<compile_context>
chip_gen: v7x
topology: tpu7x:2x2x1
jax: 0.10.0
libtpu: 0.0.40
codegen_flags: <defaults>
</compile_context>

<pallas_src>
import jax
import jax.numpy as jnp
from jax.experimental import pallas as pl
from jax.experimental.pallas import tpu as pltpu

# ---- model hyper-params (from the module __init__) ----
HIDDEN_SIZE = 256
CLF_DIM = 256
NODE_EMBED_DIM = 128
RNN_IN = NODE_EMBED_DIM + 2      # 130

SELU_SCALE = 1.0507009873554805
SELU_ALPHA = 1.6732632423543772


def _selu(x):
    # Equivalent to the module's Selu: scale*relu(x) + scale*alpha*elu(-relu(-x))
    return SELU_SCALE * (
        jnp.maximum(x, 0.0) + SELU_ALPHA * (jnp.exp(jnp.minimum(x, 0.0)) - 1.0)
    )


# ---------------------------------------------------------------------------
# Single fused kernel:
#   layer-0 LSTM (hoisted x-projection + masked recurrence, packed semantics)
#   -> layer-1 LSTM (hoisted x-projection over stored h0 sequence + recurrence)
#   -> spectral MLP (3x Linear+Selu) -> fc0 split matmul -> Selu -> fc1
#   -> log_softmax
# ---------------------------------------------------------------------------
def fused_kernel(embeds_ref, lens_ref,
                 wih0_ref, whh0_ref, b0_ref,
                 wih1_hbm, whh1_hbm, b1_ref,
                 spctr_ref,
                 ws0_ref, bs0_ref, ws1_ref, bs1_ref, ws2_ref, bs2_ref,
                 w0h_hbm, w0s_ref, b0c_ref, w1c_ref, b1c_ref,
                 out_ref,
                 wih1_vmem, whh1_vmem, w0h_vmem, xproj_ref, h0seq_ref, dma_sem):
    TB = embeds_ref.shape[0]
    B = lens_ref.shape[0]
    T = TB // B
    H = HIDDEN_SIZE

    # P4-lite: stream the layer-1 / fc0 weights (HBM -> VMEM scratch) behind the
    # layer-0 work; wait only right before first use.
    cp_wih1 = pltpu.make_async_copy(wih1_hbm, wih1_vmem, dma_sem.at[0])
    cp_whh1 = pltpu.make_async_copy(whh1_hbm, whh1_vmem, dma_sem.at[1])
    cp_w0h = pltpu.make_async_copy(w0h_hbm, w0h_vmem, dma_sem.at[2])
    cp_wih1.start()
    cp_whh1.start()
    cp_w0h.start()

    lens = lens_ref[...]                                   # (B, 1) int32

    # ---- layer-0 input projection, hoisted out of the recurrence (one M=T*B
    # matmul instead of T matmuls at M=B). f32: K=130 is the only unaligned K.
    xproj_ref[...] = (
        jnp.dot(embeds_ref[...], wih0_ref[...],
                preferred_element_type=jnp.float32) + b0_ref[...])

    whh0 = whh0_ref[...]                                   # (H, 4H) bf16, hoisted

    def gates_to_state(g, c):
        i = jax.nn.sigmoid(g[:, 0:H])
        f = jax.nn.sigmoid(g[:, H:2 * H])
        gg = jnp.tanh(g[:, 2 * H:3 * H])
        o = jax.nn.sigmoid(g[:, 3 * H:4 * H])
        c_new = f * c + i * gg
        h_new = o * jnp.tanh(c_new)
        return h_new, c_new

    # ---- layer-0 recurrence: only h0 @ Whh0 on the serial path ----
    # T is static & small -> plain unrolled Python loop (static slices).
    # TODO(synk): if bundle dumps show vreg spills at larger T, cap the unroll.
    h0 = jnp.zeros((B, H), jnp.float32)
    c0 = jnp.zeros((B, H), jnp.float32)
    for t in range(T):
        g = (xproj_ref[pl.ds(t * B, B), :]
             + jnp.dot(h0.astype(jnp.bfloat16), whh0,
                       preferred_element_type=jnp.float32))
        nh0, nc0 = gates_to_state(g, c0)
        mask = t < lens                                    # (B,1) broadcasts over H
        h0 = jnp.where(mask, nh0, h0)
        c0 = jnp.where(mask, nc0, c0)
        h0seq_ref[pl.ds(t * B, B), :] = h0                 # masked h0 feeds layer 1

    # ---- layer-1 input projection over the whole h0 sequence (hoisted) ----
    cp_wih1.wait()
    xproj_ref[...] = (
        jnp.dot(h0seq_ref[...].astype(jnp.bfloat16), wih1_vmem[...],
                preferred_element_type=jnp.float32) + b1_ref[...])

    # ---- layer-1 recurrence ----
    cp_whh1.wait()
    whh1 = whh1_vmem[...]                                  # (H, 4H) bf16, hoisted
    h1 = jnp.zeros((B, H), jnp.float32)
    c1 = jnp.zeros((B, H), jnp.float32)
    for t in range(T):
        g = (xproj_ref[pl.ds(t * B, B), :]
             + jnp.dot(h1.astype(jnp.bfloat16), whh1,
                       preferred_element_type=jnp.float32))
        nh1, nc1 = gates_to_state(g, c1)
        mask = t < lens
        h1 = jnp.where(mask, nh1, h1)
        c1 = jnp.where(mask, nc1, c1)

    # ---- spectral MLP (tiny, f32) ----
    s = _selu(jnp.dot(spctr_ref[...], ws0_ref[...],
                      preferred_element_type=jnp.float32) + bs0_ref[...])
    s = _selu(jnp.dot(s, ws1_ref[...],
                      preferred_element_type=jnp.float32) + bs1_ref[...])
    s = _selu(jnp.dot(s, ws2_ref[...],
                      preferred_element_type=jnp.float32) + bs2_ref[...])

    # ---- fc0 over cat([hn, s], -1) as a split matmul, then fc1 + log_softmax ----
    cp_w0h.wait()
    z = (jnp.dot(h1.astype(jnp.bfloat16), w0h_vmem[...],
                 preferred_element_type=jnp.float32)
         + jnp.dot(s, w0s_ref[...], preferred_element_type=jnp.float32)
         + b0c_ref[...])
    z = _selu(z)

    logits = (jnp.dot(z, w1c_ref[...], preferred_element_type=jnp.float32)
              + b1c_ref[...])
    m = jnp.max(logits, axis=-1, keepdims=True)
    lse = m + jnp.log(jnp.sum(jnp.exp(logits - m), axis=-1, keepdims=True))
    out_ref[...] = logits - lse


_VMEM = pl.BlockSpec(memory_space=pltpu.MemorySpace.VMEM)
_HBM = pl.BlockSpec(memory_space=pl.ANY)


def forward(params, x_node, x_t, x_spctr, seq_lengths, num_class):
    # glue: embedding gather + feature concat (time-major), flattened to rows.
    # TODO(synk): fold gather/concat into the kernel at production T*B.
    emb = jnp.take(params["emb"], x_node, axis=0)             # (T, B, 128)
    embeds = jnp.concatenate([emb, x_t], axis=-1)              # (T, B, 130)
    T, B, F = embeds.shape
    embeds = embeds.reshape(T * B, F)                          # (T*B, 130)
    lens = seq_lengths.astype(jnp.int32).reshape(-1, 1)        # (B, 1)

    inputs = (embeds, lens,
              params["wih0"], params["whh0_bf16"], params["b0_lstm"],
              params["wih1_bf16"], params["whh1_bf16"], params["b1_lstm"],
              x_spctr,
              params["ws0"], params["bs0"], params["ws1"], params["bs1"],
              params["ws2"], params["bs2"],
              params["w0h_bf16"], params["w0s"], params["b0"],
              params["w1"], params["b1"])
    in_specs = [_VMEM, _VMEM,
                _VMEM, _VMEM, _VMEM,
                _HBM, _HBM, _VMEM,        # wih1 / whh1 streamed manually
                _VMEM,
                _VMEM, _VMEM, _VMEM, _VMEM, _VMEM, _VMEM,
                _HBM, _VMEM, _VMEM,       # w0h streamed manually
                _VMEM, _VMEM]

    H = HIDDEN_SIZE
    scratch = [
        pltpu.VMEM((H, 4 * H), jnp.bfloat16),      # wih1 staging
        pltpu.VMEM((H, 4 * H), jnp.bfloat16),      # whh1 staging
        pltpu.VMEM((H, CLF_DIM), jnp.bfloat16),    # w0h staging
        pltpu.VMEM((T * B, 4 * H), jnp.float32),   # xproj (reused by both layers)
        pltpu.VMEM((T * B, H), jnp.float32),       # masked layer-0 output sequence
        pltpu.SemaphoreType.DMA((3,)),
    ]

    return pl.pallas_call(
        fused_kernel,
        out_shape=jax.ShapeDtypeStruct((B, num_class), jnp.float32),
        in_specs=in_specs,
        out_specs=_VMEM,
        scratch_shapes=scratch,
    )(*inputs)


# ---------------------------------------------------------------------------
# Parameter construction (deterministic, synthetic). f32 masters feed the
# reference; bf16 copies of the big tile-aligned weights feed the kernel.
# ---------------------------------------------------------------------------
def make_params(key, num_node, num_class):
    H = HIDDEN_SIZE
    s0, s1, s2 = num_node // 4, num_node // 8, num_node // 16
    shapes = {
        "emb": (num_node + 1, NODE_EMBED_DIM),
        "wih0": (RNN_IN, 4 * H), "whh0": (H, 4 * H), "b0_lstm": (1, 4 * H),
        "wih1": (H, 4 * H), "whh1": (H, 4 * H), "b1_lstm": (1, 4 * H),
        "ws0": (num_node, s0), "bs0": (1, s0),
        "ws1": (s0, s1), "bs1": (1, s1),
        "ws2": (s1, s2), "bs2": (1, s2),
        "w0h": (H, CLF_DIM), "w0s": (s2, CLF_DIM), "b0": (1, CLF_DIM),
        "w1": (CLF_DIM, num_class), "b1": (1, num_class),
    }
    keys = jax.random.split(key, len(shapes))
    p = {name: 0.05 * jax.random.normal(k, shp, jnp.float32)
         for (name, shp), k in zip(shapes.items(), keys)}
    for name in ("whh0", "wih1", "whh1", "w0h"):
        p[name + "_bf16"] = p[name].astype(jnp.bfloat16)
    return p


# ---------------------------------------------------------------------------
# Pure-JAX f32 reference (same math, f32 weights) for a sanity check.
# ---------------------------------------------------------------------------
def forward_ref(params, x_node, x_t, x_spctr, seq_lengths, num_class):
    emb = jnp.take(params["emb"], x_node, axis=0)
    embeds = jnp.concatenate([emb, x_t], axis=-1)
    T, B, _ = embeds.shape
    H = HIDDEN_SIZE
    lens = seq_lengths.astype(jnp.int32).reshape(-1, 1)

    def cell(x, h, c, wih, whh, b):
        g = x @ wih + h @ whh + b
        i, f, gg, o = jnp.split(g, 4, axis=-1)
        c = jax.nn.sigmoid(f) * c + jax.nn.sigmoid(i) * jnp.tanh(gg)
        h = jax.nn.sigmoid(o) * jnp.tanh(c)
        return h, c

    h0 = c0 = h1 = c1 = jnp.zeros((B, H), jnp.float32)
    for t in range(T):
        nh0, nc0 = cell(embeds[t], h0, c0, params["wih0"], params["whh0"], params["b0_lstm"])
        nh1, nc1 = cell(nh0, h1, c1, params["wih1"], params["whh1"], params["b1_lstm"])
        m = t < lens
        h0 = jnp.where(m, nh0, h0); c0 = jnp.where(m, nc0, c0)
        h1 = jnp.where(m, nh1, h1); c1 = jnp.where(m, nc1, c1)

    s = _selu(x_spctr @ params["ws0"] + params["bs0"])
    s = _selu(s @ params["ws1"] + params["bs1"])
    s = _selu(s @ params["ws2"] + params["bs2"])
    z = _selu(h1 @ params["w0h"] + s @ params["w0s"] + params["b0"])
    logits = z @ params["w1"] + params["b1"]
    return jax.nn.log_softmax(logits, axis=-1)


if __name__ == "__main__":
    NUM_NODE = 64
    NUM_CLASS = 10
    T, B = 8, 8

    key = jax.random.PRNGKey(0)
    kp, kn, kt, ks = jax.random.split(key, 4)

    params = make_params(kp, NUM_NODE, NUM_CLASS)

    x_node = jax.random.randint(kn, (T, B), 0, NUM_NODE + 1, dtype=jnp.int32)
    x_t = jax.random.normal(kt, (T, B, 2), jnp.float32)
    x_spctr = jax.random.normal(ks, (B, NUM_NODE), jnp.float32)
    # descending lengths, as pack_padded_sequence requires
    seq_lengths = jnp.array([8, 7, 6, 5, 4, 3, 2, 1], dtype=jnp.int32)

    out = forward(params, x_node, x_t, x_spctr, seq_lengths, NUM_CLASS)
    out = jax.block_until_ready(out)

    ref = forward_ref(params, x_node, x_t, x_spctr, seq_lengths, NUM_CLASS)
    assert out.shape == (B, NUM_CLASS)
    # bf16 weights + bf16-cast activations at the big dots -> loosen vs f32 ref.
    assert jnp.allclose(out, ref, rtol=2e-2, atol=2e-2), "mismatch vs pure-JAX reference"

    print("KERNEL_OK")
</pallas_src>

<mosaic_0001>
module attributes {stable_mosaic.version = 11 : i64} {
  func.func @fused_kernel(%arg0: memref<64x130xf32, #tpu.memory_space<vmem>>, %arg1: memref<8x1xi32, #tpu.memory_space<vmem>>, %arg2: memref<130x1024xf32, #tpu.memory_space<vmem>>, %arg3: memref<256x1024xbf16, #tpu.memory_space<vmem>>, %arg4: memref<1x1024xf32, #tpu.memory_space<vmem>>, %arg5: memref<256x1024xbf16, #tpu.memory_space<any>>, %arg6: memref<256x1024xbf16, #tpu.memory_space<any>>, %arg7: memref<1x1024xf32, #tpu.memory_space<vmem>>, %arg8: memref<8x64xf32, #tpu.memory_space<vmem>>, %arg9: memref<64x16xf32, #tpu.memory_space<vmem>>, %arg10: memref<1x16xf32, #tpu.memory_space<vmem>>, %arg11: memref<16x8xf32, #tpu.memory_space<vmem>>, %arg12: memref<1x8xf32, #tpu.memory_space<vmem>>, %arg13: memref<8x4xf32, #tpu.memory_space<vmem>>, %arg14: memref<1x4xf32, #tpu.memory_space<vmem>>, %arg15: memref<256x256xbf16, #tpu.memory_space<any>>, %arg16: memref<4x256xf32, #tpu.memory_space<vmem>>, %arg17: memref<1x256xf32, #tpu.memory_space<vmem>>, %arg18: memref<256x10xf32, #tpu.memory_space<vmem>>, %arg19: memref<1x10xf32, #tpu.memory_space<vmem>>, %arg20: memref<8x10xf32, #tpu.memory_space<vmem>>, %arg21: memref<256x1024xbf16, #tpu.memory_space<vmem>>, %arg22: memref<256x1024xbf16, #tpu.memory_space<vmem>>, %arg23: memref<256x256xbf16, #tpu.memory_space<vmem>>, %arg24: memref<64x1024xf32, #tpu.memory_space<vmem>>, %arg25: memref<64x256xf32, #tpu.memory_space<vmem>>, %arg26: memref<3x!tpu.dma_semaphore, #tpu.memory_space<semaphore_mem>>) attributes {dimension_semantics = [], scalar_prefetch = 0 : i64, scratch_operands = 6 : i64, tpu.core_type = #tpu.core_type<tc>} {
    %c0_i32 = arith.constant 0 : i32
    %0 = tpu.memref_slice %arg26[%c0_i32] : memref<3x!tpu.dma_semaphore, #tpu.memory_space<semaphore_mem>> -> memref<1x!tpu.dma_semaphore, #tpu.memory_space<semaphore_mem>>
    %1 = tpu.memref_squeeze %0 : memref<1x!tpu.dma_semaphore, #tpu.memory_space<semaphore_mem>> -> memref<!tpu.dma_semaphore, #tpu.memory_space<semaphore_mem>>
    tpu.enqueue_dma source(%arg5 : memref<256x1024xbf16, #tpu.memory_space<any>>) target(%arg21 : memref<256x1024xbf16, #tpu.memory_space<vmem>>) target_semaphore(%1 : memref<!tpu.dma_semaphore, #tpu.memory_space<semaphore_mem>>)
    %c1_i32 = arith.constant 1 : i32
    %2 = tpu.memref_slice %arg26[%c1_i32] : memref<3x!tpu.dma_semaphore, #tpu.memory_space<semaphore_mem>> -> memref<1x!tpu.dma_semaphore, #tpu.memory_space<semaphore_mem>>
    %3 = tpu.memref_squeeze %2 : memref<1x!tpu.dma_semaphore, #tpu.memory_space<semaphore_mem>> -> memref<!tpu.dma_semaphore, #tpu.memory_space<semaphore_mem>>
    tpu.enqueue_dma source(%arg6 : memref<256x1024xbf16, #tpu.memory_space<any>>) target(%arg22 : memref<256x1024xbf16, #tpu.memory_space<vmem>>) target_semaphore(%3 : memref<!tpu.dma_semaphore, #tpu.memory_space<semaphore_mem>>)
    %c2_i32 = arith.constant 2 : i32
    %4 = tpu.memref_slice %arg26[%c2_i32] : memref<3x!tpu.dma_semaphore, #tpu.memory_space<semaphore_mem>> -> memref<1x!tpu.dma_semaphore, #tpu.memory_space<semaphore_mem>>
    %5 = tpu.memref_squeeze %4 : memref<1x!tpu.dma_semaphore, #tpu.memory_space<semaphore_mem>> -> memref<!tpu.dma_semaphore, #tpu.memory_space<semaphore_mem>>
    tpu.enqueue_dma source(%arg15 : memref<256x256xbf16, #tpu.memory_space<any>>) target(%arg23 : memref<256x256xbf16, #tpu.memory_space<vmem>>) target_semaphore(%5 : memref<!tpu.dma_semaphore, #tpu.memory_space<semaphore_mem>>)
    %c0 = arith.constant 0 : index
    %c0_0 = arith.constant 0 : index
    %6 = vector.load %arg1[%c0, %c0_0] : memref<8x1xi32, #tpu.memory_space<vmem>>, vector<8x1xi32>
    %c0_1 = arith.constant 0 : index
    %c0_2 = arith.constant 0 : index
    %7 = vector.load %arg0[%c0_1, %c0_2] : memref<64x130xf32, #tpu.memory_space<vmem>>, vector<64x130xf32>
    %c0_3 = arith.constant 0 : index
    %c0_4 = arith.constant 0 : index
    %8 = vector.load %arg2[%c0_3, %c0_4] : memref<130x1024xf32, #tpu.memory_space<vmem>>, vector<130x1024xf32>
    %cst = arith.constant dense<0.000000e+00> : vector<64x1024xf32>
    %9 = tpu.matmul %7, %8, %cst {dimension_numbers = #tpu.dot_dimension_numbers<[1], [0], [0], [1], [0, 0, 1, 1], [], []>} : vector<64x130xf32>, vector<130x1024xf32>, vector<64x1024xf32> -> vector<64x1024xf32>
    %c0_5 = arith.constant 0 : index
    %c0_6 = arith.constant 0 : index
    %10 = vector.load %arg4[%c0_5, %c0_6] : memref<1x1024xf32, #tpu.memory_space<vmem>>, vector<1x1024xf32>
    %11 = vector.broadcast %10 : vector<1x1024xf32> to vector<64x1024xf32>
    %12 = arith.addf %9, %11 : vector<64x1024xf32>
    %c0_7 = arith.constant 0 : index
    %c0_8 = arith.constant 0 : index
    %13 = vector.load %arg24[%c0_7, %c0_8] : memref<64x1024xf32, #tpu.memory_space<vmem>>, vector<64x1024xf32>
    tpu.vector_store %arg24[%c0_7, %c0_8], %12 {strides = array<i32>} : memref<64x1024xf32, #tpu.memory_space<vmem>>, vector<64x1024xf32>,
    %c0_9 = arith.constant 0 : index
    %c0_10 = arith.constant 0 : index
    %14 = vector.load %arg3[%c0_9, %c0_10] : memref<256x1024xbf16, #tpu.memory_space<vmem>>, vector<256x1024xbf16>
    %cst_11 = arith.constant 0.000000e+00 : f32
    %15 = vector.broadcast %cst_11 : f32 to vector<8x256xf32>
    %cst_12 = arith.constant 0.000000e+00 : f32
    %16 = vector.broadcast %cst_12 : f32 to vector<8x256xf32>
    %c0_13 = arith.constant 0 : index
    %c0_14 = arith.constant 0 : index
    %17 = vector.load %arg24[%c0_13, %c0_14] : memref<64x1024xf32, #tpu.memory_space<vmem>>, vector<8x1024xf32>
    %18 = arith.truncf %15 : vector<8x256xf32> to vector<8x256xbf16>
    %cst_15 = arith.constant dense<0.000000e+00> : vector<8x1024xf32>
    %19 = tpu.matmul %18, %14, %cst_15 {dimension_numbers = #tpu.dot_dimension_numbers<[1], [0], [0], [1], [0, 0, 1, 1], [], []>} : vector<8x256xbf16>, vector<256x1024xbf16>, vector<8x1024xf32> -> vector<8x1024xf32>
    %20 = arith.addf %17, %19 : vector<8x1024xf32>
    %21 = vector.extract_strided_slice %20 {offsets = [0, 0], sizes = [8, 256], strides = [1, 1]} : vector<8x1024xf32> to vector<8x256xf32>
    %22 = arith.negf %21 : vector<8x256xf32>
    %23 = math.exp %22 : vector<8x256xf32>
    %cst_16 = arith.constant 1.000000e+00 : f32
    %24 = vector.broadcast %cst_16 : f32 to vector<8x256xf32>
    %25 = arith.addf %24, %23 : vector<8x256xf32>
    %26 = arith.divf %24, %25 : vector<8x256xf32>
    %27 = vector.extract_strided_slice %20 {offsets = [0, 256], sizes = [8, 256], strides = [1, 1]} : vector<8x1024xf32> to vector<8x256xf32>
    %28 = arith.negf %27 : vector<8x256xf32>
    %29 = math.exp %28 : vector<8x256xf32>
    %cst_17 = arith.constant 1.000000e+00 : f32
    %30 = vector.broadcast %cst_17 : f32 to vector<8x256xf32>
    %31 = arith.addf %30, %29 : vector<8x256xf32>
    %32 = arith.divf %30, %31 : vector<8x256xf32>
    %33 = vector.extract_strided_slice %20 {offsets = [0, 512], sizes = [8, 256], strides = [1, 1]} : vector<8x1024xf32> to vector<8x256xf32>
    %34 = math.tanh %33 : vector<8x256xf32>
    %35 = vector.extract_strided_slice %20 {offsets = [0, 768], sizes = [8, 256], strides = [1, 1]} : vector<8x1024xf32> to vector<8x256xf32>
    %36 = arith.negf %35 : vector<8x256xf32>
    %37 = math.exp %36 : vector<8x256xf32>
    %cst_18 = arith.constant 1.000000e+00 : f32
    %38 = vector.broadcast %cst_18 : f32 to vector<8x256xf32>
    %39 = arith.addf %38, %37 : vector<8x256xf32>
    %40 = arith.divf %38, %39 : vector<8x256xf32>
    %41 = arith.mulf %32, %16 : vector<8x256xf32>
    %42 = arith.mulf %26, %34 : vector<8x256xf32>
    %43 = arith.addf %41, %42 : vector<8x256xf32>
    %44 = math.tanh %43 : vector<8x256xf32>
    %45 = arith.mulf %40, %44 : vector<8x256xf32>
    %c0_i32_19 = arith.constant 0 : i32
    %46 = vector.broadcast %c0_i32_19 : i32 to vector<8x1xi32>
    %47 = arith.cmpi sgt, %6, %46 : vector<8x1xi32>
    %48 = vector.shape_cast %47 : vector<8x1xi1> to vector<8x1xi1>
    %49 = vector.broadcast %48 : vector<8x1xi1> to vector<8x256xi1>
    %50 = arith.select %49, %45, %15 : vector<8x256xi1>, vector<8x256xf32>
    %51 = vector.shape_cast %47 : vector<8x1xi1> to vector<8x1xi1>
    %52 = vector.broadcast %51 : vector<8x1xi1> to vector<8x256xi1>
    %53 = arith.select %52, %43, %16 : vector<8x256xi1>, vector<8x256xf32>
    %c0_20 = arith.constant 0 : index
    %c0_21 = arith.constant 0 : index
    %54 = vector.load %arg25[%c0_20, %c0_21] : memref<64x256xf32, #tpu.memory_space<vmem>>, vector<8x256xf32>
    tpu.vector_store %arg25[%c0_20, %c0_21], %50 {strides = array<i32>} : memref<64x256xf32, #tpu.memory_space<vmem>>, vector<8x256xf32>,
    %c8 = arith.constant 8 : index
    %c0_22 = arith.constant 0 : index
    %55 = vector.load %arg24[%c8, %c0_22] : memref<64x1024xf32, #tpu.memory_space<vmem>>, vector<8x1024xf32>
    %56 = arith.truncf %50 : vector<8x256xf32> to vector<8x256xbf16>
    %cst_23 = arith.constant dense<0.000000e+00> : vector<8x1024xf32>
    %57 = tpu.matmul %56, %14, %cst_23 {dimension_numbers = #tpu.dot_dimension_numbers<[1], [0], [0], [1], [0, 0, 1, 1], [], []>} : vector<8x256xbf16>, vector<256x1024xbf16>, vector<8x1024xf32> -> vector<8x1024xf32>
    %58 = arith.addf %55, %57 : vector<8x1024xf32>
    %59 = vector.extract_strided_slice %58 {offsets = [0, 0], sizes = [8, 256], strides = [1, 1]} : vector<8x1024xf32> to vector<8x256xf32>
    %60 = arith.negf %59 : vector<8x256xf32>
    %61 = math.exp %60 : vector<8x256xf32>
    %cst_24 = arith.constant 1.000000e+00 : f32
    %62 = vector.broadcast %cst_24 : f32 to vector<8x256xf32>
    %63 = arith.addf %62, %61 : vector<8x256xf32>
    %64 = arith.divf %62, %63 : vector<8x256xf32>
    %65 = vector.extract_strided_slice %58 {offsets = [0, 256], sizes = [8, 256], strides = [1, 1]} : vector<8x1024xf32> to vector<8x256xf32>
    %66 = arith.negf %65 : vector<8x256xf32>
    %67 = math.exp %66 : vector<8x256xf32>
    %cst_25 = arith.constant 1.000000e+00 : f32
    %68 = vector.broadcast %cst_25 : f32 to vector<8x256xf32>
    %69 = arith.addf %68, %67 : vector<8x256xf32>
    %70 = arith.divf %68, %69 : vector<8x256xf32>
    %71 = vector.extract_strided_slice %58 {offsets = [0, 512], sizes = [8, 256], strides = [1, 1]} : vector<8x1024xf32> to vector<8x256xf32>
    %72 = math.tanh %71 : vector<8x256xf32>
    %73 = vector.extract_strided_slice %58 {offsets = [0, 768], sizes = [8, 256], strides = [1, 1]} : vector<8x1024xf32> to vector<8x256xf32>
    %74 = arith.negf %73 : vector<8x256xf32>
    %75 = math.exp %74 : vector<8x256xf32>
    %cst_26 = arith.constant 1.000000e+00 : f32
    %76 = vector.broadcast %cst_26 : f32 to vector<8x256xf32>
    %77 = arith.addf %76, %75 : vector<8x256xf32>
    %78 = arith.divf %76, %77 : vector<8x256xf32>
    %79 = arith.mulf %70, %53 : vector<8x256xf32>
    %80 = arith.mulf %64, %72 : vector<8x256xf32>
    %81 = arith.addf %79, %80 : vector<8x256xf32>
    %82 = math.tanh %81 : vector<8x256xf32>
    %83 = arith.mulf %78, %82 : vector<8x256xf32>
    %c1_i32_27 = arith.constant 1 : i32
    %84 = vector.broadcast %c1_i32_27 : i32 to vector<8x1xi32>
    %85 = arith.cmpi sgt, %6, %84 : vector<8x1xi32>
    %86 = vector.shape_cast %85 : vector<8x1xi1> to vector<8x1xi1>
    %87 = vector.broadcast %86 : vector<8x1xi1> to vector<8x256xi1>
    %88 = arith.select %87, %83, %50 : vector<8x256xi1>, vector<8x256xf32>
    %89 = vector.shape_cast %85 : vector<8x1xi1> to vector<8x1xi1>
    %90 = vector.broadcast %89 : vector<8x1xi1> to vector<8x256xi1>
    %91 = arith.select %90, %81, %53 : vector<8x256xi1>, vector<8x256xf32>
    %c8_28 = arith.constant 8 : index
    %c0_29 = arith.constant 0 : index
    %92 = vector.load %arg25[%c8_28, %c0_29] : memref<64x256xf32, #tpu.memory_space<vmem>>, vector<8x256xf32>
    tpu.vector_store %arg25[%c8_28, %c0_29], %88 {strides = array<i32>} : memref<64x256xf32, #tpu.memory_space<vmem>>, vector<8x256xf32>,
    %c16 = arith.constant 16 : index
    %c0_30 = arith.constant 0 : index
    %93 = vector.load %arg24[%c16, %c0_30] : memref<64x1024xf32, #tpu.memory_space<vmem>>, vector<8x1024xf32>
    %94 = arith.truncf %88 : vector<8x256xf32> to vector<8x256xbf16>
    %cst_31 = arith.constant dense<0.000000e+00> : vector<8x1024xf32>
    %95 = tpu.matmul %94, %14, %cst_31 {dimension_numbers = #tpu.dot_dimension_numbers<[1], [0], [0], [1], [0, 0, 1, 1], [], []>} : vector<8x256xbf16>, vector<256x1024xbf16>, vector<8x1024xf32> -> vector<8x1024xf32>
    %96 = arith.addf %93, %95 : vector<8x1024xf32>
    %97 = vector.extract_strided_slice %96 {offsets = [0, 0], sizes = [8, 256], strides = [1, 1]} : vector<8x1024xf32> to vector<8x256xf32>
    %98 = arith.negf %97 : vector<8x256xf32>
    %99 = math.exp %98 : vector<8x256xf32>
    %cst_32 = arith.constant 1.000000e+00 : f32
    %100 = vector.broadcast %cst_32 : f32 to vector<8x256xf32>
    %101 = arith.addf %100, %99 : vector<8x256xf32>
    %102 = arith.divf %100, %101 : vector<8x256xf32>
    %103 = vector.extract_strided_slice %96 {offsets = [0, 256], sizes = [8, 256], strides = [1, 1]} : vector<8x1024xf32> to vector<8x256xf32>
    %104 = arith.negf %103 : vector<8x256xf32>
    %105 = math.exp %104 : vector<8x256xf32>
    %cst_33 = arith.constant 1.000000e+00 : f32
    %106 = vector.broadcast %cst_33 : f32 to vector<8x256xf32>
    %107 = arith.addf %106, %105 : vector<8x256xf32>
    %108 = arith.divf %106, %107 : vector<8x256xf32>
    %109 = vector.extract_strided_slice %96 {offsets = [0, 512], sizes = [8, 256], strides = [1, 1]} : vector<8x1024xf32> to vector<8x256xf32>
    %110 = math.tanh %109 : vector<8x256xf32>
    %111 = vector.extract_strided_slice %96 {offsets = [0, 768], sizes = [8, 256], strides = [1, 1]} : vector<8x1024xf32> to vector<8x256xf32>
    %112 = arith.negf %111 : vector<8x256xf32>
    %113 = math.exp %112 : vector<8x256xf32>
    %cst_34 = arith.constant 1.000000e+00 : f32
    %114 = vector.broadcast %cst_34 : f32 to vector<8x256xf32>
    %115 = arith.addf %114, %113 : vector<8x256xf32>
    %116 = arith.divf %114, %115 : vector<8x256xf32>
    %117 = arith.mulf %108, %91 : vector<8x256xf32>
    %118 = arith.mulf %102, %110 : vector<8x256xf32>
    %119 = arith.addf %117, %118 : vector<8x256xf32>
    %120 = math.tanh %119 : vector<8x256xf32>
    %121 = arith.mulf %116, %120 : vector<8x256xf32>
    %c2_i32_35 = arith.constant 2 : i32
    %122 = vector.broadcast %c2_i32_35 : i32 to vector<8x1xi32>
    %123 = arith.cmpi sgt, %6, %122 : vector<8x1xi32>
    %124 = vector.shape_cast %123 : vector<8x1xi1> to vector<8x1xi1>
    %125 = vector.broadcast %124 : vector<8x1xi1> to vector<8x256xi1>
    %126 = arith.select %125, %121, %88 : vector<8x256xi1>, vector<8x256xf32>
    %127 = vector.shape_cast %123 : vector<8x1xi1> to vector<8x1xi1>
    %128 = vector.broadcast %127 : vector<8x1xi1> to vector<8x256xi1>
    %129 = arith.select %128, %119, %91 : vector<8x256xi1>, vector<8x256xf32>
    %c16_36 = arith.constant 16 : index
    %c0_37 = arith.constant 0 : index
    %130 = vector.load %arg25[%c16_36, %c0_37] : memref<64x256xf32, #tpu.memory_space<vmem>>, vector<8x256xf32>
    tpu.vector_store %arg25[%c16_36, %c0_37], %126 {strides = array<i32>} : memref<64x256xf32, #tpu.memory_space<vmem>>, vector<8x256xf32>,
    %c24 = arith.constant 24 : index
    %c0_38 = arith.constant 0 : index
    %131 = vector.load %arg24[%c24, %c0_38] : memref<64x1024xf32, #tpu.memory_space<vmem>>, vector<8x1024xf32>
    %132 = arith.truncf %126 : vector<8x256xf32> to vector<8x256xbf16>
    %cst_39 = arith.constant dense<0.000000e+00> : vector<8x1024xf32>
    %133 = tpu.matmul %132, %14, %cst_39 {dimension_numbers = #tpu.dot_dimension_numbers<[1], [0], [0], [1], [0, 0, 1, 1], [], []>} : vector<8x256xbf16>, vector<256x1024xbf16>, vector<8x1024xf32> -> vector<8x1024xf32>
    %134 = arith.addf %131, %133 : vector<8x1024xf32>
    %135 = vector.extract_strided_slice %134 {offsets = [0, 0], sizes = [8, 256], strides = [1, 1]} : vector<8x1024xf32> to vector<8x256xf32>
    %136 = arith.negf %135 : vector<8x256xf32>
    %137 = math.exp %136 : vector<8x256xf32>
    %cst_40 = arith.constant 1.000000e+00 : f32
    %138 = vector.broadcast %cst_40 : f32 to vector<8x256xf32>
    %139 = arith.addf %138, %137 : vector<8x256xf32>
    %140 = arith.divf %138, %139 : vector<8x256xf32>
    %141 = vector.extract_strided_slice %134 {offsets = [0, 256], sizes = [8, 256], strides = [1, 1]} : vector<8x1024xf32> to vector<8x256xf32>
    %142 = arith.negf %141 : vector<8x256xf32>
    %143 = math.exp %142 : vector<8x256xf32>
    %cst_41 = arith.constant 1.000000e+00 : f32
    %144 = vector.broadcast %cst_41 : f32 to vector<8x256xf32>
    %145 = arith.addf %144, %143 : vector<8x256xf32>
    %146 = arith.divf %144, %145 : vector<8x256xf32>
    %147 = vector.extract_strided_slice %134 {offsets = [0, 512], sizes = [8, 256], strides = [1, 1]} : vector<8x1024xf32> to vector<8x256xf32>
    %148 = math.tanh %147 : vector<8x256xf32>
    %149 = vector.extract_strided_slice %134 {offsets = [0, 768], sizes = [8, 256], strides = [1, 1]} : vector<8x1024xf32> to vector<8x256xf32>
    %150 = arith.negf %149 : vector<8x256xf32>
    %151 = math.exp %150 : vector<8x256xf32>
    %cst_42 = arith.constant 1.000000e+00 : f32
    %152 = vector.broadcast %cst_42 : f32 to vector<8x256xf32>
    %153 = arith.addf %152, %151 : vector<8x256xf32>
    %154 = arith.divf %152, %153 : vector<8x256xf32>
    %155 = arith.mulf %146, %129 : vector<8x256xf32>
    %156 = arith.mulf %140, %148 : vector<8x256xf32>
    %157 = arith.addf %155, %156 : vector<8x256xf32>
    %158 = math.tanh %157 : vector<8x256xf32>
    %159 = arith.mulf %154, %158 : vector<8x256xf32>
    %c3_i32 = arith.constant 3 : i32
    %160 = vector.broadcast %c3_i32 : i32 to vector<8x1xi32>
    %161 = arith.cmpi sgt, %6, %160 : vector<8x1xi32>
    %162 = vector.shape_cast %161 : vector<8x1xi1> to vector<8x1xi1>
    %163 = vector.broadcast %162 : vector<8x1xi1> to vector<8x256xi1>
    %164 = arith.select %163, %159, %126 : vector<8x256xi1>, vector<8x256xf32>
    %165 = vector.shape_cast %161 : vector<8x1xi1> to vector<8x1xi1>
    %166 = vector.broadcast %165 : vector<8x1xi1> to vector<8x256xi1>
    %167 = arith.select %166, %157, %129 : vector<8x256xi1>, vector<8x256xf32>
    %c24_43 = arith.constant 24 : index
    %c0_44 = arith.constant 0 : index
    %168 = vector.load %arg25[%c24_43, %c0_44] : memref<64x256xf32, #tpu.memory_space<vmem>>, vector<8x256xf32>
    tpu.vector_store %arg25[%c24_43, %c0_44], %164 {strides = array<i32>} : memref<64x256xf32, #tpu.memory_space<vmem>>, vector<8x256xf32>,
    %c32 = arith.constant 32 : index
    %c0_45 = arith.constant 0 : index
    %169 = vector.load %arg24[%c32, %c0_45] : memref<64x1024xf32, #tpu.memory_space<vmem>>, vector<8x1024xf32>
    %170 = arith.truncf %164 : vector<8x256xf32> to vector<8x256xbf16>
    %cst_46 = arith.constant dense<0.000000e+00> : vector<8x1024xf32>
    %171 = tpu.matmul %170, %14, %cst_46 {dimension_numbers = #tpu.dot_dimension_numbers<[1], [0], [0], [1], [0, 0, 1, 1], [], []>} : vector<8x256xbf16>, vector<256x1024xbf16>, vector<8x1024xf32> -> vector<8x1024xf32>
    %172 = arith.addf %169, %171 : vector<8x1024xf32>
    %173 = vector.extract_strided_slice %172 {offsets = [0, 0], sizes = [8, 256], strides = [1, 1]} : vector<8x1024xf32> to vector<8x256xf32>
    %174 = arith.negf %173 : vector<8x256xf32>
    %175 = math.exp %174 : vector<8x256xf32>
    %cst_47 = arith.constant 1.000000e+00 : f32
    %176 = vector.broadcast %cst_47 : f32 to vector<8x256xf32>
    %177 = arith.addf %176, %175 : vector<8x256xf32>
    %178 = arith.divf %176, %177 : vector<8x256xf32>
    %179 = vector.extract_strided_slice %172 {offsets = [0, 256], sizes = [8, 256], strides = [1, 1]} : vector<8x1024xf32> to vector<8x256xf32>
    %180 = arith.negf %179 : vector<8x256xf32>
    %181 = math.exp %180 : vector<8x256xf32>
    %cst_48 = arith.constant 1.000000e+00 : f32
    %182 = vector.broadcast %cst_48 : f32 to vector<8x256xf32>
    %183 = arith.addf %182, %181 : vector<8x256xf32>
    %184 = arith.divf %182, %183 : vector<8x256xf32>
    %185 = vector.extract_strided_slice %172 {offsets = [0, 512], sizes = [8, 256], strides = [1, 1]} : vector<8x1024xf32> to vector<8x256xf32>
    %186 = math.tanh %185 : vector<8x256xf32>
    %187 = vector.extract_strided_slice %172 {offsets = [0, 768], sizes = [8, 256], strides = [1, 1]} : vector<8x1024xf32> to vector<8x256xf32>
    %188 = arith.negf %187 : vector<8x256xf32>
    %189 = math.exp %188 : vector<8x256xf32>
    %cst_49 = arith.constant 1.000000e+00 : f32
    %190 = vector.broadcast %cst_49 : f32 to vector<8x256xf32>
    %191 = arith.addf %190, %189 : vector<8x256xf32>
    %192 = arith.divf %190, %191 : vector<8x256xf32>
    %193 = arith.mulf %184, %167 : vector<8x256xf32>
    %194 = arith.mulf %178, %186 : vector<8x256xf32>
    %195 = arith.addf %193, %194 : vector<8x256xf32>
    %196 = math.tanh %195 : vector<8x256xf32>
    %197 = arith.mulf %192, %196 : vector<8x256xf32>
    %c4_i32 = arith.constant 4 : i32
    %198 = vector.broadcast %c4_i32 : i32 to vector<8x1xi32>
    %199 = arith.cmpi sgt, %6, %198 : vector<8x1xi32>
    %200 = vector.shape_cast %199 : vector<8x1xi1> to vector<8x1xi1>
    %201 = vector.broadcast %200 : vector<8x1xi1> to vector<8x256xi1>
    %202 = arith.select %201, %197, %164 : vector<8x256xi1>, vector<8x256xf32>
    %203 = vector.shape_cast %199 : vector<8x1xi1> to vector<8x1xi1>
    %204 = vector.broadcast %203 : vector<8x1xi1> to vector<8x256xi1>
    %205 = arith.select %204, %195, %167 : vector<8x256xi1>, vector<8x256xf32>
    %c32_50 = arith.constant 32 : index
    %c0_51 = arith.constant 0 : index
    %206 = vector.load %arg25[%c32_50, %c0_51] : memref<64x256xf32, #tpu.memory_space<vmem>>, vector<8x256xf32>
    tpu.vector_store %arg25[%c32_50, %c0_51], %202 {strides = array<i32>} : memref<64x256xf32, #tpu.memory_space<vmem>>, vector<8x256xf32>,
    %c40 = arith.constant 40 : index
    %c0_52 = arith.constant 0 : index
    %207 = vector.load %arg24[%c40, %c0_52] : memref<64x1024xf32, #tpu.memory_space<vmem>>, vector<8x1024xf32>
    %208 = arith.truncf %202 : vector<8x256xf32> to vector<8x256xbf16>
    %cst_53 = arith.constant dense<0.000000e+00> : vector<8x1024xf32>
    %209 = tpu.matmul %208, %14, %cst_53 {dimension_numbers = #tpu.dot_dimension_numbers<[1], [0], [0], [1], [0, 0, 1, 1], [], []>} : vector<8x256xbf16>, vector<256x1024xbf16>, vector<8x1024xf32> -> vector<8x1024xf32>
    %210 = arith.addf %207, %209 : vector<8x1024xf32>
    %211 = vector.extract_strided_slice %210 {offsets = [0, 0], sizes = [8, 256], strides = [1, 1]} : vector<8x1024xf32> to vector<8x256xf32>
    %212 = arith.negf %211 : vector<8x256xf32>
    %213 = math.exp %212 : vector<8x256xf32>
    %cst_54 = arith.constant 1.000000e+00 : f32
    %214 = vector.broadcast %cst_54 : f32 to vector<8x256xf32>
    %215 = arith.addf %214, %213 : vector<8x256xf32>
    %216 = arith.divf %214, %215 : vector<8x256xf32>
    %217 = vector.extract_strided_slice %210 {offsets = [0, 256], sizes = [8, 256], strides = [1, 1]} : vector<8x1024xf32> to vector<8x256xf32>
    %218 = arith.negf %217 : vector<8x256xf32>
    %219 = math.exp %218 : vector<8x256xf32>
    %cst_55 = arith.constant 1.000000e+00 : f32
    %220 = vector.broadcast %cst_55 : f32 to vector<8x256xf32>
    %221 = arith.addf %220, %219 : vector<8x256xf32>
    %222 = arith.divf %220, %221 : vector<8x256xf32>
    %223 = vector.extract_strided_slice %210 {offsets = [0, 512], sizes = [8, 256], strides = [1, 1]} : vector<8x1024xf32> to vector<8x256xf32>
    %224 = math.tanh %223 : vector<8x256xf32>
    %225 = vector.extract_strided_slice %210 {offsets = [0, 768], sizes = [8, 256], strides = [1, 1]} : vector<8x1024xf32> to vector<8x256xf32>
    %226 = arith.negf %225 : vector<8x256xf32>
    %227 = math.exp %226 : vector<8x256xf32>
    %cst_56 = arith.constant 1.000000e+00 : f32
    %228 = vector.broadcast %cst_56 : f32 to vector<8x256xf32>
    %229 = arith.addf %228, %227 : vector<8x256xf32>
    %230 = arith.divf %228, %229 : vector<8x256xf32>
    %231 = arith.mulf %222, %205 : vector<8x256xf32>
    %232 = arith.mulf %216, %224 : vector<8x256xf32>
    %233 = arith.addf %231, %232 : vector<8x256xf32>
    %234 = math.tanh %233 : vector<8x256xf32>
    %235 = arith.mulf %230, %234 : vector<8x256xf32>
    %c5_i32 = arith.constant 5 : i32
    %236 = vector.broadcast %c5_i32 : i32 to vector<8x1xi32>
    %237 = arith.cmpi sgt, %6, %236 : vector<8x1xi32>
    %238 = vector.shape_cast %237 : vector<8x1xi1> to vector<8x1xi1>
    %239 = vector.broadcast %238 : vector<8x1xi1> to vector<8x256xi1>
    %240 = arith.select %239, %235, %202 : vector<8x256xi1>, vector<8x256xf32>
    %241 = vector.shape_cast %237 : vector<8x1xi1> to vector<8x1xi1>
    %242 = vector.broadcast %241 : vector<8x1xi1> to vector<8x256xi1>
    %243 = arith.select %242, %233, %205 : vector<8x256xi1>, vector<8x256xf32>
    %c40_57 = arith.constant 40 : index
    %c0_58 = arith.constant 0 : index
    %244 = vector.load %arg25[%c40_57, %c0_58] : memref<64x256xf32, #tpu.memory_space<vmem>>, vector<8x256xf32>
    tpu.vector_store %arg25[%c40_57, %c0_58], %240 {strides = array<i32>} : memref<64x256xf32, #tpu.memory_space<vmem>>, vector<8x256xf32>,
    %c48 = arith.constant 48 : index
    %c0_59 = arith.constant 0 : index
    %245 = vector.load %arg24[%c48, %c0_59] : memref<64x1024xf32, #tpu.memory_space<vmem>>, vector<8x1024xf32>
    %246 = arith.truncf %240 : vector<8x256xf32> to vector<8x256xbf16>
    %cst_60 = arith.constant dense<0.000000e+00> : vector<8x1024xf32>
    %247 = tpu.matmul %246, %14, %cst_60 {dimension_numbers = #tpu.dot_dimension_numbers<[1], [0], [0], [1], [0, 0, 1, 1], [], []>} : vector<8x256xbf16>, vector<256x1024xbf16>, vector<8x1024xf32> -> vector<8x1024xf32>
    %248 = arith.addf %245, %247 : vector<8x1024xf32>
    %249 = vector.extract_strided_slice %248 {offsets = [0, 0], sizes = [8, 256], strides = [1, 1]} : vector<8x1024xf32> to vector<8x256xf32>
    %250 = arith.negf %249 : vector<8x256xf32>
    %251 = math.exp %250 : vector<8x256xf32>
    %cst_61 = arith.constant 1.000000e+00 : f32
    %252 = vector.broadcast %cst_61 : f32 to vector<8x256xf32>
    %253 = arith.addf %252, %251 : vector<8x256xf32>
    %254 = arith.divf %252, %253 : vector<8x256xf32>
    %255 = vector.extract_strided_slice %248 {offsets = [0, 256], sizes = [8, 256], strides = [1, 1]} : vector<8x1024xf32> to vector<8x256xf32>
    %256 = arith.negf %255 : vector<8x256xf32>
    %257 = math.exp %256 : vector<8x256xf32>
    %cst_62 = arith.constant 1.000000e+00 : f32
    %258 = vector.broadcast %cst_62 : f32 to vector<8x256xf32>
    %259 = arith.addf %258, %257 : vector<8x256xf32>
    %260 = arith.divf %258, %259 : vector<8x256xf32>
    %261 = vector.extract_strided_slice %248 {offsets = [0, 512], sizes = [8, 256], strides = [1, 1]} : vector<8x1024xf32> to vector<8x256xf32>
    %262 = math.tanh %261 : vector<8x256xf32>
    %263 = vector.extract_strided_slice %248 {offsets = [0, 768], sizes = [8, 256], strides = [1, 1]} : vector<8x1024xf32> to vector<8x256xf32>
    %264 = arith.negf %263 : vector<8x256xf32>
    %265 = math.exp %264 : vector<8x256xf32>
    %cst_63 = arith.constant 1.000000e+00 : f32
    %266 = vector.broadcast %cst_63 : f32 to vector<8x256xf32>
    %267 = arith.addf %266, %265 : vector<8x256xf32>
    %268 = arith.divf %266, %267 : vector<8x256xf32>
    %269 = arith.mulf %260, %243 : vector<8x256xf32>
    %270 = arith.mulf %254, %262 : vector<8x256xf32>
    %271 = arith.addf %269, %270 : vector<8x256xf32>
    %272 = math.tanh %271 : vector<8x256xf32>
    %273 = arith.mulf %268, %272 : vector<8x256xf32>
    %c6_i32 = arith.constant 6 : i32
    %274 = vector.broadcast %c6_i32 : i32 to vector<8x1xi32>
    %275 = arith.cmpi sgt, %6, %274 : vector<8x1xi32>
    %276 = vector.shape_cast %275 : vector<8x1xi1> to vector<8x1xi1>
    %277 = vector.broadcast %276 : vector<8x1xi1> to vector<8x256xi1>
    %278 = arith.select %277, %273, %240 : vector<8x256xi1>, vector<8x256xf32>
    %279 = vector.shape_cast %275 : vector<8x1xi1> to vector<8x1xi1>
    %280 = vector.broadcast %279 : vector<8x1xi1> to vector<8x256xi1>
    %281 = arith.select %280, %271, %243 : vector<8x256xi1>, vector<8x256xf32>
    %c48_64 = arith.constant 48 : index
    %c0_65 = arith.constant 0 : index
    %282 = vector.load %arg25[%c48_64, %c0_65] : memref<64x256xf32, #tpu.memory_space<vmem>>, vector<8x256xf32>
    tpu.vector_store %arg25[%c48_64, %c0_65], %278 {strides = array<i32>} : memref<64x256xf32, #tpu.memory_space<vmem>>, vector<8x256xf32>,
    %c56 = arith.constant 56 : index
    %c0_66 = arith.constant 0 : index
    %283 = vector.load %arg24[%c56, %c0_66] : memref<64x1024xf32, #tpu.memory_space<vmem>>, vector<8x1024xf32>
    %284 = arith.truncf %278 : vector<8x256xf32> to vector<8x256xbf16>
    %cst_67 = arith.constant dense<0.000000e+00> : vector<8x1024xf32>
    %285 = tpu.matmul %284, %14, %cst_67 {dimension_numbers = #tpu.dot_dimension_numbers<[1], [0], [0], [1], [0, 0, 1, 1], [], []>} : vector<8x256xbf16>, vector<256x1024xbf16>, vector<8x1024xf32> -> vector<8x1024xf32>
    %286 = arith.addf %283, %285 : vector<8x1024xf32>
    %287 = vector.extract_strided_slice %286 {offsets = [0, 0], sizes = [8, 256], strides = [1, 1]} : vector<8x1024xf32> to vector<8x256xf32>
    %288 = arith.negf %287 : vector<8x256xf32>
    %289 = math.exp %288 : vector<8x256xf32>
    %cst_68 = arith.constant 1.000000e+00 : f32
    %290 = vector.broadcast %cst_68 : f32 to vector<8x256xf32>
    %291 = arith.addf %290, %289 : vector<8x256xf32>
    %292 = arith.divf %290, %291 : vector<8x256xf32>
    %293 = vector.extract_strided_slice %286 {offsets = [0, 256], sizes = [8, 256], strides = [1, 1]} : vector<8x1024xf32> to vector<8x256xf32>
    %294 = arith.negf %293 : vector<8x256xf32>
    %295 = math.exp %294 : vector<8x256xf32>
    %cst_69 = arith.constant 1.000000e+00 : f32
    %296 = vector.broadcast %cst_69 : f32 to vector<8x256xf32>
    %297 = arith.addf %296, %295 : vector<8x256xf32>
    %298 = arith.divf %296, %297 : vector<8x256xf32>
    %299 = vector.extract_strided_slice %286 {offsets = [0, 512], sizes = [8, 256], strides = [1, 1]} : vector<8x1024xf32> to vector<8x256xf32>
    %300 = math.tanh %299 : vector<8x256xf32>
    %301 = vector.extract_strided_slice %286 {offsets = [0, 768], sizes = [8, 256], strides = [1, 1]} : vector<8x1024xf32> to vector<8x256xf32>
    %302 = arith.negf %301 : vector<8x256xf32>
    %303 = math.exp %302 : vector<8x256xf32>
    %cst_70 = arith.constant 1.000000e+00 : f32
    %304 = vector.broadcast %cst_70 : f32 to vector<8x256xf32>
    %305 = arith.addf %304, %303 : vector<8x256xf32>
    %306 = arith.divf %304, %305 : vector<8x256xf32>
    %307 = arith.mulf %298, %281 : vector<8x256xf32>
    %308 = arith.mulf %292, %300 : vector<8x256xf32>
    %309 = arith.addf %307, %308 : vector<8x256xf32>
    %310 = math.tanh %309 : vector<8x256xf32>
    %311 = arith.mulf %306, %310 : vector<8x256xf32>
    %c7_i32 = arith.constant 7 : i32
    %312 = vector.broadcast %c7_i32 : i32 to vector<8x1xi32>
    %313 = arith.cmpi sgt, %6, %312 : vector<8x1xi32>
    %314 = vector.shape_cast %313 : vector<8x1xi1> to vector<8x1xi1>
    %315 = vector.broadcast %314 : vector<8x1xi1> to vector<8x256xi1>
    %316 = arith.select %315, %311, %278 : vector<8x256xi1>, vector<8x256xf32>
    %c56_71 = arith.constant 56 : index
    %c0_72 = arith.constant 0 : index
    %317 = vector.load %arg25[%c56_71, %c0_72] : memref<64x256xf32, #tpu.memory_space<vmem>>, vector<8x256xf32>
    tpu.vector_store %arg25[%c56_71, %c0_72], %316 {strides = array<i32>} : memref<64x256xf32, #tpu.memory_space<vmem>>, vector<8x256xf32>,
    %c0_i32_73 = arith.constant 0 : i32
    %318 = tpu.memref_slice %arg26[%c0_i32_73] : memref<3x!tpu.dma_semaphore, #tpu.memory_space<semaphore_mem>> -> memref<1x!tpu.dma_semaphore, #tpu.memory_space<semaphore_mem>>
    %319 = tpu.memref_squeeze %318 : memref<1x!tpu.dma_semaphore, #tpu.memory_space<semaphore_mem>> -> memref<!tpu.dma_semaphore, #tpu.memory_space<semaphore_mem>>
    tpu.wait_dma2 semaphore(%319 : memref<!tpu.dma_semaphore, #tpu.memory_space<semaphore_mem>>) src(%arg5 : memref<256x1024xbf16, #tpu.memory_space<any>>) dst(%arg21 : memref<256x1024xbf16, #tpu.memory_space<vmem>>)
    %c0_74 = arith.constant 0 : index
    %c0_75 = arith.constant 0 : index
    %320 = vector.load %arg25[%c0_74, %c0_75] : memref<64x256xf32, #tpu.memory_space<vmem>>, vector<64x256xf32>
    %321 = arith.truncf %320 : vector<64x256xf32> to vector<64x256xbf16>
    %c0_76 = arith.constant 0 : index
    %c0_77 = arith.constant 0 : index
    %322 = vector.load %arg21[%c0_76, %c0_77] : memref<256x1024xbf16, #tpu.memory_space<vmem>>, vector<256x1024xbf16>
    %cst_78 = arith.constant dense<0.000000e+00> : vector<64x1024xf32>
    %323 = tpu.matmul %321, %322, %cst_78 {dimension_numbers = #tpu.dot_dimension_numbers<[1], [0], [0], [1], [0, 0, 1, 1], [], []>} : vector<64x256xbf16>, vector<256x1024xbf16>, vector<64x1024xf32> -> vector<64x1024xf32>
    %c0_79 = arith.constant 0 : index
    %c0_80 = arith.constant 0 : index
    %324 = vector.load %arg7[%c0_79, %c0_80] : memref<1x1024xf32, #tpu.memory_space<vmem>>, vector<1x1024xf32>
    %325 = vector.broadcast %324 : vector<1x1024xf32> to vector<64x1024xf32>
    %326 = arith.addf %323, %325 : vector<64x1024xf32>
    %c0_81 = arith.constant 0 : index
    %c0_82 = arith.constant 0 : index
    %327 = vector.load %arg24[%c0_81, %c0_82] : memref<64x1024xf32, #tpu.memory_space<vmem>>, vector<64x1024xf32>
    tpu.vector_store %arg24[%c0_81, %c0_82], %326 {strides = array<i32>} : memref<64x1024xf32, #tpu.memory_space<vmem>>, vector<64x1024xf32>,
    %c1_i32_83 = arith.constant 1 : i32
    %328 = tpu.memref_slice %arg26[%c1_i32_83] : memref<3x!tpu.dma_semaphore, #tpu.memory_space<semaphore_mem>> -> memref<1x!tpu.dma_semaphore, #tpu.memory_space<semaphore_mem>>
    %329 = tpu.memref_squeeze %328 : memref<1x!tpu.dma_semaphore, #tpu.memory_space<semaphore_mem>> -> memref<!tpu.dma_semaphore, #tpu.memory_space<semaphore_mem>>
    tpu.wait_dma2 semaphore(%329 : memref<!tpu.dma_semaphore, #tpu.memory_space<semaphore_mem>>) src(%arg6 : memref<256x1024xbf16, #tpu.memory_space<any>>) dst(%arg22 : memref<256x1024xbf16, #tpu.memory_space<vmem>>)
    %c0_84 = arith.constant 0 : index
    %c0_85 = arith.constant 0 : index
    %330 = vector.load %arg22[%c0_84, %c0_85] : memref<256x1024xbf16, #tpu.memory_space<vmem>>, vector<256x1024xbf16>
    %cst_86 = arith.constant 0.000000e+00 : f32
    %331 = vector.broadcast %cst_86 : f32 to vector<8x256xf32>
    %cst_87 = arith.constant 0.000000e+00 : f32
    %332 = vector.broadcast %cst_87 : f32 to vector<8x256xf32>
    %c0_88 = arith.constant 0 : index
    %c0_89 = arith.constant 0 : index
    %333 = vector.load %arg24[%c0_88, %c0_89] : memref<64x1024xf32, #tpu.memory_space<vmem>>, vector<8x1024xf32>
    %334 = arith.truncf %331 : vector<8x256xf32> to vector<8x256xbf16>
    %cst_90 = arith.constant dense<0.000000e+00> : vector<8x1024xf32>
    %335 = tpu.matmul %334, %330, %cst_90 {dimension_numbers = #tpu.dot_dimension_numbers<[1], [0], [0], [1], [0, 0, 1, 1], [], []>} : vector<8x256xbf16>, vector<256x1024xbf16>, vector<8x1024xf32> -> vector<8x1024xf32>
    %336 = arith.addf %333, %335 : vector<8x1024xf32>
    %337 = vector.extract_strided_slice %336 {offsets = [0, 0], sizes = [8, 256], strides = [1, 1]} : vector<8x1024xf32> to vector<8x256xf32>
    %338 = arith.negf %337 : vector<8x256xf32>
    %339 = math.exp %338 : vector<8x256xf32>
    %cst_91 = arith.constant 1.000000e+00 : f32
    %340 = vector.broadcast %cst_91 : f32 to vector<8x256xf32>
    %341 = arith.addf %340, %339 : vector<8x256xf32>
    %342 = arith.divf %340, %341 : vector<8x256xf32>
    %343 = vector.extract_strided_slice %336 {offsets = [0, 256], sizes = [8, 256], strides = [1, 1]} : vector<8x1024xf32> to vector<8x256xf32>
    %344 = arith.negf %343 : vector<8x256xf32>
    %345 = math.exp %344 : vector<8x256xf32>
    %cst_92 = arith.constant 1.000000e+00 : f32
    %346 = vector.broadcast %cst_92 : f32 to vector<8x256xf32>
    %347 = arith.addf %346, %345 : vector<8x256xf32>
    %348 = arith.divf %346, %347 : vector<8x256xf32>
    %349 = vector.extract_strided_slice %336 {offsets = [0, 512], sizes = [8, 256], strides = [1, 1]} : vector<8x1024xf32> to vector<8x256xf32>
    %350 = math.tanh %349 : vector<8x256xf32>
    %351 = vector.extract_strided_slice %336 {offsets = [0, 768], sizes = [8, 256], strides = [1, 1]} : vector<8x1024xf32> to vector<8x256xf32>
    %352 = arith.negf %351 : vector<8x256xf32>
    %353 = math.exp %352 : vector<8x256xf32>
    %cst_93 = arith.constant 1.000000e+00 : f32
    %354 = vector.broadcast %cst_93 : f32 to vector<8x256xf32>
    %355 = arith.addf %354, %353 : vector<8x256xf32>
    %356 = arith.divf %354, %355 : vector<8x256xf32>
    %357 = arith.mulf %348, %332 : vector<8x256xf32>
    %358 = arith.mulf %342, %350 : vector<8x256xf32>
    %359 = arith.addf %357, %358 : vector<8x256xf32>
    %360 = math.tanh %359 : vector<8x256xf32>
    %361 = arith.mulf %356, %360 : vector<8x256xf32>
    %c0_i32_94 = arith.constant 0 : i32
    %362 = vector.broadcast %c0_i32_94 : i32 to vector<8x1xi32>
    %363 = arith.cmpi sgt, %6, %362 : vector<8x1xi32>
    %364 = vector.shape_cast %363 : vector<8x1xi1> to vector<8x1xi1>
    %365 = vector.broadcast %364 : vector<8x1xi1> to vector<8x256xi1>
    %366 = arith.select %365, %361, %331 : vector<8x256xi1>, vector<8x256xf32>
    %367 = vector.shape_cast %363 : vector<8x1xi1> to vector<8x1xi1>
    %368 = vector.broadcast %367 : vector<8x1xi1> to vector<8x256xi1>
    %369 = arith.select %368, %359, %332 : vector<8x256xi1>, vector<8x256xf32>
    %c8_95 = arith.constant 8 : index
    %c0_96 = arith.constant 0 : index
    %370 = vector.load %arg24[%c8_95, %c0_96] : memref<64x1024xf32, #tpu.memory_space<vmem>>, vector<8x1024xf32>
    %371 = arith.truncf %366 : vector<8x256xf32> to vector<8x256xbf16>
    %cst_97 = arith.constant dense<0.000000e+00> : vector<8x1024xf32>
    %372 = tpu.matmul %371, %330, %cst_97 {dimension_numbers = #tpu.dot_dimension_numbers<[1], [0], [0], [1], [0, 0, 1, 1], [], []>} : vector<8x256xbf16>, vector<256x1024xbf16>, vector<8x1024xf32> -> vector<8x1024xf32>
    %373 = arith.addf %370, %372 : vector<8x1024xf32>
    %374 = vector.extract_strided_slice %373 {offsets = [0, 0], sizes = [8, 256], strides = [1, 1]} : vector<8x1024xf32> to vector<8x256xf32>
    %375 = arith.negf %374 : vector<8x256xf32>
    %376 = math.exp %375 : vector<8x256xf32>
    %cst_98 = arith.constant 1.000000e+00 : f32
    %377 = vector.broadcast %cst_98 : f32 to vector<8x256xf32>
    %378 = arith.addf %377, %376 : vector<8x256xf32>
    %379 = arith.divf %377, %378 : vector<8x256xf32>
    %380 = vector.extract_strided_slice %373 {offsets = [0, 256], sizes = [8, 256], strides = [1, 1]} : vector<8x1024xf32> to vector<8x256xf32>
    %381 = arith.negf %380 : vector<8x256xf32>
    %382 = math.exp %381 : vector<8x256xf32>
    %cst_99 = arith.constant 1.000000e+00 : f32
    %383 = vector.broadcast %cst_99 : f32 to vector<8x256xf32>
    %384 = arith.addf %383, %382 : vector<8x256xf32>
    %385 = arith.divf %383, %384 : vector<8x256xf32>
    %386 = vector.extract_strided_slice %373 {offsets = [0, 512], sizes = [8, 256], strides = [1, 1]} : vector<8x1024xf32> to vector<8x256xf32>
    %387 = math.tanh %386 : vector<8x256xf32>
    %388 = vector.extract_strided_slice %373 {offsets = [0, 768], sizes = [8, 256], strides = [1, 1]} : vector<8x1024xf32> to vector<8x256xf32>
    %389 = arith.negf %388 : vector<8x256xf32>
    %390 = math.exp %389 : vector<8x256xf32>
    %cst_100 = arith.constant 1.000000e+00 : f32
    %391 = vector.broadcast %cst_100 : f32 to vector<8x256xf32>
    %392 = arith.addf %391, %390 : vector<8x256xf32>
    %393 = arith.divf %391, %392 : vector<8x256xf32>
    %394 = arith.mulf %385, %369 : vector<8x256xf32>
    %395 = arith.mulf %379, %387 : vector<8x256xf32>
    %396 = arith.addf %394, %395 : vector<8x256xf32>
    %397 = math.tanh %396 : vector<8x256xf32>
    %398 = arith.mulf %393, %397 : vector<8x256xf32>
    %c1_i32_101 = arith.constant 1 : i32
    %399 = vector.broadcast %c1_i32_101 : i32 to vector<8x1xi32>
    %400 = arith.cmpi sgt, %6, %399 : vector<8x1xi32>
    %401 = vector.shape_cast %400 : vector<8x1xi1> to vector<8x1xi1>
    %402 = vector.broadcast %401 : vector<8x1xi1> to vector<8x256xi1>
    %403 = arith.select %402, %398, %366 : vector<8x256xi1>, vector<8x256xf32>
    %404 = vector.shape_cast %400 : vector<8x1xi1> to vector<8x1xi1>
    %405 = vector.broadcast %404 : vector<8x1xi1> to vector<8x256xi1>
    %406 = arith.select %405, %396, %369 : vector<8x256xi1>, vector<8x256xf32>
    %c16_102 = arith.constant 16 : index
    %c0_103 = arith.constant 0 : index
    %407 = vector.load %arg24[%c16_102, %c0_103] : memref<64x1024xf32, #tpu.memory_space<vmem>>, vector<8x1024xf32>
    %408 = arith.truncf %403 : vector<8x256xf32> to vector<8x256xbf16>
    %cst_104 = arith.constant dense<0.000000e+00> : vector<8x1024xf32>
    %409 = tpu.matmul %408, %330, %cst_104 {dimension_numbers = #tpu.dot_dimension_numbers<[1], [0], [0], [1], [0, 0, 1, 1], [], []>} : vector<8x256xbf16>, vector<256x1024xbf16>, vector<8x1024xf32> -> vector<8x1024xf32>
    %410 = arith.addf %407, %409 : vector<8x1024xf32>
    %411 = vector.extract_strided_slice %410 {offsets = [0, 0], sizes = [8, 256], strides = [1, 1]} : vector<8x1024xf32> to vector<8x256xf32>
    %412 = arith.negf %411 : vector<8x256xf32>
    %413 = math.exp %412 : vector<8x256xf32>
    %cst_105 = arith.constant 1.000000e+00 : f32
    %414 = vector.broadcast %cst_105 : f32 to vector<8x256xf32>
    %415 = arith.addf %414, %413 : vector<8x256xf32>
    %416 = arith.divf %414, %415 : vector<8x256xf32>
    %417 = vector.extract_strided_slice %410 {offsets = [0, 256], sizes = [8, 256], strides = [1, 1]} : vector<8x1024xf32> to vector<8x256xf32>
    %418 = arith.negf %417 : vector<8x256xf32>
    %419 = math.exp %418 : vector<8x256xf32>
    %cst_106 = arith.constant 1.000000e+00 : f32
    %420 = vector.broadcast %cst_106 : f32 to vector<8x256xf32>
    %421 = arith.addf %420, %419 : vector<8x256xf32>
    %422 = arith.divf %420, %421 : vector<8x256xf32>
    %423 = vector.extract_strided_slice %410 {offsets = [0, 512], sizes = [8, 256], strides = [1, 1]} : vector<8x1024xf32> to vector<8x256xf32>
    %424 = math.tanh %423 : vector<8x256xf32>
    %425 = vector.extract_strided_slice %410 {offsets = [0, 768], sizes = [8, 256], strides = [1, 1]} : vector<8x1024xf32> to vector<8x256xf32>
    %426 = arith.negf %425 : vector<8x256xf32>
    %427 = math.exp %426 : vector<8x256xf32>
    %cst_107 = arith.constant 1.000000e+00 : f32
    %428 = vector.broadcast %cst_107 : f32 to vector<8x256xf32>
    %429 = arith.addf %428, %427 : vector<8x256xf32>
    %430 = arith.divf %428, %429 : vector<8x256xf32>
    %431 = arith.mulf %422, %406 : vector<8x256xf32>
    %432 = arith.mulf %416, %424 : vector<8x256xf32>
    %433 = arith.addf %431, %432 : vector<8x256xf32>
    %434 = math.tanh %433 : vector<8x256xf32>
    %435 = arith.mulf %430, %434 : vector<8x256xf32>
    %c2_i32_108 = arith.constant 2 : i32
    %436 = vector.broadcast %c2_i32_108 : i32 to vector<8x1xi32>
    %437 = arith.cmpi sgt, %6, %436 : vector<8x1xi32>
    %438 = vector.shape_cast %437 : vector<8x1xi1> to vector<8x1xi1>
    %439 = vector.broadcast %438 : vector<8x1xi1> to vector<8x256xi1>
    %440 = arith.select %439, %435, %403 : vector<8x256xi1>, vector<8x256xf32>
    %441 = vector.shape_cast %437 : vector<8x1xi1> to vector<8x1xi1>
    %442 = vector.broadcast %441 : vector<8x1xi1> to vector<8x256xi1>
    %443 = arith.select %442, %433, %406 : vector<8x256xi1>, vector<8x256xf32>
    %c24_109 = arith.constant 24 : index
    %c0_110 = arith.constant 0 : index
    %444 = vector.load %arg24[%c24_109, %c0_110] : memref<64x1024xf32, #tpu.memory_space<vmem>>, vector<8x1024xf32>
    %445 = arith.truncf %440 : vector<8x256xf32> to vector<8x256xbf16>
    %cst_111 = arith.constant dense<0.000000e+00> : vector<8x1024xf32>
    %446 = tpu.matmul %445, %330, %cst_111 {dimension_numbers = #tpu.dot_dimension_numbers<[1], [0], [0], [1], [0, 0, 1, 1], [], []>} : vector<8x256xbf16>, vector<256x1024xbf16>, vector<8x1024xf32> -> vector<8x1024xf32>
    %447 = arith.addf %444, %446 : vector<8x1024xf32>
    %448 = vector.extract_strided_slice %447 {offsets = [0, 0], sizes = [8, 256], strides = [1, 1]} : vector<8x1024xf32> to vector<8x256xf32>
    %449 = arith.negf %448 : vector<8x256xf32>
    %450 = math.exp %449 : vector<8x256xf32>
    %cst_112 = arith.constant 1.000000e+00 : f32
    %451 = vector.broadcast %cst_112 : f32 to vector<8x256xf32>
    %452 = arith.addf %451, %450 : vector<8x256xf32>
    %453 = arith.divf %451, %452 : vector<8x256xf32>
    %454 = vector.extract_strided_slice %447 {offsets = [0, 256], sizes = [8, 256], strides = [1, 1]} : vector<8x1024xf32> to vector<8x256xf32>
    %455 = arith.negf %454 : vector<8x256xf32>
    %456 = math.exp %455 : vector<8x256xf32>
    %cst_113 = arith.constant 1.000000e+00 : f32
    %457 = vector.broadcast %cst_113 : f32 to vector<8x256xf32>
    %458 = arith.addf %457, %456 : vector<8x256xf32>
    %459 = arith.divf %457, %458 : vector<8x256xf32>
    %460 = vector.extract_strided_slice %447 {offsets = [0, 512], sizes = [8, 256], strides = [1, 1]} : vector<8x1024xf32> to vector<8x256xf32>
    %461 = math.tanh %460 : vector<8x256xf32>
    %462 = vector.extract_strided_slice %447 {offsets = [0, 768], sizes = [8, 256], strides = [1, 1]} : vector<8x1024xf32> to vector<8x256xf32>
    %463 = arith.negf %462 : vector<8x256xf32>
    %464 = math.exp %463 : vector<8x256xf32>
    %cst_114 = arith.constant 1.000000e+00 : f32
    %465 = vector.broadcast %cst_114 : f32 to vector<8x256xf32>
    %466 = arith.addf %465, %464 : vector<8x256xf32>
    %467 = arith.divf %465, %466 : vector<8x256xf32>
    %468 = arith.mulf %459, %443 : vector<8x256xf32>
    %469 = arith.mulf %453, %461 : vector<8x256xf32>
    %470 = arith.addf %468, %469 : vector<8x256xf32>
    %471 = math.tanh %470 : vector<8x256xf32>
    %472 = arith.mulf %467, %471 : vector<8x256xf32>
    %c3_i32_115 = arith.constant 3 : i32
    %473 = vector.broadcast %c3_i32_115 : i32 to vector<8x1xi32>
    %474 = arith.cmpi sgt, %6, %473 : vector<8x1xi32>
    %475 = vector.shape_cast %474 : vector<8x1xi1> to vector<8x1xi1>
    %476 = vector.broadcast %475 : vector<8x1xi1> to vector<8x256xi1>
    %477 = arith.select %476, %472, %440 : vector<8x256xi1>, vector<8x256xf32>
    %478 = vector.shape_cast %474 : vector<8x1xi1> to vector<8x1xi1>
    %479 = vector.broadcast %478 : vector<8x1xi1> to vector<8x256xi1>
    %480 = arith.select %479, %470, %443 : vector<8x256xi1>, vector<8x256xf32>
    %c32_116 = arith.constant 32 : index
    %c0_117 = arith.constant 0 : index
    %481 = vector.load %arg24[%c32_116, %c0_117] : memref<64x1024xf32, #tpu.memory_space<vmem>>, vector<8x1024xf32>
    %482 = arith.truncf %477 : vector<8x256xf32> to vector<8x256xbf16>
    %cst_118 = arith.constant dense<0.000000e+00> : vector<8x1024xf32>
    %483 = tpu.matmul %482, %330, %cst_118 {dimension_numbers = #tpu.dot_dimension_numbers<[1], [0], [0], [1], [0, 0, 1, 1], [], []>} : vector<8x256xbf16>, vector<256x1024xbf16>, vector<8x1024xf32> -> vector<8x1024xf32>
    %484 = arith.addf %481, %483 : vector<8x1024xf32>
    %485 = vector.extract_strided_slice %484 {offsets = [0, 0], sizes = [8, 256], strides = [1, 1]} : vector<8x1024xf32> to vector<8x256xf32>
    %486 = arith.negf %485 : vector<8x256xf32>
    %487 = math.exp %486 : vector<8x256xf32>
    %cst_119 = arith.constant 1.000000e+00 : f32
    %488 = vector.broadcast %cst_119 : f32 to vector<8x256xf32>
    %489 = arith.addf %488, %487 : vector<8x256xf32>
    %490 = arith.divf %488, %489 : vector<8x256xf32>
    %491 = vector.extract_strided_slice %484 {offsets = [0, 256], sizes = [8, 256], strides = [1, 1]} : vector<8x1024xf32> to vector<8x256xf32>
    %492 = arith.negf %491 : vector<8x256xf32>
    %493 = math.exp %492 : vector<8x256xf32>
    %cst_120 = arith.constant 1.000000e+00 : f32
    %494 = vector.broadcast %cst_120 : f32 to vector<8x256xf32>
    %495 = arith.addf %494, %493 : vector<8x256xf32>
    %496 = arith.divf %494, %495 : vector<8x256xf32>
    %497 = vector.extract_strided_slice %484 {offsets = [0, 512], sizes = [8, 256], strides = [1, 1]} : vector<8x1024xf32> to vector<8x256xf32>
    %498 = math.tanh %497 : vector<8x256xf32>
    %499 = vector.extract_strided_slice %484 {offsets = [0, 768], sizes = [8, 256], strides = [1, 1]} : vector<8x1024xf32> to vector<8x256xf32>
    %500 = arith.negf %499 : vector<8x256xf32>
    %501 = math.exp %500 : vector<8x256xf32>
    %cst_121 = arith.constant 1.000000e+00 : f32
    %502 = vector.broadcast %cst_121 : f32 to vector<8x256xf32>
    %503 = arith.addf %502, %501 : vector<8x256xf32>
    %504 = arith.divf %502, %503 : vector<8x256xf32>
    %505 = arith.mulf %496, %480 : vector<8x256xf32>
    %506 = arith.mulf %490, %498 : vector<8x256xf32>
    %507 = arith.addf %505, %506 : vector<8x256xf32>
    %508 = math.tanh %507 : vector<8x256xf32>
    %509 = arith.mulf %504, %508 : vector<8x256xf32>
    %c4_i32_122 = arith.constant 4 : i32
    %510 = vector.broadcast %c4_i32_122 : i32 to vector<8x1xi32>
    %511 = arith.cmpi sgt, %6, %510 : vector<8x1xi32>
    %512 = vector.shape_cast %511 : vector<8x1xi1> to vector<8x1xi1>
    %513 = vector.broadcast %512 : vector<8x1xi1> to vector<8x256xi1>
    %514 = arith.select %513, %509, %477 : vector<8x256xi1>, vector<8x256xf32>
    %515 = vector.shape_cast %511 : vector<8x1xi1> to vector<8x1xi1>
    %516 = vector.broadcast %515 : vector<8x1xi1> to vector<8x256xi1>
    %517 = arith.select %516, %507, %480 : vector<8x256xi1>, vector<8x256xf32>
    %c40_123 = arith.constant 40 : index
    %c0_124 = arith.constant 0 : index
    %518 = vector.load %arg24[%c40_123, %c0_124] : memref<64x1024xf32, #tpu.memory_space<vmem>>, vector<8x1024xf32>
    %519 = arith.truncf %514 : vector<8x256xf32> to vector<8x256xbf16>
    %cst_125 = arith.constant dense<0.000000e+00> : vector<8x1024xf32>
    %520 = tpu.matmul %519, %330, %cst_125 {dimension_numbers = #tpu.dot_dimension_numbers<[1], [0], [0], [1], [0, 0, 1, 1], [], []>} : vector<8x256xbf16>, vector<256x1024xbf16>, vector<8x1024xf32> -> vector<8x1024xf32>
    %521 = arith.addf %518, %520 : vector<8x1024xf32>
    %522 = vector.extract_strided_slice %521 {offsets = [0, 0], sizes = [8, 256], strides = [1, 1]} : vector<8x1024xf32> to vector<8x256xf32>
    %523 = arith.negf %522 : vector<8x256xf32>
    %524 = math.exp %523 : vector<8x256xf32>
    %cst_126 = arith.constant 1.000000e+00 : f32
    %525 = vector.broadcast %cst_126 : f32 to vector<8x256xf32>
    %526 = arith.addf %525, %524 : vector<8x256xf32>
    %527 = arith.divf %525, %526 : vector<8x256xf32>
    %528 = vector.extract_strided_slice %521 {offsets = [0, 256], sizes = [8, 256], strides = [1, 1]} : vector<8x1024xf32> to vector<8x256xf32>
    %529 = arith.negf %528 : vector<8x256xf32>
    %530 = math.exp %529 : vector<8x256xf32>
    %cst_127 = arith.constant 1.000000e+00 : f32
    %531 = vector.broadcast %cst_127 : f32 to vector<8x256xf32>
    %532 = arith.addf %531, %530 : vector<8x256xf32>
    %533 = arith.divf %531, %532 : vector<8x256xf32>
    %534 = vector.extract_strided_slice %521 {offsets = [0, 512], sizes = [8, 256], strides = [1, 1]} : vector<8x1024xf32> to vector<8x256xf32>
    %535 = math.tanh %534 : vector<8x256xf32>
    %536 = vector.extract_strided_slice %521 {offsets = [0, 768], sizes = [8, 256], strides = [1, 1]} : vector<8x1024xf32> to vector<8x256xf32>
    %537 = arith.negf %536 : vector<8x256xf32>
    %538 = math.exp %537 : vector<8x256xf32>
    %cst_128 = arith.constant 1.000000e+00 : f32
    %539 = vector.broadcast %cst_128 : f32 to vector<8x256xf32>
    %540 = arith.addf %539, %538 : vector<8x256xf32>
    %541 = arith.divf %539, %540 : vector<8x256xf32>
    %542 = arith.mulf %533, %517 : vector<8x256xf32>
    %543 = arith.mulf %527, %535 : vector<8x256xf32>
    %544 = arith.addf %542, %543 : vector<8x256xf32>
    %545 = math.tanh %544 : vector<8x256xf32>
    %546 = arith.mulf %541, %545 : vector<8x256xf32>
    %c5_i32_129 = arith.constant 5 : i32
    %547 = vector.broadcast %c5_i32_129 : i32 to vector<8x1xi32>
    %548 = arith.cmpi sgt, %6, %547 : vector<8x1xi32>
    %549 = vector.shape_cast %548 : vector<8x1xi1> to vector<8x1xi1>
    %550 = vector.broadcast %549 : vector<8x1xi1> to vector<8x256xi1>
    %551 = arith.select %550, %546, %514 : vector<8x256xi1>, vector<8x256xf32>
    %552 = vector.shape_cast %548 : vector<8x1xi1> to vector<8x1xi1>
    %553 = vector.broadcast %552 : vector<8x1xi1> to vector<8x256xi1>
    %554 = arith.select %553, %544, %517 : vector<8x256xi1>, vector<8x256xf32>
    %c48_130 = arith.constant 48 : index
    %c0_131 = arith.constant 0 : index
    %555 = vector.load %arg24[%c48_130, %c0_131] : memref<64x1024xf32, #tpu.memory_space<vmem>>, vector<8x1024xf32>
    %556 = arith.truncf %551 : vector<8x256xf32> to vector<8x256xbf16>
    %cst_132 = arith.constant dense<0.000000e+00> : vector<8x1024xf32>
    %557 = tpu.matmul %556, %330, %cst_132 {dimension_numbers = #tpu.dot_dimension_numbers<[1], [0], [0], [1], [0, 0, 1, 1], [], []>} : vector<8x256xbf16>, vector<256x1024xbf16>, vector<8x1024xf32> -> vector<8x1024xf32>
    %558 = arith.addf %555, %557 : vector<8x1024xf32>
    %559 = vector.extract_strided_slice %558 {offsets = [0, 0], sizes = [8, 256], strides = [1, 1]} : vector<8x1024xf32> to vector<8x256xf32>
    %560 = arith.negf %559 : vector<8x256xf32>
    %561 = math.exp %560 : vector<8x256xf32>
    %cst_133 = arith.constant 1.000000e+00 : f32
    %562 = vector.broadcast %cst_133 : f32 to vector<8x256xf32>
    %563 = arith.addf %562, %561 : vector<8x256xf32>
    %564 = arith.divf %562, %563 : vector<8x256xf32>
    %565 = vector.extract_strided_slice %558 {offsets = [0, 256], sizes = [8, 256], strides = [1, 1]} : vector<8x1024xf32> to vector<8x256xf32>
    %566 = arith.negf %565 : vector<8x256xf32>
    %567 = math.exp %566 : vector<8x256xf32>
    %cst_134 = arith.constant 1.000000e+00 : f32
    %568 = vector.broadcast %cst_134 : f32 to vector<8x256xf32>
    %569 = arith.addf %568, %567 : vector<8x256xf32>
    %570 = arith.divf %568, %569 : vector<8x256xf32>
    %571 = vector.extract_strided_slice %558 {offsets = [0, 512], sizes = [8, 256], strides = [1, 1]} : vector<8x1024xf32> to vector<8x256xf32>
    %572 = math.tanh %571 : vector<8x256xf32>
    %573 = vector.extract_strided_slice %558 {offsets = [0, 768], sizes = [8, 256], strides = [1, 1]} : vector<8x1024xf32> to vector<8x256xf32>
    %574 = arith.negf %573 : vector<8x256xf32>
    %575 = math.exp %574 : vector<8x256xf32>
    %cst_135 = arith.constant 1.000000e+00 : f32
    %576 = vector.broadcast %cst_135 : f32 to vector<8x256xf32>
    %577 = arith.addf %576, %575 : vector<8x256xf32>
    %578 = arith.divf %576, %577 : vector<8x256xf32>
    %579 = arith.mulf %570, %554 : vector<8x256xf32>
    %580 = arith.mulf %564, %572 : vector<8x256xf32>
    %581 = arith.addf %579, %580 : vector<8x256xf32>
    %582 = math.tanh %581 : vector<8x256xf32>
    %583 = arith.mulf %578, %582 : vector<8x256xf32>
    %c6_i32_136 = arith.constant 6 : i32
    %584 = vector.broadcast %c6_i32_136 : i32 to vector<8x1xi32>
    %585 = arith.cmpi sgt, %6, %584 : vector<8x1xi32>
    %586 = vector.shape_cast %585 : vector<8x1xi1> to vector<8x1xi1>
    %587 = vector.broadcast %586 : vector<8x1xi1> to vector<8x256xi1>
    %588 = arith.select %587, %583, %551 : vector<8x256xi1>, vector<8x256xf32>
    %589 = vector.shape_cast %585 : vector<8x1xi1> to vector<8x1xi1>
    %590 = vector.broadcast %589 : vector<8x1xi1> to vector<8x256xi1>
    %591 = arith.select %590, %581, %554 : vector<8x256xi1>, vector<8x256xf32>
    %c56_137 = arith.constant 56 : index
    %c0_138 = arith.constant 0 : index
    %592 = vector.load %arg24[%c56_137, %c0_138] : memref<64x1024xf32, #tpu.memory_space<vmem>>, vector<8x1024xf32>
    %593 = arith.truncf %588 : vector<8x256xf32> to vector<8x256xbf16>
    %cst_139 = arith.constant dense<0.000000e+00> : vector<8x1024xf32>
    %594 = tpu.matmul %593, %330, %cst_139 {dimension_numbers = #tpu.dot_dimension_numbers<[1], [0], [0], [1], [0, 0, 1, 1], [], []>} : vector<8x256xbf16>, vector<256x1024xbf16>, vector<8x1024xf32> -> vector<8x1024xf32>
    %595 = arith.addf %592, %594 : vector<8x1024xf32>
    %596 = vector.extract_strided_slice %595 {offsets = [0, 0], sizes = [8, 256], strides = [1, 1]} : vector<8x1024xf32> to vector<8x256xf32>
    %597 = arith.negf %596 : vector<8x256xf32>
    %598 = math.exp %597 : vector<8x256xf32>
    %cst_140 = arith.constant 1.000000e+00 : f32
    %599 = vector.broadcast %cst_140 : f32 to vector<8x256xf32>
    %600 = arith.addf %599, %598 : vector<8x256xf32>
    %601 = arith.divf %599, %600 : vector<8x256xf32>
    %602 = vector.extract_strided_slice %595 {offsets = [0, 256], sizes = [8, 256], strides = [1, 1]} : vector<8x1024xf32> to vector<8x256xf32>
    %603 = arith.negf %602 : vector<8x256xf32>
    %604 = math.exp %603 : vector<8x256xf32>
    %cst_141 = arith.constant 1.000000e+00 : f32
    %605 = vector.broadcast %cst_141 : f32 to vector<8x256xf32>
    %606 = arith.addf %605, %604 : vector<8x256xf32>
    %607 = arith.divf %605, %606 : vector<8x256xf32>
    %608 = vector.extract_strided_slice %595 {offsets = [0, 512], sizes = [8, 256], strides = [1, 1]} : vector<8x1024xf32> to vector<8x256xf32>
    %609 = math.tanh %608 : vector<8x256xf32>
    %610 = vector.extract_strided_slice %595 {offsets = [0, 768], sizes = [8, 256], strides = [1, 1]} : vector<8x1024xf32> to vector<8x256xf32>
    %611 = arith.negf %610 : vector<8x256xf32>
    %612 = math.exp %611 : vector<8x256xf32>
    %cst_142 = arith.constant 1.000000e+00 : f32
    %613 = vector.broadcast %cst_142 : f32 to vector<8x256xf32>
    %614 = arith.addf %613, %612 : vector<8x256xf32>
    %615 = arith.divf %613, %614 : vector<8x256xf32>
    %616 = arith.mulf %607, %591 : vector<8x256xf32>
    %617 = arith.mulf %601, %609 : vector<8x256xf32>
    %618 = arith.addf %616, %617 : vector<8x256xf32>
    %619 = math.tanh %618 : vector<8x256xf32>
    %620 = arith.mulf %615, %619 : vector<8x256xf32>
    %c7_i32_143 = arith.constant 7 : i32
    %621 = vector.broadcast %c7_i32_143 : i32 to vector<8x1xi32>
    %622 = arith.cmpi sgt, %6, %621 : vector<8x1xi32>
    %623 = vector.shape_cast %622 : vector<8x1xi1> to vector<8x1xi1>
    %624 = vector.broadcast %623 : vector<8x1xi1> to vector<8x256xi1>
    %625 = arith.select %624, %620, %588 : vector<8x256xi1>, vector<8x256xf32>
    %c0_144 = arith.constant 0 : index
    %c0_145 = arith.constant 0 : index
    %626 = vector.load %arg8[%c0_144, %c0_145] : memref<8x64xf32, #tpu.memory_space<vmem>>, vector<8x64xf32>
    %c0_146 = arith.constant 0 : index
    %c0_147 = arith.constant 0 : index
    %627 = vector.load %arg9[%c0_146, %c0_147] : memref<64x16xf32, #tpu.memory_space<vmem>>, vector<64x16xf32>
    %cst_148 = arith.constant dense<0.000000e+00> : vector<8x16xf32>
    %628 = tpu.matmul %626, %627, %cst_148 {dimension_numbers = #tpu.dot_dimension_numbers<[1], [0], [0], [1], [0, 0, 1, 1], [], []>} : vector<8x64xf32>, vector<64x16xf32>, vector<8x16xf32> -> vector<8x16xf32>
    %c0_149 = arith.constant 0 : index
    %c0_150 = arith.constant 0 : index
    %629 = vector.load %arg10[%c0_149, %c0_150] : memref<1x16xf32, #tpu.memory_space<vmem>>, vector<1x16xf32>
    %630 = vector.broadcast %629 : vector<1x16xf32> to vector<8x16xf32>
    %631 = arith.addf %628, %630 : vector<8x16xf32>
    %cst_151 = arith.constant 0.000000e+00 : f32
    %632 = vector.broadcast %cst_151 : f32 to vector<8x16xf32>
    %633 = arith.maximumf %631, %632 : vector<8x16xf32>
    %cst_152 = arith.constant 0.000000e+00 : f32
    %634 = vector.broadcast %cst_152 : f32 to vector<8x16xf32>
    %635 = arith.minimumf %631, %634 : vector<8x16xf32>
    %636 = math.exp %635 : vector<8x16xf32>
    %cst_153 = arith.constant 1.000000e+00 : f32
    %637 = vector.broadcast %cst_153 : f32 to vector<8x16xf32>
    %638 = arith.subf %636, %637 : vector<8x16xf32>
    %cst_154 = arith.constant 1.67326319 : f32
    %639 = vector.broadcast %cst_154 : f32 to vector<8x16xf32>
    %640 = arith.mulf %639, %638 : vector<8x16xf32>
    %641 = arith.addf %633, %640 : vector<8x16xf32>
    %cst_155 = arith.constant 1.05070102 : f32
    %642 = vector.broadcast %cst_155 : f32 to vector<8x16xf32>
    %643 = arith.mulf %642, %641 : vector<8x16xf32>
    %c0_156 = arith.constant 0 : index
    %c0_157 = arith.constant 0 : index
    %644 = vector.load %arg11[%c0_156, %c0_157] : memref<16x8xf32, #tpu.memory_space<vmem>>, vector<16x8xf32>
    %cst_158 = arith.constant dense<0.000000e+00> : vector<8x8xf32>
    %645 = tpu.matmul %643, %644, %cst_158 {dimension_numbers = #tpu.dot_dimension_numbers<[1], [0], [0], [1], [0, 0, 1, 1], [], []>} : vector<8x16xf32>, vector<16x8xf32>, vector<8x8xf32> -> vector<8x8xf32>
    %c0_159 = arith.constant 0 : index
    %c0_160 = arith.constant 0 : index
    %646 = vector.load %arg12[%c0_159, %c0_160] : memref<1x8xf32, #tpu.memory_space<vmem>>, vector<1x8xf32>
    %647 = vector.broadcast %646 : vector<1x8xf32> to vector<8x8xf32>
    %648 = arith.addf %645, %647 : vector<8x8xf32>
    %cst_161 = arith.constant 0.000000e+00 : f32
    %649 = vector.broadcast %cst_161 : f32 to vector<8x8xf32>
    %650 = arith.maximumf %648, %649 : vector<8x8xf32>
    %cst_162 = arith.constant 0.000000e+00 : f32
    %651 = vector.broadcast %cst_162 : f32 to vector<8x8xf32>
    %652 = arith.minimumf %648, %651 : vector<8x8xf32>
    %653 = math.exp %652 : vector<8x8xf32>
    %cst_163 = arith.constant 1.000000e+00 : f32
    %654 = vector.broadcast %cst_163 : f32 to vector<8x8xf32>
    %655 = arith.subf %653, %654 : vector<8x8xf32>
    %cst_164 = arith.constant 1.67326319 : f32
    %656 = vector.broadcast %cst_164 : f32 to vector<8x8xf32>
    %657 = arith.mulf %656, %655 : vector<8x8xf32>
    %658 = arith.addf %650, %657 : vector<8x8xf32>
    %cst_165 = arith.constant 1.05070102 : f32
    %659 = vector.broadcast %cst_165 : f32 to vector<8x8xf32>
    %660 = arith.mulf %659, %658 : vector<8x8xf32>
    %c0_166 = arith.constant 0 : index
    %c0_167 = arith.constant 0 : index
    %661 = vector.load %arg13[%c0_166, %c0_167] : memref<8x4xf32, #tpu.memory_space<vmem>>, vector<8x4xf32>
    %cst_168 = arith.constant dense<0.000000e+00> : vector<8x4xf32>
    %662 = tpu.matmul %660, %661, %cst_168 {dimension_numbers = #tpu.dot_dimension_numbers<[1], [0], [0], [1], [0, 0, 1, 1], [], []>} : vector<8x8xf32>, vector<8x4xf32>, vector<8x4xf32> -> vector<8x4xf32>
    %c0_169 = arith.constant 0 : index
    %c0_170 = arith.constant 0 : index
    %663 = vector.load %arg14[%c0_169, %c0_170] : memref<1x4xf32, #tpu.memory_space<vmem>>, vector<1x4xf32>
    %664 = vector.broadcast %663 : vector<1x4xf32> to vector<8x4xf32>
    %665 = arith.addf %662, %664 : vector<8x4xf32>
    %cst_171 = arith.constant 0.000000e+00 : f32
    %666 = vector.broadcast %cst_171 : f32 to vector<8x4xf32>
    %667 = arith.maximumf %665, %666 : vector<8x4xf32>
    %cst_172 = arith.constant 0.000000e+00 : f32
    %668 = vector.broadcast %cst_172 : f32 to vector<8x4xf32>
    %669 = arith.minimumf %665, %668 : vector<8x4xf32>
    %670 = math.exp %669 : vector<8x4xf32>
    %cst_173 = arith.constant 1.000000e+00 : f32
    %671 = vector.broadcast %cst_173 : f32 to vector<8x4xf32>
    %672 = arith.subf %670, %671 : vector<8x4xf32>
    %cst_174 = arith.constant 1.67326319 : f32
    %673 = vector.broadcast %cst_174 : f32 to vector<8x4xf32>
    %674 = arith.mulf %673, %672 : vector<8x4xf32>
    %675 = arith.addf %667, %674 : vector<8x4xf32>
    %cst_175 = arith.constant 1.05070102 : f32
    %676 = vector.broadcast %cst_175 : f32 to vector<8x4xf32>
    %677 = arith.mulf %676, %675 : vector<8x4xf32>
    %c2_i32_176 = arith.constant 2 : i32
    %678 = tpu.memref_slice %arg26[%c2_i32_176] : memref<3x!tpu.dma_semaphore, #tpu.memory_space<semaphore_mem>> -> memref<1x!tpu.dma_semaphore, #tpu.memory_space<semaphore_mem>>
    %679 = tpu.memref_squeeze %678 : memref<1x!tpu.dma_semaphore, #tpu.memory_space<semaphore_mem>> -> memref<!tpu.dma_semaphore, #tpu.memory_space<semaphore_mem>>
    tpu.wait_dma2 semaphore(%679 : memref<!tpu.dma_semaphore, #tpu.memory_space<semaphore_mem>>) src(%arg15 : memref<256x256xbf16, #tpu.memory_space<any>>) dst(%arg23 : memref<256x256xbf16, #tpu.memory_space<vmem>>)
    %680 = arith.truncf %625 : vector<8x256xf32> to vector<8x256xbf16>
    %c0_177 = arith.constant 0 : index
    %c0_178 = arith.constant 0 : index
    %681 = vector.load %arg23[%c0_177, %c0_178] : memref<256x256xbf16, #tpu.memory_space<vmem>>, vector<256x256xbf16>
    %cst_179 = arith.constant dense<0.000000e+00> : vector<8x256xf32>
    %682 = tpu.matmul %680, %681, %cst_179 {dimension_numbers = #tpu.dot_dimension_numbers<[1], [0], [0], [1], [0, 0, 1, 1], [], []>} : vector<8x256xbf16>, vector<256x256xbf16>, vector<8x256xf32> -> vector<8x256xf32>
    %c0_180 = arith.constant 0 : index
    %c0_181 = arith.constant 0 : index
    %683 = vector.load %arg16[%c0_180, %c0_181] : memref<4x256xf32, #tpu.memory_space<vmem>>, vector<4x256xf32>
    %cst_182 = arith.constant dense<0.000000e+00> : vector<8x256xf32>
    %684 = tpu.matmul %677, %683, %cst_182 {dimension_numbers = #tpu.dot_dimension_numbers<[1], [0], [0], [1], [0, 0, 1, 1], [], []>} : vector<8x4xf32>, vector<4x256xf32>, vector<8x256xf32> -> vector<8x256xf32>
    %685 = arith.addf %682, %684 : vector<8x256xf32>
    %c0_183 = arith.constant 0 : index
    %c0_184 = arith.constant 0 : index
    %686 = vector.load %arg17[%c0_183, %c0_184] : memref<1x256xf32, #tpu.memory_space<vmem>>, vector<1x256xf32>
    %687 = vector.broadcast %686 : vector<1x256xf32> to vector<8x256xf32>
    %688 = arith.addf %685, %687 : vector<8x256xf32>
    %cst_185 = arith.constant 0.000000e+00 : f32
    %689 = vector.broadcast %cst_185 : f32 to vector<8x256xf32>
    %690 = arith.maximumf %688, %689 : vector<8x256xf32>
    %cst_186 = arith.constant 0.000000e+00 : f32
    %691 = vector.broadcast %cst_186 : f32 to vector<8x256xf32>
    %692 = arith.minimumf %688, %691 : vector<8x256xf32>
    %693 = math.exp %692 : vector<8x256xf32>
    %cst_187 = arith.constant 1.000000e+00 : f32
    %694 = vector.broadcast %cst_187 : f32 to vector<8x256xf32>
    %695 = arith.subf %693, %694 : vector<8x256xf32>
    %cst_188 = arith.constant 1.67326319 : f32
    %696 = vector.broadcast %cst_188 : f32 to vector<8x256xf32>
    %697 = arith.mulf %696, %695 : vector<8x256xf32>
    %698 = arith.addf %690, %697 : vector<8x256xf32>
    %cst_189 = arith.constant 1.05070102 : f32
    %699 = vector.broadcast %cst_189 : f32 to vector<8x256xf32>
    %700 = arith.mulf %699, %698 : vector<8x256xf32>
    %c0_190 = arith.constant 0 : index
    %c0_191 = arith.constant 0 : index
    %701 = vector.load %arg18[%c0_190, %c0_191] : memref<256x10xf32, #tpu.memory_space<vmem>>, vector<256x10xf32>
    %cst_192 = arith.constant dense<0.000000e+00> : vector<8x10xf32>
    %702 = tpu.matmul %700, %701, %cst_192 {dimension_numbers = #tpu.dot_dimension_numbers<[1], [0], [0], [1], [0, 0, 1, 1], [], []>} : vector<8x256xf32>, vector<256x10xf32>, vector<8x10xf32> -> vector<8x10xf32>
    %c0_193 = arith.constant 0 : index
    %c0_194 = arith.constant 0 : index
    %703 = vector.load %arg19[%c0_193, %c0_194] : memref<1x10xf32, #tpu.memory_space<vmem>>, vector<1x10xf32>
    %704 = vector.broadcast %703 : vector<1x10xf32> to vector<8x10xf32>
    %705 = arith.addf %702, %704 : vector<8x10xf32>
    %cst_195 = arith.constant dense<0xFF800000> : vector<8xf32>
    %706 = vector.multi_reduction <maximumf>, %705, %cst_195 [1] : vector<8x10xf32> to vector<8xf32>
    %707 = vector.shape_cast %706 : vector<8xf32> to vector<8x1xf32>
    %708 = vector.broadcast %707 : vector<8x1xf32> to vector<8x10xf32>
    %709 = arith.subf %705, %708 : vector<8x10xf32>
    %710 = math.exp %709 : vector<8x10xf32>
    %cst_196 = arith.constant dense<0.000000e+00> : vector<8xf32>
    %711 = vector.multi_reduction <add>, %710, %cst_196 [1] : vector<8x10xf32> to vector<8xf32>
    %712 = vector.shape_cast %711 : vector<8xf32> to vector<8x1xf32>
    %713 = math.log %712 : vector<8x1xf32>
    %714 = arith.addf %707, %713 : vector<8x1xf32>
    %715 = vector.broadcast %714 : vector<8x1xf32> to vector<8x10xf32>
    %716 = arith.subf %705, %715 : vector<8x10xf32>
    %c0_197 = arith.constant 0 : index
    %c0_198 = arith.constant 0 : index
    %717 = vector.load %arg20[%c0_197, %c0_198] : memref<8x10xf32, #tpu.memory_space<vmem>>, vector<8x10xf32>
    tpu.vector_store %arg20[%c0_197, %c0_198], %716 {strides = array<i32>} : memref<8x10xf32, #tpu.memory_space<vmem>>, vector<8x10xf32>,
    return
  }
}

</mosaic_0001>

<llo_original>
// kernel: tpu_custom_call.1
$region0: #{tpu_custom_call.1}
  #allocation0 [shape = 'u32[]', space=smem, size = 0x4, offset = 0x4, fixed_abs, tag = 'smem constant byte address 0x4 - core index']
  #allocation1 [shape = 'u32[144,128]{1,0:T(1,128)}', space=vmem, size = 0x12000, scoped, tag = 'internal scratch']
  #allocation2 [shape = 'bf16[256,1024]{1,0:T(16,128)(2,1)}', space=vmem, size = 0x80000, scoped, tag = 'scratch operand']
  #allocation3 [shape = 'bf16[256,1024]{1,0:T(16,128)(2,1)}', space=vmem, size = 0x80000, scoped, tag = 'scratch operand']
  #allocation4 [shape = 'bf16[256,256]{1,0:T(16,128)(2,1)}', space=vmem, size = 0x20000, scoped, tag = 'scratch operand']
  #allocation5 [shape = 'f32[64,1024]{1,0:T(8,128)}', space=vmem, size = 0x40000, scoped, tag = 'scratch operand']
  #allocation6 [shape = 'f32[64,256]{1,0:T(8,128)}', space=vmem, size = 0x10000, scoped, tag = 'scratch operand']
  #allocation7 [shape = 's32[3]{0}', space=sflag, size = 0xc, scoped, tag = 'scratch operand']
  #allocation14 [shape = 's32[]', space=sflag, size = 0x4, offset = 0, fixed_abs, tag = 'sflag constant byte address 0x0 - dummy sync flag']
  #allocation16 [shape = 's32[]', space=sflag, size = 0x4, offset = 0, fixed_abs, tag = 'sflag constant byte address 0x0 - dummy sync flag']
  #allocation18 [shape = 's32[]', space=sflag, size = 0x4, offset = 0, fixed_abs, tag = 'sflag constant byte address 0x0 - dummy sync flag']
  %s0 = inlined_call_operand.vmem [shape: f32[64,130], index: 0, kind: input, shape index: {}]
  %s1 = inlined_call_operand.vmem [shape: s32[8,1], index: 1, kind: input, shape index: {}]
  %s2 = inlined_call_operand.hbm [shape: f32[130,1024], index: 2, kind: input, shape index: {}]
  %s3 = inlined_call_operand.hbm [shape: bf16[256,1024], index: 3, kind: input, shape index: {}]
  %s4 = inlined_call_operand.vmem [shape: f32[1,1024], index: 4, kind: input, shape index: {}]
  %s5 = inlined_call_operand.hbm [shape: bf16[256,1024], index: 5, kind: input, shape index: {}]
  %s6 = inlined_call_operand.hbm [shape: bf16[256,1024], index: 6, kind: input, shape index: {}]
  %s7 = inlined_call_operand.vmem [shape: f32[1,1024], index: 7, kind: input, shape index: {}]
  %s8 = inlined_call_operand.vmem [shape: f32[8,64], index: 8, kind: input, shape index: {}]
  %s9 = inlined_call_operand.vmem [shape: f32[64,16], index: 9, kind: input, shape index: {}]
  %s10 = inlined_call_operand.vmem [shape: f32[1,16], index: 10, kind: input, shape index: {}]
  %s11 = inlined_call_operand.vmem [shape: f32[16,8], index: 11, kind: input, shape index: {}]
  %s12 = inlined_call_operand.vmem [shape: f32[1,8], index: 12, kind: input, shape index: {}]
  %s13 = inlined_call_operand.vmem [shape: f32[8,4], index: 13, kind: input, shape index: {}]
  %s14 = inlined_call_operand.vmem [shape: f32[1,4], index: 14, kind: input, shape index: {}]
  %s15 = inlined_call_operand.vmem [shape: bf16[256,256], index: 15, kind: input, shape index: {}]
  %s16 = inlined_call_operand.vmem [shape: f32[4,256], index: 16, kind: input, shape index: {}]
  %s17 = inlined_call_operand.vmem [shape: f32[1,256], index: 17, kind: input, shape index: {}]
  %s18 = inlined_call_operand.vmem [shape: f32[256,10], index: 18, kind: input, shape index: {}]
  %s19 = inlined_call_operand.vmem [shape: f32[1,10], index: 19, kind: input, shape index: {}]
  %s20 = inlined_call_operand.hbm [shape: f32[8,10], index: 20, kind: output, shape index: {}]
  %s21 = sld [smem:[#allocation0]]
  $region123: #{tpu_custom_call.1} parent=0
    _
  %s23 = ssub.s32 1, %s21
  %s24 = scalar_select 0, %s23, %s21
  $region1: #{tpu_custom_call.1} parent=0
    #allocation8 [shape = 'u8[557056]{0}', space=vmem, size = 0x88000, scoped, tag = 'input window, operand 2, single buffered']
    #allocation9 [shape = 's32[1]{0}', space=sflag, size = 0x4, scoped, tag = 'scoped memory for tpu_custom_call.1']
    #allocation10 [shape = 's32[1]{0}', space=sflag, size = 0x4, scoped, tag = 'scoped memory for tpu_custom_call.1']
    #allocation11 [shape = 'u8[524288]{0}', space=vmem, size = 0x80000, scoped, tag = 'input window, operand 3, single buffered']
    #allocation12 [shape = 's32[1]{0}', space=sflag, size = 0x4, scoped, tag = 'scoped memory for tpu_custom_call.1']
    #allocation13 [shape = 'u8[4096]{0}', space=vmem, size = 0x1000, scoped, tag = 'output window, operand 0, single buffered']
    #allocation15 [shape = 'u32[9]{0}', space=smem, size = 0x24, scoped, tag = 'DMA stride descriptor']
    #allocation17 [shape = 'u32[9]{0}', space=smem, size = 0x24, scoped, tag = 'DMA stride descriptor']
    %25 = vsyncpa [#allocation9], 0
    %26 = vsyncpa [#allocation12], 0
    %27 = vsyncpa [#allocation10], 0
    // Predicated region
    $region2: #{tpu_custom_call.1} parent=1 // pred_check
      _
    $region3: #{tpu_custom_call.1} parent=1 // pred_check_branch
      %29 = sbr.rel (0) target = $region5
    $region4: #{tpu_custom_call.1} parent=1 // pred_region
      _
    $region5: #{tpu_custom_call.1} parent=1 // pred_fallthru
      _
    // Predicated region
    $region6: #{tpu_custom_call.1} parent=1 // pred_check
      _
    $region7: #{tpu_custom_call.1} parent=1 // pred_check_branch
      %31 = sbr.rel (0) target = $region9
    $region8: #{tpu_custom_call.1} parent=1 // pred_region
      _
    $region9: #{tpu_custom_call.1} parent=1 // pred_fallthru
      _
    // Predicated region
    $region10: #{tpu_custom_call.1} parent=1 // pred_check
      _
    $region11: #{tpu_custom_call.1} parent=1 // pred_check_branch
      %33 = sbr.rel (0) target = $region13
    $region12: #{tpu_custom_call.1} parent=1 // pred_region
      %s35 = ssub.s32 17408, 17408
      %36 = vsyncadd [#allocation9], %s35
      %s37 = sshll.u32 [#allocation8], 4
      %s38 = int_to_ptr.vmem [resolvable:$true] %s37
      %43 = dma.hbm_to_vmem [thread:$0]  %s2, 17408, %s38, [#allocation9], 1024, 1024, 64
    $region13: #{tpu_custom_call.1} parent=1 // pred_fallthru
      _
    // Predicated region
    $region14: #{tpu_custom_call.1} parent=1 // pred_check
      _
    $region15: #{tpu_custom_call.1} parent=1 // pred_check_branch
      %45 = sbr.rel (0) target = $region17
    $region16: #{tpu_custom_call.1} parent=1 // pred_region
      %s47 = ssub.s32 16384, 16384
      %48 = vsyncadd [#allocation12], %s47
      %s49 = sshll.u32 [#allocation11], 4
      %s50 = int_to_ptr.vmem [resolvable:$true] %s49
      %55 = dma.hbm_to_vmem [thread:$0]  %s3, 16384, %s50, [#allocation12], 512, 512, 32
    $region17: #{tpu_custom_call.1} parent=1 // pred_fallthru
      _
    // Predicated region
    $region18: #{tpu_custom_call.1} parent=1 // pred_check
      _
    $region19: #{tpu_custom_call.1} parent=1 // pred_check_branch
      %57 = sbr.rel (0) target = $region21
    $region20: #{tpu_custom_call.1} parent=1 // pred_region
      _
    $region21: #{tpu_custom_call.1} parent=1 // pred_fallthru
      _
    // Predicated region
    $region22: #{tpu_custom_call.1} parent=1 // pred_check
      _
    $region23: #{tpu_custom_call.1} parent=1 // pred_check_branch
      %59 = sbr.rel (0) target = $region25
    $region24: #{tpu_custom_call.1} parent=1 // pred_region
      _
    $region25: #{tpu_custom_call.1} parent=1 // pred_fallthru
      _
    // Predicated region
    $region26: #{tpu_custom_call.1} parent=1 // pred_check
      _
    $region27: #{tpu_custom_call.1} parent=1 // pred_check_branch
      %61 = sbr.rel (0) target = $region29
    $region28: #{tpu_custom_call.1} parent=1 // pred_region
      _
    $region29: #{tpu_custom_call.1} parent=1 // pred_fallthru
      _
    // Predicated region
    $region30: #{tpu_custom_call.1} parent=1 // pred_check
      _
    $region31: #{tpu_custom_call.1} parent=1 // pred_check_branch
      %63 = sbr.rel (0) target = $region33
    $region32: #{tpu_custom_call.1} parent=1 // pred_region
      _
    $region33: #{tpu_custom_call.1} parent=1 // pred_fallthru
      _
    // Predicated region
    $region34: #{tpu_custom_call.1} parent=1 // pred_check
      _
    $region35: #{tpu_custom_call.1} parent=1 // pred_check_branch
      %65 = sbr.rel (0) target = $region37
    $region36: #{tpu_custom_call.1} parent=1 // pred_region
      _
    $region37: #{tpu_custom_call.1} parent=1 // pred_fallthru
      _
    // Predicated region
    $region38: #{tpu_custom_call.1} parent=1 // pred_check
      _
    $region39: #{tpu_custom_call.1} parent=1 // pred_check_branch
      %67 = sbr.rel (0) target = $region41
    $region40: #{tpu_custom_call.1} parent=1 // pred_region
      _
    $region41: #{tpu_custom_call.1} parent=1 // pred_fallthru
      _
    // Predicated region
    $region42: #{tpu_custom_call.1} parent=1 // pred_check
      _
    $region43: #{tpu_custom_call.1} parent=1 // pred_check_branch
      %69 = sbr.rel (0) target = $region45
    $region44: #{tpu_custom_call.1} parent=1 // pred_region
      _
    $region45: #{tpu_custom_call.1} parent=1 // pred_fallthru
      _
    // Predicated region
    $region46: #{tpu_custom_call.1} parent=1 // pred_check
      _
    $region47: #{tpu_custom_call.1} parent=1 // pred_check_branch
      %71 = sbr.rel (0) target = $region49
    $region48: #{tpu_custom_call.1} parent=1 // pred_region
      _
    $region49: #{tpu_custom_call.1} parent=1 // pred_fallthru
      _
    // Predicated region
    $region50: #{tpu_custom_call.1} parent=1 // pred_check
      _
    $region51: #{tpu_custom_call.1} parent=1 // pred_check_branch
      %73 = sbr.rel (0) target = $region53
    $region52: #{tpu_custom_call.1} parent=1 // pred_region
      _
    $region53: #{tpu_custom_call.1} parent=1 // pred_fallthru
      _
    // Predicated region
    $region54: #{tpu_custom_call.1} parent=1 // pred_check
      _
    $region55: #{tpu_custom_call.1} parent=1 // pred_check_branch
      %75 = sbr.rel (0) target = $region57
    $region56: #{tpu_custom_call.1} parent=1 // pred_region
      _
    $region57: #{tpu_custom_call.1} parent=1 // pred_fallthru
      _
    // Predicated region
    $region58: #{tpu_custom_call.1} parent=1 // pred_check
      _
    $region59: #{tpu_custom_call.1} parent=1 // pred_check_branch
      %77 = sbr.rel (0) target = $region61
    $region60: #{tpu_custom_call.1} parent=1 // pred_region
      _
    $region61: #{tpu_custom_call.1} parent=1 // pred_fallthru
      _
    // Predicated region
    $region62: #{tpu_custom_call.1} parent=1 // pred_check
      _
    $region63: #{tpu_custom_call.1} parent=1 // pred_check_branch
      %79 = sbr.rel (0) target = $region65
    $region64: #{tpu_custom_call.1} parent=1 // pred_region
      _
    $region65: #{tpu_custom_call.1} parent=1 // pred_fallthru
      _
    // Predicated region
    $region66: #{tpu_custom_call.1} parent=1 // pred_check
      _
    $region67: #{tpu_custom_call.1} parent=1 // pred_check_branch
      %81 = sbr.rel (0) target = $region69
    $region68: #{tpu_custom_call.1} parent=1 // pred_region
      _
    $region69: #{tpu_custom_call.1} parent=1 // pred_fallthru
      _
    // Predicated region
    $region70: #{tpu_custom_call.1} parent=1 // pred_check
      _
    $region71: #{tpu_custom_call.1} parent=1 // pred_check_branch
      %83 = sbr.rel (0) target = $region73
    $region72: #{tpu_custom_call.1} parent=1 // pred_region
      %84 = dma.done [#allocation9], 17408
    $region73: #{tpu_custom_call.1} parent=1 // pred_fallthru
      _
    // Predicated region
    $region74: #{tpu_custom_call.1} parent=1 // pred_check
      _
    $region75: #{tpu_custom_call.1} parent=1 // pred_check_branch
      %86 = sbr.rel (0) target = $region77
    $region76: #{tpu_custom_call.1} parent=1 // pred_region
      %87 = dma.done [#allocation12], 16384
    $region77: #{tpu_custom_call.1} parent=1 // pred_fallthru
      _
    %s90 = sshll.u32 1, 14
    %s91 = sxor.u32 4294967295, %s90
    %s93 = sld [smem:[#allocation0]]
    %s94 = sadd.s32 2, %s93
    %s96 = sshll.u32 7, 26
    %s97 = sxor.u32 4294967295, %s96
    %s98 = sand.u32 0, %s97
    %s99 = sshll.u32 %s94, 26
    %s100 = sor.u32 %s98, %s99
    %s101 = sshll.u32 [#allocation2], 4
    %s102 = int_to_ptr.vmem [resolvable:$true] %s101
    %105 = sst [smem:[#allocation15]] 1024
    %s106 = scalar_lea.smem [#allocation15], 1
    %107 = sst [smem:[%s106]] 1024
    %s108 = scalar_lea.smem [#allocation15], 2
    %109 = sst [smem:[%s108]] 8
    %s110 = scalar_lea.smem [#allocation15], 3
    %111 = sst [smem:[%s110]] 64
    %s112 = scalar_lea.smem [#allocation15], 4
    %113 = sst [smem:[%s112]] 128
    %s114 = scalar_lea.smem [#allocation15], 5
    %115 = sst [smem:[%s114]] 2
    %s116 = scalar_lea.smem [#allocation15], 6
    %117 = sst [smem:[%s116]] 512
    %s118 = scalar_lea.smem [#allocation15], 7
    %119 = sst [smem:[%s118]] 64
    %s120 = scalar_lea.smem [#allocation15], 8
    %121 = sst [smem:[%s120]] 4
    %123 = dma.general %s5, 16384, %s102, [#allocation7], [#allocation14], [#allocation15], %s100, 0
    %s124 = scalar_lea.sflag [#allocation7], 1
    %s126 = sshll.u32 1, 14
    %s127 = sxor.u32 4294967295, %s126
    %s129 = sadd.s32 2, %s93
    %s131 = sshll.u32 7, 26
    %s132 = sxor.u32 4294967295, %s131
    %s133 = sand.u32 0, %s132
    %s134 = sshll.u32 %s129, 26
    %s135 = sor.u32 %s133, %s134
    %s136 = sshll.u32 [#allocation3], 4
    %s137 = int_to_ptr.vmem [resolvable:$true] %s136
    %140 = sst [smem:[#allocation17]] 1024
    %s141 = scalar_lea.smem [#allocation17], 1
    %142 = sst [smem:[%s141]] 1024
    %s143 = scalar_lea.smem [#allocation17], 2
    %144 = sst [smem:[%s143]] 8
    %s145 = scalar_lea.smem [#allocation17], 3
    %146 = sst [smem:[%s145]] 64
    %s147 = scalar_lea.smem [#allocation17], 4
    %148 = sst [smem:[%s147]] 128
    %s149 = scalar_lea.smem [#allocation17], 5
    %150 = sst [smem:[%s149]] 2
    %s151 = scalar_lea.smem [#allocation17], 6
    %152 = sst [smem:[%s151]] 512
    %s153 = scalar_lea.smem [#allocation17], 7
    %154 = sst [smem:[%s153]] 64
    %s155 = scalar_lea.smem [#allocation17], 8
    %156 = sst [smem:[%s155]] 4
    %158 = dma.general %s6, 16384, %s137, %s124, [#allocation16], [#allocation17], %s135, 0
    %s159 = scalar_lea.sflag [#allocation7], 2
    %p161 = scmp.lt.u32.totalorder 4, 8
    %p162 = pneg %p161
    // Predicated region
    $region78: #{tpu_custom_call.1} parent=1 // pred_check
      _
    $region79: #{tpu_custom_call.1} parent=1 // pred_check_branch
      %164 = sbr.rel (%p161) target = $region81
    $region80: #{tpu_custom_call.1} parent=1 // pred_region
      %s305 = sand.u32 4, 7
      %p306 = scmp.eq.s32.totalorder %s305, 0
      %p307 = pneg %p306
      // Predicated region
      $region93: #{tpu_custom_call.1} parent=80 // pred_check
        _
      $region94: #{tpu_custom_call.1} parent=80 // pred_check_branch
        %309 = sbr.rel (%p306) target = $region96
      $region95: #{tpu_custom_call.1} parent=80 // pred_region
        %s310 = sand.u32 4, 7
        %s311 = ssub.s32 4, %s310
        %s312 = scalar_lea.vmem %s15, %s311
        %s313 = ssub.s32 4, %s310
        %s314 = scalar_lea.vmem [#allocation4], %s313
        loop: start=0, step=1, limit=1
        $region97: #{tpu_custom_call.1} parent=95 // loop_pre_header
          _
        $region98: #{tpu_custom_call.1} parent=95 // loop_header
          %s316 = sphi 0, %s320
          %p317 = scmp.ge.s32.totalorder %s316, 1
          %s321 = sphi %s15, %s15
          %s322 = sphi [#allocation4], [#allocation4]
        $region99: #{tpu_custom_call.1} parent=95 // loop_header_branch
          %319 = sbr.rel (%p317) target = $region103
        $region100: #{tpu_custom_call.1} parent=95 // loop_body
          _
        $region101: #{tpu_custom_call.1} parent=95 // loop_footer
          %s320 = sadd.s32 1, %s316
        $region102: #{tpu_custom_call.1} parent=95 // loop_footer_branch
          %315 = sbr.rel target = $region98
        $region103: #{tpu_custom_call.1} parent=95 // loop_exit
          _
        %s323 = sshllo.u32 0, %s310
        loop: start=0, step=1, limit=1
        $region104: #{tpu_custom_call.1} parent=95 // loop_pre_header
          _
        $region105: #{tpu_custom_call.1} parent=95 // loop_header
          %s325 = sphi 0, %s329
          %p326 = scmp.ge.s32.totalorder %s325, 1
          %s330 = sphi %s312, %s312
          %s331 = sphi %s314, %s314
        $region106: #{tpu_custom_call.1} parent=95 // loop_header_branch
          %328 = sbr.rel (%p326) target = $region110
        $region107: #{tpu_custom_call.1} parent=95 // loop_body
          %v332 = vld [vmem:[%s330] sm:%s323]
          %333 = vst [vmem:[%s331] sm:%s323] %v332
          %v334 = vld [vmem:[%s330 + $0x8] sm:%s323]
          %335 = vst [vmem:[%s331 + $0x4] sm:%s323] %v334
          %v336 = vld [vmem:[%s330 + $0x4] sm:%s323]
          %337 = vst [vmem:[%s331 + $0x8] sm:%s323] %v336
          %v338 = vld [vmem:[%s330 + $0xc] sm:%s323]
          %339 = vst [vmem:[%s331 + $0xc] sm:%s323] %v338
          %v340 = vld [vmem:[%s330 + $0x10] sm:%s323]
          %341 = vst [vmem:[%s331 + $0x10] sm:%s323] %v340
          %v342 = vld [vmem:[%s330 + $0x18] sm:%s323]
          %343 = vst [vmem:[%s331 + $0x14] sm:%s323] %v342
          %v344 = vld [vmem:[%s330 + $0x14] sm:%s323]
          %345 = vst [vmem:[%s331 + $0x18] sm:%s323] %v344
          %v346 = vld [vmem:[%s330 + $0x1c] sm:%s323]
          %347 = vst [vmem:[%s331 + $0x1c] sm:%s323] %v346
          %v348 = vld [vmem:[%s330 + $0x20] sm:%s323]
          %349 = vst [vmem:[%s331 + $0x20] sm:%s323] %v348
          %v350 = vld [vmem:[%s330 + $0x28] sm:%s323]
          %351 = vst [vmem:[%s331 + $0x24] sm:%s323] %v350
          %v352 = vld [vmem:[%s330 + $0x24] sm:%s323]
          %353 = vst [vmem:[%s331 + $0x28] sm:%s323] %v352
          %v354 = vld [vmem:[%s330 + $0x2c] sm:%s323]
          %355 = vst [vmem:[%s331 + $0x2c] sm:%s323] %v354
          %v356 = vld [vmem:[%s330 + $0x30] sm:%s323]
          %357 = vst [vmem:[%s331 + $0x30] sm:%s323] %v356
          %v358 = vld [vmem:[%s330 + $0x38] sm:%s323]
          %359 = vst [vmem:[%s331 + $0x34] sm:%s323] %v358
          %v360 = vld [vmem:[%s330 + $0x34] sm:%s323]
          %361 = vst [vmem:[%s331 + $0x38] sm:%s323] %v360
          %v362 = vld [vmem:[%s330 + $0x3c] sm:%s323]
          %363 = vst [vmem:[%s331 + $0x3c] sm:%s323] %v362
          %v364 = vld [vmem:[%s330 + $0x40] sm:%s323]
          %365 = vst [vmem:[%s331 + $0x40] sm:%s323] %v364
          %v366 = vld [vmem:[%s330 + $0x48] sm:%s323]
          %367 = vst [vmem:[%s331 + $0x44] sm:%s323] %v366
          %v368 = vld [vmem:[%s330 + $0x44] sm:%s323]
          %369 = vst [vmem:[%s331 + $0x48] sm:%s323] %v368
          %v370 = vld [vmem:[%s330 + $0x4c] sm:%s323]
          %371 = vst [vmem:[%s331 + $0x4c] sm:%s323] %v370
          %v372 = vld [vmem:[%s330 + $0x50] sm:%s323]
          %373 = vst [vmem:[%s331 + $0x50] sm:%s323] %v372
          %v374 = vld [vmem:[%s330 + $0x58] sm:%s323]
          %375 = vst [vmem:[%s331 + $0x54] sm:%s323] %v374
          %v376 = vld [vmem:[%s330 + $0x54] sm:%s323]
          %377 = vst [vmem:[%s331 + $0x58] sm:%s323] %v376
          %v378 = vld [vmem:[%s330 + $0x5c] sm:%s323]
          %379 = vst [vmem:[%s331 + $0x5c] sm:%s323] %v378
          %v380 = vld [vmem:[%s330 + $0x60] sm:%s323]
          %381 = vst [vmem:[%s331 + $0x60] sm:%s323] %v380
          %v382 = vld [vmem:[%s330 + $0x68] sm:%s323]
          %383 = vst [vmem:[%s331 + $0x64] sm:%s323] %v382
          %v384 = vld [vmem:[%s330 + $0x64] sm:%s323]
          %385 = vst [vmem:[%s331 + $0x68] sm:%s323] %v384
          %v386 = vld [vmem:[%s330 + $0x6c] sm:%s323]
          %387 = vst [vmem:[%s331 + $0x6c] sm:%s323] %v386
          %v388 = vld [vmem:[%s330 + $0x70] sm:%s323]
          %389 = vst [vmem:[%s331 + $0x70] sm:%s323] %v388
          %v390 = vld [vmem:[%s330 + $0x78] sm:%s323]
          %391 = vst [vmem:[%s331 + $0x74] sm:%s323] %v390
          %v392 = vld [vmem:[%s330 + $0x74] sm:%s323]
          %393 = vst [vmem:[%s331 + $0x78] sm:%s323] %v392
          %v394 = vld [vmem:[%s330 + $0x7c] sm:%s323]
          %395 = vst [vmem:[%s331 + $0x7c] sm:%s323] %v394
          %v396 = vld [vmem:[%s330 + $0x80] sm:%s323]
          %397 = vst [vmem:[%s331 + $0x80] sm:%s323] %v396
          %v398 = vld [vmem:[%s330 + $0x88] sm:%s323]
          %399 = vst [vmem:[%s331 + $0x84] sm:%s323] %v398
          %v400 = vld [vmem:[%s330 + $0x84] sm:%s323]
          %401 = vst [vmem:[%s331 + $0x88] sm:%s323] %v400
          %v402 = vld [vmem:[%s330 + $0x8c] sm:%s323]
          %403 = vst [vmem:[%s331 + $0x8c] sm:%s323] %v402
          %v404 = vld [vmem:[%s330 + $0x90] sm:%s323]
          %405 = vst [vmem:[%s331 + $0x90] sm:%s323] %v404
          %v406 = vld [vmem:[%s330 + $0x98] sm:%s323]
          %407 = vst [vmem:[%s331 + $0x94] sm:%s323] %v406
          %v408 = vld [vmem:[%s330 + $0x94] sm:%s323]
          %409 = vst [vmem:[%s331 + $0x98] sm:%s323] %v408
          %v410 = vld [vmem:[%s330 + $0x9c] sm:%s323]
          %411 = vst [vmem:[%s331 + $0x9c] sm:%s323] %v410
          %v412 = vld [vmem:[%s330 + $0xa0] sm:%s323]
          %413 = vst [vmem:[%s331 + $0xa0] sm:%s323] %v412
          %v414 = vld [vmem:[%s330 + $0xa8] sm:%s323]
          %415 = vst [vmem:[%s331 + $0xa4] sm:%s323] %v414
          %v416 = vld [vmem:[%s330 + $0xa4] sm:%s323]
          %417 = vst [vmem:[%s331 + $0xa8] sm:%s323] %v416
          %v418 = vld [vmem:[%s330 + $0xac] sm:%s323]
          %419 = vst [vmem:[%s331 + $0xac] sm:%s323] %v418
          %v420 = vld [vmem:[%s330 + $0xb0] sm:%s323]
          %421 = vst [vmem:[%s331 + $0xb0] sm:%s323] %v420
          %v422 = vld [vmem:[%s330 + $0xb8] sm:%s323]
          %423 = vst [vmem:[%s331 + $0xb4] sm:%s323] %v422
          %v424 = vld [vmem:[%s330 + $0xb4] sm:%s323]
          %425 = vst [vmem:[%s331 + $0xb8] sm:%s323] %v424
          %v426 = vld [vmem:[%s330 + $0xbc] sm:%s323]
          %427 = vst [vmem:[%s331 + $0xbc] sm:%s323] %v426
          %v428 = vld [vmem:[%s330 + $0xc0] sm:%s323]
          %429 = vst [vmem:[%s331 + $0xc0] sm:%s323] %v428
          %v430 = vld [vmem:[%s330 + $0xc8] sm:%s323]
          %431 = vst [vmem:[%s331 + $0xc4] sm:%s323] %v430
          %v432 = vld [vmem:[%s330 + $0xc4] sm:%s323]
          %433 = vst [vmem:[%s331 + $0xc8] sm:%s323] %v432
          %v434 = vld [vmem:[%s330 + $0xcc] sm:%s323]
          %435 = vst [vmem:[%s331 + $0xcc] sm:%s323] %v434
          %v436 = vld [vmem:[%s330 + $0xd0] sm:%s323]
          %437 = vst [vmem:[%s331 + $0xd0] sm:%s323] %v436
          %v438 = vld [vmem:[%s330 + $0xd8] sm:%s323]
          %439 = vst [vmem:[%s331 + $0xd4] sm:%s323] %v438
          %v440 = vld [vmem:[%s330 + $0xd4] sm:%s323]
          %441 = vst [vmem:[%s331 + $0xd8] sm:%s323] %v440
          %v442 = vld [vmem:[%s330 + $0xdc] sm:%s323]
          %443 = vst [vmem:[%s331 + $0xdc] sm:%s323] %v442
          %v444 = vld [vmem:[%s330 + $0xe0] sm:%s323]
          %445 = vst [vmem:[%s331 + $0xe0] sm:%s323] %v444
          %v446 = vld [vmem:[%s330 + $0xe8] sm:%s323]
          %447 = vst [vmem:[%s331 + $0xe4] sm:%s323] %v446
          %v448 = vld [vmem:[%s330 + $0xe4] sm:%s323]
          %449 = vst [vmem:[%s331 + $0xe8] sm:%s323] %v448
          %v450 = vld [vmem:[%s330 + $0xec] sm:%s323]
          %451 = vst [vmem:[%s331 + $0xec] sm:%s323] %v450
          %v452 = vld [vmem:[%s330 + $0xf0] sm:%s323]
          %453 = vst [vmem:[%s331 + $0xf0] sm:%s323] %v452
          %v454 = vld [vmem:[%s330 + $0xf8] sm:%s323]
          %455 = vst [vmem:[%s331 + $0xf4] sm:%s323] %v454
          %v456 = vld [vmem:[%s330 + $0xf4] sm:%s323]
          %457 = vst [vmem:[%s331 + $0xf8] sm:%s323] %v456
          %v458 = vld [vmem:[%s330 + $0xfc] sm:%s323]
          %459 = vst [vmem:[%s331 + $0xfc] sm:%s323] %v458
        $region108: #{tpu_custom_call.1} parent=95 // loop_footer
          %s329 = sadd.s32 1, %s325
        $region109: #{tpu_custom_call.1} parent=95 // loop_footer_branch
          %324 = sbr.rel target = $region105
        $region110: #{tpu_custom_call.1} parent=95 // loop_exit
          _
      $region96: #{tpu_custom_call.1} parent=80 // pred_fallthru
        _
    $region81: #{tpu_custom_call.1} parent=1 // pred_fallthru
      _
    // Predicated region
    $region82: #{tpu_custom_call.1} parent=1 // pred_check
      %p165 = pneg %p161
    $region83: #{tpu_custom_call.1} parent=1 // pred_check_branch
      %167 = sbr.rel (%p165) target = $region85
    $region84: #{tpu_custom_call.1} parent=1 // pred_region
      %s168 = sshllo.u32 0, 4
      loop: start=0, step=1, limit=1
      $region86: #{tpu_custom_call.1} parent=84 // loop_pre_header
        _
      $region87: #{tpu_custom_call.1} parent=84 // loop_header
        %s170 = sphi 0, %s174
        %p171 = scmp.ge.s32.totalorder %s170, 1
        %s175 = sphi %s15, %s15
        %s176 = sphi [#allocation4], [#allocation4]
      $region88: #{tpu_custom_call.1} parent=84 // loop_header_branch
        %173 = sbr.rel (%p171) target = $region92
      $region89: #{tpu_custom_call.1} parent=84 // loop_body
        %v177 = vld [vmem:[%s175] sm:%s168]
        %178 = vst [vmem:[%s176] sm:%s168] %v177
        %v179 = vld [vmem:[%s175 + $0x8] sm:%s168]
        %180 = vst [vmem:[%s176 + $0x4] sm:%s168] %v179
        %v181 = vld [vmem:[%s175 + $0x4] sm:%s168]
        %182 = vst [vmem:[%s176 + $0x8] sm:%s168] %v181
        %v183 = vld [vmem:[%s175 + $0xc] sm:%s168]
        %184 = vst [vmem:[%s176 + $0xc] sm:%s168] %v183
        %v185 = vld [vmem:[%s175 + $0x10] sm:%s168]
        %186 = vst [vmem:[%s176 + $0x10] sm:%s168] %v185
        %v187 = vld [vmem:[%s175 + $0x18] sm:%s168]
        %188 = vst [vmem:[%s176 + $0x14] sm:%s168] %v187
        %v189 = vld [vmem:[%s175 + $0x14] sm:%s168]
        %190 = vst [vmem:[%s176 + $0x18] sm:%s168] %v189
        %v191 = vld [vmem:[%s175 + $0x1c] sm:%s168]
        %192 = vst [vmem:[%s176 + $0x1c] sm:%s168] %v191
        %v193 = vld [vmem:[%s175 + $0x20] sm:%s168]
        %194 = vst [vmem:[%s176 + $0x20] sm:%s168] %v193
        %v195 = vld [vmem:[%s175 + $0x28] sm:%s168]
        %196 = vst [vmem:[%s176 + $0x24] sm:%s168] %v195
        %v197 = vld [vmem:[%s175 + $0x24] sm:%s168]
        %198 = vst [vmem:[%s176 + $0x28] sm:%s168] %v197
        %v199 = vld [vmem:[%s175 + $0x2c] sm:%s168]
        %200 = vst [vmem:[%s176 + $0x2c] sm:%s168] %v199
        %v201 = vld [vmem:[%s175 + $0x30] sm:%s168]
        %202 = vst [vmem:[%s176 + $0x30] sm:%s168] %v201
        %v203 = vld [vmem:[%s175 + $0x38] sm:%s168]
        %204 = vst [vmem:[%s176 + $0x34] sm:%s168] %v203
        %v205 = vld [vmem:[%s175 + $0x34] sm:%s168]
        %206 = vst [vmem:[%s176 + $0x38] sm:%s168] %v205
        %v207 = vld [vmem:[%s175 + $0x3c] sm:%s168]
        %208 = vst [vmem:[%s176 + $0x3c] sm:%s168] %v207
        %v209 = vld [vmem:[%s175 + $0x40] sm:%s168]
        %210 = vst [vmem:[%s176 + $0x40] sm:%s168] %v209
        %v211 = vld [vmem:[%s175 + $0x48] sm:%s168]
        %212 = vst [vmem:[%s176 + $0x44] sm:%s168] %v211
        %v213 = vld [vmem:[%s175 + $0x44] sm:%s168]
        %214 = vst [vmem:[%s176 + $0x48] sm:%s168] %v213
        %v215 = vld [vmem:[%s175 + $0x4c] sm:%s168]
        %216 = vst [vmem:[%s176 + $0x4c] sm:%s168] %v215
        %v217 = vld [vmem:[%s175 + $0x50] sm:%s168]
        %218 = vst [vmem:[%s176 + $0x50] sm:%s168] %v217
        %v219 = vld [vmem:[%s175 + $0x58] sm:%s168]
        %220 = vst [vmem:[%s176 + $0x54] sm:%s168] %v219
        %v221 = vld [vmem:[%s175 + $0x54] sm:%s168]
        %222 = vst [vmem:[%s176 + $0x58] sm:%s168] %v221
        %v223 = vld [vmem:[%s175 + $0x5c] sm:%s168]
        %224 = vst [vmem:[%s176 + $0x5c] sm:%s168] %v223
        %v225 = vld [vmem:[%s175 + $0x60] sm:%s168]
        %226 = vst [vmem:[%s176 + $0x60] sm:%s168] %v225
        %v227 = vld [vmem:[%s175 + $0x68] sm:%s168]
        %228 = vst [vmem:[%s176 + $0x64] sm:%s168] %v227
        %v229 = vld [vmem:[%s175 + $0x64] sm:%s168]
        %230 = vst [vmem:[%s176 + $0x68] sm:%s168] %v229
        %v231 = vld [vmem:[%s175 + $0x6c] sm:%s168]
        %232 = vst [vmem:[%s176 + $0x6c] sm:%s168] %v231
        %v233 = vld [vmem:[%s175 + $0x70] sm:%s168]
        %234 = vst [vmem:[%s176 + $0x70] sm:%s168] %v233
        %v235 = vld [vmem:[%s175 + $0x78] sm:%s168]
        %236 = vst [vmem:[%s176 + $0x74] sm:%s168] %v235
        %v237 = vld [vmem:[%s175 + $0x74] sm:%s168]
        %238 = vst [vmem:[%s176 + $0x78] sm:%s168] %v237
        %v239 = vld [vmem:[%s175 + $0x7c] sm:%s168]
        %240 = vst [vmem:[%s176 + $0x7c] sm:%s168] %v239
        %v241 = vld [vmem:[%s175 + $0x80] sm:%s168]
        %242 = vst [vmem:[%s176 + $0x80] sm:%s168] %v241
        %v243 = vld [vmem:[%s175 + $0x88] sm:%s168]
        %244 = vst [vmem:[%s176 + $0x84] sm:%s168] %v243
        %v245 = vld [vmem:[%s175 + $0x84] sm:%s168]
        %246 = vst [vmem:[%s176 + $0x88] sm:%s168] %v245
        %v247 = vld [vmem:[%s175 + $0x8c] sm:%s168]
        %248 = vst [vmem:[%s176 + $0x8c] sm:%s168] %v247
        %v249 = vld [vmem:[%s175 + $0x90] sm:%s168]
        %250 = vst [vmem:[%s176 + $0x90] sm:%s168] %v249
        %v251 = vld [vmem:[%s175 + $0x98] sm:%s168]
        %252 = vst [vmem:[%s176 + $0x94] sm:%s168] %v251
        %v253 = vld [vmem:[%s175 + $0x94] sm:%s168]
        %254 = vst [vmem:[%s176 + $0x98] sm:%s168] %v253
        %v255 = vld [vmem:[%s175 + $0x9c] sm:%s168]
        %256 = vst [vmem:[%s176 + $0x9c] sm:%s168] %v255
        %v257 = vld [vmem:[%s175 + $0xa0] sm:%s168]
        %258 = vst [vmem:[%s176 + $0xa0] sm:%s168] %v257
        %v259 = vld [vmem:[%s175 + $0xa8] sm:%s168]
        %260 = vst [vmem:[%s176 + $0xa4] sm:%s168] %v259
        %v261 = vld [vmem:[%s175 + $0xa4] sm:%s168]
        %262 = vst [vmem:[%s176 + $0xa8] sm:%s168] %v261
        %v263 = vld [vmem:[%s175 + $0xac] sm:%s168]
        %264 = vst [vmem:[%s176 + $0xac] sm:%s168] %v263
        %v265 = vld [vmem:[%s175 + $0xb0] sm:%s168]
        %266 = vst [vmem:[%s176 + $0xb0] sm:%s168] %v265
        %v267 = vld [vmem:[%s175 + $0xb8] sm:%s168]
        %268 = vst [vmem:[%s176 + $0xb4] sm:%s168] %v267
        %v269 = vld [vmem:[%s175 + $0xb4] sm:%s168]
        %270 = vst [vmem:[%s176 + $0xb8] sm:%s168] %v269
        %v271 = vld [vmem:[%s175 + $0xbc] sm:%s168]
        %272 = vst [vmem:[%s176 + $0xbc] sm:%s168] %v271
        %v273 = vld [vmem:[%s175 + $0xc0] sm:%s168]
        %274 = vst [vmem:[%s176 + $0xc0] sm:%s168] %v273
        %v275 = vld [vmem:[%s175 + $0xc8] sm:%s168]
        %276 = vst [vmem:[%s176 + $0xc4] sm:%s168] %v275
        %v277 = vld [vmem:[%s175 + $0xc4] sm:%s168]
        %278 = vst [vmem:[%s176 + $0xc8] sm:%s168] %v277
        %v279 = vld [vmem:[%s175 + $0xcc] sm:%s168]
        %280 = vst [vmem:[%s176 + $0xcc] sm:%s168] %v279
        %v281 = vld [vmem:[%s175 + $0xd0] sm:%s168]
        %282 = vst [vmem:[%s176 + $0xd0] sm:%s168] %v281
        %v283 = vld [vmem:[%s175 + $0xd8] sm:%s168]
        %284 = vst [vmem:[%s176 + $0xd4] sm:%s168] %v283
        %v285 = vld [vmem:[%s175 + $0xd4] sm:%s168]
        %286 = vst [vmem:[%s176 + $0xd8] sm:%s168] %v285
        %v287 = vld [vmem:[%s175 + $0xdc] sm:%s168]
        %288 = vst [vmem:[%s176 + $0xdc] sm:%s168] %v287
        %v289 = vld [vmem:[%s175 + $0xe0] sm:%s168]
        %290 = vst [vmem:[%s176 + $0xe0] sm:%s168] %v289
        %v291 = vld [vmem:[%s175 + $0xe8] sm:%s168]
        %292 = vst [vmem:[%s176 + $0xe4] sm:%s168] %v291
        %v293 = vld [vmem:[%s175 + $0xe4] sm:%s168]
        %294 = vst [vmem:[%s176 + $0xe8] sm:%s168] %v293
        %v295 = vld [vmem:[%s175 + $0xec] sm:%s168]
        %296 = vst [vmem:[%s176 + $0xec] sm:%s168] %v295
        %v297 = vld [vmem:[%s175 + $0xf0] sm:%s168]
        %298 = vst [vmem:[%s176 + $0xf0] sm:%s168] %v297
        %v299 = vld [vmem:[%s175 + $0xf8] sm:%s168]
        %300 = vst [vmem:[%s176 + $0xf4] sm:%s168] %v299
        %v301 = vld [vmem:[%s175 + $0xf4] sm:%s168]
        %302 = vst [vmem:[%s176 + $0xf8] sm:%s168] %v301
        %v303 = vld [vmem:[%s175 + $0xfc] sm:%s168]
        %304 = vst [vmem:[%s176 + $0xfc] sm:%s168] %v303
      $region90: #{tpu_custom_call.1} parent=84 // loop_footer
        %s174 = sadd.s32 1, %s170
      $region91: #{tpu_custom_call.1} parent=84 // loop_footer_branch
        %169 = sbr.rel target = $region87
      $region92: #{tpu_custom_call.1} parent=84 // loop_exit
        _
    $region85: #{tpu_custom_call.1} parent=1 // pred_fallthru
      _
    // Predicated region
    $region111: #{tpu_custom_call.1} parent=1 // pred_check
      _
    $region112: #{tpu_custom_call.1} parent=1 // pred_check_branch
      %462 = sbr.rel (0) target = $region114
    $region113: #{tpu_custom_call.1} parent=1 // pred_region
      %463 = vsyncadd %s159, 4096
    $region114: #{tpu_custom_call.1} parent=1 // pred_fallthru
      _
    %v464 = vld [vmem:[%s1] sm:$0xff]
    %v465 = vld [vmem:[%s0] sm:$0xff]
    %v466 = vld [vmem:[%s0 + $0x8] sm:$0xff]
    %v467 = vld [vmem:[%s0 + $0x10] sm:$0xff]
    %v468 = vld [vmem:[%s0 + $0x18] sm:$0xff]
    %v469 = vld [vmem:[%s0 + $0x20] sm:$0xff]
    %v470 = vld [vmem:[%s0 + $0x28] sm:$0xff]
    %v471 = vld [vmem:[%s0 + $0x30] sm:$0xff]
    %v472 = vld [vmem:[%s0 + $0x38] sm:$0xff]
    %v473 = vld [vmem:[%s0 + $0x40] sm:$0xff]
    %v474 = vld [vmem:[%s0 + $0x48] sm:$0xff]
    %v475 = vld [vmem:[%s0 + $0x50] sm:$0xff]
    %v476 = vld [vmem:[%s0 + $0x58] sm:$0xff]
    %v477 = vld [vmem:[%s0 + $0x60] sm:$0xff]
    %v478 = vld [vmem:[%s0 + $0x68] sm:$0xff]
    %v479 = vld [vmem:[%s0 + $0x70] sm:$0xff]
    %v480 = vld [vmem:[%s0 + $0x78] sm:$0xff]
    %v481 = vld [vmem:[#allocation8] sm:$0xff]
    %v482 = vld [vmem:[#allocation8 + $0x8] sm:$0xff]
    %v483 = vld [vmem:[#allocation8 + $0x10] sm:$0xff]
    %v484 = vld [vmem:[#allocation8 + $0x18] sm:$0xff]
    %v485 = vld [vmem:[#allocation8 + $0x20] sm:$0xff]
    %v486 = vld [vmem:[#allocation8 + $0x28] sm:$0xff]
    %v487 = vld [vmem:[#allocation8 + $0x30] sm:$0xff]
    %v488 = vld [vmem:[#allocation8 + $0x38] sm:$0xff]
    %v489 = vld [vmem:[#allocation8 + $0x40] sm:$0xff]
    %v490 = vld [vmem:[#allocation8 + $0x48] sm:$0xff]
    %v491 = vld [vmem:[#allocation8 + $0x50] sm:$0xff]
    %v492 = vld [vmem:[#allocation8 + $0x58] sm:$0xff]
    %v493 = vld [vmem:[#allocation8 + $0x60] sm:$0xff]
    %v494 = vld [vmem:[#allocation8 + $0x68] sm:$0xff]
    %v495 = vld [vmem:[#allocation8 + $0x70] sm:$0xff]
    %v496 = vld [vmem:[#allocation8 + $0x78] sm:$0xff]
    %v497 = vld [vmem:[#allocation8 + $0x80] sm:$0xff]
    %v498 = vld [vmem:[#allocation8 + $0x88] sm:$0xff]
    %v499 = vld [vmem:[#allocation8 + $0x90] sm:$0xff]
    %v500 = vld [vmem:[#allocation8 + $0x98] sm:$0xff]
    %v501 = vld [vmem:[#allocation8 + $0xa0] sm:$0xff]
    %v502 = vld [vmem:[#allocation8 + $0xa8] sm:$0xff]
    %v503 = vld [vmem:[#allocation8 + $0xb0] sm:$0xff]
    %v504 = vld [vmem:[#allocation8 + $0xb8] sm:$0xff]
    %v505 = vld [vmem:[#allocation8 + $0xc0] sm:$0xff]
    %v506 = vld [vmem:[#allocation8 + $0xc8] sm:$0xff]
    %v507 = vld [vmem:[#allocation8 + $0xd0] sm:$0xff]
    %v508 = vld [vmem:[#allocation8 + $0xd8] sm:$0xff]
    %v509 = vld [vmem:[#allocation8 + $0xe0] sm:$0xff]
    %v510 = vld [vmem:[#allocation8 + $0xe8] sm:$0xff]
    %v511 = vld [vmem:[#allocation8 + $0xf0] sm:$0xff]
    %v512 = vld [vmem:[#allocation8 + $0xf8] sm:$0xff]
    %v513 = vld [vmem:[#allocation8 + $0x100] sm:$0xff]
    %v514 = vld [vmem:[#allocation8 + $0x108] sm:$0xff]
    %v515 = vld [vmem:[#allocation8 + $0x110] sm:$0xff]
    %v516 = vld [vmem:[#allocation8 + $0x118] sm:$0xff]
    %v517 = vld [vmem:[#allocation8 + $0x120] sm:$0xff]
    %v518 = vld [vmem:[#allocation8 + $0x128] sm:$0xff]
    %v519 = vld [vmem:[#allocation8 + $0x130] sm:$0xff]
    %v520 = vld [vmem:[#allocation8 + $0x138] sm:$0xff]
    %v521 = vld [vmem:[#allocation8 + $0x140] sm:$0xff]
    %v522 = vld [vmem:[#allocation8 + $0x148] sm:$0xff]
    %v523 = vld [vmem:[#allocation8 + $0x150] sm:$0xff]
    %v524 = vld [vmem:[#allocation8 + $0x158] sm:$0xff]
    %v525 = vld [vmem:[#allocation8 + $0x160] sm:$0xff]
    %v526 = vld [vmem:[#allocation8 + $0x168] sm:$0xff]
    %v527 = vld [vmem:[#allocation8 + $0x170] sm:$0xff]
    %v528 = vld [vmem:[#allocation8 + $0x178] sm:$0xff]
    %v529 = vld [vmem:[#allocation8 + $0x180] sm:$0xff]
    %v530 = vld [vmem:[#allocation8 + $0x188] sm:$0xff]
    %v531 = vld [vmem:[#allocation8 + $0x190] sm:$0xff]
    %v532 = vld [vmem:[#allocation8 + $0x198] sm:$0xff]
    %v533 = vld [vmem:[#allocation8 + $0x1a0] sm:$0xff]
    %v534 = vld [vmem:[#allocation8 + $0x1a8] sm:$0xff]
    %v535 = vld [vmem:[#allocation8 + $0x1b0] sm:$0xff]
    %v536 = vld [vmem:[#allocation8 + $0x1b8] sm:$0xff]
    %v537 = vld [vmem:[#allocation8 + $0x1c0] sm:$0xff]
    %v538 = vld [vmem:[#allocation8 + $0x1c8] sm:$0xff]
    %v539 = vld [vmem:[#allocation8 + $0x1d0] sm:$0xff]
    %v540 = vld [vmem:[#allocation8 + $0x1d8] sm:$0xff]
    %v541 = vld [vmem:[#allocation8 + $0x1e0] sm:$0xff]
    %v542 = vld [vmem:[#allocation8 + $0x1e8] sm:$0xff]
    %v543 = vld [vmem:[#allocation8 + $0x1f0] sm:$0xff]
    %v544 = vld [vmem:[#allocation8 + $0x1f8] sm:$0xff]
    %v545 = vld [vmem:[#allocation8 + $0x200] sm:$0xff]
    %v546 = vld [vmem:[#allocation8 + $0x208] sm:$0xff]
    %v547 = vld [vmem:[#allocation8 + $0x210] sm:$0xff]
    %v548 = vld [vmem:[#allocation8 + $0x218] sm:$0xff]
    %v549 = vld [vmem:[#allocation8 + $0x220] sm:$0xff]
    %v550 = vld [vmem:[#allocation8 + $0x228] sm:$0xff]
    %v551 = vld [vmem:[#allocation8 + $0x230] sm:$0xff]
    %v552 = vld [vmem:[#allocation8 + $0x238] sm:$0xff]
    %v553 = vld [vmem:[#allocation8 + $0x240] sm:$0xff]
    %v554 = vld [vmem:[#allocation8 + $0x248] sm:$0xff]
    %v555 = vld [vmem:[#allocation8 + $0x250] sm:$0xff]
    %v556 = vld [vmem:[#allocation8 + $0x258] sm:$0xff]
    %v557 = vld [vmem:[#allocation8 + $0x260] sm:$0xff]
    %v558 = vld [vmem:[#allocation8 + $0x268] sm:$0xff]
    %v559 = vld [vmem:[#allocation8 + $0x270] sm:$0xff]
    %v560 = vld [vmem:[#allocation8 + $0x278] sm:$0xff]
    %v561 = vld [vmem:[#allocation8 + $0x280] sm:$0xff]
    %v562 = vld [vmem:[#allocation8 + $0x288] sm:$0xff]
    %v563 = vld [vmem:[#allocation8 + $0x290] sm:$0xff]
    %v564 = vld [vmem:[#allocation8 + $0x298] sm:$0xff]
    %v565 = vld [vmem:[#allocation8 + $0x2a0] sm:$0xff]
    %v566 = vld [vmem:[#allocation8 + $0x2a8] sm:$0xff]
    %v567 = vld [vmem:[#allocation8 + $0x2b0] sm:$0xff]
    %v568 = vld [vmem:[#allocation8 + $0x2b8] sm:$0xff]
    %v569 = vld [vmem:[#allocation8 + $0x2c0] sm:$0xff]
    %v570 = vld [vmem:[#allocation8 + $0x2c8] sm:$0xff]
    %v571 = vld [vmem:[#allocation8 + $0x2d0] sm:$0xff]
    %v572 = vld [vmem:[#allocation8 + $0x2d8] sm:$0xff]
    %v573 = vld [vmem:[#allocation8 + $0x2e0] sm:$0xff]
    %v574 = vld [vmem:[#allocation8 + $0x2e8] sm:$0xff]
    %v575 = vld [vmem:[#allocation8 + $0x2f0] sm:$0xff]
    %v576 = vld [vmem:[#allocation8 + $0x2f8] sm:$0xff]
    %v577 = vld [vmem:[#allocation8 + $0x300] sm:$0xff]
    %v578 = vld [vmem:[#allocation8 + $0x308] sm:$0xff]
    %v579 = vld [vmem:[#allocation8 + $0x310] sm:$0xff]
    %v580 = vld [vmem:[#allocation8 + $0x318] sm:$0xff]
    %v581 = vld [vmem:[#allocation8 + $0x320] sm:$0xff]
    %v582 = vld [vmem:[#allocation8 + $0x328] sm:$0xff]
    %v583 = vld [vmem:[#allocation8 + $0x330] sm:$0xff]
    %v584 = vld [vmem:[#allocation8 + $0x338] sm:$0xff]
    %v585 = vld [vmem:[#allocation8 + $0x340] sm:$0xff]
    %v586 = vld [vmem:[#allocation8 + $0x348] sm:$0xff]
    %v587 = vld [vmem:[#allocation8 + $0x350] sm:$0xff]
    %v588 = vld [vmem:[#allocation8 + $0x358] sm:$0xff]
    %v589 = vld [vmem:[#allocation8 + $0x360] sm:$0xff]
    %v590 = vld [vmem:[#allocation8 + $0x368] sm:$0xff]
    %v591 = vld [vmem:[#allocation8 + $0x370] sm:$0xff]
    %v592 = vld [vmem:[#allocation8 + $0x378] sm:$0xff]
    %v593 = vld [vmem:[#allocation8 + $0x380] sm:$0xff]
    %v594 = vld [vmem:[#allocation8 + $0x388] sm:$0xff]
    %v595 = vld [vmem:[#allocation8 + $0x390] sm:$0xff]
    %v596 = vld [vmem:[#allocation8 + $0x398] sm:$0xff]
    %v597 = vld [vmem:[#allocation8 + $0x3a0] sm:$0xff]
    %v598 = vld [vmem:[#allocation8 + $0x3a8] sm:$0xff]
    %v599 = vld [vmem:[#allocation8 + $0x3b0] sm:$0xff]
    %v600 = vld [vmem:[#allocation8 + $0x3b8] sm:$0xff]
    %v601 = vld [vmem:[#allocation8 + $0x3c0] sm:$0xff]
    %v602 = vld [vmem:[#allocation8 + $0x3c8] sm:$0xff]
    %v603 = vld [vmem:[#allocation8 + $0x3d0] sm:$0xff]
    %v604 = vld [vmem:[#allocation8 + $0x3d8] sm:$0xff]
    %v605 = vld [vmem:[#allocation8 + $0x3e0] sm:$0xff]
    %v606 = vld [vmem:[#allocation8 + $0x3e8] sm:$0xff]
    %v607 = vld [vmem:[#allocation8 + $0x3f0] sm:$0xff]
    %v608 = vld [vmem:[#allocation8 + $0x3f8] sm:$0xff]
    %v609 = vld [vmem:[#allocation8 + $0x400] sm:$0x3]
    %v610 = vld [vmem:[#allocation8 + $0x408] sm:$0x3]
    %v611 = vld [vmem:[#allocation8 + $0x410] sm:$0x3]
    %v612 = vld [vmem:[#allocation8 + $0x418] sm:$0x3]
    %v613 = vld [vmem:[#allocation8 + $0x420] sm:$0x3]
    %v614 = vld [vmem:[#allocation8 + $0x428] sm:$0x3]
    %v615 = vld [vmem:[#allocation8 + $0x430] sm:$0x3]
    %v616 = vld [vmem:[#allocation8 + $0x438] sm:$0x3]
    %v617 = vld [vmem:[%s4] sm:$0xff]
    %v619 = vlaneseq
    %v620 = vshrl.u32 %v619, 7
    %v621 = vsub.s32 0, %v620
    %v622 = vrot.slane %v617, %v621
    %v623 = vlaneseq
    %v624 = vshrl.u32 %v623, 7
    %v625 = vsub.s32 1, %v624
    %v626 = vrot.slane %v617, %v625
    %v627 = vlaneseq
    %v628 = vshrl.u32 %v627, 7
    %v629 = vsub.s32 2, %v628
    %v630 = vrot.slane %v617, %v629
    %v631 = vlaneseq
    %v632 = vshrl.u32 %v631, 7
    %v633 = vsub.s32 3, %v632
    %v634 = vrot.slane %v617, %v633
    %v635 = vlaneseq
    %v636 = vshrl.u32 %v635, 7
    %v637 = vsub.s32 4, %v636
    %v638 = vrot.slane %v617, %v637
    %v639 = vlaneseq
    %v640 = vshrl.u32 %v639, 7
    %v641 = vsub.s32 5, %v640
    %v642 = vrot.slane %v617, %v641
    %v643 = vlaneseq
    %v644 = vshrl.u32 %v643, 7
    %v645 = vsub.s32 6, %v644
    %v646 = vrot.slane %v617, %v645
    %v647 = vlaneseq
    %v648 = vshrl.u32 %v647, 7
    %v649 = vsub.s32 7, %v648
    %v650 = vrot.slane %v617, %v649
    %vm659 = vcmask 15360
    %v661 = vsel %vm659, %v466, 0
    %v664 = vsel %vm659, %v468, 0
    %v667 = vsel %vm659, %v470, 0
    %v670 = vsel %vm659, %v472, 0
    %v673 = vsel %vm659, %v474, 0
    %v676 = vsel %vm659, %v476, 0
    %v679 = vsel %vm659, %v478, 0
    %v682 = vsel %vm659, %v480, 0
    %vm684 = vcmask 1041408
    %v686 = vsel %vm684, %v609, 0
    %v689 = vsel %vm684, %v610, 0
    %v692 = vsel %vm684, %v611, 0
    %v695 = vsel %vm684, %v612, 0
    %v698 = vsel %vm684, %v613, 0
    %v701 = vsel %vm684, %v614, 0
    %v704 = vsel %vm684, %v615, 0
    %v707 = vsel %vm684, %v616, 0
    %709 = vmatprep.subr.mxu0 %v482
    %710 = vmatpush1.msra.mxu0 %v481
    %711 = vmatprep.subr.mxu0 %v490
    %712 = vmatpush1.msra.mxu0 %v489
    %713 = vmatprep.subr.mxu0 %v498
    %714 = vmatpush1.msra.mxu0 %v497
    %715 = vmatprep.subr.mxu0 %v506
    %716 = vmatpush1.msra.mxu0 %v505
    %717 = vmatprep.subr.mxu0 %v514
    %718 = vmatpush1.msra.mxu0 %v513
    %719 = vmatprep.subr.mxu0 %v522
    %720 = vmatpush1.msra.mxu0 %v521
    %721 = vmatprep.subr.mxu0 %v530
    %722 = vmatpush1.msra.mxu0 %v529
    %723 = vmatprep.subr.mxu0 %v538
    %724 = vmatpush1.msra.mxu0 %v537
    %725 = vmatprep.subr.mxu0 %v546
    %726 = vmatpush1.msra.mxu0 %v545
    %727 = vmatprep.subr.mxu0 %v554
    %728 = vmatpush1.msra.mxu0 %v553
    %729 = vmatprep.subr.mxu0 %v562
    %730 = vmatpush1.msra.mxu0 %v561
    %731 = vmatprep.subr.mxu0 %v570
    %732 = vmatpush1.msra.mxu0 %v569
    %733 = vmatprep.subr.mxu0 %v578
    %734 = vmatpush1.msra.mxu0 %v577
    %735 = vmatprep.subr.mxu0 %v586
    %736 = vmatpush1.msra.mxu0 %v585
    %737 = vmatprep.subr.mxu0 %v594
    %738 = vmatpush1.msra.mxu0 %v593
    %739 = vmatprep.subr.mxu0 %v602
    %740 = vmatpush1.msra.mxu0 %v601
    %741 = vmatprep.subr.mxu0 %v689
    %742 = vmatpush1.msra.mxu0 %v686
    %743 = vmatprep.subr.mxu0 0.0
    %744 = vmatpush1.msra.mxu0 0.0
    %745 = vmatprep.subr.mxu0 0.0
    %746 = vmatpush1.msra.mxu0 0.0
    %747 = vmatprep.subr.mxu0 0.0
    %748 = vmatpush1.msra.mxu0 0.0
    %749 = vmatprep.subr.mxu0 0.0
    %750 = vmatpush1.msra.mxu0 0.0
    %751 = vmatprep.subr.mxu0 0.0
    %752 = vmatpush1.msra.mxu0 0.0
    %753 = vmatprep.subr.mxu0 0.0
    %754 = vmatpush1.msra.mxu0 0.0
    %755 = vmatprep.subr.mxu0 0.0
    %756 = vmatpush1.msra.mxu0 0.0
    %757 = vmatprep.subr.mxu0 0.0
    %758 = vmatpush1.msra.mxu0 0.0
    %759 = vmatprep.subr.mxu0 0.0
    %760 = vmatpush1.msra.mxu0 0.0
    %761 = vmatprep.subr.mxu0 0.0
    %762 = vmatpush1.msra.mxu0 0.0
    %763 = vmatprep.subr.mxu0 0.0
    %764 = vmatpush1.msra.mxu0 0.0
    %765 = vmatprep.subr.mxu0 0.0
    %766 = vmatpush1.msra.mxu0 0.0
    %767 = vmatprep.subr.mxu0 0.0
    %768 = vmatpush1.msra.mxu0 0.0
    %769 = vmatprep.subr.mxu0 0.0
    %770 = vmatpush1.msra.mxu0 0.0
    %771 = vmatprep.subr.mxu0 0.0
    %772 = vmatpush1.msra.mxu0 0.0
    %773 = vmatprep.mubr.f32.mxu0 %v661
    %774 = vmatmul.mubr.f32.gmra.mrb[0].mxu0 %v465
    %v775 = vpop.f32.mrb[0].mxu0
    %v776 = vadd.f32 %v622, %v775
    %v777 = vpop.f32.mrb[0].mxu0
    %v778 = vadd.f32 %v626, %v777
    %779 = vmatprep.mubr.f32.mxu0 %v664
    %780 = vmatmul.mubr.f32.gmra.mrb[0].mxu0 %v467
    %v781 = vpop.f32.mrb[0].mxu0
    %v782 = vadd.f32 %v622, %v781
    %v783 = vpop.f32.mrb[0].mxu0
    %v784 = vadd.f32 %v626, %v783
    %785 = vmatprep.mubr.f32.mxu0 %v667
    %786 = vmatmul.mubr.f32.gmra.mrb[0].mxu0 %v469
    %v787 = vpop.f32.mrb[0].mxu0
    %v788 = vadd.f32 %v622, %v787
    %v789 = vpop.f32.mrb[0].mxu0
    %v790 = vadd.f32 %v626, %v789
    %791 = vmatprep.mubr.f32.mxu0 %v670
    %792 = vmatmul.mubr.f32.gmra.mrb[0].mxu0 %v471
    %v793 = vpop.f32.mrb[0].mxu0
    %v794 = vadd.f32 %v622, %v793
    %v795 = vpop.f32.mrb[0].mxu0
    %v796 = vadd.f32 %v626, %v795
    %797 = vmatprep.mubr.f32.mxu0 %v673
    %798 = vmatmul.mubr.f32.gmra.mrb[0].mxu0 %v473
    %v799 = vpop.f32.mrb[0].mxu0
    %v800 = vadd.f32 %v622, %v799
    %v801 = vpop.f32.mrb[0].mxu0
    %v802 = vadd.f32 %v626, %v801
    %803 = vmatprep.mubr.f32.mxu0 %v676
    %804 = vmatmul.mubr.f32.gmra.mrb[0].mxu0 %v475
    %v805 = vpop.f32.mrb[0].mxu0
    %v806 = vadd.f32 %v622, %v805
    %v807 = vpop.f32.mrb[0].mxu0
    %v808 = vadd.f32 %v626, %v807
    %809 = vmatprep.mubr.f32.mxu0 %v679
    %810 = vmatmul.mubr.f32.gmra.mrb[0].mxu0 %v477
    %v811 = vpop.f32.mrb[0].mxu0
    %v812 = vadd.f32 %v622, %v811
    %v813 = vpop.f32.mrb[0].mxu0
    %v814 = vadd.f32 %v626, %v813
    %815 = vmatprep.mubr.f32.mxu0 %v682
    %816 = vmatmul.mubr.f32.gmra.mrb[0].mxu0 %v479
    %v817 = vpop.f32.mrb[0].mxu0
    %v818 = vadd.f32 %v622, %v817
    %v819 = vpop.f32.mrb[0].mxu0
    %v820 = vadd.f32 %v626, %v819
    %821 = vdwg.mxu0
    %822 = vmatprep.subr.mxu0 %v484
    %823 = vmatpush1.msra.mxu0 %v483
    %824 = vmatprep.subr.mxu0 %v492
    %825 = vmatpush1.msra.mxu0 %v491
    %826 = vmatprep.subr.mxu0 %v500
    %827 = vmatpush1.msra.mxu0 %v499
    %828 = vmatprep.subr.mxu0 %v508
    %829 = vmatpush1.msra.mxu0 %v507
    %830 = vmatprep.subr.mxu0 %v516
    %831 = vmatpush1.msra.mxu0 %v515
    %832 = vmatprep.subr.mxu0 %v524
    %833 = vmatpush1.msra.mxu0 %v523
    %834 = vmatprep.subr.mxu0 %v532
    %835 = vmatpush1.msra.mxu0 %v531
    %836 = vmatprep.subr.mxu0 %v540
    %837 = vmatpush1.msra.mxu0 %v539
    %838 = vmatprep.subr.mxu0 %v548
    %839 = vmatpush1.msra.mxu0 %v547
    %840 = vmatprep.subr.mxu0 %v556
    %841 = vmatpush1.msra.mxu0 %v555
    %842 = vmatprep.subr.mxu0 %v564
    %843 = vmatpush1.msra.mxu0 %v563
    %844 = vmatprep.subr.mxu0 %v572
    %845 = vmatpush1.msra.mxu0 %v571
    %846 = vmatprep.subr.mxu0 %v580
    %847 = vmatpush1.msra.mxu0 %v579
    %848 = vmatprep.subr.mxu0 %v588
    %849 = vmatpush1.msra.mxu0 %v587
    %850 = vmatprep.subr.mxu0 %v596
    %851 = vmatpush1.msra.mxu0 %v595
    %852 = vmatprep.subr.mxu0 %v604
    %853 = vmatpush1.msra.mxu0 %v603
    %854 = vmatprep.subr.mxu0 %v695
    %855 = vmatpush1.msra.mxu0 %v692
    %856 = vmatprep.subr.mxu0 0.0
    %857 = vmatpush1.msra.mxu0 0.0
    %858 = vmatprep.subr.mxu0 0.0
    %859 = vmatpush1.msra.mxu0 0.0
    %860 = vmatprep.subr.mxu0 0.0
    %861 = vmatpush1.msra.mxu0 0.0
    %862 = vmatprep.subr.mxu0 0.0
    %863 = vmatpush1.msra.mxu0 0.0
    %864 = vmatprep.subr.mxu0 0.0
    %865 = vmatpush1.msra.mxu0 0.0
    %866 = vmatprep.subr.mxu0 0.0
    %867 = vmatpush1.msra.mxu0 0.0
    %868 = vmatprep.subr.mxu0 0.0
    %869 = vmatpush1.msra.mxu0 0.0
    %870 = vmatprep.subr.mxu0 0.0
    %871 = vmatpush1.msra.mxu0 0.0
    %872 = vmatprep.subr.mxu0 0.0
    %873 = vmatpush1.msra.mxu0 0.0
    %874 = vmatprep.subr.mxu0 0.0
    %875 = vmatpush1.msra.mxu0 0.0
    %876 = vmatprep.subr.mxu0 0.0
    %877 = vmatpush1.msra.mxu0 0.0
    %878 = vmatprep.subr.mxu0 0.0
    %879 = vmatpush1.msra.mxu0 0.0
    %880 = vmatprep.subr.mxu0 0.0
    %881 = vmatpush1.msra.mxu0 0.0
    %882 = vmatprep.subr.mxu0 0.0
    %883 = vmatpush1.msra.mxu0 0.0
    %884 = vmatprep.subr.mxu0 0.0
    %885 = vmatpush1.msra.mxu0 0.0
    %886 = vmatprep.mubr.f32.mxu0 %v661
    %887 = vmatmul.mubr.f32.gmra.mrb[0].mxu0 %v465
    %v888 = vpop.f32.mrb[0].mxu0
    %v889 = vadd.f32 %v630, %v888
    %v890 = vpop.f32.mrb[0].mxu0
    %v891 = vadd.f32 %v634, %v890
    %892 = vmatprep.mubr.f32.mxu0 %v664
    %893 = vmatmul.mubr.f32.gmra.mrb[0].mxu0 %v467
    %v894 = vpop.f32.mrb[0].mxu0
    %v895 = vadd.f32 %v630, %v894
    %v896 = vpop.f32.mrb[0].mxu0
    %v897 = vadd.f32 %v634, %v896
    %898 = vmatprep.mubr.f32.mxu0 %v667
    %899 = vmatmul.mubr.f32.gmra.mrb[0].mxu0 %v469
    %v900 = vpop.f32.mrb[0].mxu0
    %v901 = vadd.f32 %v630, %v900
    %v902 = vpop.f32.mrb[0].mxu0
    %v903 = vadd.f32 %v634, %v902
    %904 = vmatprep.mubr.f32.mxu0 %v670
    %905 = vmatmul.mubr.f32.gmra.mrb[0].mxu0 %v471
    %v906 = vpop.f32.mrb[0].mxu0
    %v907 = vadd.f32 %v630, %v906
    %v908 = vpop.f32.mrb[0].mxu0
    %v909 = vadd.f32 %v634, %v908
    %910 = vmatprep.mubr.f32.mxu0 %v673
    %911 = vmatmul.mubr.f32.gmra.mrb[0].mxu0 %v473
    %v912 = vpop.f32.mrb[0].mxu0
    %v913 = vadd.f32 %v630, %v912
    %v914 = vpop.f32.mrb[0].mxu0
    %v915 = vadd.f32 %v634, %v914
    %916 = vmatprep.mubr.f32.mxu0 %v676
    %917 = vmatmul.mubr.f32.gmra.mrb[0].mxu0 %v475
    %v918 = vpop.f32.mrb[0].mxu0
    %v919 = vadd.f32 %v630, %v918
    %v920 = vpop.f32.mrb[0].mxu0
    %v921 = vadd.f32 %v634, %v920
    %922 = vmatprep.mubr.f32.mxu0 %v679
    %923 = vmatmul.mubr.f32.gmra.mrb[0].mxu0 %v477
    %v924 = vpop.f32.mrb[0].mxu0
    %v925 = vadd.f32 %v630, %v924
    %v926 = vpop.f32.mrb[0].mxu0
    %v927 = vadd.f32 %v634, %v926
    %928 = vmatprep.mubr.f32.mxu0 %v682
    %929 = vmatmul.mubr.f32.gmra.mrb[0].mxu0 %v479
    %v930 = vpop.f32.mrb[0].mxu0
    %v931 = vadd.f32 %v630, %v930
    %v932 = vpop.f32.mrb[0].mxu0
    %v933 = vadd.f32 %v634, %v932
    %934 = vdwg.mxu0
    %935 = vmatprep.subr.mxu0 %v486
    %936 = vmatpush1.msra.mxu0 %v485
    %937 = vmatprep.subr.mxu0 %v494
    %938 = vmatpush1.msra.mxu0 %v493
    %939 = vmatprep.subr.mxu0 %v502
    %940 = vmatpush1.msra.mxu0 %v501
    %941 = vmatprep.subr.mxu0 %v510
    %942 = vmatpush1.msra.mxu0 %v509
    %943 = vmatprep.subr.mxu0 %v518
    %944 = vmatpush1.msra.mxu0 %v517
    %945 = vmatprep.subr.mxu0 %v526
    %946 = vmatpush1.msra.mxu0 %v525
    %947 = vmatprep.subr.mxu0 %v534
    %948 = vmatpush1.msra.mxu0 %v533
    %949 = vmatprep.subr.mxu0 %v542
    %950 = vmatpush1.msra.mxu0 %v541
    %951 = vmatprep.subr.mxu0 %v550
    %952 = vmatpush1.msra.mxu0 %v549
    %953 = vmatprep.subr.mxu0 %v558
    %954 = vmatpush1.msra.mxu0 %v557
    %955 = vmatprep.subr.mxu0 %v566
    %956 = vmatpush1.msra.mxu0 %v565
    %957 = vmatprep.subr.mxu0 %v574
    %958 = vmatpush1.msra.mxu0 %v573
    %959 = vmatprep.subr.mxu0 %v582
    %960 = vmatpush1.msra.mxu0 %v581
    %961 = vmatprep.subr.mxu0 %v590
    %962 = vmatpush1.msra.mxu0 %v589
    %963 = vmatprep.subr.mxu0 %v598
    %964 = vmatpush1.msra.mxu0 %v597
    %965 = vmatprep.subr.mxu0 %v606
    %966 = vmatpush1.msra.mxu0 %v605
    %967 = vmatprep.subr.mxu0 %v701
    %968 = vmatpush1.msra.mxu0 %v698
    %969 = vmatprep.subr.mxu0 0.0
    %970 = vmatpush1.msra.mxu0 0.0
    %971 = vmatprep.subr.mxu0 0.0
    %972 = vmatpush1.msra.mxu0 0.0
    %973 = vmatprep.subr.mxu0 0.0
    %974 = vmatpush1.msra.mxu0 0.0
    %975 = vmatprep.subr.mxu0 0.0
    %976 = vmatpush1.msra.mxu0 0.0
    %977 = vmatprep.subr.mxu0 0.0
    %978 = vmatpush1.msra.mxu0 0.0
    %979 = vmatprep.subr.mxu0 0.0
    %980 = vmatpush1.msra.mxu0 0.0
    %981 = vmatprep.subr.mxu0 0.0
    %982 = vmatpush1.msra.mxu0 0.0
    %983 = vmatprep.subr.mxu0 0.0
    %984 = vmatpush1.msra.mxu0 0.0
    %985 = vmatprep.subr.mxu0 0.0
    %986 = vmatpush1.msra.mxu0 0.0
    %987 = vmatprep.subr.mxu0 0.0
    %988 = vmatpush1.msra.mxu0 0.0
    %989 = vmatprep.subr.mxu0 0.0
    %990 = vmatpush1.msra.mxu0 0.0
    %991 = vmatprep.subr.mxu0 0.0
    %992 = vmatpush1.msra.mxu0 0.0
    %993 = vmatprep.subr.mxu0 0.0
    %994 = vmatpush1.msra.mxu0 0.0
    %995 = vmatprep.subr.mxu0 0.0
    %996 = vmatpush1.msra.mxu0 0.0
    %997 = vmatprep.subr.mxu0 0.0
    %998 = vmatpush1.msra.mxu0 0.0
    %999 = vmatprep.mubr.f32.mxu0 %v661
    %1000 = vmatmul.mubr.f32.gmra.mrb[0].mxu0 %v465
    %v1001 = vpop.f32.mrb[0].mxu0
    %v1002 = vadd.f32 %v638, %v1001
    %v1003 = vpop.f32.mrb[0].mxu0
    %v1004 = vadd.f32 %v642, %v1003
    %1005 = vmatprep.mubr.f32.mxu0 %v664
    %1006 = vmatmul.mubr.f32.gmra.mrb[0].mxu0 %v467
    %v1007 = vpop.f32.mrb[0].mxu0
    %v1008 = vadd.f32 %v638, %v1007
    %v1009 = vpop.f32.mrb[0].mxu0
    %v1010 = vadd.f32 %v642, %v1009
    %1011 = vmatprep.mubr.f32.mxu0 %v667
    %1012 = vmatmul.mubr.f32.gmra.mrb[0].mxu0 %v469
    %v1013 = vpop.f32.mrb[0].mxu0
    %v1014 = vadd.f32 %v638, %v1013
    %v1015 = vpop.f32.mrb[0].mxu0
    %v1016 = vadd.f32 %v642, %v1015
    %1017 = vmatprep.mubr.f32.mxu0 %v670
    %1018 = vmatmul.mubr.f32.gmra.mrb[0].mxu0 %v471
    %v1019 = vpop.f32.mrb[0].mxu0
    %v1020 = vadd.f32 %v638, %v1019
    %v1021 = vpop.f32.mrb[0].mxu0
    %v1022 = vadd.f32 %v642, %v1021
    %1023 = vmatprep.mubr.f32.mxu0 %v673
    %1024 = vmatmul.mubr.f32.gmra.mrb[0].mxu0 %v473
    %v1025 = vpop.f32.mrb[0].mxu0
    %v1026 = vadd.f32 %v638, %v1025
    %v1027 = vpop.f32.mrb[0].mxu0
    %v1028 = vadd.f32 %v642, %v1027
    %1029 = vmatprep.mubr.f32.mxu0 %v676
    %1030 = vmatmul.mubr.f32.gmra.mrb[0].mxu0 %v475
    %v1031 = vpop.f32.mrb[0].mxu0
    %v1032 = vadd.f32 %v638, %v1031
    %v1033 = vpop.f32.mrb[0].mxu0
    %v1034 = vadd.f32 %v642, %v1033
    %1035 = vmatprep.mubr.f32.mxu0 %v679
    %1036 = vmatmul.mubr.f32.gmra.mrb[0].mxu0 %v477
    %v1037 = vpop.f32.mrb[0].mxu0
    %v1038 = vadd.f32 %v638, %v1037
    %v1039 = vpop.f32.mrb[0].mxu0
    %v1040 = vadd.f32 %v642, %v1039
    %1041 = vmatprep.mubr.f32.mxu0 %v682
    %1042 = vmatmul.mubr.f32.gmra.mrb[0].mxu0 %v479
    %v1043 = vpop.f32.mrb[0].mxu0
    %v1044 = vadd.f32 %v638, %v1043
    %v1045 = vpop.f32.mrb[0].mxu0
    %v1046 = vadd.f32 %v642, %v1045
    %1047 = vdwg.mxu0
    %1048 = vmatprep.subr.mxu0 %v488
    %1049 = vmatpush1.msra.mxu0 %v487
    %1050 = vmatprep.subr.mxu0 %v496
    %1051 = vmatpush1.msra.mxu0 %v495
    %1052 = vmatprep.subr.mxu0 %v504
    %1053 = vmatpush1.msra.mxu0 %v503
    %1054 = vmatprep.subr.mxu0 %v512
    %1055 = vmatpush1.msra.mxu0 %v511
    %1056 = vmatprep.subr.mxu0 %v520
    %1057 = vmatpush1.msra.mxu0 %v519
    %1058 = vmatprep.subr.mxu0 %v528
    %1059 = vmatpush1.msra.mxu0 %v527
    %1060 = vmatprep.subr.mxu0 %v536
    %1061 = vmatpush1.msra.mxu0 %v535
    %1062 = vmatprep.subr.mxu0 %v544
    %1063 = vmatpush1.msra.mxu0 %v543
    %1064 = vmatprep.subr.mxu0 %v552
    %1065 = vmatpush1.msra.mxu0 %v551
    %1066 = vmatprep.subr.mxu0 %v560
    %1067 = vmatpush1.msra.mxu0 %v559
    %1068 = vmatprep.subr.mxu0 %v568
    %1069 = vmatpush1.msra.mxu0 %v567
    %1070 = vmatprep.subr.mxu0 %v576
    %1071 = vmatpush1.msra.mxu0 %v575
    %1072 = vmatprep.subr.mxu0 %v584
    %1073 = vmatpush1.msra.mxu0 %v583
    %1074 = vmatprep.subr.mxu0 %v592
    %1075 = vmatpush1.msra.mxu0 %v591
    %1076 = vmatprep.subr.mxu0 %v600
    %1077 = vmatpush1.msra.mxu0 %v599
    %1078 = vmatprep.subr.mxu0 %v608
    %1079 = vmatpush1.msra.mxu0 %v607
    %1080 = vmatprep.subr.mxu0 %v707
    %1081 = vmatpush1.msra.mxu0 %v704
    %1082 = vmatprep.subr.mxu0 0.0
    %1083 = vmatpush1.msra.mxu0 0.0
    %1084 = vmatprep.subr.mxu0 0.0
    %1085 = vmatpush1.msra.mxu0 0.0
    %1086 = vmatprep.subr.mxu0 0.0
    %1087 = vmatpush1.msra.mxu0 0.0
    %1088 = vmatprep.subr.mxu0 0.0
    %1089 = vmatpush1.msra.mxu0 0.0
    %1090 = vmatprep.subr.mxu0 0.0
    %1091 = vmatpush1.msra.mxu0 0.0
    %1092 = vmatprep.subr.mxu0 0.0
    %1093 = vmatpush1.msra.mxu0 0.0
    %1094 = vmatprep.subr.mxu0 0.0
    %1095 = vmatpush1.msra.mxu0 0.0
    %1096 = vmatprep.subr.mxu0 0.0
    %1097 = vmatpush1.msra.mxu0 0.0
    %1098 = vmatprep.subr.mxu0 0.0
    %1099 = vmatpush1.msra.mxu0 0.0
    %1100 = vmatprep.subr.mxu0 0.0
    %1101 = vmatpush1.msra.mxu0 0.0
    %1102 = vmatprep.subr.mxu0 0.0
    %1103 = vmatpush1.msra.mxu0 0.0
    %1104 = vmatprep.subr.mxu0 0.0
    %1105 = vmatpush1.msra.mxu0 0.0
    %1106 = vmatprep.subr.mxu0 0.0
    %1107 = vmatpush1.msra.mxu0 0.0
    %1108 = vmatprep.subr.mxu0 0.0
    %1109 = vmatpush1.msra.mxu0 0.0
    %1110 = vmatprep.subr.mxu0 0.0
    %1111 = vmatpush1.msra.mxu0 0.0
    %1112 = vmatprep.mubr.f32.mxu0 %v661
    %1113 = vmatmul.mubr.f32.gmra.mrb[0].mxu0 %v465
    %v1114 = vpop.f32.mrb[0].mxu0
    %v1115 = vadd.f32 %v646, %v1114
    %v1116 = vpop.f32.mrb[0].mxu0
    %v1117 = vadd.f32 %v650, %v1116
    %1118 = vmatprep.mubr.f32.mxu0 %v664
    %1119 = vmatmul.mubr.f32.gmra.mrb[0].mxu0 %v467
    %v1120 = vpop.f32.mrb[0].mxu0
    %v1121 = vadd.f32 %v646, %v1120
    %v1122 = vpop.f32.mrb[0].mxu0
    %v1123 = vadd.f32 %v650, %v1122
    %1124 = vmatprep.mubr.f32.mxu0 %v667
    %1125 = vmatmul.mubr.f32.gmra.mrb[0].mxu0 %v469
    %v1126 = vpop.f32.mrb[0].mxu0
    %v1127 = vadd.f32 %v646, %v1126
    %v1128 = vpop.f32.mrb[0].mxu0
    %v1129 = vadd.f32 %v650, %v1128
    %1130 = vmatprep.mubr.f32.mxu0 %v670
    %1131 = vmatmul.mubr.f32.gmra.mrb[0].mxu0 %v471
    %v1132 = vpop.f32.mrb[0].mxu0
    %v1133 = vadd.f32 %v646, %v1132
    %v1134 = vpop.f32.mrb[0].mxu0
    %v1135 = vadd.f32 %v650, %v1134
    %1136 = vmatprep.mubr.f32.mxu0 %v673
    %1137 = vmatmul.mubr.f32.gmra.mrb[0].mxu0 %v473
    %v1138 = vpop.f32.mrb[0].mxu0
    %v1139 = vadd.f32 %v646, %v1138
    %v1140 = vpop.f32.mrb[0].mxu0
    %v1141 = vadd.f32 %v650, %v1140
    %1142 = vmatprep.mubr.f32.mxu0 %v676
    %1143 = vmatmul.mubr.f32.gmra.mrb[0].mxu0 %v475
    %v1144 = vpop.f32.mrb[0].mxu0
    %v1145 = vadd.f32 %v646, %v1144
    %v1146 = vpop.f32.mrb[0].mxu0
    %v1147 = vadd.f32 %v650, %v1146
    %1148 = vmatprep.mubr.f32.mxu0 %v679
    %1149 = vmatmul.mubr.f32.gmra.mrb[0].mxu0 %v477
    %v1150 = vpop.f32.mrb[0].mxu0
    %v1151 = vadd.f32 %v646, %v1150
    %v1152 = vpop.f32.mrb[0].mxu0
    %v1153 = vadd.f32 %v650, %v1152
    %1154 = vmatprep.mubr.f32.mxu0 %v682
    %1155 = vmatmul.mubr.f32.gmra.mrb[0].mxu0 %v479
    %v1156 = vpop.f32.mrb[0].mxu0
    %v1157 = vadd.f32 %v646, %v1156
    %v1158 = vpop.f32.mrb[0].mxu0
    %v1159 = vadd.f32 %v650, %v1158
    %1160 = vdwg.mxu0
    %1161 = vst [vmem:[#allocation5] sm:$0xff] %v776
    %1162 = vst [vmem:[#allocation5 + $0x8] sm:$0xff] %v778
    %1163 = vst [vmem:[#allocation5 + $0x10] sm:$0xff] %v889
    %1164 = vst [vmem:[#allocation5 + $0x18] sm:$0xff] %v891
    %1165 = vst [vmem:[#allocation5 + $0x20] sm:$0xff] %v1002
    %1166 = vst [vmem:[#allocation5 + $0x28] sm:$0xff] %v1004
    %1167 = vst [vmem:[#allocation5 + $0x30] sm:$0xff] %v1115
    %1168 = vst [vmem:[#allocation5 + $0x38] sm:$0xff] %v1117
    %1169 = vst [vmem:[#allocation5 + $0x40] sm:$0xff] %v782
    %1170 = vst [vmem:[#allocation5 + $0x48] sm:$0xff] %v784
    %1171 = vst [vmem:[#allocation5 + $0x50] sm:$0xff] %v895
    %1172 = vst [vmem:[#allocation5 + $0x58] sm:$0xff] %v897
    %1173 = vst [vmem:[#allocation5 + $0x60] sm:$0xff] %v1008
    %1174 = vst [vmem:[#allocation5 + $0x68] sm:$0xff] %v1010
    %1175 = vst [vmem:[#allocation5 + $0x70] sm:$0xff] %v1121
    %1176 = vst [vmem:[#allocation5 + $0x78] sm:$0xff] %v1123
    %1177 = vst [vmem:[#allocation5 + $0x80] sm:$0xff] %v788
    %1178 = vst [vmem:[#allocation5 + $0x88] sm:$0xff] %v790
    %1179 = vst [vmem:[#allocation5 + $0x90] sm:$0xff] %v901
    %1180 = vst [vmem:[#allocation5 + $0x98] sm:$0xff] %v903
    %1181 = vst [vmem:[#allocation5 + $0xa0] sm:$0xff] %v1014
    %1182 = vst [vmem:[#allocation5 + $0xa8] sm:$0xff] %v1016
    %1183 = vst [vmem:[#allocation5 + $0xb0] sm:$0xff] %v1127
    %1184 = vst [vmem:[#allocation5 + $0xb8] sm:$0xff] %v1129
    %1185 = vst [vmem:[#allocation5 + $0xc0] sm:$0xff] %v794
    %1186 = vst [vmem:[#allocation5 + $0xc8] sm:$0xff] %v796
    %1187 = vst [vmem:[#allocation5 + $0xd0] sm:$0xff] %v907
    %1188 = vst [vmem:[#allocation5 + $0xd8] sm:$0xff] %v909
    %1189 = vst [vmem:[#allocation5 + $0xe0] sm:$0xff] %v1020
    %1190 = vst [vmem:[#allocation5 + $0xe8] sm:$0xff] %v1022
    %1191 = vst [vmem:[#allocation5 + $0xf0] sm:$0xff] %v1133
    %1192 = vst [vmem:[#allocation5 + $0xf8] sm:$0xff] %v1135
    %1193 = vst [vmem:[#allocation5 + $0x100] sm:$0xff] %v800
    %1194 = vst [vmem:[#allocation5 + $0x108] sm:$0xff] %v802
    %1195 = vst [vmem:[#allocation5 + $0x110] sm:$0xff] %v913
    %1196 = vst [vmem:[#allocation5 + $0x118] sm:$0xff] %v915
    %1197 = vst [vmem:[#allocation5 + $0x120] sm:$0xff] %v1026
    %1198 = vst [vmem:[#allocation5 + $0x128] sm:$0xff] %v1028
    %1199 = vst [vmem:[#allocation5 + $0x130] sm:$0xff] %v1139
    %1200 = vst [vmem:[#allocation5 + $0x138] sm:$0xff] %v1141
    %1201 = vst [vmem:[#allocation5 + $0x140] sm:$0xff] %v806
    %1202 = vst [vmem:[#allocation5 + $0x148] sm:$0xff] %v808
    %1203 = vst [vmem:[#allocation5 + $0x150] sm:$0xff] %v919
    %1204 = vst [vmem:[#allocation5 + $0x158] sm:$0xff] %v921
    %1205 = vst [vmem:[#allocation5 + $0x160] sm:$0xff] %v1032
    %1206 = vst [vmem:[#allocation5 + $0x168] sm:$0xff] %v1034
    %1207 = vst [vmem:[#allocation5 + $0x170] sm:$0xff] %v1145
    %1208 = vst [vmem:[#allocation5 + $0x178] sm:$0xff] %v1147
    %1209 = vst [vmem:[#allocation5 + $0x180] sm:$0xff] %v812
    %1210 = vst [vmem:[#allocation5 + $0x188] sm:$0xff] %v814
    %1211 = vst [vmem:[#allocation5 + $0x190] sm:$0xff] %v925
    %1212 = vst [vmem:[#allocation5 + $0x198] sm:$0xff] %v927
    %1213 = vst [vmem:[#allocation5 + $0x1a0] sm:$0xff] %v1038
    %1214 = vst [vmem:[#allocation5 + $0x1a8] sm:$0xff] %v1040
    %1215 = vst [vmem:[#allocation5 + $0x1b0] sm:$0xff] %v1151
    %1216 = vst [vmem:[#allocation5 + $0x1b8] sm:$0xff] %v1153
    %1217 = vst [vmem:[#allocation5 + $0x1c0] sm:$0xff] %v818
    %1218 = vst [vmem:[#allocation5 + $0x1c8] sm:$0xff] %v820
    %1219 = vst [vmem:[#allocation5 + $0x1d0] sm:$0xff] %v931
    %1220 = vst [vmem:[#allocation5 + $0x1d8] sm:$0xff] %v933
    %1221 = vst [vmem:[#allocation5 + $0x1e0] sm:$0xff] %v1044
    %1222 = vst [vmem:[#allocation5 + $0x1e8] sm:$0xff] %v1046
    %1223 = vst [vmem:[#allocation5 + $0x1f0] sm:$0xff] %v1157
    %1224 = vst [vmem:[#allocation5 + $0x1f8] sm:$0xff] %v1159
    %v1225 = vld [vmem:[#allocation11] sm:$0xff]
    %v1226 = vld [vmem:[#allocation11 + $0x8] sm:$0xff]
    %v1227 = vld [vmem:[#allocation11 + $0x10] sm:$0xff]
    %v1228 = vld [vmem:[#allocation11 + $0x18] sm:$0xff]
    %v1229 = vld [vmem:[#allocation11 + $0x20] sm:$0xff]
    %v1230 = vld [vmem:[#allocation11 + $0x28] sm:$0xff]
    %v1231 = vld [vmem:[#allocation11 + $0x30] sm:$0xff]
    %v1232 = vld [vmem:[#allocation11 + $0x38] sm:$0xff]
    %v1233 = vld [vmem:[#allocation11 + $0x40] sm:$0xff]
    %v1234 = vld [vmem:[#allocation11 + $0x48] sm:$0xff]
    %v1235 = vld [vmem:[#allocation11 + $0x50] sm:$0xff]
    %v1236 = vld [vmem:[#allocation11 + $0x58] sm:$0xff]
    %v1237 = vld [vmem:[#allocation11 + $0x60] sm:$0xff]
    %v1238 = vld [vmem:[#allocation11 + $0x68] sm:$0xff]
    %v1239 = vld [vmem:[#allocation11 + $0x70] sm:$0xff]
    %v1240 = vld [vmem:[#allocation11 + $0x78] sm:$0xff]
    %v1241 = vld [vmem:[#allocation11 + $0x80] sm:$0xff]
    %v1242 = vld [vmem:[#allocation11 + $0x88] sm:$0xff]
    %v1243 = vld [vmem:[#allocation11 + $0x90] sm:$0xff]
    %v1244 = vld [vmem:[#allocation11 + $0x98] sm:$0xff]
    %v1245 = vld [vmem:[#allocation11 + $0xa0] sm:$0xff]
    %v1246 = vld [vmem:[#allocation11 + $0xa8] sm:$0xff]
    %v1247 = vld [vmem:[#allocation11 + $0xb0] sm:$0xff]
    %v1248 = vld [vmem:[#allocation11 + $0xb8] sm:$0xff]
    %v1249 = vld [vmem:[#allocation11 + $0xc0] sm:$0xff]
    %v1250 = vld [vmem:[#allocation11 + $0xc8] sm:$0xff]
    %v1251 = vld [vmem:[#allocation11 + $0xd0] sm:$0xff]
    %v1252 = vld [vmem:[#allocation11 + $0xd8] sm:$0xff]
    %v1253 = vld [vmem:[#allocation11 + $0xe0] sm:$0xff]
    %v1254 = vld [vmem:[#allocation11 + $0xe8] sm:$0xff]
    %v1255 = vld [vmem:[#allocation11 + $0xf0] sm:$0xff]
    %v1256 = vld [vmem:[#allocation11 + $0xf8] sm:$0xff]
    %v1257 = vld [vmem:[#allocation11 + $0x100] sm:$0xff]
    %v1258 = vld [vmem:[#allocation11 + $0x108] sm:$0xff]
    %v1259 = vld [vmem:[#allocation11 + $0x110] sm:$0xff]
    %v1260 = vld [vmem:[#allocation11 + $0x118] sm:$0xff]
    %v1261 = vld [vmem:[#allocation11 + $0x120] sm:$0xff]
    %v1262 = vld [vmem:[#allocation11 + $0x128] sm:$0xff]
    %v1263 = vld [vmem:[#allocation11 + $0x130] sm:$0xff]
    %v1264 = vld [vmem:[#allocation11 + $0x138] sm:$0xff]
    %v1265 = vld [vmem:[#allocation11 + $0x140] sm:$0xff]
    %v1266 = vld [vmem:[#allocation11 + $0x148] sm:$0xff]
    %v1267 = vld [vmem:[#allocation11 + $0x150] sm:$0xff]
    %v1268 = vld [vmem:[#allocation11 + $0x158] sm:$0xff]
    %v1269 = vld [vmem:[#allocation11 + $0x160] sm:$0xff]
    %v1270 = vld [vmem:[#allocation11 + $0x168] sm:$0xff]
    %v1271 = vld [vmem:[#allocation11 + $0x170] sm:$0xff]
    %v1272 = vld [vmem:[#allocation11 + $0x178] sm:$0xff]
    %v1273 = vld [vmem:[#allocation11 + $0x180] sm:$0xff]
    %v1274 = vld [vmem:[#allocation11 + $0x188] sm:$0xff]
    %v1275 = vld [vmem:[#allocation11 + $0x190] sm:$0xff]
    %v1276 = vld [vmem:[#allocation11 + $0x198] sm:$0xff]
    %v1277 = vld [vmem:[#allocation11 + $0x1a0] sm:$0xff]
    %v1278 = vld [vmem:[#allocation11 + $0x1a8] sm:$0xff]
    %v1279 = vld [vmem:[#allocation11 + $0x1b0] sm:$0xff]
    %v1280 = vld [vmem:[#allocation11 + $0x1b8] sm:$0xff]
    %v1281 = vld [vmem:[#allocation11 + $0x1c0] sm:$0xff]
    %v1282 = vld [vmem:[#allocation11 + $0x1c8] sm:$0xff]
    %v1283 = vld [vmem:[#allocation11 + $0x1d0] sm:$0xff]
    %v1284 = vld [vmem:[#allocation11 + $0x1d8] sm:$0xff]
    %v1285 = vld [vmem:[#allocation11 + $0x1e0] sm:$0xff]
    %v1286 = vld [vmem:[#allocation11 + $0x1e8] sm:$0xff]
    %v1287 = vld [vmem:[#allocation11 + $0x1f0] sm:$0xff]
    %v1288 = vld [vmem:[#allocation11 + $0x1f8] sm:$0xff]
    %v1289 = vld [vmem:[#allocation11 + $0x200] sm:$0xff]
    %v1290 = vld [vmem:[#allocation11 + $0x208] sm:$0xff]
    %v1291 = vld [vmem:[#allocation11 + $0x210] sm:$0xff]
    %v1292 = vld [vmem:[#allocation11 + $0x218] sm:$0xff]
    %v1293 = vld [vmem:[#allocation11 + $0x220] sm:$0xff]
    %v1294 = vld [vmem:[#allocation11 + $0x228] sm:$0xff]
    %v1295 = vld [vmem:[#allocation11 + $0x230] sm:$0xff]
    %v1296 = vld [vmem:[#allocation11 + $0x238] sm:$0xff]
    %v1297 = vld [vmem:[#allocation11 + $0x240] sm:$0xff]
    %v1298 = vld [vmem:[#allocation11 + $0x248] sm:$0xff]
    %v1299 = vld [vmem:[#allocation11 + $0x250] sm:$0xff]
    %v1300 = vld [vmem:[#allocation11 + $0x258] sm:$0xff]
    %v1301 = vld [vmem:[#allocation11 + $0x260] sm:$0xff]
    %v1302 = vld [vmem:[#allocation11 + $0x268] sm:$0xff]
    %v1303 = vld [vmem:[#allocation11 + $0x270] sm:$0xff]
    %v1304 = vld [vmem:[#allocation11 + $0x278] sm:$0xff]
    %v1305 = vld [vmem:[#allocation11 + $0x280] sm:$0xff]
    %v1306 = vld [vmem:[#allocation11 + $0x288] sm:$0xff]
    %v1307 = vld [vmem:[#allocation11 + $0x290] sm:$0xff]
    %v1308 = vld [vmem:[#allocation11 + $0x298] sm:$0xff]
    %v1309 = vld [vmem:[#allocation11 + $0x2a0] sm:$0xff]
    %v1310 = vld [vmem:[#allocation11 + $0x2a8] sm:$0xff]
    %v1311 = vld [vmem:[#allocation11 + $0x2b0] sm:$0xff]
    %v1312 = vld [vmem:[#allocation11 + $0x2b8] sm:$0xff]
    %v1313 = vld [vmem:[#allocation11 + $0x2c0] sm:$0xff]
    %v1314 = vld [vmem:[#allocation11 + $0x2c8] sm:$0xff]
    %v1315 = vld [vmem:[#allocation11 + $0x2d0] sm:$0xff]
    %v1316 = vld [vmem:[#allocation11 + $0x2d8] sm:$0xff]
    %v1317 = vld [vmem:[#allocation11 + $0x2e0] sm:$0xff]
    %v1318 = vld [vmem:[#allocation11 + $0x2e8] sm:$0xff]
    %v1319 = vld [vmem:[#allocation11 + $0x2f0] sm:$0xff]
    %v1320 = vld [vmem:[#allocation11 + $0x2f8] sm:$0xff]
    %v1321 = vld [vmem:[#allocation11 + $0x300] sm:$0xff]
    %v1322 = vld [vmem:[#allocation11 + $0x308] sm:$0xff]
    %v1323 = vld [vmem:[#allocation11 + $0x310] sm:$0xff]
    %v1324 = vld [vmem:[#allocation11 + $0x318] sm:$0xff]
    %v1325 = vld [vmem:[#allocation11 + $0x320] sm:$0xff]
    %v1326 = vld [vmem:[#allocation11 + $0x328] sm:$0xff]
    %v1327 = vld [vmem:[#allocation11 + $0x330] sm:$0xff]
    %v1328 = vld [vmem:[#allocation11 + $0x338] sm:$0xff]
    %v1329 = vld [vmem:[#allocation11 + $0x340] sm:$0xff]
    %v1330 = vld [vmem:[#allocation11 + $0x348] sm:$0xff]
    %v1331 = vld [vmem:[#allocation11 + $0x350] sm:$0xff]
    %v1332 = vld [vmem:[#allocation11 + $0x358] sm:$0xff]
    %v1333 = vld [vmem:[#allocation11 + $0x360] sm:$0xff]
    %v1334 = vld [vmem:[#allocation11 + $0x368] sm:$0xff]
    %v1335 = vld [vmem:[#allocation11 + $0x370] sm:$0xff]
    %v1336 = vld [vmem:[#allocation11 + $0x378] sm:$0xff]
    %v1337 = vld [vmem:[#allocation11 + $0x380] sm:$0xff]
    %v1338 = vld [vmem:[#allocation11 + $0x388] sm:$0xff]
    %v1339 = vld [vmem:[#allocation11 + $0x390] sm:$0xff]
    %v1340 = vld [vmem:[#allocation11 + $0x398] sm:$0xff]
    %v1341 = vld [vmem:[#allocation11 + $0x3a0] sm:$0xff]
    %v1342 = vld [vmem:[#allocation11 + $0x3a8] sm:$0xff]
    %v1343 = vld [vmem:[#allocation11 + $0x3b0] sm:$0xff]
    %v1344 = vld [vmem:[#allocation11 + $0x3b8] sm:$0xff]
    %v1345 = vld [vmem:[#allocation11 + $0x3c0] sm:$0xff]
    %v1346 = vld [vmem:[#allocation11 + $0x3c8] sm:$0xff]
    %v1347 = vld [vmem:[#allocation11 + $0x3d0] sm:$0xff]
    %v1348 = vld [vmem:[#allocation11 + $0x3d8] sm:$0xff]
    %v1349 = vld [vmem:[#allocation11 + $0x3e0] sm:$0xff]
    %v1350 = vld [vmem:[#allocation11 + $0x3e8] sm:$0xff]
    %v1351 = vld [vmem:[#allocation11 + $0x3f0] sm:$0xff]
    %v1352 = vld [vmem:[#allocation11 + $0x3f8] sm:$0xff]
    %v1353 = vld [vmem:[#allocation5] sm:$0xff]
    %v1354 = vld [vmem:[#allocation5 + $0x8] sm:$0xff]
    %v1355 = vld [vmem:[#allocation5 + $0x10] sm:$0xff]
    %v1356 = vld [vmem:[#allocation5 + $0x18] sm:$0xff]
    %v1357 = vld [vmem:[#allocation5 + $0x20] sm:$0xff]
    %v1358 = vld [vmem:[#allocation5 + $0x28] sm:$0xff]
    %v1359 = vld [vmem:[#allocation5 + $0x30] sm:$0xff]
    %v1360 = vld [vmem:[#allocation5 + $0x38] sm:$0xff]
    %v1489 = vunpack.c.l.b16 %v1225
    %v1490 = vunpack.c.h.b16 %v1225
    %v1491 = vunpack.c.l.b16 %v1226
    %v1492 = vunpack.c.h.b16 %v1226
    %v1493 = vunpack.c.l.b16 %v1227
    %v1494 = vunpack.c.h.b16 %v1227
    %v1495 = vunpack.c.l.b16 %v1228
    %v1496 = vunpack.c.h.b16 %v1228
    %v1497 = vunpack.c.l.b16 %v1229
    %v1498 = vunpack.c.h.b16 %v1229
    %v1499 = vunpack.c.l.b16 %v1230
    %v1500 = vunpack.c.h.b16 %v1230
    %v1501 = vunpack.c.l.b16 %v1231
    %v1502 = vunpack.c.h.b16 %v1231
    %v1503 = vunpack.c.l.b16 %v1232
    %v1504 = vunpack.c.h.b16 %v1232
    %v1505 = vunpack.c.l.b16 %v1233
    %v1506 = vunpack.c.h.b16 %v1233
    %v1507 = vunpack.c.l.b16 %v1234
    %v1508 = vunpack.c.h.b16 %v1234
    %v1509 = vunpack.c.l.b16 %v1235
    %v1510 = vunpack.c.h.b16 %v1235
    %v1511 = vunpack.c.l.b16 %v1236
    %v1512 = vunpack.c.h.b16 %v1236
    %v1513 = vunpack.c.l.b16 %v1237
    %v1514 = vunpack.c.h.b16 %v1237
    %v1515 = vunpack.c.l.b16 %v1238
    %v1516 = vunpack.c.h.b16 %v1238
    %v1517 = vunpack.c.l.b16 %v1239
    %v1518 = vunpack.c.h.b16 %v1239
    %v1519 = vunpack.c.l.b16 %v1240
    %v1520 = vunpack.c.h.b16 %v1240
    %v1521 = vunpack.c.l.b16 %v1241
    %v1522 = vunpack.c.h.b16 %v1241
    %v1523 = vunpack.c.l.b16 %v1242
    %v1524 = vunpack.c.h.b16 %v1242
    %v1525 = vunpack.c.l.b16 %v1243
    %v1526 = vunpack.c.h.b16 %v1243
    %v1527 = vunpack.c.l.b16 %v1244
    %v1528 = vunpack.c.h.b16 %v1244
    %v1529 = vunpack.c.l.b16 %v1245
    %v1530 = vunpack.c.h.b16 %v1245
    %v1531 = vunpack.c.l.b16 %v1246
    %v1532 = vunpack.c.h.b16 %v1246
    %v1533 = vunpack.c.l.b16 %v1247
    %v1534 = vunpack.c.h.b16 %v1247
    %v1535 = vunpack.c.l.b16 %v1248
    %v1536 = vunpack.c.h.b16 %v1248
    %v1537 = vunpack.c.l.b16 %v1249
    %v1538 = vunpack.c.h.b16 %v1249
    %v1539 = vunpack.c.l.b16 %v1250
    %v1540 = vunpack.c.h.b16 %v1250
    %v1541 = vunpack.c.l.b16 %v1251
    %v1542 = vunpack.c.h.b16 %v1251
    %v1543 = vunpack.c.l.b16 %v1252
    %v1544 = vunpack.c.h.b16 %v1252
    %v1545 = vunpack.c.l.b16 %v1253
    %v1546 = vunpack.c.h.b16 %v1253
    %v1547 = vunpack.c.l.b16 %v1254
    %v1548 = vunpack.c.h.b16 %v1254
    %v1549 = vunpack.c.l.b16 %v1255
    %v1550 = vunpack.c.h.b16 %v1255
    %v1551 = vunpack.c.l.b16 %v1256
    %v1552 = vunpack.c.h.b16 %v1256
    %v1553 = vunpack.c.l.b16 %v1257
    %v1554 = vunpack.c.h.b16 %v1257
    %v1555 = vunpack.c.l.b16 %v1258
    %v1556 = vunpack.c.h.b16 %v1258
    %v1557 = vunpack.c.l.b16 %v1259
    %v1558 = vunpack.c.h.b16 %v1259
    %v1559 = vunpack.c.l.b16 %v1260
    %v1560 = vunpack.c.h.b16 %v1260
    %v1561 = vunpack.c.l.b16 %v1261
    %v1562 = vunpack.c.h.b16 %v1261
    %v1563 = vunpack.c.l.b16 %v1262
    %v1564 = vunpack.c.h.b16 %v1262
    %v1565 = vunpack.c.l.b16 %v1263
    %v1566 = vunpack.c.h.b16 %v1263
    %v1567 = vunpack.c.l.b16 %v1264
    %v1568 = vunpack.c.h.b16 %v1264
    %v1569 = vunpack.c.l.b16 %v1265
    %v1570 = vunpack.c.h.b16 %v1265
    %v1571 = vunpack.c.l.b16 %v1266
    %v1572 = vunpack.c.h.b16 %v1266
    %v1573 = vunpack.c.l.b16 %v1267
    %v1574 = vunpack.c.h.b16 %v1267
    %v1575 = vunpack.c.l.b16 %v1268
    %v1576 = vunpack.c.h.b16 %v1268
    %v1577 = vunpack.c.l.b16 %v1269
    %v1578 = vunpack.c.h.b16 %v1269
    %v1579 = vunpack.c.l.b16 %v1270
    %v1580 = vunpack.c.h.b16 %v1270
    %v1581 = vunpack.c.l.b16 %v1271
    %v1582 = vunpack.c.h.b16 %v1271
    %v1583 = vunpack.c.l.b16 %v1272
    %v1584 = vunpack.c.h.b16 %v1272
    %v1585 = vunpack.c.l.b16 %v1273
    %v1586 = vunpack.c.h.b16 %v1273
    %v1587 = vunpack.c.l.b16 %v1274
    %v1588 = vunpack.c.h.b16 %v1274
    %v1589 = vunpack.c.l.b16 %v1275
    %v1590 = vunpack.c.h.b16 %v1275
    %v1591 = vunpack.c.l.b16 %v1276
    %v1592 = vunpack.c.h.b16 %v1276
    %v1593 = vunpack.c.l.b16 %v1277
    %v1594 = vunpack.c.h.b16 %v1277
    %v1595 = vunpack.c.l.b16 %v1278
    %v1596 = vunpack.c.h.b16 %v1278
    %v1597 = vunpack.c.l.b16 %v1279
    %v1598 = vunpack.c.h.b16 %v1279
    %v1599 = vunpack.c.l.b16 %v1280
    %v1600 = vunpack.c.h.b16 %v1280
    %v1601 = vunpack.c.l.b16 %v1281
    %v1602 = vunpack.c.h.b16 %v1281
    %v1603 = vunpack.c.l.b16 %v1282
    %v1604 = vunpack.c.h.b16 %v1282
    %v1605 = vunpack.c.l.b16 %v1283
    %v1606 = vunpack.c.h.b16 %v1283
    %v1607 = vunpack.c.l.b16 %v1284
    %v1608 = vunpack.c.h.b16 %v1284
    %v1609 = vunpack.c.l.b16 %v1285
    %v1610 = vunpack.c.h.b16 %v1285
    %v1611 = vunpack.c.l.b16 %v1286
    %v1612 = vunpack.c.h.b16 %v1286
    %v1613 = vunpack.c.l.b16 %v1287
    %v1614 = vunpack.c.h.b16 %v1287
    %v1615 = vunpack.c.l.b16 %v1288
    %v1616 = vunpack.c.h.b16 %v1288
    %v1617 = vunpack.c.l.b16 %v1289
    %v1618 = vunpack.c.h.b16 %v1289
    %v1619 = vunpack.c.l.b16 %v1290
    %v1620 = vunpack.c.h.b16 %v1290
    %v1621 = vunpack.c.l.b16 %v1291
    %v1622 = vunpack.c.h.b16 %v1291
    %v1623 = vunpack.c.l.b16 %v1292
    %v1624 = vunpack.c.h.b16 %v1292
    %v1625 = vunpack.c.l.b16 %v1293
    %v1626 = vunpack.c.h.b16 %v1293
    %v1627 = vunpack.c.l.b16 %v1294
    %v1628 = vunpack.c.h.b16 %v1294
    %v1629 = vunpack.c.l.b16 %v1295
    %v1630 = vunpack.c.h.b16 %v1295
    %v1631 = vunpack.c.l.b16 %v1296
    %v1632 = vunpack.c.h.b16 %v1296
    %v1633 = vunpack.c.l.b16 %v1297
    %v1634 = vunpack.c.h.b16 %v1297
    %v1635 = vunpack.c.l.b16 %v1298
    %v1636 = vunpack.c.h.b16 %v1298
    %v1637 = vunpack.c.l.b16 %v1299
    %v1638 = vunpack.c.h.b16 %v1299
    %v1639 = vunpack.c.l.b16 %v1300
    %v1640 = vunpack.c.h.b16 %v1300
    %v1641 = vunpack.c.l.b16 %v1301
    %v1642 = vunpack.c.h.b16 %v1301
    %v1643 = vunpack.c.l.b16 %v1302
    %v1644 = vunpack.c.h.b16 %v1302
    %v1645 = vunpack.c.l.b16 %v1303
    %v1646 = vunpack.c.h.b16 %v1303
    %v1647 = vunpack.c.l.b16 %v1304
    %v1648 = vunpack.c.h.b16 %v1304
    %v1649 = vunpack.c.l.b16 %v1305
    %v1650 = vunpack.c.h.b16 %v1305
    %v1651 = vunpack.c.l.b16 %v1306
    %v1652 = vunpack.c.h.b16 %v1306
    %v1653 = vunpack.c.l.b16 %v1307
    %v1654 = vunpack.c.h.b16 %v1307
    %v1655 = vunpack.c.l.b16 %v1308
    %v1656 = vunpack.c.h.b16 %v1308
    %v1657 = vunpack.c.l.b16 %v1309
    %v1658 = vunpack.c.h.b16 %v1309
    %v1659 = vunpack.c.l.b16 %v1310
    %v1660 = vunpack.c.h.b16 %v1310
    %v1661 = vunpack.c.l.b16 %v1311
    %v1662 = vunpack.c.h.b16 %v1311
    %v1663 = vunpack.c.l.b16 %v1312
    %v1664 = vunpack.c.h.b16 %v1312
    %v1665 = vunpack.c.l.b16 %v1313
    %v1666 = vunpack.c.h.b16 %v1313
    %v1667 = vunpack.c.l.b16 %v1314
    %v1668 = vunpack.c.h.b16 %v1314
    %v1669 = vunpack.c.l.b16 %v1315
    %v1670 = vunpack.c.h.b16 %v1315
    %v1671 = vunpack.c.l.b16 %v1316
    %v1672 = vunpack.c.h.b16 %v1316
    %v1673 = vunpack.c.l.b16 %v1317
    %v1674 = vunpack.c.h.b16 %v1317
    %v1675 = vunpack.c.l.b16 %v1318
    %v1676 = vunpack.c.h.b16 %v1318
    %v1677 = vunpack.c.l.b16 %v1319
    %v1678 = vunpack.c.h.b16 %v1319
    %v1679 = vunpack.c.l.b16 %v1320
    %v1680 = vunpack.c.h.b16 %v1320
    %v1681 = vunpack.c.l.b16 %v1321
    %v1682 = vunpack.c.h.b16 %v1321
    %v1683 = vunpack.c.l.b16 %v1322
    %v1684 = vunpack.c.h.b16 %v1322
    %v1685 = vunpack.c.l.b16 %v1323
    %v1686 = vunpack.c.h.b16 %v1323
    %v1687 = vunpack.c.l.b16 %v1324
    %v1688 = vunpack.c.h.b16 %v1324
    %v1689 = vunpack.c.l.b16 %v1325
    %v1690 = vunpack.c.h.b16 %v1325
    %v1691 = vunpack.c.l.b16 %v1326
    %v1692 = vunpack.c.h.b16 %v1326
    %v1693 = vunpack.c.l.b16 %v1327
    %v1694 = vunpack.c.h.b16 %v1327
    %v1695 = vunpack.c.l.b16 %v1328
    %v1696 = vunpack.c.h.b16 %v1328
    %v1697 = vunpack.c.l.b16 %v1329
    %v1698 = vunpack.c.h.b16 %v1329
    %v1699 = vunpack.c.l.b16 %v1330
    %v1700 = vunpack.c.h.b16 %v1330
    %v1701 = vunpack.c.l.b16 %v1331
    %v1702 = vunpack.c.h.b16 %v1331
    %v1703 = vunpack.c.l.b16 %v1332
    %v1704 = vunpack.c.h.b16 %v1332
    %v1705 = vunpack.c.l.b16 %v1333
    %v1706 = vunpack.c.h.b16 %v1333
    %v1707 = vunpack.c.l.b16 %v1334
    %v1708 = vunpack.c.h.b16 %v1334
    %v1709 = vunpack.c.l.b16 %v1335
    %v1710 = vunpack.c.h.b16 %v1335
    %v1711 = vunpack.c.l.b16 %v1336
    %v1712 = vunpack.c.h.b16 %v1336
    %v1713 = vunpack.c.l.b16 %v1337
    %v1714 = vunpack.c.h.b16 %v1337
    %v1715 = vunpack.c.l.b16 %v1338
    %v1716 = vunpack.c.h.b16 %v1338
    %v1717 = vunpack.c.l.b16 %v1339
    %v1718 = vunpack.c.h.b16 %v1339
    %v1719 = vunpack.c.l.b16 %v1340
    %v1720 = vunpack.c.h.b16 %v1340
    %v1721 = vunpack.c.l.b16 %v1341
    %v1722 = vunpack.c.h.b16 %v1341
    %v1723 = vunpack.c.l.b16 %v1342
    %v1724 = vunpack.c.h.b16 %v1342
    %v1725 = vunpack.c.l.b16 %v1343
    %v1726 = vunpack.c.h.b16 %v1343
    %v1727 = vunpack.c.l.b16 %v1344
    %v1728 = vunpack.c.h.b16 %v1344
    %v1729 = vunpack.c.l.b16 %v1345
    %v1730 = vunpack.c.h.b16 %v1345
    %v1731 = vunpack.c.l.b16 %v1346
    %v1732 = vunpack.c.h.b16 %v1346
    %v1733 = vunpack.c.l.b16 %v1347
    %v1734 = vunpack.c.h.b16 %v1347
    %v1735 = vunpack.c.l.b16 %v1348
    %v1736 = vunpack.c.h.b16 %v1348
    %v1737 = vunpack.c.l.b16 %v1349
    %v1738 = vunpack.c.h.b16 %v1349
    %v1739 = vunpack.c.l.b16 %v1350
    %v1740 = vunpack.c.h.b16 %v1350
    %v1741 = vunpack.c.l.b16 %v1351
    %v1742 = vunpack.c.h.b16 %v1351
    %v1743 = vunpack.c.l.b16 %v1352
    %v1744 = vunpack.c.h.b16 %v1352
    %v1745 = vpack.c.b16 %v1497, %v1489
    %v1746 = vpack.c.b16 %v1498, %v1490
    %v1747 = vpack.c.b16 %v1499, %v1491
    %v1748 = vpack.c.b16 %v1500, %v1492
    %v1749 = vpack.c.b16 %v1501, %v1493
    %v1750 = vpack.c.b16 %v1502, %v1494
    %v1751 = vpack.c.b16 %v1503, %v1495
    %v1752 = vpack.c.b16 %v1504, %v1496
    %v1753 = vpack.c.b16 %v1513, %v1505
    %v1754 = vpack.c.b16 %v1514, %v1506
    %v1755 = vpack.c.b16 %v1515, %v1507
    %v1756 = vpack.c.b16 %v1516, %v1508
    %v1757 = vpack.c.b16 %v1517, %v1509
    %v1758 = vpack.c.b16 %v1518, %v1510
    %v1759 = vpack.c.b16 %v1519, %v1511
    %v1760 = vpack.c.b16 %v1520, %v1512
    %v1761 = vpack.c.b16 %v1529, %v1521
    %v1762 = vpack.c.b16 %v1530, %v1522
    %v1763 = vpack.c.b16 %v1531, %v1523
    %v1764 = vpack.c.b16 %v1532, %v1524
    %v1765 = vpack.c.b16 %v1533, %v1525
    %v1766 = vpack.c.b16 %v1534, %v1526
    %v1767 = vpack.c.b16 %v1535, %v1527
    %v1768 = vpack.c.b16 %v1536, %v1528
    %v1769 = vpack.c.b16 %v1545, %v1537
    %v1770 = vpack.c.b16 %v1546, %v1538
    %v1771 = vpack.c.b16 %v1547, %v1539
    %v1772 = vpack.c.b16 %v1548, %v1540
    %v1773 = vpack.c.b16 %v1549, %v1541
    %v1774 = vpack.c.b16 %v1550, %v1542
    %v1775 = vpack.c.b16 %v1551, %v1543
    %v1776 = vpack.c.b16 %v1552, %v1544
    %v1777 = vpack.c.b16 %v1561, %v1553
    %v1778 = vpack.c.b16 %v1562, %v1554
    %v1779 = vpack.c.b16 %v1563, %v1555
    %v1780 = vpack.c.b16 %v1564, %v1556
    %v1781 = vpack.c.b16 %v1565, %v1557
    %v1782 = vpack.c.b16 %v1566, %v1558
    %v1783 = vpack.c.b16 %v1567, %v1559
    %v1784 = vpack.c.b16 %v1568, %v1560
    %v1785 = vpack.c.b16 %v1577, %v1569
    %v1786 = vpack.c.b16 %v1578, %v1570
    %v1787 = vpack.c.b16 %v1579, %v1571
    %v1788 = vpack.c.b16 %v1580, %v1572
    %v1789 = vpack.c.b16 %v1581, %v1573
    %v1790 = vpack.c.b16 %v1582, %v1574
    %v1791 = vpack.c.b16 %v1583, %v1575
    %v1792 = vpack.c.b16 %v1584, %v1576
    %v1793 = vpack.c.b16 %v1593, %v1585
    %v1794 = vpack.c.b16 %v1594, %v1586
    %v1795 = vpack.c.b16 %v1595, %v1587
    %v1796 = vpack.c.b16 %v1596, %v1588
    %v1797 = vpack.c.b16 %v1597, %v1589
    %v1798 = vpack.c.b16 %v1598, %v1590
    %v1799 = vpack.c.b16 %v1599, %v1591
    %v1800 = vpack.c.b16 %v1600, %v1592
    %v1801 = vpack.c.b16 %v1609, %v1601
    %v1802 = vpack.c.b16 %v1610, %v1602
    %v1803 = vpack.c.b16 %v1611, %v1603
    %v1804 = vpack.c.b16 %v1612, %v1604
    %v1805 = vpack.c.b16 %v1613, %v1605
    %v1806 = vpack.c.b16 %v1614, %v1606
    %v1807 = vpack.c.b16 %v1615, %v1607
    %v1808 = vpack.c.b16 %v1616, %v1608
    %v1809 = vpack.c.b16 %v1625, %v1617
    %v1810 = vpack.c.b16 %v1626, %v1618
    %v1811 = vpack.c.b16 %v1627, %v1619
    %v1812 = vpack.c.b16 %v1628, %v1620
    %v1813 = vpack.c.b16 %v1629, %v1621
    %v1814 = vpack.c.b16 %v1630, %v1622
    %v1815 = vpack.c.b16 %v1631, %v1623
    %v1816 = vpack.c.b16 %v1632, %v1624
    %v1817 = vpack.c.b16 %v1641, %v1633
    %v1818 = vpack.c.b16 %v1642, %v1634
    %v1819 = vpack.c.b16 %v1643, %v1635
    %v1820 = vpack.c.b16 %v1644, %v1636
    %v1821 = vpack.c.b16 %v1645, %v1637
    %v1822 = vpack.c.b16 %v1646, %v1638
    %v1823 = vpack.c.b16 %v1647, %v1639
    %v1824 = vpack.c.b16 %v1648, %v1640
    %v1825 = vpack.c.b16 %v1657, %v1649
    %v1826 = vpack.c.b16 %v1658, %v1650
    %v1827 = vpack.c.b16 %v1659, %v1651
    %v1828 = vpack.c.b16 %v1660, %v1652
    %v1829 = vpack.c.b16 %v1661, %v1653
    %v1830 = vpack.c.b16 %v1662, %v1654
    %v1831 = vpack.c.b16 %v1663, %v1655
    %v1832 = vpack.c.b16 %v1664, %v1656
    %v1833 = vpack.c.b16 %v1673, %v1665
    %v1834 = vpack.c.b16 %v1674, %v1666
    %v1835 = vpack.c.b16 %v1675, %v1667
    %v1836 = vpack.c.b16 %v1676, %v1668
    %v1837 = vpack.c.b16 %v1677, %v1669
    %v1838 = vpack.c.b16 %v1678, %v1670
    %v1839 = vpack.c.b16 %v1679, %v1671
    %v1840 = vpack.c.b16 %v1680, %v1672
    %v1841 = vpack.c.b16 %v1689, %v1681
    %v1842 = vpack.c.b16 %v1690, %v1682
    %v1843 = vpack.c.b16 %v1691, %v1683
    %v1844 = vpack.c.b16 %v1692, %v1684
    %v1845 = vpack.c.b16 %v1693, %v1685
    %v1846 = vpack.c.b16 %v1694, %v1686
    %v1847 = vpack.c.b16 %v1695, %v1687
    %v1848 = vpack.c.b16 %v1696, %v1688
    %v1849 = vpack.c.b16 %v1705, %v1697
    %v1850 = vpack.c.b16 %v1706, %v1698
    %v1851 = vpack.c.b16 %v1707, %v1699
    %v1852 = vpack.c.b16 %v1708, %v1700
    %v1853 = vpack.c.b16 %v1709, %v1701
    %v1854 = vpack.c.b16 %v1710, %v1702
    %v1855 = vpack.c.b16 %v1711, %v1703
    %v1856 = vpack.c.b16 %v1712, %v1704
    %v1857 = vpack.c.b16 %v1721, %v1713
    %v1858 = vpack.c.b16 %v1722, %v1714
    %v1859 = vpack.c.b16 %v1723, %v1715
    %v1860 = vpack.c.b16 %v1724, %v1716
    %v1861 = vpack.c.b16 %v1725, %v1717
    %v1862 = vpack.c.b16 %v1726, %v1718
    %v1863 = vpack.c.b16 %v1727, %v1719
    %v1864 = vpack.c.b16 %v1728, %v1720
    %v1865 = vpack.c.b16 %v1737, %v1729
    %v1866 = vpack.c.b16 %v1738, %v1730
    %v1867 = vpack.c.b16 %v1739, %v1731
    %v1868 = vpack.c.b16 %v1740, %v1732
    %v1869 = vpack.c.b16 %v1741, %v1733
    %v1870 = vpack.c.b16 %v1742, %v1734
    %v1871 = vpack.c.b16 %v1743, %v1735
    %v1872 = vpack.c.b16 %v1744, %v1736
    %2001 = vmatprep.subr.bf16.mxu0 %v1746
    %2002 = vmatpush1.bf16.msra.mxu0 %v1745
    %2003 = vmatprep.subr.bf16.mxu0 %v1754
    %2004 = vmatpush1.bf16.msra.mxu0 %v1753
    %2005 = vmatprep.subr.bf16.mxu0 %v1762
    %2006 = vmatpush1.bf16.msra.mxu0 %v1761
    %2007 = vmatprep.subr.bf16.mxu0 %v1770
    %2008 = vmatpush1.bf16.msra.mxu0 %v1769
    %2009 = vmatprep.subr.bf16.mxu0 %v1778
    %2010 = vmatpush1.bf16.msra.mxu0 %v1777
    %2011 = vmatprep.subr.bf16.mxu0 %v1786
    %2012 = vmatpush1.bf16.msra.mxu0 %v1785
    %2013 = vmatprep.subr.bf16.mxu0 %v1794
    %2014 = vmatpush1.bf16.msra.mxu0 %v1793
    %2015 = vmatprep.subr.bf16.mxu0 %v1802
    %2016 = vmatpush1.bf16.msra.mxu0 %v1801
    %2017 = vmatprep.subr.bf16.mxu0 %v1810
    %2018 = vmatpush1.bf16.msra.mxu0 %v1809
    %2019 = vmatprep.subr.bf16.mxu0 %v1818
    %2020 = vmatpush1.bf16.msra.mxu0 %v1817
    %2021 = vmatprep.subr.bf16.mxu0 %v1826
    %2022 = vmatpush1.bf16.msra.mxu0 %v1825
    %2023 = vmatprep.subr.bf16.mxu0 %v1834
    %2024 = vmatpush1.bf16.msra.mxu0 %v1833
    %2025 = vmatprep.subr.bf16.mxu0 %v1842
    %2026 = vmatpush1.bf16.msra.mxu0 %v1841
    %2027 = vmatprep.subr.bf16.mxu0 %v1850
    %2028 = vmatpush1.bf16.msra.mxu0 %v1849
    %2029 = vmatprep.subr.bf16.mxu0 %v1858
    %2030 = vmatpush1.bf16.msra.mxu0 %v1857
    %2031 = vmatprep.subr.bf16.mxu0 %v1866
    %2032 = vmatpush1.bf16.msra.mxu0 %v1865
    %2033 = vmatprep.mubr.bf16.mxu0 0
    %2034 = vmatmul.mubr.bf16.gmra.mrb[0].mxu0 0
    %v2035 = vpop.f32.mrb[0].mxu0
    %v2036 = vadd.f32 0.0, %v2035
    %v2037 = vpop.f32.mrb[0].mxu0
    %v2038 = vadd.f32 0.0, %v2037
    %v2039 = vpop.f32.mrb[0].mxu0
    %v2040 = vpop.f32.mrb[0].mxu0
    %2041 = vdwg.mxu0
    %2042 = vmatprep.subr.bf16.mxu0 %v1748
    %2043 = vmatpush1.bf16.msra.mxu0 %v1747
    %2044 = vmatprep.subr.bf16.mxu0 %v1756
    %2045 = vmatpush1.bf16.msra.mxu0 %v1755
    %2046 = vmatprep.subr.bf16.mxu0 %v1764
    %2047 = vmatpush1.bf16.msra.mxu0 %v1763
    %2048 = vmatprep.subr.bf16.mxu0 %v1772
    %2049 = vmatpush1.bf16.msra.mxu0 %v1771
    %2050 = vmatprep.subr.bf16.mxu0 %v1780
    %2051 = vmatpush1.bf16.msra.mxu0 %v1779
    %2052 = vmatprep.subr.bf16.mxu0 %v1788
    %2053 = vmatpush1.bf16.msra.mxu0 %v1787
    %2054 = vmatprep.subr.bf16.mxu0 %v1796
    %2055 = vmatpush1.bf16.msra.mxu0 %v1795
    %2056 = vmatprep.subr.bf16.mxu0 %v1804
    %2057 = vmatpush1.bf16.msra.mxu0 %v1803
    %2058 = vmatprep.subr.bf16.mxu0 %v1812
    %2059 = vmatpush1.bf16.msra.mxu0 %v1811
    %2060 = vmatprep.subr.bf16.mxu0 %v1820
    %2061 = vmatpush1.bf16.msra.mxu0 %v1819
    %2062 = vmatprep.subr.bf16.mxu0 %v1828
    %2063 = vmatpush1.bf16.msra.mxu0 %v1827
    %2064 = vmatprep.subr.bf16.mxu0 %v1836
    %2065 = vmatpush1.bf16.msra.mxu0 %v1835
    %2066 = vmatprep.subr.bf16.mxu0 %v1844
    %2067 = vmatpush1.bf16.msra.mxu0 %v1843
    %2068 = vmatprep.subr.bf16.mxu0 %v1852
    %2069 = vmatpush1.bf16.msra.mxu0 %v1851
    %2070 = vmatprep.subr.bf16.mxu0 %v1860
    %2071 = vmatpush1.bf16.msra.mxu0 %v1859
    %2072 = vmatprep.subr.bf16.mxu0 %v1868
    %2073 = vmatpush1.bf16.msra.mxu0 %v1867
    %2074 = vmatprep.mubr.bf16.mxu0 0
    %2075 = vmatmul.mubr.bf16.gmra.mrb[0].mxu0 0
    %v2076 = vpop.f32.mrb[0].mxu0
    %v2077 = vadd.f32 0.0, %v2076
    %v2078 = vpop.f32.mrb[0].mxu0
    %v2079 = vadd.f32 0.0, %v2078
    %v2080 = vpop.f32.mrb[0].mxu0
    %v2081 = vpop.f32.mrb[0].mxu0
    %2082 = vdwg.mxu0
    %2083 = vmatprep.subr.bf16.mxu0 %v1750
    %2084 = vmatpush1.bf16.msra.mxu0 %v1749
    %2085 = vmatprep.subr.bf16.mxu0 %v1758
    %2086 = vmatpush1.bf16.msra.mxu0 %v1757
    %2087 = vmatprep.subr.bf16.mxu0 %v1766
    %2088 = vmatpush1.bf16.msra.mxu0 %v1765
    %2089 = vmatprep.subr.bf16.mxu0 %v1774
    %2090 = vmatpush1.bf16.msra.mxu0 %v1773
    %2091 = vmatprep.subr.bf16.mxu0 %v1782
    %2092 = vmatpush1.bf16.msra.mxu0 %v1781
    %2093 = vmatprep.subr.bf16.mxu0 %v1790
    %2094 = vmatpush1.bf16.msra.mxu0 %v1789
    %2095 = vmatprep.subr.bf16.mxu0 %v1798
    %2096 = vmatpush1.bf16.msra.mxu0 %v1797
    %2097 = vmatprep.subr.bf16.mxu0 %v1806
    %2098 = vmatpush1.bf16.msra.mxu0 %v1805
    %2099 = vmatprep.subr.bf16.mxu0 %v1814
    %2100 = vmatpush1.bf16.msra.mxu0 %v1813
    %2101 = vmatprep.subr.bf16.mxu0 %v1822
    %2102 = vmatpush1.bf16.msra.mxu0 %v1821
    %2103 = vmatprep.subr.bf16.mxu0 %v1830
    %2104 = vmatpush1.bf16.msra.mxu0 %v1829
    %2105 = vmatprep.subr.bf16.mxu0 %v1838
    %2106 = vmatpush1.bf16.msra.mxu0 %v1837
    %2107 = vmatprep.subr.bf16.mxu0 %v1846
    %2108 = vmatpush1.bf16.msra.mxu0 %v1845
    %2109 = vmatprep.subr.bf16.mxu0 %v1854
    %2110 = vmatpush1.bf16.msra.mxu0 %v1853
    %2111 = vmatprep.subr.bf16.mxu0 %v1862
    %2112 = vmatpush1.bf16.msra.mxu0 %v1861
    %2113 = vmatprep.subr.bf16.mxu0 %v1870
    %2114 = vmatpush1.bf16.msra.mxu0 %v1869
    %2115 = vmatprep.mubr.bf16.mxu0 0
    %2116 = vmatmul.mubr.bf16.gmra.mrb[0].mxu0 0
    %v2117 = vpop.f32.mrb[0].mxu0
    %v2118 = vadd.f32 0.0, %v2117
    %v2119 = vpop.f32.mrb[0].mxu0
    %v2120 = vadd.f32 0.0, %v2119
    %v2121 = vpop.f32.mrb[0].mxu0
    %v2122 = vpop.f32.mrb[0].mxu0
    %2123 = vdwg.mxu0
    %2124 = vmatprep.subr.bf16.mxu0 %v1752
    %2125 = vmatpush1.bf16.msra.mxu0 %v1751
    %2126 = vmatprep.subr.bf16.mxu0 %v1760
    %2127 = vmatpush1.bf16.msra.mxu0 %v1759
    %2128 = vmatprep.subr.bf16.mxu0 %v1768
    %2129 = vmatpush1.bf16.msra.mxu0 %v1767
    %2130 = vmatprep.subr.bf16.mxu0 %v1776
    %2131 = vmatpush1.bf16.msra.mxu0 %v1775
    %2132 = vmatprep.subr.bf16.mxu0 %v1784
    %2133 = vmatpush1.bf16.msra.mxu0 %v1783
    %2134 = vmatprep.subr.bf16.mxu0 %v1792
    %2135 = vmatpush1.bf16.msra.mxu0 %v1791
    %2136 = vmatprep.subr.bf16.mxu0 %v1800
    %2137 = vmatpush1.bf16.msra.mxu0 %v1799
    %2138 = vmatprep.subr.bf16.mxu0 %v1808
    %2139 = vmatpush1.bf16.msra.mxu0 %v1807
    %2140 = vmatprep.subr.bf16.mxu0 %v1816
    %2141 = vmatpush1.bf16.msra.mxu0 %v1815
    %2142 = vmatprep.subr.bf16.mxu0 %v1824
    %2143 = vmatpush1.bf16.msra.mxu0 %v1823
    %2144 = vmatprep.subr.bf16.mxu0 %v1832
    %2145 = vmatpush1.bf16.msra.mxu0 %v1831
    %2146 = vmatprep.subr.bf16.mxu0 %v1840
    %2147 = vmatpush1.bf16.msra.mxu0 %v1839
    %2148 = vmatprep.subr.bf16.mxu0 %v1848
    %2149 = vmatpush1.bf16.msra.mxu0 %v1847
    %2150 = vmatprep.subr.bf16.mxu0 %v1856
    %2151 = vmatpush1.bf16.msra.mxu0 %v1855
    %2152 = vmatprep.subr.bf16.mxu0 %v1864
    %2153 = vmatpush1.bf16.msra.mxu0 %v1863
    %2154 = vmatprep.subr.bf16.mxu0 %v1872
    %2155 = vmatpush1.bf16.msra.mxu0 %v1871
    %2156 = vmatprep.mubr.bf16.mxu0 0
    %2157 = vmatmul.mubr.bf16.gmra.mrb[0].mxu0 0
    %v2158 = vpop.f32.mrb[0].mxu0
    %v2159 = vadd.f32 0.0, %v2158
    %v2160 = vpop.f32.mrb[0].mxu0
    %v2161 = vadd.f32 0.0, %v2160
    %v2162 = vpop.f32.mrb[0].mxu0
    %v2163 = vpop.f32.mrb[0].mxu0
    %2164 = vdwg.mxu0
    %v2165 = vadd.f32 %v1353, %v2036
    %v2166 = vadd.f32 %v1354, %v2038
    %v2167 = vadd.f32 %v1355, %v2077
    %v2168 = vadd.f32 %v1356, %v2079
    %v2169 = vadd.f32 %v1357, %v2118
    %v2170 = vadd.f32 %v1358, %v2120
    %v2171 = vadd.f32 %v1359, %v2159
    %v2172 = vadd.f32 %v1360, %v2161
    %v2173 = vxor.u32 %v2165, 2147483648
    %v2174 = vxor.u32 %v2166, 2147483648
    %v2175 = vmul.f32 %v2173, 1.442695
    %v2176 = vpow.pop %v2175
    %v2177 = vmul.f32 %v2174, 1.442695
    %v2178 = vpow.pop %v2177
    %v2179 = vadd.f32 %v2176, 1.0
    %v2180 = vadd.f32 %v2178, 1.0
    %v2181 = vrcp.pop %v2179
    %v2182 = vmul.f32 1.0, %v2181
    %v2183 = vrcp.pop %v2180
    %v2184 = vmul.f32 1.0, %v2183
    %v2185 = vxor.u32 %v2167, 2147483648
    %v2186 = vxor.u32 %v2168, 2147483648
    %v2187 = vmul.f32 %v2185, 1.442695
    %v2188 = vpow.pop %v2187
    %v2189 = vmul.f32 %v2186, 1.442695
    %v2190 = vpow.pop %v2189
    %v2191 = vadd.f32 %v2188, 1.0
    %v2192 = vadd.f32 %v2190, 1.0
    %v2193 = vrcp.pop %v2191
    %v2194 = vmul.f32 1.0, %v2193
    %v2195 = vrcp.pop %v2192
    %v2196 = vmul.f32 1.0, %v2195
    %v2197 = vtanh.pop %v2169
    %v2198 = vtanh.pop %v2170
    %v2199 = vxor.u32 %v2171, 2147483648
    %v2200 = vxor.u32 %v2172, 2147483648
    %v2201 = vmul.f32 %v2199, 1.442695
    %v2202 = vpow.pop %v2201
    %v2203 = vmul.f32 %v2200, 1.442695
    %v2204 = vpow.pop %v2203
    %v2205 = vadd.f32 %v2202, 1.0
    %v2206 = vadd.f32 %v2204, 1.0
    %v2207 = vrcp.pop %v2205
    %v2208 = vmul.f32 1.0, %v2207
    %v2209 = vrcp.pop %v2206
    %v2210 = vmul.f32 1.0, %v2209
    %v2211 = vmul.f32 %v2194, 0.0
    %v2212 = vmul.f32 %v2196, 0.0
    %v2213 = vmul.f32 %v2182, %v2197
    %v2214 = vmul.f32 %v2184, %v2198
    %v2215 = vadd.f32 %v2211, %v2213
    %v2216 = vadd.f32 %v2212, %v2214
    %v2217 = vtanh.pop %v2215
    %v2218 = vtanh.pop %v2216
    %v2219 = vmul.f32 %v2208, %v2217
    %v2220 = vmul.f32 %v2210, %v2218
    %vm2221 = vcmp.gt.s32.totalorder %v464, 0
    %v2222 = vsel %vm2221, 1, 0
    %2223 = vset.pattern.permute.xlu0 0
    %2224 = vperm.xlu0 %2223, %v2222
    %v2225 = vpop.permute.xlu0 %2224
    %vm2226 = vcmp.eq.s32.totalorder %v2225, 1
    %v2227 = vsel %vm2226, %v2219, 0.0
    %v2228 = vsel %vm2226, %v2220, 0.0
    %v2229 = vsel %vm2226, %v2215, 0.0
    %v2230 = vsel %vm2226, %v2216, 0.0
    %2231 = vst [vmem:[#allocation6] sm:$0xff] %v2227
    %2232 = vst [vmem:[#allocation6 + $0x8] sm:$0xff] %v2228
    %v2233 = vld [vmem:[#allocation5 + $0x40] sm:$0xff]
    %v2234 = vld [vmem:[#allocation5 + $0x48] sm:$0xff]
    %v2235 = vld [vmem:[#allocation5 + $0x50] sm:$0xff]
    %v2236 = vld [vmem:[#allocation5 + $0x58] sm:$0xff]
    %v2237 = vld [vmem:[#allocation5 + $0x60] sm:$0xff]
    %v2238 = vld [vmem:[#allocation5 + $0x68] sm:$0xff]
    %v2239 = vld [vmem:[#allocation5 + $0x70] sm:$0xff]
    %v2240 = vld [vmem:[#allocation5 + $0x78] sm:$0xff]
    %v2241 = vpack.c.bf16 %v2227, %v2227
    %v2242 = vpack.c.bf16 %v2228, %v2228
    %2243 = vmatprep.subr.bf16.mxu0 %v1746
    %2244 = vmatpush1.bf16.msra.mxu0 %v1745
    %2245 = vmatprep.subr.bf16.mxu0 %v1754
    %2246 = vmatpush1.bf16.msra.mxu0 %v1753
    %2247 = vmatprep.subr.bf16.mxu0 %v1762
    %2248 = vmatpush1.bf16.msra.mxu0 %v1761
    %2249 = vmatprep.subr.bf16.mxu0 %v1770
    %2250 = vmatpush1.bf16.msra.mxu0 %v1769
    %2251 = vmatprep.subr.bf16.mxu0 %v1778
    %2252 = vmatpush1.bf16.msra.mxu0 %v1777
    %2253 = vmatprep.subr.bf16.mxu0 %v1786
    %2254 = vmatpush1.bf16.msra.mxu0 %v1785
    %2255 = vmatprep.subr.bf16.mxu0 %v1794
    %2256 = vmatpush1.bf16.msra.mxu0 %v1793
    %2257 = vmatprep.subr.bf16.mxu0 %v1802
    %2258 = vmatpush1.bf16.msra.mxu0 %v1801
    %2259 = vmatprep.subr.bf16.mxu0 %v1810
    %2260 = vmatpush1.bf16.msra.mxu0 %v1809
    %2261 = vmatprep.subr.bf16.mxu0 %v1818
    %2262 = vmatpush1.bf16.msra.mxu0 %v1817
    %2263 = vmatprep.subr.bf16.mxu0 %v1826
    %2264 = vmatpush1.bf16.msra.mxu0 %v1825
    %2265 = vmatprep.subr.bf16.mxu0 %v1834
    %2266 = vmatpush1.bf16.msra.mxu0 %v1833
    %2267 = vmatprep.subr.bf16.mxu0 %v1842
    %2268 = vmatpush1.bf16.msra.mxu0 %v1841
    %2269 = vmatprep.subr.bf16.mxu0 %v1850
    %2270 = vmatpush1.bf16.msra.mxu0 %v1849
    %2271 = vmatprep.subr.bf16.mxu0 %v1858
    %2272 = vmatpush1.bf16.msra.mxu0 %v1857
    %2273 = vmatprep.subr.bf16.mxu0 %v1866
    %2274 = vmatpush1.bf16.msra.mxu0 %v1865
    %2275 = vmatprep.mubr.bf16.mxu0 %v2242
    %2276 = vmatmul.mubr.bf16.gmra.mrb[0].mxu0 %v2241
    %v2277 = vpop.f32.mrb[0].mxu0
    %v2278 = vadd.f32 0.0, %v2277
    %v2279 = vpop.f32.mrb[0].mxu0
    %v2280 = vadd.f32 0.0, %v2279
    %v2281 = vpop.f32.mrb[0].mxu0
    %v2282 = vpop.f32.mrb[0].mxu0
    %2283 = vdwg.mxu0
    %2284 = vmatprep.subr.bf16.mxu0 %v1748
    %2285 = vmatpush1.bf16.msra.mxu0 %v1747
    %2286 = vmatprep.subr.bf16.mxu0 %v1756
    %2287 = vmatpush1.bf16.msra.mxu0 %v1755
    %2288 = vmatprep.subr.bf16.mxu0 %v1764
    %2289 = vmatpush1.bf16.msra.mxu0 %v1763
    %2290 = vmatprep.subr.bf16.mxu0 %v1772
    %2291 = vmatpush1.bf16.msra.mxu0 %v1771
    %2292 = vmatprep.subr.bf16.mxu0 %v1780
    %2293 = vmatpush1.bf16.msra.mxu0 %v1779
    %2294 = vmatprep.subr.bf16.mxu0 %v1788
    %2295 = vmatpush1.bf16.msra.mxu0 %v1787
    %2296 = vmatprep.subr.bf16.mxu0 %v1796
    %2297 = vmatpush1.bf16.msra.mxu0 %v1795
    %2298 = vmatprep.subr.bf16.mxu0 %v1804
    %2299 = vmatpush1.bf16.msra.mxu0 %v1803
    %2300 = vmatprep.subr.bf16.mxu0 %v1812
    %2301 = vmatpush1.bf16.msra.mxu0 %v1811
    %2302 = vmatprep.subr.bf16.mxu0 %v1820
    %2303 = vmatpush1.bf16.msra.mxu0 %v1819
    %2304 = vmatprep.subr.bf16.mxu0 %v1828
    %2305 = vmatpush1.bf16.msra.mxu0 %v1827
    %2306 = vmatprep.subr.bf16.mxu0 %v1836
    %2307 = vmatpush1.bf16.msra.mxu0 %v1835
    %2308 = vmatprep.subr.bf16.mxu0 %v1844
    %2309 = vmatpush1.bf16.msra.mxu0 %v1843
    %2310 = vmatprep.subr.bf16.mxu0 %v1852
    %2311 = vmatpush1.bf16.msra.mxu0 %v1851
    %2312 = vmatprep.subr.bf16.mxu0 %v1860
    %2313 = vmatpush1.bf16.msra.mxu0 %v1859
    %2314 = vmatprep.subr.bf16.mxu0 %v1868
    %2315 = vmatpush1.bf16.msra.mxu0 %v1867
    %2316 = vmatprep.mubr.bf16.mxu0 %v2242
    %2317 = vmatmul.mubr.bf16.gmra.mrb[0].mxu0 %v2241
    %v2318 = vpop.f32.mrb[0].mxu0
    %v2319 = vadd.f32 0.0, %v2318
    %v2320 = vpop.f32.mrb[0].mxu0
    %v2321 = vadd.f32 0.0, %v2320
    %v2322 = vpop.f32.mrb[0].mxu0
    %v2323 = vpop.f32.mrb[0].mxu0
    %2324 = vdwg.mxu0
    %2325 = vmatprep.subr.bf16.mxu0 %v1750
    %2326 = vmatpush1.bf16.msra.mxu0 %v1749
    %2327 = vmatprep.subr.bf16.mxu0 %v1758
    %2328 = vmatpush1.bf16.msra.mxu0 %v1757
    %2329 = vmatprep.subr.bf16.mxu0 %v1766
    %2330 = vmatpush1.bf16.msra.mxu0 %v1765
    %2331 = vmatprep.subr.bf16.mxu0 %v1774
    %2332 = vmatpush1.bf16.msra.mxu0 %v1773
    %2333 = vmatprep.subr.bf16.mxu0 %v1782
    %2334 = vmatpush1.bf16.msra.mxu0 %v1781
    %2335 = vmatprep.subr.bf16.mxu0 %v1790
    %2336 = vmatpush1.bf16.msra.mxu0 %v1789
    %2337 = vmatprep.subr.bf16.mxu0 %v1798
    %2338 = vmatpush1.bf16.msra.mxu0 %v1797
    %2339 = vmatprep.subr.bf16.mxu0 %v1806
    %2340 = vmatpush1.bf16.msra.mxu0 %v1805
    %2341 = vmatprep.subr.bf16.mxu0 %v1814
    %2342 = vmatpush1.bf16.msra.mxu0 %v1813
    %2343 = vmatprep.subr.bf16.mxu0 %v1822
    %2344 = vmatpush1.bf16.msra.mxu0 %v1821
    %2345 = vmatprep.subr.bf16.mxu0 %v1830
    %2346 = vmatpush1.bf16.msra.mxu0 %v1829
    %2347 = vmatprep.subr.bf16.mxu0 %v1838
    %2348 = vmatpush1.bf16.msra.mxu0 %v1837
    %2349 = vmatprep.subr.bf16.mxu0 %v1846
    %2350 = vmatpush1.bf16.msra.mxu0 %v1845
    %2351 = vmatprep.subr.bf16.mxu0 %v1854
    %2352 = vmatpush1.bf16.msra.mxu0 %v1853
    %2353 = vmatprep.subr.bf16.mxu0 %v1862
    %2354 = vmatpush1.bf16.msra.mxu0 %v1861
    %2355 = vmatprep.subr.bf16.mxu0 %v1870
    %2356 = vmatpush1.bf16.msra.mxu0 %v1869
    %2357 = vmatprep.mubr.bf16.mxu0 %v2242
    %2358 = vmatmul.mubr.bf16.gmra.mrb[0].mxu0 %v2241
    %v2359 = vpop.f32.mrb[0].mxu0
    %v2360 = vadd.f32 0.0, %v2359
    %v2361 = vpop.f32.mrb[0].mxu0
    %v2362 = vadd.f32 0.0, %v2361
    %v2363 = vpop.f32.mrb[0].mxu0
    %v2364 = vpop.f32.mrb[0].mxu0
    %2365 = vdwg.mxu0
    %2366 = vmatprep.subr.bf16.mxu0 %v1752
    %2367 = vmatpush1.bf16.msra.mxu0 %v1751
    %2368 = vmatprep.subr.bf16.mxu0 %v1760
    %2369 = vmatpush1.bf16.msra.mxu0 %v1759
    %2370 = vmatprep.subr.bf16.mxu0 %v1768
    %2371 = vmatpush1.bf16.msra.mxu0 %v1767
    %2372 = vmatprep.subr.bf16.mxu0 %v1776
    %2373 = vmatpush1.bf16.msra.mxu0 %v1775
    %2374 = vmatprep.subr.bf16.mxu0 %v1784
    %2375 = vmatpush1.bf16.msra.mxu0 %v1783
    %2376 = vmatprep.subr.bf16.mxu0 %v1792
    %2377 = vmatpush1.bf16.msra.mxu0 %v1791
    %2378 = vmatprep.subr.bf16.mxu0 %v1800
    %2379 = vmatpush1.bf16.msra.mxu0 %v1799
    %2380 = vmatprep.subr.bf16.mxu0 %v1808
    %2381 = vmatpush1.bf16.msra.mxu0 %v1807
    %2382 = vmatprep.subr.bf16.mxu0 %v1816
    %2383 = vmatpush1.bf16.msra.mxu0 %v1815
    %2384 = vmatprep.subr.bf16.mxu0 %v1824
    %2385 = vmatpush1.bf16.msra.mxu0 %v1823
    %2386 = vmatprep.subr.bf16.mxu0 %v1832
    %2387 = vmatpush1.bf16.msra.mxu0 %v1831
    %2388 = vmatprep.subr.bf16.mxu0 %v1840
    %2389 = vmatpush1.bf16.msra.mxu0 %v1839
    %2390 = vmatprep.subr.bf16.mxu0 %v1848
    %2391 = vmatpush1.bf16.msra.mxu0 %v1847
    %2392 = vmatprep.subr.bf16.mxu0 %v1856
    %2393 = vmatpush1.bf16.msra.mxu0 %v1855
    %2394 = vmatprep.subr.bf16.mxu0 %v1864
    %2395 = vmatpush1.bf16.msra.mxu0 %v1863
    %2396 = vmatprep.subr.bf16.mxu0 %v1872
    %2397 = vmatpush1.bf16.msra.mxu0 %v1871
    %2398 = vmatprep.mubr.bf16.mxu0 %v2242
    %2399 = vmatmul.mubr.bf16.gmra.mrb[0].mxu0 %v2241
    %v2400 = vpop.f32.mrb[0].mxu0
    %v2401 = vadd.f32 0.0, %v2400
    %v2402 = vpop.f32.mrb[0].mxu0
    %v2403 = vadd.f32 0.0, %v2402
    %v2404 = vpop.f32.mrb[0].mxu0
    %v2405 = vpop.f32.mrb[0].mxu0
    %2406 = vdwg.mxu0
    %v2407 = vadd.f32 %v2233, %v2278
    %v2408 = vadd.f32 %v2234, %v2280
    %v2409 = vadd.f32 %v2235, %v2319
    %v2410 = vadd.f32 %v2236, %v2321
    %v2411 = vadd.f32 %v2237, %v2360
    %v2412 = vadd.f32 %v2238, %v2362
    %v2413 = vadd.f32 %v2239, %v2401
    %v2414 = vadd.f32 %v2240, %v2403
    %v2415 = vxor.u32 %v2407, 2147483648
    %v2416 = vxor.u32 %v2408, 2147483648
    %v2417 = vmul.f32 %v2415, 1.442695
    %v2418 = vpow.pop %v2417
    %v2419 = vmul.f32 %v2416, 1.442695
    %v2420 = vpow.pop %v2419
    %v2421 = vadd.f32 %v2418, 1.0
    %v2422 = vadd.f32 %v2420, 1.0
    %v2423 = vrcp.pop %v2421
    %v2424 = vmul.f32 1.0, %v2423
    %v2425 = vrcp.pop %v2422
    %v2426 = vmul.f32 1.0, %v2425
    %v2427 = vxor.u32 %v2409, 2147483648
    %v2428 = vxor.u32 %v2410, 2147483648
    %v2429 = vmul.f32 %v2427, 1.442695
    %v2430 = vpow.pop %v2429
    %v2431 = vmul.f32 %v2428, 1.442695
    %v2432 = vpow.pop %v2431
    %v2433 = vadd.f32 %v2430, 1.0
    %v2434 = vadd.f32 %v2432, 1.0
    %v2435 = vrcp.pop %v2433
    %v2436 = vmul.f32 1.0, %v2435
    %v2437 = vrcp.pop %v2434
    %v2438 = vmul.f32 1.0, %v2437
    %v2439 = vtanh.pop %v2411
    %v2440 = vtanh.pop %v2412
    %v2441 = vxor.u32 %v2413, 2147483648
    %v2442 = vxor.u32 %v2414, 2147483648
    %v2443 = vmul.f32 %v2441, 1.442695
    %v2444 = vpow.pop %v2443
    %v2445 = vmul.f32 %v2442, 1.442695
    %v2446 = vpow.pop %v2445
    %v2447 = vadd.f32 %v2444, 1.0
    %v2448 = vadd.f32 %v2446, 1.0
    %v2449 = vrcp.pop %v2447
    %v2450 = vmul.f32 1.0, %v2449
    %v2451 = vrcp.pop %v2448
    %v2452 = vmul.f32 1.0, %v2451
    %v2453 = vmul.f32 %v2436, %v2229
    %v2454 = vmul.f32 %v2438, %v2230
    %v2455 = vmul.f32 %v2424, %v2439
    %v2456 = vmul.f32 %v2426, %v2440
    %v2457 = vadd.f32 %v2453, %v2455
    %v2458 = vadd.f32 %v2454, %v2456
    %v2459 = vtanh.pop %v2457
    %v2460 = vtanh.pop %v2458
    %v2461 = vmul.f32 %v2450, %v2459
    %v2462 = vmul.f32 %v2452, %v2460
    %vm2463 = vcmp.gt.s32.totalorder %v464, 1
    %v2464 = vsel %vm2463, 1, 0
    %2465 = vset.pattern.permute.xlu0 0
    %2466 = vperm.xlu0 %2465, %v2464
    %v2467 = vpop.permute.xlu0 %2466
    %vm2468 = vcmp.eq.s32.totalorder %v2467, 1
    %v2469 = vsel %vm2468, %v2461, %v2227
    %v2470 = vsel %vm2468, %v2462, %v2228
    %v2471 = vsel %vm2468, %v2457, %v2229
    %v2472 = vsel %vm2468, %v2458, %v2230
    %2473 = vst [vmem:[#allocation6 + $0x10] sm:$0xff] %v2469
    %2474 = vst [vmem:[#allocation6 + $0x18] sm:$0xff] %v2470
    %v2475 = vld [vmem:[#allocation5 + $0x80] sm:$0xff]
    %v2476 = vld [vmem:[#allocation5 + $0x88] sm:$0xff]
    %v2477 = vld [vmem:[#allocation5 + $0x90] sm:$0xff]
    %v2478 = vld [vmem:[#allocation5 + $0x98] sm:$0xff]
    %v2479 = vld [vmem:[#allocation5 + $0xa0] sm:$0xff]
    %v2480 = vld [vmem:[#allocation5 + $0xa8] sm:$0xff]
    %v2481 = vld [vmem:[#allocation5 + $0xb0] sm:$0xff]
    %v2482 = vld [vmem:[#allocation5 + $0xb8] sm:$0xff]
    %v2483 = vpack.c.bf16 %v2469, %v2469
    %v2484 = vpack.c.bf16 %v2470, %v2470
    %2485 = vmatprep.subr.bf16.mxu0 %v1746
    %2486 = vmatpush1.bf16.msra.mxu0 %v1745
    %2487 = vmatprep.subr.bf16.mxu0 %v1754
    %2488 = vmatpush1.bf16.msra.mxu0 %v1753
    %2489 = vmatprep.subr.bf16.mxu0 %v1762
    %2490 = vmatpush1.bf16.msra.mxu0 %v1761
    %2491 = vmatprep.subr.bf16.mxu0 %v1770
    %2492 = vmatpush1.bf16.msra.mxu0 %v1769
    %2493 = vmatprep.subr.bf16.mxu0 %v1778
    %2494 = vmatpush1.bf16.msra.mxu0 %v1777
    %2495 = vmatprep.subr.bf16.mxu0 %v1786
    %2496 = vmatpush1.bf16.msra.mxu0 %v1785
    %2497 = vmatprep.subr.bf16.mxu0 %v1794
    %2498 = vmatpush1.bf16.msra.mxu0 %v1793
    %2499 = vmatprep.subr.bf16.mxu0 %v1802
    %2500 = vmatpush1.bf16.msra.mxu0 %v1801
    %2501 = vmatprep.subr.bf16.mxu0 %v1810
    %2502 = vmatpush1.bf16.msra.mxu0 %v1809
    %2503 = vmatprep.subr.bf16.mxu0 %v1818
    %2504 = vmatpush1.bf16.msra.mxu0 %v1817
    %2505 = vmatprep.subr.bf16.mxu0 %v1826
    %2506 = vmatpush1.bf16.msra.mxu0 %v1825
    %2507 = vmatprep.subr.bf16.mxu0 %v1834
    %2508 = vmatpush1.bf16.msra.mxu0 %v1833
    %2509 = vmatprep.subr.bf16.mxu0 %v1842
    %2510 = vmatpush1.bf16.msra.mxu0 %v1841
    %2511 = vmatprep.subr.bf16.mxu0 %v1850
    %2512 = vmatpush1.bf16.msra.mxu0 %v1849
    %2513 = vmatprep.subr.bf16.mxu0 %v1858
    %2514 = vmatpush1.bf16.msra.mxu0 %v1857
    %2515 = vmatprep.subr.bf16.mxu0 %v1866
    %2516 = vmatpush1.bf16.msra.mxu0 %v1865
    %2517 = vmatprep.mubr.bf16.mxu0 %v2484
    %2518 = vmatmul.mubr.bf16.gmra.mrb[0].mxu0 %v2483
    %v2519 = vpop.f32.mrb[0].mxu0
    %v2520 = vadd.f32 0.0, %v2519
    %v2521 = vpop.f32.mrb[0].mxu0
    %v2522 = vadd.f32 0.0, %v2521
    %v2523 = vpop.f32.mrb[0].mxu0
    %v2524 = vpop.f32.mrb[0].mxu0
    %2525 = vdwg.mxu0
    %2526 = vmatprep.subr.bf16.mxu0 %v1748
    %2527 = vmatpush1.bf16.msra.mxu0 %v1747
    %2528 = vmatprep.subr.bf16.mxu0 %v1756
    %2529 = vmatpush1.bf16.msra.mxu0 %v1755
    %2530 = vmatprep.subr.bf16.mxu0 %v1764
    %2531 = vmatpush1.bf16.msra.mxu0 %v1763
    %2532 = vmatprep.subr.bf16.mxu0 %v1772
    %2533 = vmatpush1.bf16.msra.mxu0 %v1771
    %2534 = vmatprep.subr.bf16.mxu0 %v1780
    %2535 = vmatpush1.bf16.msra.mxu0 %v1779
    %2536 = vmatprep.subr.bf16.mxu0 %v1788
    %2537 = vmatpush1.bf16.msra.mxu0 %v1787
    %2538 = vmatprep.subr.bf16.mxu0 %v1796
    %2539 = vmatpush1.bf16.msra.mxu0 %v1795
    %2540 = vmatprep.subr.bf16.mxu0 %v1804
    %2541 = vmatpush1.bf16.msra.mxu0 %v1803
    %2542 = vmatprep.subr.bf16.mxu0 %v1812
    %2543 = vmatpush1.bf16.msra.mxu0 %v1811
    %2544 = vmatprep.subr.bf16.mxu0 %v1820
    %2545 = vmatpush1.bf16.msra.mxu0 %v1819
    %2546 = vmatprep.subr.bf16.mxu0 %v1828
    %2547 = vmatpush1.bf16.msra.mxu0 %v1827
    %2548 = vmatprep.subr.bf16.mxu0 %v1836
    %2549 = vmatpush1.bf16.msra.mxu0 %v1835
    %2550 = vmatprep.subr.bf16.mxu0 %v1844
    %2551 = vmatpush1.bf16.msra.mxu0 %v1843
    %2552 = vmatprep.subr.bf16.mxu0 %v1852
    %2553 = vmatpush1.bf16.msra.mxu0 %v1851
    %2554 = vmatprep.subr.bf16.mxu0 %v1860
    %2555 = vmatpush1.bf16.msra.mxu0 %v1859
    %2556 = vmatprep.subr.bf16.mxu0 %v1868
    %2557 = vmatpush1.bf16.msra.mxu0 %v1867
    %2558 = vmatprep.mubr.bf16.mxu0 %v2484
    %2559 = vmatmul.mubr.bf16.gmra.mrb[0].mxu0 %v2483
    %v2560 = vpop.f32.mrb[0].mxu0
    %v2561 = vadd.f32 0.0, %v2560
    %v2562 = vpop.f32.mrb[0].mxu0
    %v2563 = vadd.f32 0.0, %v2562
    %v2564 = vpop.f32.mrb[0].mxu0
    %v2565 = vpop.f32.mrb[0].mxu0
    %2566 = vdwg.mxu0
    %2567 = vmatprep.subr.bf16.mxu0 %v1750
    %2568 = vmatpush1.bf16.msra.mxu0 %v1749
    %2569 = vmatprep.subr.bf16.mxu0 %v1758
    %2570 = vmatpush1.bf16.msra.mxu0 %v1757
    %2571 = vmatprep.subr.bf16.mxu0 %v1766
    %2572 = vmatpush1.bf16.msra.mxu0 %v1765
    %2573 = vmatprep.subr.bf16.mxu0 %v1774
    %2574 = vmatpush1.bf16.msra.mxu0 %v1773
    %2575 = vmatprep.subr.bf16.mxu0 %v1782
    %2576 = vmatpush1.bf16.msra.mxu0 %v1781
    %2577 = vmatprep.subr.bf16.mxu0 %v1790
    %2578 = vmatpush1.bf16.msra.mxu0 %v1789
    %2579 = vmatprep.subr.bf16.mxu0 %v1798
    %2580 = vmatpush1.bf16.msra.mxu0 %v1797
    %2581 = vmatprep.subr.bf16.mxu0 %v1806
    %2582 = vmatpush1.bf16.msra.mxu0 %v1805
    %2583 = vmatprep.subr.bf16.mxu0 %v1814
    %2584 = vmatpush1.bf16.msra.mxu0 %v1813
    %2585 = vmatprep.subr.bf16.mxu0 %v1822
    %2586 = vmatpush1.bf16.msra.mxu0 %v1821
    %2587 = vmatprep.subr.bf16.mxu0 %v1830
    %2588 = vmatpush1.bf16.msra.mxu0 %v1829
    %2589 = vmatprep.subr.bf16.mxu0 %v1838
    %2590 = vmatpush1.bf16.msra.mxu0 %v1837
    %2591 = vmatprep.subr.bf16.mxu0 %v1846
    %2592 = vmatpush1.bf16.msra.mxu0 %v1845
    %2593 = vmatprep.subr.bf16.mxu0 %v1854
    %2594 = vmatpush1.bf16.msra.mxu0 %v1853
    %2595 = vmatprep.subr.bf16.mxu0 %v1862
    %2596 = vmatpush1.bf16.msra.mxu0 %v1861
    %2597 = vmatprep.subr.bf16.mxu0 %v1870
    %2598 = vmatpush1.bf16.msra.mxu0 %v1869
    %2599 = vmatprep.mubr.bf16.mxu0 %v2484
    %2600 = vmatmul.mubr.bf16.gmra.mrb[0].mxu0 %v2483
    %v2601 = vpop.f32.mrb[0].mxu0
    %v2602 = vadd.f32 0.0, %v2601
    %v2603 = vpop.f32.mrb[0].mxu0
    %v2604 = vadd.f32 0.0, %v2603
    %v2605 = vpop.f32.mrb[0].mxu0
    %v2606 = vpop.f32.mrb[0].mxu0
    %2607 = vdwg.mxu0
    %2608 = vmatprep.subr.bf16.mxu0 %v1752
    %2609 = vmatpush1.bf16.msra.mxu0 %v1751
    %2610 = vmatprep.subr.bf16.mxu0 %v1760
    %2611 = vmatpush1.bf16.msra.mxu0 %v1759
    %2612 = vmatprep.subr.bf16.mxu0 %v1768
    %2613 = vmatpush1.bf16.msra.mxu0 %v1767
    %2614 = vmatprep.subr.bf16.mxu0 %v1776
    %2615 = vmatpush1.bf16.msra.mxu0 %v1775
    %2616 = vmatprep.subr.bf16.mxu0 %v1784
    %2617 = vmatpush1.bf16.msra.mxu0 %v1783
    %2618 = vmatprep.subr.bf16.mxu0 %v1792
    %2619 = vmatpush1.bf16.msra.mxu0 %v1791
    %2620 = vmatprep.subr.bf16.mxu0 %v1800
    %2621 = vmatpush1.bf16.msra.mxu0 %v1799
    %2622 = vmatprep.subr.bf16.mxu0 %v1808
    %2623 = vmatpush1.bf16.msra.mxu0 %v1807
    %2624 = vmatprep.subr.bf16.mxu0 %v1816
    %2625 = vmatpush1.bf16.msra.mxu0 %v1815
    %2626 = vmatprep.subr.bf16.mxu0 %v1824
    %2627 = vmatpush1.bf16.msra.mxu0 %v1823
    %2628 = vmatprep.subr.bf16.mxu0 %v1832
    %2629 = vmatpush1.bf16.msra.mxu0 %v1831
    %2630 = vmatprep.subr.bf16.mxu0 %v1840
    %2631 = vmatpush1.bf16.msra.mxu0 %v1839
    %2632 = vmatprep.subr.bf16.mxu0 %v1848
    %2633 = vmatpush1.bf16.msra.mxu0 %v1847
    %2634 = vmatprep.subr.bf16.mxu0 %v1856
    %2635 = vmatpush1.bf16.msra.mxu0 %v1855
    %2636 = vmatprep.subr.bf16.mxu0 %v1864
    %2637 = vmatpush1.bf16.msra.mxu0 %v1863
    %2638 = vmatprep.subr.bf16.mxu0 %v1872
    %2639 = vmatpush1.bf16.msra.mxu0 %v1871
    %2640 = vmatprep.mubr.bf16.mxu0 %v2484
    %2641 = vmatmul.mubr.bf16.gmra.mrb[0].mxu0 %v2483
    %v2642 = vpop.f32.mrb[0].mxu0
    %v2643 = vadd.f32 0.0, %v2642
    %v2644 = vpop.f32.mrb[0].mxu0
    %v2645 = vadd.f32 0.0, %v2644
    %v2646 = vpop.f32.mrb[0].mxu0
    %v2647 = vpop.f32.mrb[0].mxu0
    %2648 = vdwg.mxu0
    %v2649 = vadd.f32 %v2475, %v2520
    %v2650 = vadd.f32 %v2476, %v2522
    %v2651 = vadd.f32 %v2477, %v2561
    %v2652 = vadd.f32 %v2478, %v2563
    %v2653 = vadd.f32 %v2479, %v2602
    %v2654 = vadd.f32 %v2480, %v2604
    %v2655 = vadd.f32 %v2481, %v2643
    %v2656 = vadd.f32 %v2482, %v2645
    %v2657 = vxor.u32 %v2649, 2147483648
    %v2658 = vxor.u32 %v2650, 2147483648
    %v2659 = vmul.f32 %v2657, 1.442695
    %v2660 = vpow.pop %v2659
    %v2661 = vmul.f32 %v2658, 1.442695
    %v2662 = vpow.pop %v2661
    %v2663 = vadd.f32 %v2660, 1.0
    %v2664 = vadd.f32 %v2662, 1.0
    %v2665 = vrcp.pop %v2663
    %v2666 = vmul.f32 1.0, %v2665
    %v2667 = vrcp.pop %v2664
    %v2668 = vmul.f32 1.0, %v2667
    %v2669 = vxor.u32 %v2651, 2147483648
    %v2670 = vxor.u32 %v2652, 2147483648
    %v2671 = vmul.f32 %v2669, 1.442695
    %v2672 = vpow.pop %v2671
    %v2673 = vmul.f32 %v2670, 1.442695
    %v2674 = vpow.pop %v2673
    %v2675 = vadd.f32 %v2672, 1.0
    %v2676 = vadd.f32 %v2674, 1.0
    %v2677 = vrcp.pop %v2675
    %v2678 = vmul.f32 1.0, %v2677
    %v2679 = vrcp.pop %v2676
    %v2680 = vmul.f32 1.0, %v2679
    %v2681 = vtanh.pop %v2653
    %v2682 = vtanh.pop %v2654
    %v2683 = vxor.u32 %v2655, 2147483648
    %v2684 = vxor.u32 %v2656, 2147483648
    %v2685 = vmul.f32 %v2683, 1.442695
    %v2686 = vpow.pop %v2685
    %v2687 = vmul.f32 %v2684, 1.442695
    %v2688 = vpow.pop %v2687
    %v2689 = vadd.f32 %v2686, 1.0
    %v2690 = vadd.f32 %v2688, 1.0
    %v2691 = vrcp.pop %v2689
    %v2692 = vmul.f32 1.0, %v2691
    %v2693 = vrcp.pop %v2690
    %v2694 = vmul.f32 1.0, %v2693
    %v2695 = vmul.f32 %v2678, %v2471
    %v2696 = vmul.f32 %v2680, %v2472
    %v2697 = vmul.f32 %v2666, %v2681
    %v2698 = vmul.f32 %v2668, %v2682
    %v2699 = vadd.f32 %v2695, %v2697
    %v2700 = vadd.f32 %v2696, %v2698
    %v2701 = vtanh.pop %v2699
    %v2702 = vtanh.pop %v2700
    %v2703 = vmul.f32 %v2692, %v2701
    %v2704 = vmul.f32 %v2694, %v2702
    %vm2705 = vcmp.gt.s32.totalorder %v464, 2
    %v2706 = vsel %vm2705, 1, 0
    %2707 = vset.pattern.permute.xlu0 0
    %2708 = vperm.xlu0 %2707, %v2706
    %v2709 = vpop.permute.xlu0 %2708
    %vm2710 = vcmp.eq.s32.totalorder %v2709, 1
    %v2711 = vsel %vm2710, %v2703, %v2469
    %v2712 = vsel %vm2710, %v2704, %v2470
    %v2713 = vsel %vm2710, %v2699, %v2471
    %v2714 = vsel %vm2710, %v2700, %v2472
    %2715 = vst [vmem:[#allocation6 + $0x20] sm:$0xff] %v2711
    %2716 = vst [vmem:[#allocation6 + $0x28] sm:$0xff] %v2712
    %v2717 = vld [vmem:[#allocation5 + $0xc0] sm:$0xff]
    %v2718 = vld [vmem:[#allocation5 + $0xc8] sm:$0xff]
    %v2719 = vld [vmem:[#allocation5 + $0xd0] sm:$0xff]
    %v2720 = vld [vmem:[#allocation5 + $0xd8] sm:$0xff]
    %v2721 = vld [vmem:[#allocation5 + $0xe0] sm:$0xff]
    %v2722 = vld [vmem:[#allocation5 + $0xe8] sm:$0xff]
    %v2723 = vld [vmem:[#allocation5 + $0xf0] sm:$0xff]
    %v2724 = vld [vmem:[#allocation5 + $0xf8] sm:$0xff]
    %v2725 = vpack.c.bf16 %v2711, %v2711
    %v2726 = vpack.c.bf16 %v2712, %v2712
    %2727 = vmatprep.subr.bf16.mxu0 %v1746
    %2728 = vmatpush1.bf16.msra.mxu0 %v1745
    %2729 = vmatprep.subr.bf16.mxu0 %v1754
    %2730 = vmatpush1.bf16.msra.mxu0 %v1753
    %2731 = vmatprep.subr.bf16.mxu0 %v1762
    %2732 = vmatpush1.bf16.msra.mxu0 %v1761
    %2733 = vmatprep.subr.bf16.mxu0 %v1770
    %2734 = vmatpush1.bf16.msra.mxu0 %v1769
    %2735 = vmatprep.subr.bf16.mxu0 %v1778
    %2736 = vmatpush1.bf16.msra.mxu0 %v1777
    %2737 = vmatprep.subr.bf16.mxu0 %v1786
    %2738 = vmatpush1.bf16.msra.mxu0 %v1785
    %2739 = vmatprep.subr.bf16.mxu0 %v1794
    %2740 = vmatpush1.bf16.msra.mxu0 %v1793
    %2741 = vmatprep.subr.bf16.mxu0 %v1802
    %2742 = vmatpush1.bf16.msra.mxu0 %v1801
    %2743 = vmatprep.subr.bf16.mxu0 %v1810
    %2744 = vmatpush1.bf16.msra.mxu0 %v1809
    %2745 = vmatprep.subr.bf16.mxu0 %v1818
    %2746 = vmatpush1.bf16.msra.mxu0 %v1817
    %2747 = vmatprep.subr.bf16.mxu0 %v1826
    %2748 = vmatpush1.bf16.msra.mxu0 %v1825
    %2749 = vmatprep.subr.bf16.mxu0 %v1834
    %2750 = vmatpush1.bf16.msra.mxu0 %v1833
    %2751 = vmatprep.subr.bf16.mxu0 %v1842
    %2752 = vmatpush1.bf16.msra.mxu0 %v1841
    %2753 = vmatprep.subr.bf16.mxu0 %v1850
    %2754 = vmatpush1.bf16.msra.mxu0 %v1849
    %2755 = vmatprep.subr.bf16.mxu0 %v1858
    %2756 = vmatpush1.bf16.msra.mxu0 %v1857
    %2757 = vmatprep.subr.bf16.mxu0 %v1866
    %2758 = vmatpush1.bf16.msra.mxu0 %v1865
    %2759 = vmatprep.mubr.bf16.mxu0 %v2726
    %2760 = vmatmul.mubr.bf16.gmra.mrb[0].mxu0 %v2725
    %v2761 = vpop.f32.mrb[0].mxu0
    %v2762 = vadd.f32 0.0, %v2761
    %v2763 = vpop.f32.mrb[0].mxu0
    %v2764 = vadd.f32 0.0, %v2763
    %v2765 = vpop.f32.mrb[0].mxu0
    %v2766 = vpop.f32.mrb[0].mxu0
    %2767 = vdwg.mxu0
    %2768 = vmatprep.subr.bf16.mxu0 %v1748
    %2769 = vmatpush1.bf16.msra.mxu0 %v1747
    %2770 = vmatprep.subr.bf16.mxu0 %v1756
    %2771 = vmatpush1.bf16.msra.mxu0 %v1755
    %2772 = vmatprep.subr.bf16.mxu0 %v1764
    %2773 = vmatpush1.bf16.msra.mxu0 %v1763
    %2774 = vmatprep.subr.bf16.mxu0 %v1772
    %2775 = vmatpush1.bf16.msra.mxu0 %v1771
    %2776 = vmatprep.subr.bf16.mxu0 %v1780
    %2777 = vmatpush1.bf16.msra.mxu0 %v1779
    %2778 = vmatprep.subr.bf16.mxu0 %v1788
    %2779 = vmatpush1.bf16.msra.mxu0 %v1787
    %2780 = vmatprep.subr.bf16.mxu0 %v1796
    %2781 = vmatpush1.bf16.msra.mxu0 %v1795
    %2782 = vmatprep.subr.bf16.mxu0 %v1804
    %2783 = vmatpush1.bf16.msra.mxu0 %v1803
    %2784 = vmatprep.subr.bf16.mxu0 %v1812
    %2785 = vmatpush1.bf16.msra.mxu0 %v1811
    %2786 = vmatprep.subr.bf16.mxu0 %v1820
    %2787 = vmatpush1.bf16.msra.mxu0 %v1819
    %2788 = vmatprep.subr.bf16.mxu0 %v1828
    %2789 = vmatpush1.bf16.msra.mxu0 %v1827
    %2790 = vmatprep.subr.bf16.mxu0 %v1836
    %2791 = vmatpush1.bf16.msra.mxu0 %v1835
    %2792 = vmatprep.subr.bf16.mxu0 %v1844
    %2793 = vmatpush1.bf16.msra.mxu0 %v1843
    %2794 = vmatprep.subr.bf16.mxu0 %v1852
    %2795 = vmatpush1.bf16.msra.mxu0 %v1851
    %2796 = vmatprep.subr.bf16.mxu0 %v1860
    %2797 = vmatpush1.bf16.msra.mxu0 %v1859
    %2798 = vmatprep.subr.bf16.mxu0 %v1868
    %2799 = vmatpush1.bf16.msra.mxu0 %v1867
    %2800 = vmatprep.mubr.bf16.mxu0 %v2726
    %2801 = vmatmul.mubr.bf16.gmra.mrb[0].mxu0 %v2725
    %v2802 = vpop.f32.mrb[0].mxu0
    %v2803 = vadd.f32 0.0, %v2802
    %v2804 = vpop.f32.mrb[0].mxu0
    %v2805 = vadd.f32 0.0, %v2804
    %v2806 = vpop.f32.mrb[0].mxu0
    %v2807 = vpop.f32.mrb[0].mxu0
    %2808 = vdwg.mxu0
    %2809 = vmatprep.subr.bf16.mxu0 %v1750
    %2810 = vmatpush1.bf16.msra.mxu0 %v1749
    %2811 = vmatprep.subr.bf16.mxu0 %v1758
    %2812 = vmatpush1.bf16.msra.mxu0 %v1757
    %2813 = vmatprep.subr.bf16.mxu0 %v1766
    %2814 = vmatpush1.bf16.msra.mxu0 %v1765
    %2815 = vmatprep.subr.bf16.mxu0 %v1774
    %2816 = vmatpush1.bf16.msra.mxu0 %v1773
    %2817 = vmatprep.subr.bf16.mxu0 %v1782
    %2818 = vmatpush1.bf16.msra.mxu0 %v1781
    %2819 = vmatprep.subr.bf16.mxu0 %v1790
    %2820 = vmatpush1.bf16.msra.mxu0 %v1789
    %2821 = vmatprep.subr.bf16.mxu0 %v1798
    %2822 = vmatpush1.bf16.msra.mxu0 %v1797
    %2823 = vmatprep.subr.bf16.mxu0 %v1806
    %2824 = vmatpush1.bf16.msra.mxu0 %v1805
    %2825 = vmatprep.subr.bf16.mxu0 %v1814
    %2826 = vmatpush1.bf16.msra.mxu0 %v1813
    %2827 = vmatprep.subr.bf16.mxu0 %v1822
    %2828 = vmatpush1.bf16.msra.mxu0 %v1821
    %2829 = vmatprep.subr.bf16.mxu0 %v1830
    %2830 = vmatpush1.bf16.msra.mxu0 %v1829
    %2831 = vmatprep.subr.bf16.mxu0 %v1838
    %2832 = vmatpush1.bf16.msra.mxu0 %v1837
    %2833 = vmatprep.subr.bf16.mxu0 %v1846
    %2834 = vmatpush1.bf16.msra.mxu0 %v1845
    %2835 = vmatprep.subr.bf16.mxu0 %v1854
    %2836 = vmatpush1.bf16.msra.mxu0 %v1853
    %2837 = vmatprep.subr.bf16.mxu0 %v1862
    %2838 = vmatpush1.bf16.msra.mxu0 %v1861
    %2839 = vmatprep.subr.bf16.mxu0 %v1870
    %2840 = vmatpush1.bf16.msra.mxu0 %v1869
    %2841 = vmatprep.mubr.bf16.mxu0 %v2726
    %2842 = vmatmul.mubr.bf16.gmra.mrb[0].mxu0 %v2725
    %v2843 = vpop.f32.mrb[0].mxu0
    %v2844 = vadd.f32 0.0, %v2843
    %v2845 = vpop.f32.mrb[0].mxu0
    %v2846 = vadd.f32 0.0, %v2845
    %v2847 = vpop.f32.mrb[0].mxu0
    %v2848 = vpop.f32.mrb[0].mxu0
    %2849 = vdwg.mxu0
    %2850 = vmatprep.subr.bf16.mxu0 %v1752
    %2851 = vmatpush1.bf16.msra.mxu0 %v1751
    %2852 = vmatprep.subr.bf16.mxu0 %v1760
    %2853 = vmatpush1.bf16.msra.mxu0 %v1759
    %2854 = vmatprep.subr.bf16.mxu0 %v1768
    %2855 = vmatpush1.bf16.msra.mxu0 %v1767
    %2856 = vmatprep.subr.bf16.mxu0 %v1776
    %2857 = vmatpush1.bf16.msra.mxu0 %v1775
    %2858 = vmatprep.subr.bf16.mxu0 %v1784
    %2859 = vmatpush1.bf16.msra.mxu0 %v1783
    %2860 = vmatprep.subr.bf16.mxu0 %v1792
    %2861 = vmatpush1.bf16.msra.mxu0 %v1791
    %2862 = vmatprep.subr.bf16.mxu0 %v1800
    %2863 = vmatpush1.bf16.msra.mxu0 %v1799
    %2864 = vmatprep.subr.bf16.mxu0 %v1808
    %2865 = vmatpush1.bf16.msra.mxu0 %v1807
    %2866 = vmatprep.subr.bf16.mxu0 %v1816
    %2867 = vmatpush1.bf16.msra.mxu0 %v1815
    %2868 = vmatprep.subr.bf16.mxu0 %v1824
    %2869 = vmatpush1.bf16.msra.mxu0 %v1823
    %2870 = vmatprep.subr.bf16.mxu0 %v1832
    %2871 = vmatpush1.bf16.msra.mxu0 %v1831
    %2872 = vmatprep.subr.bf16.mxu0 %v1840
    %2873 = vmatpush1.bf16.msra.mxu0 %v1839
    %2874 = vmatprep.subr.bf16.mxu0 %v1848
    %2875 = vmatpush1.bf16.msra.mxu0 %v1847
    %2876 = vmatprep.subr.bf16.mxu0 %v1856
    %2877 = vmatpush1.bf16.msra.mxu0 %v1855
    %2878 = vmatprep.subr.bf16.mxu0 %v1864
    %2879 = vmatpush1.bf16.msra.mxu0 %v1863
    %2880 = vmatprep.subr.bf16.mxu0 %v1872
    %2881 = vmatpush1.bf16.msra.mxu0 %v1871
    %2882 = vmatprep.mubr.bf16.mxu0 %v2726
    %2883 = vmatmul.mubr.bf16.gmra.mrb[0].mxu0 %v2725
    %v2884 = vpop.f32.mrb[0].mxu0
    %v2885 = vadd.f32 0.0, %v2884
    %v2886 = vpop.f32.mrb[0].mxu0
    %v2887 = vadd.f32 0.0, %v2886
    %v2888 = vpop.f32.mrb[0].mxu0
    %v2889 = vpop.f32.mrb[0].mxu0
    %2890 = vdwg.mxu0
    %v2891 = vadd.f32 %v2717, %v2762
    %v2892 = vadd.f32 %v2718, %v2764
    %v2893 = vadd.f32 %v2719, %v2803
    %v2894 = vadd.f32 %v2720, %v2805
    %v2895 = vadd.f32 %v2721, %v2844
    %v2896 = vadd.f32 %v2722, %v2846
    %v2897 = vadd.f32 %v2723, %v2885
    %v2898 = vadd.f32 %v2724, %v2887
    %v2899 = vxor.u32 %v2891, 2147483648
    %v2900 = vxor.u32 %v2892, 2147483648
    %v2901 = vmul.f32 %v2899, 1.442695
    %v2902 = vpow.pop %v2901
    %v2903 = vmul.f32 %v2900, 1.442695
    %v2904 = vpow.pop %v2903
    %v2905 = vadd.f32 %v2902, 1.0
    %v2906 = vadd.f32 %v2904, 1.0
    %v2907 = vrcp.pop %v2905
    %v2908 = vmul.f32 1.0, %v2907
    %v2909 = vrcp.pop %v2906
    %v2910 = vmul.f32 1.0, %v2909
    %v2911 = vxor.u32 %v2893, 2147483648
    %v2912 = vxor.u32 %v2894, 2147483648
    %v2913 = vmul.f32 %v2911, 1.442695
    %v2914 = vpow.pop %v2913
    %v2915 = vmul.f32 %v2912, 1.442695
    %v2916 = vpow.pop %v2915
    %v2917 = vadd.f32 %v2914, 1.0
    %v2918 = vadd.f32 %v2916, 1.0
    %v2919 = vrcp.pop %v2917
    %v2920 = vmul.f32 1.0, %v2919
    %v2921 = vrcp.pop %v2918
    %v2922 = vmul.f32 1.0, %v2921
    %v2923 = vtanh.pop %v2895
    %v2924 = vtanh.pop %v2896
    %v2925 = vxor.u32 %v2897, 2147483648
    %v2926 = vxor.u32 %v2898, 2147483648
    %v2927 = vmul.f32 %v2925, 1.442695
    %v2928 = vpow.pop %v2927
    %v2929 = vmul.f32 %v2926, 1.442695
    %v2930 = vpow.pop %v2929
    %v2931 = vadd.f32 %v2928, 1.0
    %v2932 = vadd.f32 %v2930, 1.0
    %v2933 = vrcp.pop %v2931
    %v2934 = vmul.f32 1.0, %v2933
    %v2935 = vrcp.pop %v2932
    %v2936 = vmul.f32 1.0, %v2935
    %v2937 = vmul.f32 %v2920, %v2713
    %v2938 = vmul.f32 %v2922, %v2714
    %v2939 = vmul.f32 %v2908, %v2923
    %v2940 = vmul.f32 %v2910, %v2924
    %v2941 = vadd.f32 %v2937, %v2939
    %v2942 = vadd.f32 %v2938, %v2940
    %v2943 = vtanh.pop %v2941
    %v2944 = vtanh.pop %v2942
    %v2945 = vmul.f32 %v2934, %v2943
    %v2946 = vmul.f32 %v2936, %v2944
    %vm2947 = vcmp.gt.s32.totalorder %v464, 3
    %v2948 = vsel %vm2947, 1, 0
    %2949 = vset.pattern.permute.xlu0 0
    %2950 = vperm.xlu0 %2949, %v2948
    %v2951 = vpop.permute.xlu0 %2950
    %vm2952 = vcmp.eq.s32.totalorder %v2951, 1
    %v2953 = vsel %vm2952, %v2945, %v2711
    %v2954 = vsel %vm2952, %v2946, %v2712
    %v2955 = vsel %vm2952, %v2941, %v2713
    %v2956 = vsel %vm2952, %v2942, %v2714
    %2957 = vst [vmem:[#allocation6 + $0x30] sm:$0xff] %v2953
    %2958 = vst [vmem:[#allocation6 + $0x38] sm:$0xff] %v2954
    %v2959 = vld [vmem:[#allocation5 + $0x100] sm:$0xff]
    %v2960 = vld [vmem:[#allocation5 + $0x108] sm:$0xff]
    %v2961 = vld [vmem:[#allocation5 + $0x110] sm:$0xff]
    %v2962 = vld [vmem:[#allocation5 + $0x118] sm:$0xff]
    %v2963 = vld [vmem:[#allocation5 + $0x120] sm:$0xff]
    %v2964 = vld [vmem:[#allocation5 + $0x128] sm:$0xff]
    %v2965 = vld [vmem:[#allocation5 + $0x130] sm:$0xff]
    %v2966 = vld [vmem:[#allocation5 + $0x138] sm:$0xff]
    %v2967 = vpack.c.bf16 %v2953, %v2953
    %v2968 = vpack.c.bf16 %v2954, %v2954
    %2969 = vmatprep.subr.bf16.mxu0 %v1746
    %2970 = vmatpush1.bf16.msra.mxu0 %v1745
    %2971 = vmatprep.subr.bf16.mxu0 %v1754
    %2972 = vmatpush1.bf16.msra.mxu0 %v1753
    %2973 = vmatprep.subr.bf16.mxu0 %v1762
    %2974 = vmatpush1.bf16.msra.mxu0 %v1761
    %2975 = vmatprep.subr.bf16.mxu0 %v1770
    %2976 = vmatpush1.bf16.msra.mxu0 %v1769
    %2977 = vmatprep.subr.bf16.mxu0 %v1778
    %2978 = vmatpush1.bf16.msra.mxu0 %v1777
    %2979 = vmatprep.subr.bf16.mxu0 %v1786
    %2980 = vmatpush1.bf16.msra.mxu0 %v1785
    %2981 = vmatprep.subr.bf16.mxu0 %v1794
    %2982 = vmatpush1.bf16.msra.mxu0 %v1793
    %2983 = vmatprep.subr.bf16.mxu0 %v1802
    %2984 = vmatpush1.bf16.msra.mxu0 %v1801
    %2985 = vmatprep.subr.bf16.mxu0 %v1810
    %2986 = vmatpush1.bf16.msra.mxu0 %v1809
    %2987 = vmatprep.subr.bf16.mxu0 %v1818
    %2988 = vmatpush1.bf16.msra.mxu0 %v1817
    %2989 = vmatprep.subr.bf16.mxu0 %v1826
    %2990 = vmatpush1.bf16.msra.mxu0 %v1825
    %2991 = vmatprep.subr.bf16.mxu0 %v1834
    %2992 = vmatpush1.bf16.msra.mxu0 %v1833
    %2993 = vmatprep.subr.bf16.mxu0 %v1842
    %2994 = vmatpush1.bf16.msra.mxu0 %v1841
    %2995 = vmatprep.subr.bf16.mxu0 %v1850
    %2996 = vmatpush1.bf16.msra.mxu0 %v1849
    %2997 = vmatprep.subr.bf16.mxu0 %v1858
    %2998 = vmatpush1.bf16.msra.mxu0 %v1857
    %2999 = vmatprep.subr.bf16.mxu0 %v1866
    %3000 = vmatpush1.bf16.msra.mxu0 %v1865
    %3001 = vmatprep.mubr.bf16.mxu0 %v2968
    %3002 = vmatmul.mubr.bf16.gmra.mrb[0].mxu0 %v2967
    %v3003 = vpop.f32.mrb[0].mxu0
    %v3004 = vadd.f32 0.0, %v3003
    %v3005 = vpop.f32.mrb[0].mxu0
    %v3006 = vadd.f32 0.0, %v3005
    %v3007 = vpop.f32.mrb[0].mxu0
    %v3008 = vpop.f32.mrb[0].mxu0
    %3009 = vdwg.mxu0
    %3010 = vmatprep.subr.bf16.mxu0 %v1748
    %3011 = vmatpush1.bf16.msra.mxu0 %v1747
    %3012 = vmatprep.subr.bf16.mxu0 %v1756
    %3013 = vmatpush1.bf16.msra.mxu0 %v1755
    %3014 = vmatprep.subr.bf16.mxu0 %v1764
    %3015 = vmatpush1.bf16.msra.mxu0 %v1763
    %3016 = vmatprep.subr.bf16.mxu0 %v1772
    %3017 = vmatpush1.bf16.msra.mxu0 %v1771
    %3018 = vmatprep.subr.bf16.mxu0 %v1780
    %3019 = vmatpush1.bf16.msra.mxu0 %v1779
    %3020 = vmatprep.subr.bf16.mxu0 %v1788
    %3021 = vmatpush1.bf16.msra.mxu0 %v1787
    %3022 = vmatprep.subr.bf16.mxu0 %v1796
    %3023 = vmatpush1.bf16.msra.mxu0 %v1795
    %3024 = vmatprep.subr.bf16.mxu0 %v1804
    %3025 = vmatpush1.bf16.msra.mxu0 %v1803
    %3026 = vmatprep.subr.bf16.mxu0 %v1812
    %3027 = vmatpush1.bf16.msra.mxu0 %v1811
    %3028 = vmatprep.subr.bf16.mxu0 %v1820
    %3029 = vmatpush1.bf16.msra.mxu0 %v1819
    %3030 = vmatprep.subr.bf16.mxu0 %v1828
    %3031 = vmatpush1.bf16.msra.mxu0 %v1827
    %3032 = vmatprep.subr.bf16.mxu0 %v1836
    %3033 = vmatpush1.bf16.msra.mxu0 %v1835
    %3034 = vmatprep.subr.bf16.mxu0 %v1844
    %3035 = vmatpush1.bf16.msra.mxu0 %v1843
    %3036 = vmatprep.subr.bf16.mxu0 %v1852
    %3037 = vmatpush1.bf16.msra.mxu0 %v1851
    %3038 = vmatprep.subr.bf16.mxu0 %v1860
    %3039 = vmatpush1.bf16.msra.mxu0 %v1859
    %3040 = vmatprep.subr.bf16.mxu0 %v1868
    %3041 = vmatpush1.bf16.msra.mxu0 %v1867
    %3042 = vmatprep.mubr.bf16.mxu0 %v2968
    %3043 = vmatmul.mubr.bf16.gmra.mrb[0].mxu0 %v2967
    %v3044 = vpop.f32.mrb[0].mxu0
    %v3045 = vadd.f32 0.0, %v3044
    %v3046 = vpop.f32.mrb[0].mxu0
    %v3047 = vadd.f32 0.0, %v3046
    %v3048 = vpop.f32.mrb[0].mxu0
    %v3049 = vpop.f32.mrb[0].mxu0
    %3050 = vdwg.mxu0
    %3051 = vmatprep.subr.bf16.mxu0 %v1750
    %3052 = vmatpush1.bf16.msra.mxu0 %v1749
    %3053 = vmatprep.subr.bf16.mxu0 %v1758
    %3054 = vmatpush1.bf16.msra.mxu0 %v1757
    %3055 = vmatprep.subr.bf16.mxu0 %v1766
    %3056 = vmatpush1.bf16.msra.mxu0 %v1765
    %3057 = vmatprep.subr.bf16.mxu0 %v1774
    %3058 = vmatpush1.bf16.msra.mxu0 %v1773
    %3059 = vmatprep.subr.bf16.mxu0 %v1782
    %3060 = vmatpush1.bf16.msra.mxu0 %v1781
    %3061 = vmatprep.subr.bf16.mxu0 %v1790
    %3062 = vmatpush1.bf16.msra.mxu0 %v1789
    %3063 = vmatprep.subr.bf16.mxu0 %v1798
    %3064 = vmatpush1.bf16.msra.mxu0 %v1797
    %3065 = vmatprep.subr.bf16.mxu0 %v1806
    %3066 = vmatpush1.bf16.msra.mxu0 %v1805
    %3067 = vmatprep.subr.bf16.mxu0 %v1814
    %3068 = vmatpush1.bf16.msra.mxu0 %v1813
    %3069 = vmatprep.subr.bf16.mxu0 %v1822
    %3070 = vmatpush1.bf16.msra.mxu0 %v1821
    %3071 = vmatprep.subr.bf16.mxu0 %v1830
    %3072 = vmatpush1.bf16.msra.mxu0 %v1829
    %3073 = vmatprep.subr.bf16.mxu0 %v1838
    %3074 = vmatpush1.bf16.msra.mxu0 %v1837
    %3075 = vmatprep.subr.bf16.mxu0 %v1846
    %3076 = vmatpush1.bf16.msra.mxu0 %v1845
    %3077 = vmatprep.subr.bf16.mxu0 %v1854
    %3078 = vmatpush1.bf16.msra.mxu0 %v1853
    %3079 = vmatprep.subr.bf16.mxu0 %v1862
    %3080 = vmatpush1.bf16.msra.mxu0 %v1861
    %3081 = vmatprep.subr.bf16.mxu0 %v1870
    %3082 = vmatpush1.bf16.msra.mxu0 %v1869
    %3083 = vmatprep.mubr.bf16.mxu0 %v2968
    %3084 = vmatmul.mubr.bf16.gmra.mrb[0].mxu0 %v2967
    %v3085 = vpop.f32.mrb[0].mxu0
    %v3086 = vadd.f32 0.0, %v3085
    %v3087 = vpop.f32.mrb[0].mxu0
    %v3088 = vadd.f32 0.0, %v3087
    %v3089 = vpop.f32.mrb[0].mxu0
    %v3090 = vpop.f32.mrb[0].mxu0
    %3091 = vdwg.mxu0
    %3092 = vmatprep.subr.bf16.mxu0 %v1752
    %3093 = vmatpush1.bf16.msra.mxu0 %v1751
    %3094 = vmatprep.subr.bf16.mxu0 %v1760
    %3095 = vmatpush1.bf16.msra.mxu0 %v1759
    %3096 = vmatprep.subr.bf16.mxu0 %v1768
    %3097 = vmatpush1.bf16.msra.mxu0 %v1767
    %3098 = vmatprep.subr.bf16.mxu0 %v1776
    %3099 = vmatpush1.bf16.msra.mxu0 %v1775
    %3100 = vmatprep.subr.bf16.mxu0 %v1784
    %3101 = vmatpush1.bf16.msra.mxu0 %v1783
    %3102 = vmatprep.subr.bf16.mxu0 %v1792
    %3103 = vmatpush1.bf16.msra.mxu0 %v1791
    %3104 = vmatprep.subr.bf16.mxu0 %v1800
    %3105 = vmatpush1.bf16.msra.mxu0 %v1799
    %3106 = vmatprep.subr.bf16.mxu0 %v1808
    %3107 = vmatpush1.bf16.msra.mxu0 %v1807
    %3108 = vmatprep.subr.bf16.mxu0 %v1816
    %3109 = vmatpush1.bf16.msra.mxu0 %v1815
    %3110 = vmatprep.subr.bf16.mxu0 %v1824
    %3111 = vmatpush1.bf16.msra.mxu0 %v1823
    %3112 = vmatprep.subr.bf16.mxu0 %v1832
    %3113 = vmatpush1.bf16.msra.mxu0 %v1831
    %3114 = vmatprep.subr.bf16.mxu0 %v1840
    %3115 = vmatpush1.bf16.msra.mxu0 %v1839
    %3116 = vmatprep.subr.bf16.mxu0 %v1848
    %3117 = vmatpush1.bf16.msra.mxu0 %v1847
    %3118 = vmatprep.subr.bf16.mxu0 %v1856
    %3119 = vmatpush1.bf16.msra.mxu0 %v1855
    %3120 = vmatprep.subr.bf16.mxu0 %v1864
    %3121 = vmatpush1.bf16.msra.mxu0 %v1863
    %3122 = vmatprep.subr.bf16.mxu0 %v1872
    %3123 = vmatpush1.bf16.msra.mxu0 %v1871
    %3124 = vmatprep.mubr.bf16.mxu0 %v2968
    %3125 = vmatmul.mubr.bf16.gmra.mrb[0].mxu0 %v2967
    %v3126 = vpop.f32.mrb[0].mxu0
    %v3127 = vadd.f32 0.0, %v3126
    %v3128 = vpop.f32.mrb[0].mxu0
    %v3129 = vadd.f32 0.0, %v3128
    %v3130 = vpop.f32.mrb[0].mxu0
    %v3131 = vpop.f32.mrb[0].mxu0
    %3132 = vdwg.mxu0
    %v3133 = vadd.f32 %v2959, %v3004
    %v3134 = vadd.f32 %v2960, %v3006
    %v3135 = vadd.f32 %v2961, %v3045
    %v3136 = vadd.f32 %v2962, %v3047
    %v3137 = vadd.f32 %v2963, %v3086
    %v3138 = vadd.f32 %v2964, %v3088
    %v3139 = vadd.f32 %v2965, %v3127
    %v3140 = vadd.f32 %v2966, %v3129
    %v3141 = vxor.u32 %v3133, 2147483648
    %v3142 = vxor.u32 %v3134, 2147483648
    %v3143 = vmul.f32 %v3141, 1.442695
    %v3144 = vpow.pop %v3143
    %v3145 = vmul.f32 %v3142, 1.442695
    %v3146 = vpow.pop %v3145
    %v3147 = vadd.f32 %v3144, 1.0
    %v3148 = vadd.f32 %v3146, 1.0
    %v3149 = vrcp.pop %v3147
    %v3150 = vmul.f32 1.0, %v3149
    %v3151 = vrcp.pop %v3148
    %v3152 = vmul.f32 1.0, %v3151
    %v3153 = vxor.u32 %v3135, 2147483648
    %v3154 = vxor.u32 %v3136, 2147483648
    %v3155 = vmul.f32 %v3153, 1.442695
    %v3156 = vpow.pop %v3155
    %v3157 = vmul.f32 %v3154, 1.442695
    %v3158 = vpow.pop %v3157
    %v3159 = vadd.f32 %v3156, 1.0
    %v3160 = vadd.f32 %v3158, 1.0
    %v3161 = vrcp.pop %v3159
    %v3162 = vmul.f32 1.0, %v3161
    %v3163 = vrcp.pop %v3160
    %v3164 = vmul.f32 1.0, %v3163
    %v3165 = vtanh.pop %v3137
    %v3166 = vtanh.pop %v3138
    %v3167 = vxor.u32 %v3139, 2147483648
    %v3168 = vxor.u32 %v3140, 2147483648
    %v3169 = vmul.f32 %v3167, 1.442695
    %v3170 = vpow.pop %v3169
    %v3171 = vmul.f32 %v3168, 1.442695
    %v3172 = vpow.pop %v3171
    %v3173 = vadd.f32 %v3170, 1.0
    %v3174 = vadd.f32 %v3172, 1.0
    %v3175 = vrcp.pop %v3173
    %v3176 = vmul.f32 1.0, %v3175
    %v3177 = vrcp.pop %v3174
    %v3178 = vmul.f32 1.0, %v3177
    %v3179 = vmul.f32 %v3162, %v2955
    %v3180 = vmul.f32 %v3164, %v2956
    %v3181 = vmul.f32 %v3150, %v3165
    %v3182 = vmul.f32 %v3152, %v3166
    %v3183 = vadd.f32 %v3179, %v3181
    %v3184 = vadd.f32 %v3180, %v3182
    %v3185 = vtanh.pop %v3183
    %v3186 = vtanh.pop %v3184
    %v3187 = vmul.f32 %v3176, %v3185
    %v3188 = vmul.f32 %v3178, %v3186
    %vm3189 = vcmp.gt.s32.totalorder %v464, 4
    %v3190 = vsel %vm3189, 1, 0
    %3191 = vset.pattern.permute.xlu0 0
    %3192 = vperm.xlu0 %3191, %v3190
    %v3193 = vpop.permute.xlu0 %3192
    %vm3194 = vcmp.eq.s32.totalorder %v3193, 1
    %v3195 = vsel %vm3194, %v3187, %v2953
    %v3196 = vsel %vm3194, %v3188, %v2954
    %v3197 = vsel %vm3194, %v3183, %v2955
    %v3198 = vsel %vm3194, %v3184, %v2956
    %3199 = vst [vmem:[#allocation6 + $0x40] sm:$0xff] %v3195
    %3200 = vst [vmem:[#allocation6 + $0x48] sm:$0xff] %v3196
    %v3201 = vld [vmem:[#allocation5 + $0x140] sm:$0xff]
    %v3202 = vld [vmem:[#allocation5 + $0x148] sm:$0xff]
    %v3203 = vld [vmem:[#allocation5 + $0x150] sm:$0xff]
    %v3204 = vld [vmem:[#allocation5 + $0x158] sm:$0xff]
    %v3205 = vld [vmem:[#allocation5 + $0x160] sm:$0xff]
    %v3206 = vld [vmem:[#allocation5 + $0x168] sm:$0xff]
    %v3207 = vld [vmem:[#allocation5 + $0x170] sm:$0xff]
    %v3208 = vld [vmem:[#allocation5 + $0x178] sm:$0xff]
    %v3209 = vpack.c.bf16 %v3195, %v3195
    %v3210 = vpack.c.bf16 %v3196, %v3196
    %3211 = vmatprep.subr.bf16.mxu0 %v1746
    %3212 = vmatpush1.bf16.msra.mxu0 %v1745
    %3213 = vmatprep.subr.bf16.mxu0 %v1754
    %3214 = vmatpush1.bf16.msra.mxu0 %v1753
    %3215 = vmatprep.subr.bf16.mxu0 %v1762
    %3216 = vmatpush1.bf16.msra.mxu0 %v1761
    %3217 = vmatprep.subr.bf16.mxu0 %v1770
    %3218 = vmatpush1.bf16.msra.mxu0 %v1769
    %3219 = vmatprep.subr.bf16.mxu0 %v1778
    %3220 = vmatpush1.bf16.msra.mxu0 %v1777
    %3221 = vmatprep.subr.bf16.mxu0 %v1786
    %3222 = vmatpush1.bf16.msra.mxu0 %v1785
    %3223 = vmatprep.subr.bf16.mxu0 %v1794
    %3224 = vmatpush1.bf16.msra.mxu0 %v1793
    %3225 = vmatprep.subr.bf16.mxu0 %v1802
    %3226 = vmatpush1.bf16.msra.mxu0 %v1801
    %3227 = vmatprep.subr.bf16.mxu0 %v1810
    %3228 = vmatpush1.bf16.msra.mxu0 %v1809
    %3229 = vmatprep.subr.bf16.mxu0 %v1818
    %3230 = vmatpush1.bf16.msra.mxu0 %v1817
    %3231 = vmatprep.subr.bf16.mxu0 %v1826
    %3232 = vmatpush1.bf16.msra.mxu0 %v1825
    %3233 = vmatprep.subr.bf16.mxu0 %v1834
    %3234 = vmatpush1.bf16.msra.mxu0 %v1833
    %3235 = vmatprep.subr.bf16.mxu0 %v1842
    %3236 = vmatpush1.bf16.msra.mxu0 %v1841
    %3237 = vmatprep.subr.bf16.mxu0 %v1850
    %3238 = vmatpush1.bf16.msra.mxu0 %v1849
    %3239 = vmatprep.subr.bf16.mxu0 %v1858
    %3240 = vmatpush1.bf16.msra.mxu0 %v1857
    %3241 = vmatprep.subr.bf16.mxu0 %v1866
    %3242 = vmatpush1.bf16.msra.mxu0 %v1865
    %3243 = vmatprep.mubr.bf16.mxu0 %v3210
    %3244 = vmatmul.mubr.bf16.gmra.mrb[0].mxu0 %v3209
    %v3245 = vpop.f32.mrb[0].mxu0
    %v3246 = vadd.f32 0.0, %v3245
    %v3247 = vpop.f32.mrb[0].mxu0
    %v3248 = vadd.f32 0.0, %v3247
    %v3249 = vpop.f32.mrb[0].mxu0
    %v3250 = vpop.f32.mrb[0].mxu0
    %3251 = vdwg.mxu0
    %3252 = vmatprep.subr.bf16.mxu0 %v1748
    %3253 = vmatpush1.bf16.msra.mxu0 %v1747
    %3254 = vmatprep.subr.bf16.mxu0 %v1756
    %3255 = vmatpush1.bf16.msra.mxu0 %v1755
    %3256 = vmatprep.subr.bf16.mxu0 %v1764
    %3257 = vmatpush1.bf16.msra.mxu0 %v1763
    %3258 = vmatprep.subr.bf16.mxu0 %v1772
    %3259 = vmatpush1.bf16.msra.mxu0 %v1771
    %3260 = vmatprep.subr.bf16.mxu0 %v1780
    %3261 = vmatpush1.bf16.msra.mxu0 %v1779
    %3262 = vmatprep.subr.bf16.mxu0 %v1788
    %3263 = vmatpush1.bf16.msra.mxu0 %v1787
    %3264 = vmatprep.subr.bf16.mxu0 %v1796
    %3265 = vmatpush1.bf16.msra.mxu0 %v1795
    %3266 = vmatprep.subr.bf16.mxu0 %v1804
    %3267 = vmatpush1.bf16.msra.mxu0 %v1803
    %3268 = vmatprep.subr.bf16.mxu0 %v1812
    %3269 = vmatpush1.bf16.msra.mxu0 %v1811
    %3270 = vmatprep.subr.bf16.mxu0 %v1820
    %3271 = vmatpush1.bf16.msra.mxu0 %v1819
    %3272 = vmatprep.subr.bf16.mxu0 %v1828
    %3273 = vmatpush1.bf16.msra.mxu0 %v1827
    %3274 = vmatprep.subr.bf16.mxu0 %v1836
    %3275 = vmatpush1.bf16.msra.mxu0 %v1835
    %3276 = vmatprep.subr.bf16.mxu0 %v1844
    %3277 = vmatpush1.bf16.msra.mxu0 %v1843
    %3278 = vmatprep.subr.bf16.mxu0 %v1852
    %3279 = vmatpush1.bf16.msra.mxu0 %v1851
    %3280 = vmatprep.subr.bf16.mxu0 %v1860
    %3281 = vmatpush1.bf16.msra.mxu0 %v1859
    %3282 = vmatprep.subr.bf16.mxu0 %v1868
    %3283 = vmatpush1.bf16.msra.mxu0 %v1867
    %3284 = vmatprep.mubr.bf16.mxu0 %v3210
    %3285 = vmatmul.mubr.bf16.gmra.mrb[0].mxu0 %v3209
    %v3286 = vpop.f32.mrb[0].mxu0
    %v3287 = vadd.f32 0.0, %v3286
    %v3288 = vpop.f32.mrb[0].mxu0
    %v3289 = vadd.f32 0.0, %v3288
    %v3290 = vpop.f32.mrb[0].mxu0
    %v3291 = vpop.f32.mrb[0].mxu0
    %3292 = vdwg.mxu0
    %3293 = vmatprep.subr.bf16.mxu0 %v1750
    %3294 = vmatpush1.bf16.msra.mxu0 %v1749
    %3295 = vmatprep.subr.bf16.mxu0 %v1758
    %3296 = vmatpush1.bf16.msra.mxu0 %v1757
    %3297 = vmatprep.subr.bf16.mxu0 %v1766
    %3298 = vmatpush1.bf16.msra.mxu0 %v1765
    %3299 = vmatprep.subr.bf16.mxu0 %v1774
    %3300 = vmatpush1.bf16.msra.mxu0 %v1773
    %3301 = vmatprep.subr.bf16.mxu0 %v1782
    %3302 = vmatpush1.bf16.msra.mxu0 %v1781
    %3303 = vmatprep.subr.bf16.mxu0 %v1790
    %3304 = vmatpush1.bf16.msra.mxu0 %v1789
    %3305 = vmatprep.subr.bf16.mxu0 %v1798
    %3306 = vmatpush1.bf16.msra.mxu0 %v1797
    %3307 = vmatprep.subr.bf16.mxu0 %v1806
    %3308 = vmatpush1.bf16.msra.mxu0 %v1805
    %3309 = vmatprep.subr.bf16.mxu0 %v1814
    %3310 = vmatpush1.bf16.msra.mxu0 %v1813
    %3311 = vmatprep.subr.bf16.mxu0 %v1822
    %3312 = vmatpush1.bf16.msra.mxu0 %v1821
    %3313 = vmatprep.subr.bf16.mxu0 %v1830
    %3314 = vmatpush1.bf16.msra.mxu0 %v1829
    %3315 = vmatprep.subr.bf16.mxu0 %v1838
    %3316 = vmatpush1.bf16.msra.mxu0 %v1837
    %3317 = vmatprep.subr.bf16.mxu0 %v1846
    %3318 = vmatpush1.bf16.msra.mxu0 %v1845
    %3319 = vmatprep.subr.bf16.mxu0 %v1854
    %3320 = vmatpush1.bf16.msra.mxu0 %v1853
    %3321 = vmatprep.subr.bf16.mxu0 %v1862
    %3322 = vmatpush1.bf16.msra.mxu0 %v1861
    %3323 = vmatprep.subr.bf16.mxu0 %v1870
    %3324 = vmatpush1.bf16.msra.mxu0 %v1869
    %3325 = vmatprep.mubr.bf16.mxu0 %v3210
    %3326 = vmatmul.mubr.bf16.gmra.mrb[0].mxu0 %v3209
    %v3327 = vpop.f32.mrb[0].mxu0
    %v3328 = vadd.f32 0.0, %v3327
    %v3329 = vpop.f32.mrb[0].mxu0
    %v3330 = vadd.f32 0.0, %v3329
    %v3331 = vpop.f32.mrb[0].mxu0
    %v3332 = vpop.f32.mrb[0].mxu0
    %3333 = vdwg.mxu0
    %3334 = vmatprep.subr.bf16.mxu0 %v1752
    %3335 = vmatpush1.bf16.msra.mxu0 %v1751
    %3336 = vmatprep.subr.bf16.mxu0 %v1760
    %3337 = vmatpush1.bf16.msra.mxu0 %v1759
    %3338 = vmatprep.subr.bf16.mxu0 %v1768
    %3339 = vmatpush1.bf16.msra.mxu0 %v1767
    %3340 = vmatprep.subr.bf16.mxu0 %v1776
    %3341 = vmatpush1.bf16.msra.mxu0 %v1775
    %3342 = vmatprep.subr.bf16.mxu0 %v1784
    %3343 = vmatpush1.bf16.msra.mxu0 %v1783
    %3344 = vmatprep.subr.bf16.mxu0 %v1792
    %3345 = vmatpush1.bf16.msra.mxu0 %v1791
    %3346 = vmatprep.subr.bf16.mxu0 %v1800
    %3347 = vmatpush1.bf16.msra.mxu0 %v1799
    %3348 = vmatprep.subr.bf16.mxu0 %v1808
    %3349 = vmatpush1.bf16.msra.mxu0 %v1807
    %3350 = vmatprep.subr.bf16.mxu0 %v1816
    %3351 = vmatpush1.bf16.msra.mxu0 %v1815
    %3352 = vmatprep.subr.bf16.mxu0 %v1824
    %3353 = vmatpush1.bf16.msra.mxu0 %v1823
    %3354 = vmatprep.subr.bf16.mxu0 %v1832
    %3355 = vmatpush1.bf16.msra.mxu0 %v1831
    %3356 = vmatprep.subr.bf16.mxu0 %v1840
    %3357 = vmatpush1.bf16.msra.mxu0 %v1839
    %3358 = vmatprep.subr.bf16.mxu0 %v1848
    %3359 = vmatpush1.bf16.msra.mxu0 %v1847
    %3360 = vmatprep.subr.bf16.mxu0 %v1856
    %3361 = vmatpush1.bf16.msra.mxu0 %v1855
    %3362 = vmatprep.subr.bf16.mxu0 %v1864
    %3363 = vmatpush1.bf16.msra.mxu0 %v1863
    %3364 = vmatprep.subr.bf16.mxu0 %v1872
    %3365 = vmatpush1.bf16.msra.mxu0 %v1871
    %3366 = vmatprep.mubr.bf16.mxu0 %v3210
    %3367 = vmatmul.mubr.bf16.gmra.mrb[0].mxu0 %v3209
    %v3368 = vpop.f32.mrb[0].mxu0
    %v3369 = vadd.f32 0.0, %v3368
    %v3370 = vpop.f32.mrb[0].mxu0
    %v3371 = vadd.f32 0.0, %v3370
    %v3372 = vpop.f32.mrb[0].mxu0
    %v3373 = vpop.f32.mrb[0].mxu0
    %3374 = vdwg.mxu0
    %v3375 = vadd.f32 %v3201, %v3246
    %v3376 = vadd.f32 %v3202, %v3248
    %v3377 = vadd.f32 %v3203, %v3287
    %v3378 = vadd.f32 %v3204, %v3289
    %v3379 = vadd.f32 %v3205, %v3328
    %v3380 = vadd.f32 %v3206, %v3330
    %v3381 = vadd.f32 %v3207, %v3369
    %v3382 = vadd.f32 %v3208, %v3371
    %v3383 = vxor.u32 %v3375, 2147483648
    %v3384 = vxor.u32 %v3376, 2147483648
    %v3385 = vmul.f32 %v3383, 1.442695
    %v3386 = vpow.pop %v3385
    %v3387 = vmul.f32 %v3384, 1.442695
    %v3388 = vpow.pop %v3387
    %v3389 = vadd.f32 %v3386, 1.0
    %v3390 = vadd.f32 %v3388, 1.0
    %v3391 = vrcp.pop %v3389
    %v3392 = vmul.f32 1.0, %v3391
    %v3393 = vrcp.pop %v3390
    %v3394 = vmul.f32 1.0, %v3393
    %v3395 = vxor.u32 %v3377, 2147483648
    %v3396 = vxor.u32 %v3378, 2147483648
    %v3397 = vmul.f32 %v3395, 1.442695
    %v3398 = vpow.pop %v3397
    %v3399 = vmul.f32 %v3396, 1.442695
    %v3400 = vpow.pop %v3399
    %v3401 = vadd.f32 %v3398, 1.0
    %v3402 = vadd.f32 %v3400, 1.0
    %v3403 = vrcp.pop %v3401
    %v3404 = vmul.f32 1.0, %v3403
    %v3405 = vrcp.pop %v3402
    %v3406 = vmul.f32 1.0, %v3405
    %v3407 = vtanh.pop %v3379
    %v3408 = vtanh.pop %v3380
    %v3409 = vxor.u32 %v3381, 2147483648
    %v3410 = vxor.u32 %v3382, 2147483648
    %v3411 = vmul.f32 %v3409, 1.442695
    %v3412 = vpow.pop %v3411
    %v3413 = vmul.f32 %v3410, 1.442695
    %v3414 = vpow.pop %v3413
    %v3415 = vadd.f32 %v3412, 1.0
    %v3416 = vadd.f32 %v3414, 1.0
    %v3417 = vrcp.pop %v3415
    %v3418 = vmul.f32 1.0, %v3417
    %v3419 = vrcp.pop %v3416
    %v3420 = vmul.f32 1.0, %v3419
    %v3421 = vmul.f32 %v3404, %v3197
    %v3422 = vmul.f32 %v3406, %v3198
    %v3423 = vmul.f32 %v3392, %v3407
    %v3424 = vmul.f32 %v3394, %v3408
    %v3425 = vadd.f32 %v3421, %v3423
    %v3426 = vadd.f32 %v3422, %v3424
    %v3427 = vtanh.pop %v3425
    %v3428 = vtanh.pop %v3426
    %v3429 = vmul.f32 %v3418, %v3427
    %v3430 = vmul.f32 %v3420, %v3428
    %vm3431 = vcmp.gt.s32.totalorder %v464, 5
    %v3432 = vsel %vm3431, 1, 0
    %3433 = vset.pattern.permute.xlu0 0
    %3434 = vperm.xlu0 %3433, %v3432
    %v3435 = vpop.permute.xlu0 %3434
    %vm3436 = vcmp.eq.s32.totalorder %v3435, 1
    %v3437 = vsel %vm3436, %v3429, %v3195
    %v3438 = vsel %vm3436, %v3430, %v3196
    %v3439 = vsel %vm3436, %v3425, %v3197
    %v3440 = vsel %vm3436, %v3426, %v3198
    %3441 = vst [vmem:[#allocation6 + $0x50] sm:$0xff] %v3437
    %3442 = vst [vmem:[#allocation6 + $0x58] sm:$0xff] %v3438
    %v3443 = vld [vmem:[#allocation5 + $0x180] sm:$0xff]
    %v3444 = vld [vmem:[#allocation5 + $0x188] sm:$0xff]
    %v3445 = vld [vmem:[#allocation5 + $0x190] sm:$0xff]
    %v3446 = vld [vmem:[#allocation5 + $0x198] sm:$0xff]
    %v3447 = vld [vmem:[#allocation5 + $0x1a0] sm:$0xff]
    %v3448 = vld [vmem:[#allocation5 + $0x1a8] sm:$0xff]
    %v3449 = vld [vmem:[#allocation5 + $0x1b0] sm:$0xff]
    %v3450 = vld [vmem:[#allocation5 + $0x1b8] sm:$0xff]
    %v3451 = vpack.c.bf16 %v3437, %v3437
    %v3452 = vpack.c.bf16 %v3438, %v3438
    %3453 = vmatprep.subr.bf16.mxu0 %v1746
    %3454 = vmatpush1.bf16.msra.mxu0 %v1745
    %3455 = vmatprep.subr.bf16.mxu0 %v1754
    %3456 = vmatpush1.bf16.msra.mxu0 %v1753
    %3457 = vmatprep.subr.bf16.mxu0 %v1762
    %3458 = vmatpush1.bf16.msra.mxu0 %v1761
    %3459 = vmatprep.subr.bf16.mxu0 %v1770
    %3460 = vmatpush1.bf16.msra.mxu0 %v1769
    %3461 = vmatprep.subr.bf16.mxu0 %v1778
    %3462 = vmatpush1.bf16.msra.mxu0 %v1777
    %3463 = vmatprep.subr.bf16.mxu0 %v1786
    %3464 = vmatpush1.bf16.msra.mxu0 %v1785
    %3465 = vmatprep.subr.bf16.mxu0 %v1794
    %3466 = vmatpush1.bf16.msra.mxu0 %v1793
    %3467 = vmatprep.subr.bf16.mxu0 %v1802
    %3468 = vmatpush1.bf16.msra.mxu0 %v1801
    %3469 = vmatprep.subr.bf16.mxu0 %v1810
    %3470 = vmatpush1.bf16.msra.mxu0 %v1809
    %3471 = vmatprep.subr.bf16.mxu0 %v1818
    %3472 = vmatpush1.bf16.msra.mxu0 %v1817
    %3473 = vmatprep.subr.bf16.mxu0 %v1826
    %3474 = vmatpush1.bf16.msra.mxu0 %v1825
    %3475 = vmatprep.subr.bf16.mxu0 %v1834
    %3476 = vmatpush1.bf16.msra.mxu0 %v1833
    %3477 = vmatprep.subr.bf16.mxu0 %v1842
    %3478 = vmatpush1.bf16.msra.mxu0 %v1841
    %3479 = vmatprep.subr.bf16.mxu0 %v1850
    %3480 = vmatpush1.bf16.msra.mxu0 %v1849
    %3481 = vmatprep.subr.bf16.mxu0 %v1858
    %3482 = vmatpush1.bf16.msra.mxu0 %v1857
    %3483 = vmatprep.subr.bf16.mxu0 %v1866
    %3484 = vmatpush1.bf16.msra.mxu0 %v1865
    %3485 = vmatprep.mubr.bf16.mxu0 %v3452
    %3486 = vmatmul.mubr.bf16.gmra.mrb[0].mxu0 %v3451
    %v3487 = vpop.f32.mrb[0].mxu0
    %v3488 = vadd.f32 0.0, %v3487
    %v3489 = vpop.f32.mrb[0].mxu0
    %v3490 = vadd.f32 0.0, %v3489
    %v3491 = vpop.f32.mrb[0].mxu0
    %v3492 = vpop.f32.mrb[0].mxu0
    %3493 = vdwg.mxu0
    %3494 = vmatprep.subr.bf16.mxu0 %v1748
    %3495 = vmatpush1.bf16.msra.mxu0 %v1747
    %3496 = vmatprep.subr.bf16.mxu0 %v1756
    %3497 = vmatpush1.bf16.msra.mxu0 %v1755
    %3498 = vmatprep.subr.bf16.mxu0 %v1764
    %3499 = vmatpush1.bf16.msra.mxu0 %v1763
    %3500 = vmatprep.subr.bf16.mxu0 %v1772
    %3501 = vmatpush1.bf16.msra.mxu0 %v1771
    %3502 = vmatprep.subr.bf16.mxu0 %v1780
    %3503 = vmatpush1.bf16.msra.mxu0 %v1779
    %3504 = vmatprep.subr.bf16.mxu0 %v1788
    %3505 = vmatpush1.bf16.msra.mxu0 %v1787
    %3506 = vmatprep.subr.bf16.mxu0 %v1796
    %3507 = vmatpush1.bf16.msra.mxu0 %v1795
    %3508 = vmatprep.subr.bf16.mxu0 %v1804
    %3509 = vmatpush1.bf16.msra.mxu0 %v1803
    %3510 = vmatprep.subr.bf16.mxu0 %v1812
    %3511 = vmatpush1.bf16.msra.mxu0 %v1811
    %3512 = vmatprep.subr.bf16.mxu0 %v1820
    %3513 = vmatpush1.bf16.msra.mxu0 %v1819
    %3514 = vmatprep.subr.bf16.mxu0 %v1828
    %3515 = vmatpush1.bf16.msra.mxu0 %v1827
    %3516 = vmatprep.subr.bf16.mxu0 %v1836
    %3517 = vmatpush1.bf16.msra.mxu0 %v1835
    %3518 = vmatprep.subr.bf16.mxu0 %v1844
    %3519 = vmatpush1.bf16.msra.mxu0 %v1843
    %3520 = vmatprep.subr.bf16.mxu0 %v1852
    %3521 = vmatpush1.bf16.msra.mxu0 %v1851
    %3522 = vmatprep.subr.bf16.mxu0 %v1860
    %3523 = vmatpush1.bf16.msra.mxu0 %v1859
    %3524 = vmatprep.subr.bf16.mxu0 %v1868
    %3525 = vmatpush1.bf16.msra.mxu0 %v1867
    %3526 = vmatprep.mubr.bf16.mxu0 %v3452
    %3527 = vmatmul.mubr.bf16.gmra.mrb[0].mxu0 %v3451
    %v3528 = vpop.f32.mrb[0].mxu0
    %v3529 = vadd.f32 0.0, %v3528
    %v3530 = vpop.f32.mrb[0].mxu0
    %v3531 = vadd.f32 0.0, %v3530
    %v3532 = vpop.f32.mrb[0].mxu0
    %v3533 = vpop.f32.mrb[0].mxu0
    %3534 = vdwg.mxu0
    %3535 = vmatprep.subr.bf16.mxu0 %v1750
    %3536 = vmatpush1.bf16.msra.mxu0 %v1749
    %3537 = vmatprep.subr.bf16.mxu0 %v1758
    %3538 = vmatpush1.bf16.msra.mxu0 %v1757
    %3539 = vmatprep.subr.bf16.mxu0 %v1766
    %3540 = vmatpush1.bf16.msra.mxu0 %v1765
    %3541 = vmatprep.subr.bf16.mxu0 %v1774
    %3542 = vmatpush1.bf16.msra.mxu0 %v1773
    %3543 = vmatprep.subr.bf16.mxu0 %v1782
    %3544 = vmatpush1.bf16.msra.mxu0 %v1781
    %3545 = vmatprep.subr.bf16.mxu0 %v1790
    %3546 = vmatpush1.bf16.msra.mxu0 %v1789
    %3547 = vmatprep.subr.bf16.mxu0 %v1798
    %3548 = vmatpush1.bf16.msra.mxu0 %v1797
    %3549 = vmatprep.subr.bf16.mxu0 %v1806
    %3550 = vmatpush1.bf16.msra.mxu0 %v1805
    %3551 = vmatprep.subr.bf16.mxu0 %v1814
    %3552 = vmatpush1.bf16.msra.mxu0 %v1813
    %3553 = vmatprep.subr.bf16.mxu0 %v1822
    %3554 = vmatpush1.bf16.msra.mxu0 %v1821
    %3555 = vmatprep.subr.bf16.mxu0 %v1830
    %3556 = vmatpush1.bf16.msra.mxu0 %v1829
    %3557 = vmatprep.subr.bf16.mxu0 %v1838
    %3558 = vmatpush1.bf16.msra.mxu0 %v1837
    %3559 = vmatprep.subr.bf16.mxu0 %v1846
    %3560 = vmatpush1.bf16.msra.mxu0 %v1845
    %3561 = vmatprep.subr.bf16.mxu0 %v1854
    %3562 = vmatpush1.bf16.msra.mxu0 %v1853
    %3563 = vmatprep.subr.bf16.mxu0 %v1862
    %3564 = vmatpush1.bf16.msra.mxu0 %v1861
    %3565 = vmatprep.subr.bf16.mxu0 %v1870
    %3566 = vmatpush1.bf16.msra.mxu0 %v1869
    %3567 = vmatprep.mubr.bf16.mxu0 %v3452
    %3568 = vmatmul.mubr.bf16.gmra.mrb[0].mxu0 %v3451
    %v3569 = vpop.f32.mrb[0].mxu0
    %v3570 = vadd.f32 0.0, %v3569
    %v3571 = vpop.f32.mrb[0].mxu0
    %v3572 = vadd.f32 0.0, %v3571
    %v3573 = vpop.f32.mrb[0].mxu0
    %v3574 = vpop.f32.mrb[0].mxu0
    %3575 = vdwg.mxu0
    %3576 = vmatprep.subr.bf16.mxu0 %v1752
    %3577 = vmatpush1.bf16.msra.mxu0 %v1751
    %3578 = vmatprep.subr.bf16.mxu0 %v1760
    %3579 = vmatpush1.bf16.msra.mxu0 %v1759
    %3580 = vmatprep.subr.bf16.mxu0 %v1768
    %3581 = vmatpush1.bf16.msra.mxu0 %v1767
    %3582 = vmatprep.subr.bf16.mxu0 %v1776
    %3583 = vmatpush1.bf16.msra.mxu0 %v1775
    %3584 = vmatprep.subr.bf16.mxu0 %v1784
    %3585 = vmatpush1.bf16.msra.mxu0 %v1783
    %3586 = vmatprep.subr.bf16.mxu0 %v1792
    %3587 = vmatpush1.bf16.msra.mxu0 %v1791
    %3588 = vmatprep.subr.bf16.mxu0 %v1800
    %3589 = vmatpush1.bf16.msra.mxu0 %v1799
    %3590 = vmatprep.subr.bf16.mxu0 %v1808
    %3591 = vmatpush1.bf16.msra.mxu0 %v1807
    %3592 = vmatprep.subr.bf16.mxu0 %v1816
    %3593 = vmatpush1.bf16.msra.mxu0 %v1815
    %3594 = vmatprep.subr.bf16.mxu0 %v1824
    %3595 = vmatpush1.bf16.msra.mxu0 %v1823
    %3596 = vmatprep.subr.bf16.mxu0 %v1832
    %3597 = vmatpush1.bf16.msra.mxu0 %v1831
    %3598 = vmatprep.subr.bf16.mxu0 %v1840
    %3599 = vmatpush1.bf16.msra.mxu0 %v1839
    %3600 = vmatprep.subr.bf16.mxu0 %v1848
    %3601 = vmatpush1.bf16.msra.mxu0 %v1847
    %3602 = vmatprep.subr.bf16.mxu0 %v1856
    %3603 = vmatpush1.bf16.msra.mxu0 %v1855
    %3604 = vmatprep.subr.bf16.mxu0 %v1864
    %3605 = vmatpush1.bf16.msra.mxu0 %v1863
    %3606 = vmatprep.subr.bf16.mxu0 %v1872
    %3607 = vmatpush1.bf16.msra.mxu0 %v1871
    %3608 = vmatprep.mubr.bf16.mxu0 %v3452
    %3609 = vmatmul.mubr.bf16.gmra.mrb[0].mxu0 %v3451
    %v3610 = vpop.f32.mrb[0].mxu0
    %v3611 = vadd.f32 0.0, %v3610
    %v3612 = vpop.f32.mrb[0].mxu0
    %v3613 = vadd.f32 0.0, %v3612
    %v3614 = vpop.f32.mrb[0].mxu0
    %v3615 = vpop.f32.mrb[0].mxu0
    %3616 = vdwg.mxu0
    %v3617 = vadd.f32 %v3443, %v3488
    %v3618 = vadd.f32 %v3444, %v3490
    %v3619 = vadd.f32 %v3445, %v3529
    %v3620 = vadd.f32 %v3446, %v3531
    %v3621 = vadd.f32 %v3447, %v3570
    %v3622 = vadd.f32 %v3448, %v3572
    %v3623 = vadd.f32 %v3449, %v3611
    %v3624 = vadd.f32 %v3450, %v3613
    %v3625 = vxor.u32 %v3617, 2147483648
    %v3626 = vxor.u32 %v3618, 2147483648
    %v3627 = vmul.f32 %v3625, 1.442695
    %v3628 = vpow.pop %v3627
    %v3629 = vmul.f32 %v3626, 1.442695
    %v3630 = vpow.pop %v3629
    %v3631 = vadd.f32 %v3628, 1.0
    %v3632 = vadd.f32 %v3630, 1.0
    %v3633 = vrcp.pop %v3631
    %v3634 = vmul.f32 1.0, %v3633
    %v3635 = vrcp.pop %v3632
    %v3636 = vmul.f32 1.0, %v3635
    %v3637 = vxor.u32 %v3619, 2147483648
    %v3638 = vxor.u32 %v3620, 2147483648
    %v3639 = vmul.f32 %v3637, 1.442695
    %v3640 = vpow.pop %v3639
    %v3641 = vmul.f32 %v3638, 1.442695
    %v3642 = vpow.pop %v3641
    %v3643 = vadd.f32 %v3640, 1.0
    %v3644 = vadd.f32 %v3642, 1.0
    %v3645 = vrcp.pop %v3643
    %v3646 = vmul.f32 1.0, %v3645
    %v3647 = vrcp.pop %v3644
    %v3648 = vmul.f32 1.0, %v3647
    %v3649 = vtanh.pop %v3621
    %v3650 = vtanh.pop %v3622
    %v3651 = vxor.u32 %v3623, 2147483648
    %v3652 = vxor.u32 %v3624, 2147483648
    %v3653 = vmul.f32 %v3651, 1.442695
    %v3654 = vpow.pop %v3653
    %v3655 = vmul.f32 %v3652, 1.442695
    %v3656 = vpow.pop %v3655
    %v3657 = vadd.f32 %v3654, 1.0
    %v3658 = vadd.f32 %v3656, 1.0
    %v3659 = vrcp.pop %v3657
    %v3660 = vmul.f32 1.0, %v3659
    %v3661 = vrcp.pop %v3658
    %v3662 = vmul.f32 1.0, %v3661
    %v3663 = vmul.f32 %v3646, %v3439
    %v3664 = vmul.f32 %v3648, %v3440
    %v3665 = vmul.f32 %v3634, %v3649
    %v3666 = vmul.f32 %v3636, %v3650
    %v3667 = vadd.f32 %v3663, %v3665
    %v3668 = vadd.f32 %v3664, %v3666
    %v3669 = vtanh.pop %v3667
    %v3670 = vtanh.pop %v3668
    %v3671 = vmul.f32 %v3660, %v3669
    %v3672 = vmul.f32 %v3662, %v3670
    %vm3673 = vcmp.gt.s32.totalorder %v464, 6
    %v3674 = vsel %vm3673, 1, 0
    %3675 = vset.pattern.permute.xlu0 0
    %3676 = vperm.xlu0 %3675, %v3674
    %v3677 = vpop.permute.xlu0 %3676
    %vm3678 = vcmp.eq.s32.totalorder %v3677, 1
    %v3679 = vsel %vm3678, %v3671, %v3437
    %v3680 = vsel %vm3678, %v3672, %v3438
    %v3681 = vsel %vm3678, %v3667, %v3439
    %v3682 = vsel %vm3678, %v3668, %v3440
    %3683 = vst [vmem:[#allocation6 + $0x60] sm:$0xff] %v3679
    %3684 = vst [vmem:[#allocation6 + $0x68] sm:$0xff] %v3680
    %v3685 = vld [vmem:[#allocation5 + $0x1c0] sm:$0xff]
    %v3686 = vld [vmem:[#allocation5 + $0x1c8] sm:$0xff]
    %v3687 = vld [vmem:[#allocation5 + $0x1d0] sm:$0xff]
    %v3688 = vld [vmem:[#allocation5 + $0x1d8] sm:$0xff]
    %v3689 = vld [vmem:[#allocation5 + $0x1e0] sm:$0xff]
    %v3690 = vld [vmem:[#allocation5 + $0x1e8] sm:$0xff]
    %v3691 = vld [vmem:[#allocation5 + $0x1f0] sm:$0xff]
    %v3692 = vld [vmem:[#allocation5 + $0x1f8] sm:$0xff]
    %v3693 = vpack.c.bf16 %v3679, %v3679
    %v3694 = vpack.c.bf16 %v3680, %v3680
    %3695 = vmatprep.subr.bf16.mxu0 %v1746
    %3696 = vmatpush1.bf16.msra.mxu0 %v1745
    %3697 = vmatprep.subr.bf16.mxu0 %v1754
    %3698 = vmatpush1.bf16.msra.mxu0 %v1753
    %3699 = vmatprep.subr.bf16.mxu0 %v1762
    %3700 = vmatpush1.bf16.msra.mxu0 %v1761
    %3701 = vmatprep.subr.bf16.mxu0 %v1770
    %3702 = vmatpush1.bf16.msra.mxu0 %v1769
    %3703 = vmatprep.subr.bf16.mxu0 %v1778
    %3704 = vmatpush1.bf16.msra.mxu0 %v1777
    %3705 = vmatprep.subr.bf16.mxu0 %v1786
    %3706 = vmatpush1.bf16.msra.mxu0 %v1785
    %3707 = vmatprep.subr.bf16.mxu0 %v1794
    %3708 = vmatpush1.bf16.msra.mxu0 %v1793
    %3709 = vmatprep.subr.bf16.mxu0 %v1802
    %3710 = vmatpush1.bf16.msra.mxu0 %v1801
    %3711 = vmatprep.subr.bf16.mxu0 %v1810
    %3712 = vmatpush1.bf16.msra.mxu0 %v1809
    %3713 = vmatprep.subr.bf16.mxu0 %v1818
    %3714 = vmatpush1.bf16.msra.mxu0 %v1817
    %3715 = vmatprep.subr.bf16.mxu0 %v1826
    %3716 = vmatpush1.bf16.msra.mxu0 %v1825
    %3717 = vmatprep.subr.bf16.mxu0 %v1834
    %3718 = vmatpush1.bf16.msra.mxu0 %v1833
    %3719 = vmatprep.subr.bf16.mxu0 %v1842
    %3720 = vmatpush1.bf16.msra.mxu0 %v1841
    %3721 = vmatprep.subr.bf16.mxu0 %v1850
    %3722 = vmatpush1.bf16.msra.mxu0 %v1849
    %3723 = vmatprep.subr.bf16.mxu0 %v1858
    %3724 = vmatpush1.bf16.msra.mxu0 %v1857
    %3725 = vmatprep.subr.bf16.mxu0 %v1866
    %3726 = vmatpush1.bf16.msra.mxu0 %v1865
    %3727 = vmatprep.mubr.bf16.mxu0 %v3694
    %3728 = vmatmul.mubr.bf16.gmra.mrb[0].mxu0 %v3693
    %v3729 = vpop.f32.mrb[0].mxu0
    %v3730 = vadd.f32 0.0, %v3729
    %v3731 = vpop.f32.mrb[0].mxu0
    %v3732 = vadd.f32 0.0, %v3731
    %v3733 = vpop.f32.mrb[0].mxu0
    %v3734 = vpop.f32.mrb[0].mxu0
    %3735 = vdwg.mxu0
    %3736 = vmatprep.subr.bf16.mxu0 %v1748
    %3737 = vmatpush1.bf16.msra.mxu0 %v1747
    %3738 = vmatprep.subr.bf16.mxu0 %v1756
    %3739 = vmatpush1.bf16.msra.mxu0 %v1755
    %3740 = vmatprep.subr.bf16.mxu0 %v1764
    %3741 = vmatpush1.bf16.msra.mxu0 %v1763
    %3742 = vmatprep.subr.bf16.mxu0 %v1772
    %3743 = vmatpush1.bf16.msra.mxu0 %v1771
    %3744 = vmatprep.subr.bf16.mxu0 %v1780
    %3745 = vmatpush1.bf16.msra.mxu0 %v1779
    %3746 = vmatprep.subr.bf16.mxu0 %v1788
    %3747 = vmatpush1.bf16.msra.mxu0 %v1787
    %3748 = vmatprep.subr.bf16.mxu0 %v1796
    %3749 = vmatpush1.bf16.msra.mxu0 %v1795
    %3750 = vmatprep.subr.bf16.mxu0 %v1804
    %3751 = vmatpush1.bf16.msra.mxu0 %v1803
    %3752 = vmatprep.subr.bf16.mxu0 %v1812
    %3753 = vmatpush1.bf16.msra.mxu0 %v1811
    %3754 = vmatprep.subr.bf16.mxu0 %v1820
    %3755 = vmatpush1.bf16.msra.mxu0 %v1819
    %3756 = vmatprep.subr.bf16.mxu0 %v1828
    %3757 = vmatpush1.bf16.msra.mxu0 %v1827
    %3758 = vmatprep.subr.bf16.mxu0 %v1836
    %3759 = vmatpush1.bf16.msra.mxu0 %v1835
    %3760 = vmatprep.subr.bf16.mxu0 %v1844
    %3761 = vmatpush1.bf16.msra.mxu0 %v1843
    %3762 = vmatprep.subr.bf16.mxu0 %v1852
    %3763 = vmatpush1.bf16.msra.mxu0 %v1851
    %3764 = vmatprep.subr.bf16.mxu0 %v1860
    %3765 = vmatpush1.bf16.msra.mxu0 %v1859
    %3766 = vmatprep.subr.bf16.mxu0 %v1868
    %3767 = vmatpush1.bf16.msra.mxu0 %v1867
    %3768 = vmatprep.mubr.bf16.mxu0 %v3694
    %3769 = vmatmul.mubr.bf16.gmra.mrb[0].mxu0 %v3693
    %v3770 = vpop.f32.mrb[0].mxu0
    %v3771 = vadd.f32 0.0, %v3770
    %v3772 = vpop.f32.mrb[0].mxu0
    %v3773 = vadd.f32 0.0, %v3772
    %v3774 = vpop.f32.mrb[0].mxu0
    %v3775 = vpop.f32.mrb[0].mxu0
    %3776 = vdwg.mxu0
    %3777 = vmatprep.subr.bf16.mxu0 %v1750
    %3778 = vmatpush1.bf16.msra.mxu0 %v1749
    %3779 = vmatprep.subr.bf16.mxu0 %v1758
    %3780 = vmatpush1.bf16.msra.mxu0 %v1757
    %3781 = vmatprep.subr.bf16.mxu0 %v1766
    %3782 = vmatpush1.bf16.msra.mxu0 %v1765
    %3783 = vmatprep.subr.bf16.mxu0 %v1774
    %3784 = vmatpush1.bf16.msra.mxu0 %v1773
    %3785 = vmatprep.subr.bf16.mxu0 %v1782
    %3786 = vmatpush1.bf16.msra.mxu0 %v1781
    %3787 = vmatprep.subr.bf16.mxu0 %v1790
    %3788 = vmatpush1.bf16.msra.mxu0 %v1789
    %3789 = vmatprep.subr.bf16.mxu0 %v1798
    %3790 = vmatpush1.bf16.msra.mxu0 %v1797
    %3791 = vmatprep.subr.bf16.mxu0 %v1806
    %3792 = vmatpush1.bf16.msra.mxu0 %v1805
    %3793 = vmatprep.subr.bf16.mxu0 %v1814
    %3794 = vmatpush1.bf16.msra.mxu0 %v1813
    %3795 = vmatprep.subr.bf16.mxu0 %v1822
    %3796 = vmatpush1.bf16.msra.mxu0 %v1821
    %3797 = vmatprep.subr.bf16.mxu0 %v1830
    %3798 = vmatpush1.bf16.msra.mxu0 %v1829
    %3799 = vmatprep.subr.bf16.mxu0 %v1838
    %3800 = vmatpush1.bf16.msra.mxu0 %v1837
    %3801 = vmatprep.subr.bf16.mxu0 %v1846
    %3802 = vmatpush1.bf16.msra.mxu0 %v1845
    %3803 = vmatprep.subr.bf16.mxu0 %v1854
    %3804 = vmatpush1.bf16.msra.mxu0 %v1853
    %3805 = vmatprep.subr.bf16.mxu0 %v1862
    %3806 = vmatpush1.bf16.msra.mxu0 %v1861
    %3807 = vmatprep.subr.bf16.mxu0 %v1870
    %3808 = vmatpush1.bf16.msra.mxu0 %v1869
    %3809 = vmatprep.mubr.bf16.mxu0 %v3694
    %3810 = vmatmul.mubr.bf16.gmra.mrb[0].mxu0 %v3693
    %v3811 = vpop.f32.mrb[0].mxu0
    %v3812 = vadd.f32 0.0, %v3811
    %v3813 = vpop.f32.mrb[0].mxu0
    %v3814 = vadd.f32 0.0, %v3813
    %v3815 = vpop.f32.mrb[0].mxu0
    %v3816 = vpop.f32.mrb[0].mxu0
    %3817 = vdwg.mxu0
    %3818 = vmatprep.subr.bf16.mxu0 %v1752
    %3819 = vmatpush1.bf16.msra.mxu0 %v1751
    %3820 = vmatprep.subr.bf16.mxu0 %v1760
    %3821 = vmatpush1.bf16.msra.mxu0 %v1759
    %3822 = vmatprep.subr.bf16.mxu0 %v1768
    %3823 = vmatpush1.bf16.msra.mxu0 %v1767
    %3824 = vmatprep.subr.bf16.mxu0 %v1776
    %3825 = vmatpush1.bf16.msra.mxu0 %v1775
    %3826 = vmatprep.subr.bf16.mxu0 %v1784
    %3827 = vmatpush1.bf16.msra.mxu0 %v1783
    %3828 = vmatprep.subr.bf16.mxu0 %v1792
    %3829 = vmatpush1.bf16.msra.mxu0 %v1791
    %3830 = vmatprep.subr.bf16.mxu0 %v1800
    %3831 = vmatpush1.bf16.msra.mxu0 %v1799
    %3832 = vmatprep.subr.bf16.mxu0 %v1808
    %3833 = vmatpush1.bf16.msra.mxu0 %v1807
    %3834 = vmatprep.subr.bf16.mxu0 %v1816
    %3835 = vmatpush1.bf16.msra.mxu0 %v1815
    %3836 = vmatprep.subr.bf16.mxu0 %v1824
    %3837 = vmatpush1.bf16.msra.mxu0 %v1823
    %3838 = vmatprep.subr.bf16.mxu0 %v1832
    %3839 = vmatpush1.bf16.msra.mxu0 %v1831
    %3840 = vmatprep.subr.bf16.mxu0 %v1840
    %3841 = vmatpush1.bf16.msra.mxu0 %v1839
    %3842 = vmatprep.subr.bf16.mxu0 %v1848
    %3843 = vmatpush1.bf16.msra.mxu0 %v1847
    %3844 = vmatprep.subr.bf16.mxu0 %v1856
    %3845 = vmatpush1.bf16.msra.mxu0 %v1855
    %3846 = vmatprep.subr.bf16.mxu0 %v1864
    %3847 = vmatpush1.bf16.msra.mxu0 %v1863
    %3848 = vmatprep.subr.bf16.mxu0 %v1872
    %3849 = vmatpush1.bf16.msra.mxu0 %v1871
    %3850 = vmatprep.mubr.bf16.mxu0 %v3694
    %3851 = vmatmul.mubr.bf16.gmra.mrb[0].mxu0 %v3693
    %v3852 = vpop.f32.mrb[0].mxu0
    %v3853 = vadd.f32 0.0, %v3852
    %v3854 = vpop.f32.mrb[0].mxu0
    %v3855 = vadd.f32 0.0, %v3854
    %v3856 = vpop.f32.mrb[0].mxu0
    %v3857 = vpop.f32.mrb[0].mxu0
    %3858 = vdwg.mxu0
    %v3859 = vadd.f32 %v3685, %v3730
    %v3860 = vadd.f32 %v3686, %v3732
    %v3861 = vadd.f32 %v3687, %v3771
    %v3862 = vadd.f32 %v3688, %v3773
    %v3863 = vadd.f32 %v3689, %v3812
    %v3864 = vadd.f32 %v3690, %v3814
    %v3865 = vadd.f32 %v3691, %v3853
    %v3866 = vadd.f32 %v3692, %v3855
    %v3867 = vxor.u32 %v3859, 2147483648
    %v3868 = vxor.u32 %v3860, 2147483648
    %v3869 = vmul.f32 %v3867, 1.442695
    %v3870 = vpow.pop %v3869
    %v3871 = vmul.f32 %v3868, 1.442695
    %v3872 = vpow.pop %v3871
    %v3873 = vadd.f32 %v3870, 1.0
    %v3874 = vadd.f32 %v3872, 1.0
    %v3875 = vrcp.pop %v3873
    %v3876 = vmul.f32 1.0, %v3875
    %v3877 = vrcp.pop %v3874
    %v3878 = vmul.f32 1.0, %v3877
    %v3879 = vxor.u32 %v3861, 2147483648
    %v3880 = vxor.u32 %v3862, 2147483648
    %v3881 = vmul.f32 %v3879, 1.442695
    %v3882 = vpow.pop %v3881
    %v3883 = vmul.f32 %v3880, 1.442695
    %v3884 = vpow.pop %v3883
    %v3885 = vadd.f32 %v3882, 1.0
    %v3886 = vadd.f32 %v3884, 1.0
    %v3887 = vrcp.pop %v3885
    %v3888 = vmul.f32 1.0, %v3887
    %v3889 = vrcp.pop %v3886
    %v3890 = vmul.f32 1.0, %v3889
    %v3891 = vtanh.pop %v3863
    %v3892 = vtanh.pop %v3864
    %v3893 = vxor.u32 %v3865, 2147483648
    %v3894 = vxor.u32 %v3866, 2147483648
    %v3895 = vmul.f32 %v3893, 1.442695
    %v3896 = vpow.pop %v3895
    %v3897 = vmul.f32 %v3894, 1.442695
    %v3898 = vpow.pop %v3897
    %v3899 = vadd.f32 %v3896, 1.0
    %v3900 = vadd.f32 %v3898, 1.0
    %v3901 = vrcp.pop %v3899
    %v3902 = vmul.f32 1.0, %v3901
    %v3903 = vrcp.pop %v3900
    %v3904 = vmul.f32 1.0, %v3903
    %v3905 = vmul.f32 %v3888, %v3681
    %v3906 = vmul.f32 %v3890, %v3682
    %v3907 = vmul.f32 %v3876, %v3891
    %v3908 = vmul.f32 %v3878, %v3892
    %v3909 = vadd.f32 %v3905, %v3907
    %v3910 = vadd.f32 %v3906, %v3908
    %v3911 = vtanh.pop %v3909
    %v3912 = vtanh.pop %v3910
    %v3913 = vmul.f32 %v3902, %v3911
    %v3914 = vmul.f32 %v3904, %v3912
    %vm3915 = vcmp.gt.s32.totalorder %v464, 7
    %v3916 = vsel %vm3915, 1, 0
    %3917 = vset.pattern.permute.xlu0 0
    %3918 = vperm.xlu0 %3917, %v3916
    %v3919 = vpop.permute.xlu0 %3918
    %vm3920 = vcmp.eq.s32.totalorder %v3919, 1
    %v3921 = vsel %vm3920, %v3913, %v3679
    %v3922 = vsel %vm3920, %v3914, %v3680
    %3923 = vst [vmem:[#allocation6 + $0x70] sm:$0xff] %v3921
    %3924 = vst [vmem:[#allocation6 + $0x78] sm:$0xff] %v3922
    %s3925 = smul.u32 4, 32
    %s3926 = smul.u32 %s3925, 8
    %s3927 = sshll.u32 %s3926, 4
    %3928 = dma.done [#allocation7], %s3927
    %v3929 = vld [vmem:[#allocation6] sm:$0xff]
    %v3930 = vld [vmem:[#allocation6 + $0x8] sm:$0xff]
    %v3931 = vld [vmem:[#allocation6 + $0x10] sm:$0xff]
    %v3932 = vld [vmem:[#allocation6 + $0x18] sm:$0xff]
    %v3933 = vld [vmem:[#allocation6 + $0x20] sm:$0xff]
    %v3934 = vld [vmem:[#allocation6 + $0x28] sm:$0xff]
    %v3935 = vld [vmem:[#allocation6 + $0x30] sm:$0xff]
    %v3936 = vld [vmem:[#allocation6 + $0x38] sm:$0xff]
    %v3937 = vld [vmem:[#allocation6 + $0x40] sm:$0xff]
    %v3938 = vld [vmem:[#allocation6 + $0x48] sm:$0xff]
    %v3939 = vld [vmem:[#allocation6 + $0x50] sm:$0xff]
    %v3940 = vld [vmem:[#allocation6 + $0x58] sm:$0xff]
    %v3941 = vld [vmem:[#allocation6 + $0x60] sm:$0xff]
    %v3942 = vld [vmem:[#allocation6 + $0x68] sm:$0xff]
    %v3943 = vld [vmem:[#allocation6 + $0x70] sm:$0xff]
    %v3944 = vld [vmem:[#allocation6 + $0x78] sm:$0xff]
    %v3945 = vpack.c.bf16 %v3931, %v3929
    %v3946 = vpack.c.bf16 %v3932, %v3930
    %v3947 = vpack.c.bf16 %v3935, %v3933
    %v3948 = vpack.c.bf16 %v3936, %v3934
    %v3949 = vpack.c.bf16 %v3939, %v3937
    %v3950 = vpack.c.bf16 %v3940, %v3938
    %v3951 = vpack.c.bf16 %v3943, %v3941
    %v3952 = vpack.c.bf16 %v3944, %v3942
    %v3953 = vld [vmem:[#allocation2] sm:$0xff]
    %v3954 = vld [vmem:[#allocation2 + $0x8] sm:$0xff]
    %v3955 = vld [vmem:[#allocation2 + $0x10] sm:$0xff]
    %v3956 = vld [vmem:[#allocation2 + $0x18] sm:$0xff]
    %v3957 = vld [vmem:[#allocation2 + $0x20] sm:$0xff]
    %v3958 = vld [vmem:[#allocation2 + $0x28] sm:$0xff]
    %v3959 = vld [vmem:[#allocation2 + $0x30] sm:$0xff]
    %v3960 = vld [vmem:[#allocation2 + $0x38] sm:$0xff]
    %v3961 = vld [vmem:[#allocation2 + $0x40] sm:$0xff]
    %v3962 = vld [vmem:[#allocation2 + $0x48] sm:$0xff]
    %v3963 = vld [vmem:[#allocation2 + $0x50] sm:$0xff]
    %v3964 = vld [vmem:[#allocation2 + $0x58] sm:$0xff]
    %v3965 = vld [vmem:[#allocation2 + $0x60] sm:$0xff]
    %v3966 = vld [vmem:[#allocation2 + $0x68] sm:$0xff]
    %v3967 = vld [vmem:[#allocation2 + $0x70] sm:$0xff]
    %v3968 = vld [vmem:[#allocation2 + $0x78] sm:$0xff]
    %v3969 = vld [vmem:[#allocation2 + $0x80] sm:$0xff]
    %v3970 = vld [vmem:[#allocation2 + $0x88] sm:$0xff]
    %v3971 = vld [vmem:[#allocation2 + $0x90] sm:$0xff]
    %v3972 = vld [vmem:[#allocation2 + $0x98] sm:$0xff]
    %v3973 = vld [vmem:[#allocation2 + $0xa0] sm:$0xff]
    %v3974 = vld [vmem:[#allocation2 + $0xa8] sm:$0xff]
    %v3975 = vld [vmem:[#allocation2 + $0xb0] sm:$0xff]
    %v3976 = vld [vmem:[#allocation2 + $0xb8] sm:$0xff]
    %v3977 = vld [vmem:[#allocation2 + $0xc0] sm:$0xff]
    %v3978 = vld [vmem:[#allocation2 + $0xc8] sm:$0xff]
    %v3979 = vld [vmem:[#allocation2 + $0xd0] sm:$0xff]
    %v3980 = vld [vmem:[#allocation2 + $0xd8] sm:$0xff]
    %v3981 = vld [vmem:[#allocation2 + $0xe0] sm:$0xff]
    %v3982 = vld [vmem:[#allocation2 + $0xe8] sm:$0xff]
    %v3983 = vld [vmem:[#allocation2 + $0xf0] sm:$0xff]
    %v3984 = vld [vmem:[#allocation2 + $0xf8] sm:$0xff]
    %v3985 = vld [vmem:[#allocation2 + $0x100] sm:$0xff]
    %v3986 = vld [vmem:[#allocation2 + $0x108] sm:$0xff]
    %v3987 = vld [vmem:[#allocation2 + $0x110] sm:$0xff]
    %v3988 = vld [vmem:[#allocation2 + $0x118] sm:$0xff]
    %v3989 = vld [vmem:[#allocation2 + $0x120] sm:$0xff]
    %v3990 = vld [vmem:[#allocation2 + $0x128] sm:$0xff]
    %v3991 = vld [vmem:[#allocation2 + $0x130] sm:$0xff]
    %v3992 = vld [vmem:[#allocation2 + $0x138] sm:$0xff]
    %v3993 = vld [vmem:[#allocation2 + $0x140] sm:$0xff]
    %v3994 = vld [vmem:[#allocation2 + $0x148] sm:$0xff]
    %v3995 = vld [vmem:[#allocation2 + $0x150] sm:$0xff]
    %v3996 = vld [vmem:[#allocation2 + $0x158] sm:$0xff]
    %v3997 = vld [vmem:[#allocation2 + $0x160] sm:$0xff]
    %v3998 = vld [vmem:[#allocation2 + $0x168] sm:$0xff]
    %v3999 = vld [vmem:[#allocation2 + $0x170] sm:$0xff]
    %v4000 = vld [vmem:[#allocation2 + $0x178] sm:$0xff]
    %v4001 = vld [vmem:[#allocation2 + $0x180] sm:$0xff]
    %v4002 = vld [vmem:[#allocation2 + $0x188] sm:$0xff]
    %v4003 = vld [vmem:[#allocation2 + $0x190] sm:$0xff]
    %v4004 = vld [vmem:[#allocation2 + $0x198] sm:$0xff]
    %v4005 = vld [vmem:[#allocation2 + $0x1a0] sm:$0xff]
    %v4006 = vld [vmem:[#allocation2 + $0x1a8] sm:$0xff]
    %v4007 = vld [vmem:[#allocation2 + $0x1b0] sm:$0xff]
    %v4008 = vld [vmem:[#allocation2 + $0x1b8] sm:$0xff]
    %v4009 = vld [vmem:[#allocation2 + $0x1c0] sm:$0xff]
    %v4010 = vld [vmem:[#allocation2 + $0x1c8] sm:$0xff]
    %v4011 = vld [vmem:[#allocation2 + $0x1d0] sm:$0xff]
    %v4012 = vld [vmem:[#allocation2 + $0x1d8] sm:$0xff]
    %v4013 = vld [vmem:[#allocation2 + $0x1e0] sm:$0xff]
    %v4014 = vld [vmem:[#allocation2 + $0x1e8] sm:$0xff]
    %v4015 = vld [vmem:[#allocation2 + $0x1f0] sm:$0xff]
    %v4016 = vld [vmem:[#allocation2 + $0x1f8] sm:$0xff]
    %v4017 = vld [vmem:[#allocation2 + $0x200] sm:$0xff]
    %v4018 = vld [vmem:[#allocation2 + $0x208] sm:$0xff]
    %v4019 = vld [vmem:[#allocation2 + $0x210] sm:$0xff]
    %v4020 = vld [vmem:[#allocation2 + $0x218] sm:$0xff]
    %v4021 = vld [vmem:[#allocation2 + $0x220] sm:$0xff]
    %v4022 = vld [vmem:[#allocation2 + $0x228] sm:$0xff]
    %v4023 = vld [vmem:[#allocation2 + $0x230] sm:$0xff]
    %v4024 = vld [vmem:[#allocation2 + $0x238] sm:$0xff]
    %v4025 = vld [vmem:[#allocation2 + $0x240] sm:$0xff]
    %v4026 = vld [vmem:[#allocation2 + $0x248] sm:$0xff]
    %v4027 = vld [vmem:[#allocation2 + $0x250] sm:$0xff]
    %v4028 = vld [vmem:[#allocation2 + $0x258] sm:$0xff]
    %v4029 = vld [vmem:[#allocation2 + $0x260] sm:$0xff]
    %v4030 = vld [vmem:[#allocation2 + $0x268] sm:$0xff]
    %v4031 = vld [vmem:[#allocation2 + $0x270] sm:$0xff]
    %v4032 = vld [vmem:[#allocation2 + $0x278] sm:$0xff]
    %v4033 = vld [vmem:[#allocation2 + $0x280] sm:$0xff]
    %v4034 = vld [vmem:[#allocation2 + $0x288] sm:$0xff]
    %v4035 = vld [vmem:[#allocation2 + $0x290] sm:$0xff]
    %v4036 = vld [vmem:[#allocation2 + $0x298] sm:$0xff]
    %v4037 = vld [vmem:[#allocation2 + $0x2a0] sm:$0xff]
    %v4038 = vld [vmem:[#allocation2 + $0x2a8] sm:$0xff]
    %v4039 = vld [vmem:[#allocation2 + $0x2b0] sm:$0xff]
    %v4040 = vld [vmem:[#allocation2 + $0x2b8] sm:$0xff]
    %v4041 = vld [vmem:[#allocation2 + $0x2c0] sm:$0xff]
    %v4042 = vld [vmem:[#allocation2 + $0x2c8] sm:$0xff]
    %v4043 = vld [vmem:[#allocation2 + $0x2d0] sm:$0xff]
    %v4044 = vld [vmem:[#allocation2 + $0x2d8] sm:$0xff]
    %v4045 = vld [vmem:[#allocation2 + $0x2e0] sm:$0xff]
    %v4046 = vld [vmem:[#allocation2 + $0x2e8] sm:$0xff]
    %v4047 = vld [vmem:[#allocation2 + $0x2f0] sm:$0xff]
    %v4048 = vld [vmem:[#allocation2 + $0x2f8] sm:$0xff]
    %v4049 = vld [vmem:[#allocation2 + $0x300] sm:$0xff]
    %v4050 = vld [vmem:[#allocation2 + $0x308] sm:$0xff]
    %v4051 = vld [vmem:[#allocation2 + $0x310] sm:$0xff]
    %v4052 = vld [vmem:[#allocation2 + $0x318] sm:$0xff]
    %v4053 = vld [vmem:[#allocation2 + $0x320] sm:$0xff]
    %v4054 = vld [vmem:[#allocation2 + $0x328] sm:$0xff]
    %v4055 = vld [vmem:[#allocation2 + $0x330] sm:$0xff]
    %v4056 = vld [vmem:[#allocation2 + $0x338] sm:$0xff]
    %v4057 = vld [vmem:[#allocation2 + $0x340] sm:$0xff]
    %v4058 = vld [vmem:[#allocation2 + $0x348] sm:$0xff]
    %v4059 = vld [vmem:[#allocation2 + $0x350] sm:$0xff]
    %v4060 = vld [vmem:[#allocation2 + $0x358] sm:$0xff]
    %v4061 = vld [vmem:[#allocation2 + $0x360] sm:$0xff]
    %v4062 = vld [vmem:[#allocation2 + $0x368] sm:$0xff]
    %v4063 = vld [vmem:[#allocation2 + $0x370] sm:$0xff]
    %v4064 = vld [vmem:[#allocation2 + $0x378] sm:$0xff]
    %v4065 = vld [vmem:[#allocation2 + $0x380] sm:$0xff]
    %v4066 = vld [vmem:[#allocation2 + $0x388] sm:$0xff]
    %v4067 = vld [vmem:[#allocation2 + $0x390] sm:$0xff]
    %v4068 = vld [vmem:[#allocation2 + $0x398] sm:$0xff]
    %v4069 = vld [vmem:[#allocation2 + $0x3a0] sm:$0xff]
    %v4070 = vld [vmem:[#allocation2 + $0x3a8] sm:$0xff]
    %v4071 = vld [vmem:[#allocation2 + $0x3b0] sm:$0xff]
    %v4072 = vld [vmem:[#allocation2 + $0x3b8] sm:$0xff]
    %v4073 = vld [vmem:[#allocation2 + $0x3c0] sm:$0xff]
    %v4074 = vld [vmem:[#allocation2 + $0x3c8] sm:$0xff]
    %v4075 = vld [vmem:[#allocation2 + $0x3d0] sm:$0xff]
    %v4076 = vld [vmem:[#allocation2 + $0x3d8] sm:$0xff]
    %v4077 = vld [vmem:[#allocation2 + $0x3e0] sm:$0xff]
    %v4078 = vld [vmem:[#allocation2 + $0x3e8] sm:$0xff]
    %v4079 = vld [vmem:[#allocation2 + $0x3f0] sm:$0xff]
    %v4080 = vld [vmem:[#allocation2 + $0x3f8] sm:$0xff]
    %v4081 = vld [vmem:[%s7] sm:$0xff]
    %v4083 = vlaneseq
    %v4084 = vshrl.u32 %v4083, 7
    %v4085 = vsub.s32 0, %v4084
    %v4086 = vrot.slane %v4081, %v4085
    %v4087 = vlaneseq
    %v4088 = vshrl.u32 %v4087, 7
    %v4089 = vsub.s32 1, %v4088
    %v4090 = vrot.slane %v4081, %v4089
    %v4091 = vlaneseq
    %v4092 = vshrl.u32 %v4091, 7
    %v4093 = vsub.s32 2, %v4092
    %v4094 = vrot.slane %v4081, %v4093
    %v4095 = vlaneseq
    %v4096 = vshrl.u32 %v4095, 7
    %v4097 = vsub.s32 3, %v4096
    %v4098 = vrot.slane %v4081, %v4097
    %v4099 = vlaneseq
    %v4100 = vshrl.u32 %v4099, 7
    %v4101 = vsub.s32 4, %v4100
    %v4102 = vrot.slane %v4081, %v4101
    %v4103 = vlaneseq
    %v4104 = vshrl.u32 %v4103, 7
    %v4105 = vsub.s32 5, %v4104
    %v4106 = vrot.slane %v4081, %v4105
    %v4107 = vlaneseq
    %v4108 = vshrl.u32 %v4107, 7
    %v4109 = vsub.s32 6, %v4108
    %v4110 = vrot.slane %v4081, %v4109
    %v4111 = vlaneseq
    %v4112 = vshrl.u32 %v4111, 7
    %v4113 = vsub.s32 7, %v4112
    %v4114 = vrot.slane %v4081, %v4113
    %4123 = vmatprep.subr.bf16.mxu0 %v3954
    %4124 = vmatpush1.bf16.msra.mxu0 %v3953
    %4125 = vmatprep.subr.bf16.mxu0 %v3962
    %4126 = vmatpush1.bf16.msra.mxu0 %v3961
    %4127 = vmatprep.subr.bf16.mxu0 %v3970
    %4128 = vmatpush1.bf16.msra.mxu0 %v3969
    %4129 = vmatprep.subr.bf16.mxu0 %v3978
    %4130 = vmatpush1.bf16.msra.mxu0 %v3977
    %4131 = vmatprep.subr.bf16.mxu0 %v3986
    %4132 = vmatpush1.bf16.msra.mxu0 %v3985
    %4133 = vmatprep.subr.bf16.mxu0 %v3994
    %4134 = vmatpush1.bf16.msra.mxu0 %v3993
    %4135 = vmatprep.subr.bf16.mxu0 %v4002
    %4136 = vmatpush1.bf16.msra.mxu0 %v4001
    %4137 = vmatprep.subr.bf16.mxu0 %v4010
    %4138 = vmatpush1.bf16.msra.mxu0 %v4009
    %4139 = vmatprep.subr.bf16.mxu0 %v4018
    %4140 = vmatpush1.bf16.msra.mxu0 %v4017
    %4141 = vmatprep.subr.bf16.mxu0 %v4026
    %4142 = vmatpush1.bf16.msra.mxu0 %v4025
    %4143 = vmatprep.subr.bf16.mxu0 %v4034
    %4144 = vmatpush1.bf16.msra.mxu0 %v4033
    %4145 = vmatprep.subr.bf16.mxu0 %v4042
    %4146 = vmatpush1.bf16.msra.mxu0 %v4041
    %4147 = vmatprep.subr.bf16.mxu0 %v4050
    %4148 = vmatpush1.bf16.msra.mxu0 %v4049
    %4149 = vmatprep.subr.bf16.mxu0 %v4058
    %4150 = vmatpush1.bf16.msra.mxu0 %v4057
    %4151 = vmatprep.subr.bf16.mxu0 %v4066
    %4152 = vmatpush1.bf16.msra.mxu0 %v4065
    %4153 = vmatprep.subr.bf16.mxu0 %v4074
    %4154 = vmatpush1.bf16.msra.mxu0 %v4073
    %4155 = vmatprep.mubr.bf16.mxu0 %v3946
    %4156 = vmatmul.mubr.bf16.gmra.mrb[0].mxu0 %v3945
    %v4157 = vpop.f32.mrb[0].mxu0
    %v4158 = vadd.f32 %v4086, %v4157
    %v4159 = vpop.f32.mrb[0].mxu0
    %v4160 = vadd.f32 %v4090, %v4159
    %v4161 = vpop.f32.mrb[0].mxu0
    %v4162 = vadd.f32 %v4086, %v4161
    %v4163 = vpop.f32.mrb[0].mxu0
    %v4164 = vadd.f32 %v4090, %v4163
    %4165 = vmatprep.mubr.bf16.mxu0 %v3948
    %4166 = vmatmul.mubr.bf16.gmra.mrb[0].mxu0 %v3947
    %v4167 = vpop.f32.mrb[0].mxu0
    %v4168 = vadd.f32 %v4086, %v4167
    %v4169 = vpop.f32.mrb[0].mxu0
    %v4170 = vadd.f32 %v4090, %v4169
    %v4171 = vpop.f32.mrb[0].mxu0
    %v4172 = vadd.f32 %v4086, %v4171
    %v4173 = vpop.f32.mrb[0].mxu0
    %v4174 = vadd.f32 %v4090, %v4173
    %4175 = vmatprep.mubr.bf16.mxu0 %v3950
    %4176 = vmatmul.mubr.bf16.gmra.mrb[0].mxu0 %v3949
    %v4177 = vpop.f32.mrb[0].mxu0
    %v4178 = vadd.f32 %v4086, %v4177
    %v4179 = vpop.f32.mrb[0].mxu0
    %v4180 = vadd.f32 %v4090, %v4179
    %v4181 = vpop.f32.mrb[0].mxu0
    %v4182 = vadd.f32 %v4086, %v4181
    %v4183 = vpop.f32.mrb[0].mxu0
    %v4184 = vadd.f32 %v4090, %v4183
    %4185 = vmatprep.mubr.bf16.mxu0 %v3952
    %4186 = vmatmul.mubr.bf16.gmra.mrb[0].mxu0 %v3951
    %v4187 = vpop.f32.mrb[0].mxu0
    %v4188 = vadd.f32 %v4086, %v4187
    %v4189 = vpop.f32.mrb[0].mxu0
    %v4190 = vadd.f32 %v4090, %v4189
    %v4191 = vpop.f32.mrb[0].mxu0
    %v4192 = vadd.f32 %v4086, %v4191
    %v4193 = vpop.f32.mrb[0].mxu0
    %v4194 = vadd.f32 %v4090, %v4193
    %4195 = vdwg.mxu0
    %4196 = vmatprep.subr.bf16.mxu0 %v3956
    %4197 = vmatpush1.bf16.msra.mxu0 %v3955
    %4198 = vmatprep.subr.bf16.mxu0 %v3964
    %4199 = vmatpush1.bf16.msra.mxu0 %v3963
    %4200 = vmatprep.subr.bf16.mxu0 %v3972
    %4201 = vmatpush1.bf16.msra.mxu0 %v3971
    %4202 = vmatprep.subr.bf16.mxu0 %v3980
    %4203 = vmatpush1.bf16.msra.mxu0 %v3979
    %4204 = vmatprep.subr.bf16.mxu0 %v3988
    %4205 = vmatpush1.bf16.msra.mxu0 %v3987
    %4206 = vmatprep.subr.bf16.mxu0 %v3996
    %4207 = vmatpush1.bf16.msra.mxu0 %v3995
    %4208 = vmatprep.subr.bf16.mxu0 %v4004
    %4209 = vmatpush1.bf16.msra.mxu0 %v4003
    %4210 = vmatprep.subr.bf16.mxu0 %v4012
    %4211 = vmatpush1.bf16.msra.mxu0 %v4011
    %4212 = vmatprep.subr.bf16.mxu0 %v4020
    %4213 = vmatpush1.bf16.msra.mxu0 %v4019
    %4214 = vmatprep.subr.bf16.mxu0 %v4028
    %4215 = vmatpush1.bf16.msra.mxu0 %v4027
    %4216 = vmatprep.subr.bf16.mxu0 %v4036
    %4217 = vmatpush1.bf16.msra.mxu0 %v4035
    %4218 = vmatprep.subr.bf16.mxu0 %v4044
    %4219 = vmatpush1.bf16.msra.mxu0 %v4043
    %4220 = vmatprep.subr.bf16.mxu0 %v4052
    %4221 = vmatpush1.bf16.msra.mxu0 %v4051
    %4222 = vmatprep.subr.bf16.mxu0 %v4060
    %4223 = vmatpush1.bf16.msra.mxu0 %v4059
    %4224 = vmatprep.subr.bf16.mxu0 %v4068
    %4225 = vmatpush1.bf16.msra.mxu0 %v4067
    %4226 = vmatprep.subr.bf16.mxu0 %v4076
    %4227 = vmatpush1.bf16.msra.mxu0 %v4075
    %4228 = vmatprep.mubr.bf16.mxu0 %v3946
    %4229 = vmatmul.mubr.bf16.gmra.mrb[0].mxu0 %v3945
    %v4230 = vpop.f32.mrb[0].mxu0
    %v4231 = vadd.f32 %v4094, %v4230
    %v4232 = vpop.f32.mrb[0].mxu0
    %v4233 = vadd.f32 %v4098, %v4232
    %v4234 = vpop.f32.mrb[0].mxu0
    %v4235 = vadd.f32 %v4094, %v4234
    %v4236 = vpop.f32.mrb[0].mxu0
    %v4237 = vadd.f32 %v4098, %v4236
    %4238 = vmatprep.mubr.bf16.mxu0 %v3948
    %4239 = vmatmul.mubr.bf16.gmra.mrb[0].mxu0 %v3947
    %v4240 = vpop.f32.mrb[0].mxu0
    %v4241 = vadd.f32 %v4094, %v4240
    %v4242 = vpop.f32.mrb[0].mxu0
    %v4243 = vadd.f32 %v4098, %v4242
    %v4244 = vpop.f32.mrb[0].mxu0
    %v4245 = vadd.f32 %v4094, %v4244
    %v4246 = vpop.f32.mrb[0].mxu0
    %v4247 = vadd.f32 %v4098, %v4246
    %4248 = vmatprep.mubr.bf16.mxu0 %v3950
    %4249 = vmatmul.mubr.bf16.gmra.mrb[0].mxu0 %v3949
    %v4250 = vpop.f32.mrb[0].mxu0
    %v4251 = vadd.f32 %v4094, %v4250
    %v4252 = vpop.f32.mrb[0].mxu0
    %v4253 = vadd.f32 %v4098, %v4252
    %v4254 = vpop.f32.mrb[0].mxu0
    %v4255 = vadd.f32 %v4094, %v4254
    %v4256 = vpop.f32.mrb[0].mxu0
    %v4257 = vadd.f32 %v4098, %v4256
    %4258 = vmatprep.mubr.bf16.mxu0 %v3952
    %4259 = vmatmul.mubr.bf16.gmra.mrb[0].mxu0 %v3951
    %v4260 = vpop.f32.mrb[0].mxu0
    %v4261 = vadd.f32 %v4094, %v4260
    %v4262 = vpop.f32.mrb[0].mxu0
    %v4263 = vadd.f32 %v4098, %v4262
    %v4264 = vpop.f32.mrb[0].mxu0
    %v4265 = vadd.f32 %v4094, %v4264
    %v4266 = vpop.f32.mrb[0].mxu0
    %v4267 = vadd.f32 %v4098, %v4266
    %4268 = vdwg.mxu0
    %4269 = vmatprep.subr.bf16.mxu0 %v3958
    %4270 = vmatpush1.bf16.msra.mxu0 %v3957
    %4271 = vmatprep.subr.bf16.mxu0 %v3966
    %4272 = vmatpush1.bf16.msra.mxu0 %v3965
    %4273 = vmatprep.subr.bf16.mxu0 %v3974
    %4274 = vmatpush1.bf16.msra.mxu0 %v3973
    %4275 = vmatprep.subr.bf16.mxu0 %v3982
    %4276 = vmatpush1.bf16.msra.mxu0 %v3981
    %4277 = vmatprep.subr.bf16.mxu0 %v3990
    %4278 = vmatpush1.bf16.msra.mxu0 %v3989
    %4279 = vmatprep.subr.bf16.mxu0 %v3998
    %4280 = vmatpush1.bf16.msra.mxu0 %v3997
    %4281 = vmatprep.subr.bf16.mxu0 %v4006
    %4282 = vmatpush1.bf16.msra.mxu0 %v4005
    %4283 = vmatprep.subr.bf16.mxu0 %v4014
    %4284 = vmatpush1.bf16.msra.mxu0 %v4013
    %4285 = vmatprep.subr.bf16.mxu0 %v4022
    %4286 = vmatpush1.bf16.msra.mxu0 %v4021
    %4287 = vmatprep.subr.bf16.mxu0 %v4030
    %4288 = vmatpush1.bf16.msra.mxu0 %v4029
    %4289 = vmatprep.subr.bf16.mxu0 %v4038
    %4290 = vmatpush1.bf16.msra.mxu0 %v4037
    %4291 = vmatprep.subr.bf16.mxu0 %v4046
    %4292 = vmatpush1.bf16.msra.mxu0 %v4045
    %4293 = vmatprep.subr.bf16.mxu0 %v4054
    %4294 = vmatpush1.bf16.msra.mxu0 %v4053
    %4295 = vmatprep.subr.bf16.mxu0 %v4062
    %4296 = vmatpush1.bf16.msra.mxu0 %v4061
    %4297 = vmatprep.subr.bf16.mxu0 %v4070
    %4298 = vmatpush1.bf16.msra.mxu0 %v4069
    %4299 = vmatprep.subr.bf16.mxu0 %v4078
    %4300 = vmatpush1.bf16.msra.mxu0 %v4077
    %4301 = vmatprep.mubr.bf16.mxu0 %v3946
    %4302 = vmatmul.mubr.bf16.gmra.mrb[0].mxu0 %v3945
    %v4303 = vpop.f32.mrb[0].mxu0
    %v4304 = vadd.f32 %v4102, %v4303
    %v4305 = vpop.f32.mrb[0].mxu0
    %v4306 = vadd.f32 %v4106, %v4305
    %v4307 = vpop.f32.mrb[0].mxu0
    %v4308 = vadd.f32 %v4102, %v4307
    %v4309 = vpop.f32.mrb[0].mxu0
    %v4310 = vadd.f32 %v4106, %v4309
    %4311 = vmatprep.mubr.bf16.mxu0 %v3948
    %4312 = vmatmul.mubr.bf16.gmra.mrb[0].mxu0 %v3947
    %v4313 = vpop.f32.mrb[0].mxu0
    %v4314 = vadd.f32 %v4102, %v4313
    %v4315 = vpop.f32.mrb[0].mxu0
    %v4316 = vadd.f32 %v4106, %v4315
    %v4317 = vpop.f32.mrb[0].mxu0
    %v4318 = vadd.f32 %v4102, %v4317
    %v4319 = vpop.f32.mrb[0].mxu0
    %v4320 = vadd.f32 %v4106, %v4319
    %4321 = vmatprep.mubr.bf16.mxu0 %v3950
    %4322 = vmatmul.mubr.bf16.gmra.mrb[0].mxu0 %v3949
    %v4323 = vpop.f32.mrb[0].mxu0
    %v4324 = vadd.f32 %v4102, %v4323
    %v4325 = vpop.f32.mrb[0].mxu0
    %v4326 = vadd.f32 %v4106, %v4325
    %v4327 = vpop.f32.mrb[0].mxu0
    %v4328 = vadd.f32 %v4102, %v4327
    %v4329 = vpop.f32.mrb[0].mxu0
    %v4330 = vadd.f32 %v4106, %v4329
    %4331 = vmatprep.mubr.bf16.mxu0 %v3952
    %4332 = vmatmul.mubr.bf16.gmra.mrb[0].mxu0 %v3951
    %v4333 = vpop.f32.mrb[0].mxu0
    %v4334 = vadd.f32 %v4102, %v4333
    %v4335 = vpop.f32.mrb[0].mxu0
    %v4336 = vadd.f32 %v4106, %v4335
    %v4337 = vpop.f32.mrb[0].mxu0
    %v4338 = vadd.f32 %v4102, %v4337
    %v4339 = vpop.f32.mrb[0].mxu0
    %v4340 = vadd.f32 %v4106, %v4339
    %4341 = vdwg.mxu0
    %4342 = vmatprep.subr.bf16.mxu0 %v3960
    %4343 = vmatpush1.bf16.msra.mxu0 %v3959
    %4344 = vmatprep.subr.bf16.mxu0 %v3968
    %4345 = vmatpush1.bf16.msra.mxu0 %v3967
    %4346 = vmatprep.subr.bf16.mxu0 %v3976
    %4347 = vmatpush1.bf16.msra.mxu0 %v3975
    %4348 = vmatprep.subr.bf16.mxu0 %v3984
    %4349 = vmatpush1.bf16.msra.mxu0 %v3983
    %4350 = vmatprep.subr.bf16.mxu0 %v3992
    %4351 = vmatpush1.bf16.msra.mxu0 %v3991
    %4352 = vmatprep.subr.bf16.mxu0 %v4000
    %4353 = vmatpush1.bf16.msra.mxu0 %v3999
    %4354 = vmatprep.subr.bf16.mxu0 %v4008
    %4355 = vmatpush1.bf16.msra.mxu0 %v4007
    %4356 = vmatprep.subr.bf16.mxu0 %v4016
    %4357 = vmatpush1.bf16.msra.mxu0 %v4015
    %4358 = vmatprep.subr.bf16.mxu0 %v4024
    %4359 = vmatpush1.bf16.msra.mxu0 %v4023
    %4360 = vmatprep.subr.bf16.mxu0 %v4032
    %4361 = vmatpush1.bf16.msra.mxu0 %v4031
    %4362 = vmatprep.subr.bf16.mxu0 %v4040
    %4363 = vmatpush1.bf16.msra.mxu0 %v4039
    %4364 = vmatprep.subr.bf16.mxu0 %v4048
    %4365 = vmatpush1.bf16.msra.mxu0 %v4047
    %4366 = vmatprep.subr.bf16.mxu0 %v4056
    %4367 = vmatpush1.bf16.msra.mxu0 %v4055
    %4368 = vmatprep.subr.bf16.mxu0 %v4064
    %4369 = vmatpush1.bf16.msra.mxu0 %v4063
    %4370 = vmatprep.subr.bf16.mxu0 %v4072
    %4371 = vmatpush1.bf16.msra.mxu0 %v4071
    %4372 = vmatprep.subr.bf16.mxu0 %v4080
    %4373 = vmatpush1.bf16.msra.mxu0 %v4079
    %4374 = vmatprep.mubr.bf16.mxu0 %v3946
    %4375 = vmatmul.mubr.bf16.gmra.mrb[0].mxu0 %v3945
    %v4376 = vpop.f32.mrb[0].mxu0
    %v4377 = vadd.f32 %v4110, %v4376
    %v4378 = vpop.f32.mrb[0].mxu0
    %v4379 = vadd.f32 %v4114, %v4378
    %v4380 = vpop.f32.mrb[0].mxu0
    %v4381 = vadd.f32 %v4110, %v4380
    %v4382 = vpop.f32.mrb[0].mxu0
    %v4383 = vadd.f32 %v4114, %v4382
    %4384 = vmatprep.mubr.bf16.mxu0 %v3948
    %4385 = vmatmul.mubr.bf16.gmra.mrb[0].mxu0 %v3947
    %v4386 = vpop.f32.mrb[0].mxu0
    %v4387 = vadd.f32 %v4110, %v4386
    %v4388 = vpop.f32.mrb[0].mxu0
    %v4389 = vadd.f32 %v4114, %v4388
    %v4390 = vpop.f32.mrb[0].mxu0
    %v4391 = vadd.f32 %v4110, %v4390
    %v4392 = vpop.f32.mrb[0].mxu0
    %v4393 = vadd.f32 %v4114, %v4392
    %4394 = vmatprep.mubr.bf16.mxu0 %v3950
    %4395 = vmatmul.mubr.bf16.gmra.mrb[0].mxu0 %v3949
    %v4396 = vpop.f32.mrb[0].mxu0
    %v4397 = vadd.f32 %v4110, %v4396
    %v4398 = vpop.f32.mrb[0].mxu0
    %v4399 = vadd.f32 %v4114, %v4398
    %v4400 = vpop.f32.mrb[0].mxu0
    %v4401 = vadd.f32 %v4110, %v4400
    %v4402 = vpop.f32.mrb[0].mxu0
    %v4403 = vadd.f32 %v4114, %v4402
    %4404 = vmatprep.mubr.bf16.mxu0 %v3952
    %4405 = vmatmul.mubr.bf16.gmra.mrb[0].mxu0 %v3951
    %v4406 = vpop.f32.mrb[0].mxu0
    %v4407 = vadd.f32 %v4110, %v4406
    %v4408 = vpop.f32.mrb[0].mxu0
    %v4409 = vadd.f32 %v4114, %v4408
    %v4410 = vpop.f32.mrb[0].mxu0
    %v4411 = vadd.f32 %v4110, %v4410
    %v4412 = vpop.f32.mrb[0].mxu0
    %v4413 = vadd.f32 %v4114, %v4412
    %4414 = vdwg.mxu0
    %4415 = vst [vmem:[#allocation5] sm:$0xff] %v4158
    %4416 = vst [vmem:[#allocation5 + $0x8] sm:$0xff] %v4160
    %4417 = vst [vmem:[#allocation5 + $0x10] sm:$0xff] %v4231
    %4418 = vst [vmem:[#allocation5 + $0x18] sm:$0xff] %v4233
    %4419 = vst [vmem:[#allocation5 + $0x20] sm:$0xff] %v4304
    %4420 = vst [vmem:[#allocation5 + $0x28] sm:$0xff] %v4306
    %4421 = vst [vmem:[#allocation5 + $0x30] sm:$0xff] %v4377
    %4422 = vst [vmem:[#allocation5 + $0x38] sm:$0xff] %v4379
    %4423 = vst [vmem:[#allocation5 + $0x40] sm:$0xff] %v4162
    %4424 = vst [vmem:[#allocation5 + $0x48] sm:$0xff] %v4164
    %4425 = vst [vmem:[#allocation5 + $0x50] sm:$0xff] %v4235
    %4426 = vst [vmem:[#allocation5 + $0x58] sm:$0xff] %v4237
    %4427 = vst [vmem:[#allocation5 + $0x60] sm:$0xff] %v4308
    %4428 = vst [vmem:[#allocation5 + $0x68] sm:$0xff] %v4310
    %4429 = vst [vmem:[#allocation5 + $0x70] sm:$0xff] %v4381
    %4430 = vst [vmem:[#allocation5 + $0x78] sm:$0xff] %v4383
    %4431 = vst [vmem:[#allocation5 + $0x80] sm:$0xff] %v4168
    %4432 = vst [vmem:[#allocation5 + $0x88] sm:$0xff] %v4170
    %4433 = vst [vmem:[#allocation5 + $0x90] sm:$0xff] %v4241
    %4434 = vst [vmem:[#allocation5 + $0x98] sm:$0xff] %v4243
    %4435 = vst [vmem:[#allocation5 + $0xa0] sm:$0xff] %v4314
    %4436 = vst [vmem:[#allocation5 + $0xa8] sm:$0xff] %v4316
    %4437 = vst [vmem:[#allocation5 + $0xb0] sm:$0xff] %v4387
    %4438 = vst [vmem:[#allocation5 + $0xb8] sm:$0xff] %v4389
    %4439 = vst [vmem:[#allocation5 + $0xc0] sm:$0xff] %v4172
    %4440 = vst [vmem:[#allocation5 + $0xc8] sm:$0xff] %v4174
    %4441 = vst [vmem:[#allocation5 + $0xd0] sm:$0xff] %v4245
    %4442 = vst [vmem:[#allocation5 + $0xd8] sm:$0xff] %v4247
    %4443 = vst [vmem:[#allocation5 + $0xe0] sm:$0xff] %v4318
    %4444 = vst [vmem:[#allocation5 + $0xe8] sm:$0xff] %v4320
    %4445 = vst [vmem:[#allocation5 + $0xf0] sm:$0xff] %v4391
    %4446 = vst [vmem:[#allocation5 + $0xf8] sm:$0xff] %v4393
    %4447 = vst [vmem:[#allocation5 + $0x100] sm:$0xff] %v4178
    %4448 = vst [vmem:[#allocation5 + $0x108] sm:$0xff] %v4180
    %4449 = vst [vmem:[#allocation5 + $0x110] sm:$0xff] %v4251
    %4450 = vst [vmem:[#allocation5 + $0x118] sm:$0xff] %v4253
    %4451 = vst [vmem:[#allocation5 + $0x120] sm:$0xff] %v4324
    %4452 = vst [vmem:[#allocation5 + $0x128] sm:$0xff] %v4326
    %4453 = vst [vmem:[#allocation5 + $0x130] sm:$0xff] %v4397
    %4454 = vst [vmem:[#allocation5 + $0x138] sm:$0xff] %v4399
    %4455 = vst [vmem:[#allocation5 + $0x140] sm:$0xff] %v4182
    %4456 = vst [vmem:[#allocation5 + $0x148] sm:$0xff] %v4184
    %4457 = vst [vmem:[#allocation5 + $0x150] sm:$0xff] %v4255
    %4458 = vst [vmem:[#allocation5 + $0x158] sm:$0xff] %v4257
    %4459 = vst [vmem:[#allocation5 + $0x160] sm:$0xff] %v4328
    %4460 = vst [vmem:[#allocation5 + $0x168] sm:$0xff] %v4330
    %4461 = vst [vmem:[#allocation5 + $0x170] sm:$0xff] %v4401
    %4462 = vst [vmem:[#allocation5 + $0x178] sm:$0xff] %v4403
    %4463 = vst [vmem:[#allocation5 + $0x180] sm:$0xff] %v4188
    %4464 = vst [vmem:[#allocation5 + $0x188] sm:$0xff] %v4190
    %4465 = vst [vmem:[#allocation5 + $0x190] sm:$0xff] %v4261
    %4466 = vst [vmem:[#allocation5 + $0x198] sm:$0xff] %v4263
    %4467 = vst [vmem:[#allocation5 + $0x1a0] sm:$0xff] %v4334
    %4468 = vst [vmem:[#allocation5 + $0x1a8] sm:$0xff] %v4336
    %4469 = vst [vmem:[#allocation5 + $0x1b0] sm:$0xff] %v4407
    %4470 = vst [vmem:[#allocation5 + $0x1b8] sm:$0xff] %v4409
    %4471 = vst [vmem:[#allocation5 + $0x1c0] sm:$0xff] %v4192
    %4472 = vst [vmem:[#allocation5 + $0x1c8] sm:$0xff] %v4194
    %4473 = vst [vmem:[#allocation5 + $0x1d0] sm:$0xff] %v4265
    %4474 = vst [vmem:[#allocation5 + $0x1d8] sm:$0xff] %v4267
    %4475 = vst [vmem:[#allocation5 + $0x1e0] sm:$0xff] %v4338
    %4476 = vst [vmem:[#allocation5 + $0x1e8] sm:$0xff] %v4340
    %4477 = vst [vmem:[#allocation5 + $0x1f0] sm:$0xff] %v4411
    %4478 = vst [vmem:[#allocation5 + $0x1f8] sm:$0xff] %v4413
    %s4479 = sshll.u32 %s3926, 4
    %4480 = dma.done %s124, %s4479
    %v4481 = vld [vmem:[#allocation3] sm:$0xff]
    %v4482 = vld [vmem:[#allocation3 + $0x8] sm:$0xff]
    %v4483 = vld [vmem:[#allocation3 + $0x10] sm:$0xff]
    %v4484 = vld [vmem:[#allocation3 + $0x18] sm:$0xff]
    %v4485 = vld [vmem:[#allocation3 + $0x20] sm:$0xff]
    %v4486 = vld [vmem:[#allocation3 + $0x28] sm:$0xff]
    %v4487 = vld [vmem:[#allocation3 + $0x30] sm:$0xff]
    %v4488 = vld [vmem:[#allocation3 + $0x38] sm:$0xff]
    %v4489 = vld [vmem:[#allocation3 + $0x40] sm:$0xff]
    %v4490 = vld [vmem:[#allocation3 + $0x48] sm:$0xff]
    %v4491 = vld [vmem:[#allocation3 + $0x50] sm:$0xff]
    %v4492 = vld [vmem:[#allocation3 + $0x58] sm:$0xff]
    %v4493 = vld [vmem:[#allocation3 + $0x60] sm:$0xff]
    %v4494 = vld [vmem:[#allocation3 + $0x68] sm:$0xff]
    %v4495 = vld [vmem:[#allocation3 + $0x70] sm:$0xff]
    %v4496 = vld [vmem:[#allocation3 + $0x78] sm:$0xff]
    %v4497 = vld [vmem:[#allocation3 + $0x80] sm:$0xff]
    %v4498 = vld [vmem:[#allocation3 + $0x88] sm:$0xff]
    %v4499 = vld [vmem:[#allocation3 + $0x90] sm:$0xff]
    %v4500 = vld [vmem:[#allocation3 + $0x98] sm:$0xff]
    %v4501 = vld [vmem:[#allocation3 + $0xa0] sm:$0xff]
    %v4502 = vld [vmem:[#allocation3 + $0xa8] sm:$0xff]
    %v4503 = vld [vmem:[#allocation3 + $0xb0] sm:$0xff]
    %v4504 = vld [vmem:[#allocation3 + $0xb8] sm:$0xff]
    %v4505 = vld [vmem:[#allocation3 + $0xc0] sm:$0xff]
    %v4506 = vld [vmem:[#allocation3 + $0xc8] sm:$0xff]
    %v4507 = vld [vmem:[#allocation3 + $0xd0] sm:$0xff]
    %v4508 = vld [vmem:[#allocation3 + $0xd8] sm:$0xff]
    %v4509 = vld [vmem:[#allocation3 + $0xe0] sm:$0xff]
    %v4510 = vld [vmem:[#allocation3 + $0xe8] sm:$0xff]
    %v4511 = vld [vmem:[#allocation3 + $0xf0] sm:$0xff]
    %v4512 = vld [vmem:[#allocation3 + $0xf8] sm:$0xff]
    %v4513 = vld [vmem:[#allocation3 + $0x100] sm:$0xff]
    %v4514 = vld [vmem:[#allocation3 + $0x108] sm:$0xff]
    %v4515 = vld [vmem:[#allocation3 + $0x110] sm:$0xff]
    %v4516 = vld [vmem:[#allocation3 + $0x118] sm:$0xff]
    %v4517 = vld [vmem:[#allocation3 + $0x120] sm:$0xff]
    %v4518 = vld [vmem:[#allocation3 + $0x128] sm:$0xff]
    %v4519 = vld [vmem:[#allocation3 + $0x130] sm:$0xff]
    %v4520 = vld [vmem:[#allocation3 + $0x138] sm:$0xff]
    %v4521 = vld [vmem:[#allocation3 + $0x140] sm:$0xff]
    %v4522 = vld [vmem:[#allocation3 + $0x148] sm:$0xff]
    %v4523 = vld [vmem:[#allocation3 + $0x150] sm:$0xff]
    %v4524 = vld [vmem:[#allocation3 + $0x158] sm:$0xff]
    %v4525 = vld [vmem:[#allocation3 + $0x160] sm:$0xff]
    %v4526 = vld [vmem:[#allocation3 + $0x168] sm:$0xff]
    %v4527 = vld [vmem:[#allocation3 + $0x170] sm:$0xff]
    %v4528 = vld [vmem:[#allocation3 + $0x178] sm:$0xff]
    %v4529 = vld [vmem:[#allocation3 + $0x180] sm:$0xff]
    %v4530 = vld [vmem:[#allocation3 + $0x188] sm:$0xff]
    %v4531 = vld [vmem:[#allocation3 + $0x190] sm:$0xff]
    %v4532 = vld [vmem:[#allocation3 + $0x198] sm:$0xff]
    %v4533 = vld [vmem:[#allocation3 + $0x1a0] sm:$0xff]
    %v4534 = vld [vmem:[#allocation3 + $0x1a8] sm:$0xff]
    %v4535 = vld [vmem:[#allocation3 + $0x1b0] sm:$0xff]
    %v4536 = vld [vmem:[#allocation3 + $0x1b8] sm:$0xff]
    %v4537 = vld [vmem:[#allocation3 + $0x1c0] sm:$0xff]
    %v4538 = vld [vmem:[#allocation3 + $0x1c8] sm:$0xff]
    %v4539 = vld [vmem:[#allocation3 + $0x1d0] sm:$0xff]
    %v4540 = vld [vmem:[#allocation3 + $0x1d8] sm:$0xff]
    %v4541 = vld [vmem:[#allocation3 + $0x1e0] sm:$0xff]
    %v4542 = vld [vmem:[#allocation3 + $0x1e8] sm:$0xff]
    %v4543 = vld [vmem:[#allocation3 + $0x1f0] sm:$0xff]
    %v4544 = vld [vmem:[#allocation3 + $0x1f8] sm:$0xff]
    %v4545 = vld [vmem:[#allocation3 + $0x200] sm:$0xff]
    %v4546 = vld [vmem:[#allocation3 + $0x208] sm:$0xff]
    %v4547 = vld [vmem:[#allocation3 + $0x210] sm:$0xff]
    %v4548 = vld [vmem:[#allocation3 + $0x218] sm:$0xff]
    %v4549 = vld [vmem:[#allocation3 + $0x220] sm:$0xff]
    %v4550 = vld [vmem:[#allocation3 + $0x228] sm:$0xff]
    %v4551 = vld [vmem:[#allocation3 + $0x230] sm:$0xff]
    %v4552 = vld [vmem:[#allocation3 + $0x238] sm:$0xff]
    %v4553 = vld [vmem:[#allocation3 + $0x240] sm:$0xff]
    %v4554 = vld [vmem:[#allocation3 + $0x248] sm:$0xff]
    %v4555 = vld [vmem:[#allocation3 + $0x250] sm:$0xff]
    %v4556 = vld [vmem:[#allocation3 + $0x258] sm:$0xff]
    %v4557 = vld [vmem:[#allocation3 + $0x260] sm:$0xff]
    %v4558 = vld [vmem:[#allocation3 + $0x268] sm:$0xff]
    %v4559 = vld [vmem:[#allocation3 + $0x270] sm:$0xff]
    %v4560 = vld [vmem:[#allocation3 + $0x278] sm:$0xff]
    %v4561 = vld [vmem:[#allocation3 + $0x280] sm:$0xff]
    %v4562 = vld [vmem:[#allocation3 + $0x288] sm:$0xff]
    %v4563 = vld [vmem:[#allocation3 + $0x290] sm:$0xff]
    %v4564 = vld [vmem:[#allocation3 + $0x298] sm:$0xff]
    %v4565 = vld [vmem:[#allocation3 + $0x2a0] sm:$0xff]
    %v4566 = vld [vmem:[#allocation3 + $0x2a8] sm:$0xff]
    %v4567 = vld [vmem:[#allocation3 + $0x2b0] sm:$0xff]
    %v4568 = vld [vmem:[#allocation3 + $0x2b8] sm:$0xff]
    %v4569 = vld [vmem:[#allocation3 + $0x2c0] sm:$0xff]
    %v4570 = vld [vmem:[#allocation3 + $0x2c8] sm:$0xff]
    %v4571 = vld [vmem:[#allocation3 + $0x2d0] sm:$0xff]
    %v4572 = vld [vmem:[#allocation3 + $0x2d8] sm:$0xff]
    %v4573 = vld [vmem:[#allocation3 + $0x2e0] sm:$0xff]
    %v4574 = vld [vmem:[#allocation3 + $0x2e8] sm:$0xff]
    %v4575 = vld [vmem:[#allocation3 + $0x2f0] sm:$0xff]
    %v4576 = vld [vmem:[#allocation3 + $0x2f8] sm:$0xff]
    %v4577 = vld [vmem:[#allocation3 + $0x300] sm:$0xff]
    %v4578 = vld [vmem:[#allocation3 + $0x308] sm:$0xff]
    %v4579 = vld [vmem:[#allocation3 + $0x310] sm:$0xff]
    %v4580 = vld [vmem:[#allocation3 + $0x318] sm:$0xff]
    %v4581 = vld [vmem:[#allocation3 + $0x320] sm:$0xff]
    %v4582 = vld [vmem:[#allocation3 + $0x328] sm:$0xff]
    %v4583 = vld [vmem:[#allocation3 + $0x330] sm:$0xff]
    %v4584 = vld [vmem:[#allocation3 + $0x338] sm:$0xff]
    %v4585 = vld [vmem:[#allocation3 + $0x340] sm:$0xff]
    %v4586 = vld [vmem:[#allocation3 + $0x348] sm:$0xff]
    %v4587 = vld [vmem:[#allocation3 + $0x350] sm:$0xff]
    %v4588 = vld [vmem:[#allocation3 + $0x358] sm:$0xff]
    %v4589 = vld [vmem:[#allocation3 + $0x360] sm:$0xff]
    %v4590 = vld [vmem:[#allocation3 + $0x368] sm:$0xff]
    %v4591 = vld [vmem:[#allocation3 + $0x370] sm:$0xff]
    %v4592 = vld [vmem:[#allocation3 + $0x378] sm:$0xff]
    %v4593 = vld [vmem:[#allocation3 + $0x380] sm:$0xff]
    %v4594 = vld [vmem:[#allocation3 + $0x388] sm:$0xff]
    %v4595 = vld [vmem:[#allocation3 + $0x390] sm:$0xff]
    %v4596 = vld [vmem:[#allocation3 + $0x398] sm:$0xff]
    %v4597 = vld [vmem:[#allocation3 + $0x3a0] sm:$0xff]
    %v4598 = vld [vmem:[#allocation3 + $0x3a8] sm:$0xff]
    %v4599 = vld [vmem:[#allocation3 + $0x3b0] sm:$0xff]
    %v4600 = vld [vmem:[#allocation3 + $0x3b8] sm:$0xff]
    %v4601 = vld [vmem:[#allocation3 + $0x3c0] sm:$0xff]
    %v4602 = vld [vmem:[#allocation3 + $0x3c8] sm:$0xff]
    %v4603 = vld [vmem:[#allocation3 + $0x3d0] sm:$0xff]
    %v4604 = vld [vmem:[#allocation3 + $0x3d8] sm:$0xff]
    %v4605 = vld [vmem:[#allocation3 + $0x3e0] sm:$0xff]
    %v4606 = vld [vmem:[#allocation3 + $0x3e8] sm:$0xff]
    %v4607 = vld [vmem:[#allocation3 + $0x3f0] sm:$0xff]
    %v4608 = vld [vmem:[#allocation3 + $0x3f8] sm:$0xff]
    %v4609 = vld [vmem:[#allocation5] sm:$0xff]
    %v4610 = vld [vmem:[#allocation5 + $0x8] sm:$0xff]
    %v4611 = vld [vmem:[#allocation5 + $0x10] sm:$0xff]
    %v4612 = vld [vmem:[#allocation5 + $0x18] sm:$0xff]
    %v4613 = vld [vmem:[#allocation5 + $0x20] sm:$0xff]
    %v4614 = vld [vmem:[#allocation5 + $0x28] sm:$0xff]
    %v4615 = vld [vmem:[#allocation5 + $0x30] sm:$0xff]
    %v4616 = vld [vmem:[#allocation5 + $0x38] sm:$0xff]
    %4617 = vmatprep.subr.bf16.mxu0 %v4482
    %4618 = vmatpush1.bf16.msra.mxu0 %v4481
    %4619 = vmatprep.subr.bf16.mxu0 %v4490
    %4620 = vmatpush1.bf16.msra.mxu0 %v4489
    %4621 = vmatprep.subr.bf16.mxu0 %v4498
    %4622 = vmatpush1.bf16.msra.mxu0 %v4497
    %4623 = vmatprep.subr.bf16.mxu0 %v4506
    %4624 = vmatpush1.bf16.msra.mxu0 %v4505
    %4625 = vmatprep.subr.bf16.mxu0 %v4514
    %4626 = vmatpush1.bf16.msra.mxu0 %v4513
    %4627 = vmatprep.subr.bf16.mxu0 %v4522
    %4628 = vmatpush1.bf16.msra.mxu0 %v4521
    %4629 = vmatprep.subr.bf16.mxu0 %v4530
    %4630 = vmatpush1.bf16.msra.mxu0 %v4529
    %4631 = vmatprep.subr.bf16.mxu0 %v4538
    %4632 = vmatpush1.bf16.msra.mxu0 %v4537
    %4633 = vmatprep.subr.bf16.mxu0 %v4546
    %4634 = vmatpush1.bf16.msra.mxu0 %v4545
    %4635 = vmatprep.subr.bf16.mxu0 %v4554
    %4636 = vmatpush1.bf16.msra.mxu0 %v4553
    %4637 = vmatprep.subr.bf16.mxu0 %v4562
    %4638 = vmatpush1.bf16.msra.mxu0 %v4561
    %4639 = vmatprep.subr.bf16.mxu0 %v4570
    %4640 = vmatpush1.bf16.msra.mxu0 %v4569
    %4641 = vmatprep.subr.bf16.mxu0 %v4578
    %4642 = vmatpush1.bf16.msra.mxu0 %v4577
    %4643 = vmatprep.subr.bf16.mxu0 %v4586
    %4644 = vmatpush1.bf16.msra.mxu0 %v4585
    %4645 = vmatprep.subr.bf16.mxu0 %v4594
    %4646 = vmatpush1.bf16.msra.mxu0 %v4593
    %4647 = vmatprep.subr.bf16.mxu0 %v4602
    %4648 = vmatpush1.bf16.msra.mxu0 %v4601
    %4649 = vmatprep.mubr.bf16.mxu0 0
    %4650 = vmatmul.mubr.bf16.gmra.mrb[0].mxu0 0
    %v4651 = vpop.f32.mrb[0].mxu0
    %v4652 = vadd.f32 0.0, %v4651
    %v4653 = vpop.f32.mrb[0].mxu0
    %v4654 = vadd.f32 0.0, %v4653
    %v4655 = vpop.f32.mrb[0].mxu0
    %v4656 = vpop.f32.mrb[0].mxu0
    %4657 = vdwg.mxu0
    %4658 = vmatprep.subr.bf16.mxu0 %v4484
    %4659 = vmatpush1.bf16.msra.mxu0 %v4483
    %4660 = vmatprep.subr.bf16.mxu0 %v4492
    %4661 = vmatpush1.bf16.msra.mxu0 %v4491
    %4662 = vmatprep.subr.bf16.mxu0 %v4500
    %4663 = vmatpush1.bf16.msra.mxu0 %v4499
    %4664 = vmatprep.subr.bf16.mxu0 %v4508
    %4665 = vmatpush1.bf16.msra.mxu0 %v4507
    %4666 = vmatprep.subr.bf16.mxu0 %v4516
    %4667 = vmatpush1.bf16.msra.mxu0 %v4515
    %4668 = vmatprep.subr.bf16.mxu0 %v4524
    %4669 = vmatpush1.bf16.msra.mxu0 %v4523
    %4670 = vmatprep.subr.bf16.mxu0 %v4532
    %4671 = vmatpush1.bf16.msra.mxu0 %v4531
    %4672 = vmatprep.subr.bf16.mxu0 %v4540
    %4673 = vmatpush1.bf16.msra.mxu0 %v4539
    %4674 = vmatprep.subr.bf16.mxu0 %v4548
    %4675 = vmatpush1.bf16.msra.mxu0 %v4547
    %4676 = vmatprep.subr.bf16.mxu0 %v4556
    %4677 = vmatpush1.bf16.msra.mxu0 %v4555
    %4678 = vmatprep.subr.bf16.mxu0 %v4564
    %4679 = vmatpush1.bf16.msra.mxu0 %v4563
    %4680 = vmatprep.subr.bf16.mxu0 %v4572
    %4681 = vmatpush1.bf16.msra.mxu0 %v4571
    %4682 = vmatprep.subr.bf16.mxu0 %v4580
    %4683 = vmatpush1.bf16.msra.mxu0 %v4579
    %4684 = vmatprep.subr.bf16.mxu0 %v4588
    %4685 = vmatpush1.bf16.msra.mxu0 %v4587
    %4686 = vmatprep.subr.bf16.mxu0 %v4596
    %4687 = vmatpush1.bf16.msra.mxu0 %v4595
    %4688 = vmatprep.subr.bf16.mxu0 %v4604
    %4689 = vmatpush1.bf16.msra.mxu0 %v4603
    %4690 = vmatprep.mubr.bf16.mxu0 0
    %4691 = vmatmul.mubr.bf16.gmra.mrb[0].mxu0 0
    %v4692 = vpop.f32.mrb[0].mxu0
    %v4693 = vadd.f32 0.0, %v4692
    %v4694 = vpop.f32.mrb[0].mxu0
    %v4695 = vadd.f32 0.0, %v4694
    %v4696 = vpop.f32.mrb[0].mxu0
    %v4697 = vpop.f32.mrb[0].mxu0
    %4698 = vdwg.mxu0
    %4699 = vmatprep.subr.bf16.mxu0 %v4486
    %4700 = vmatpush1.bf16.msra.mxu0 %v4485
    %4701 = vmatprep.subr.bf16.mxu0 %v4494
    %4702 = vmatpush1.bf16.msra.mxu0 %v4493
    %4703 = vmatprep.subr.bf16.mxu0 %v4502
    %4704 = vmatpush1.bf16.msra.mxu0 %v4501
    %4705 = vmatprep.subr.bf16.mxu0 %v4510
    %4706 = vmatpush1.bf16.msra.mxu0 %v4509
    %4707 = vmatprep.subr.bf16.mxu0 %v4518
    %4708 = vmatpush1.bf16.msra.mxu0 %v4517
    %4709 = vmatprep.subr.bf16.mxu0 %v4526
    %4710 = vmatpush1.bf16.msra.mxu0 %v4525
    %4711 = vmatprep.subr.bf16.mxu0 %v4534
    %4712 = vmatpush1.bf16.msra.mxu0 %v4533
    %4713 = vmatprep.subr.bf16.mxu0 %v4542
    %4714 = vmatpush1.bf16.msra.mxu0 %v4541
    %4715 = vmatprep.subr.bf16.mxu0 %v4550
    %4716 = vmatpush1.bf16.msra.mxu0 %v4549
    %4717 = vmatprep.subr.bf16.mxu0 %v4558
    %4718 = vmatpush1.bf16.msra.mxu0 %v4557
    %4719 = vmatprep.subr.bf16.mxu0 %v4566
    %4720 = vmatpush1.bf16.msra.mxu0 %v4565
    %4721 = vmatprep.subr.bf16.mxu0 %v4574
    %4722 = vmatpush1.bf16.msra.mxu0 %v4573
    %4723 = vmatprep.subr.bf16.mxu0 %v4582
    %4724 = vmatpush1.bf16.msra.mxu0 %v4581
    %4725 = vmatprep.subr.bf16.mxu0 %v4590
    %4726 = vmatpush1.bf16.msra.mxu0 %v4589
    %4727 = vmatprep.subr.bf16.mxu0 %v4598
    %4728 = vmatpush1.bf16.msra.mxu0 %v4597
    %4729 = vmatprep.subr.bf16.mxu0 %v4606
    %4730 = vmatpush1.bf16.msra.mxu0 %v4605
    %4731 = vmatprep.mubr.bf16.mxu0 0
    %4732 = vmatmul.mubr.bf16.gmra.mrb[0].mxu0 0
    %v4733 = vpop.f32.mrb[0].mxu0
    %v4734 = vadd.f32 0.0, %v4733
    %v4735 = vpop.f32.mrb[0].mxu0
    %v4736 = vadd.f32 0.0, %v4735
    %v4737 = vpop.f32.mrb[0].mxu0
    %v4738 = vpop.f32.mrb[0].mxu0
    %4739 = vdwg.mxu0
    %4740 = vmatprep.subr.bf16.mxu0 %v4488
    %4741 = vmatpush1.bf16.msra.mxu0 %v4487
    %4742 = vmatprep.subr.bf16.mxu0 %v4496
    %4743 = vmatpush1.bf16.msra.mxu0 %v4495
    %4744 = vmatprep.subr.bf16.mxu0 %v4504
    %4745 = vmatpush1.bf16.msra.mxu0 %v4503
    %4746 = vmatprep.subr.bf16.mxu0 %v4512
    %4747 = vmatpush1.bf16.msra.mxu0 %v4511
    %4748 = vmatprep.subr.bf16.mxu0 %v4520
    %4749 = vmatpush1.bf16.msra.mxu0 %v4519
    %4750 = vmatprep.subr.bf16.mxu0 %v4528
    %4751 = vmatpush1.bf16.msra.mxu0 %v4527
    %4752 = vmatprep.subr.bf16.mxu0 %v4536
    %4753 = vmatpush1.bf16.msra.mxu0 %v4535
    %4754 = vmatprep.subr.bf16.mxu0 %v4544
    %4755 = vmatpush1.bf16.msra.mxu0 %v4543
    %4756 = vmatprep.subr.bf16.mxu0 %v4552
    %4757 = vmatpush1.bf16.msra.mxu0 %v4551
    %4758 = vmatprep.subr.bf16.mxu0 %v4560
    %4759 = vmatpush1.bf16.msra.mxu0 %v4559
    %4760 = vmatprep.subr.bf16.mxu0 %v4568
    %4761 = vmatpush1.bf16.msra.mxu0 %v4567
    %4762 = vmatprep.subr.bf16.mxu0 %v4576
    %4763 = vmatpush1.bf16.msra.mxu0 %v4575
    %4764 = vmatprep.subr.bf16.mxu0 %v4584
    %4765 = vmatpush1.bf16.msra.mxu0 %v4583
    %4766 = vmatprep.subr.bf16.mxu0 %v4592
    %4767 = vmatpush1.bf16.msra.mxu0 %v4591
    %4768 = vmatprep.subr.bf16.mxu0 %v4600
    %4769 = vmatpush1.bf16.msra.mxu0 %v4599
    %4770 = vmatprep.subr.bf16.mxu0 %v4608
    %4771 = vmatpush1.bf16.msra.mxu0 %v4607
    %4772 = vmatprep.mubr.bf16.mxu0 0
    %4773 = vmatmul.mubr.bf16.gmra.mrb[0].mxu0 0
    %v4774 = vpop.f32.mrb[0].mxu0
    %v4775 = vadd.f32 0.0, %v4774
    %v4776 = vpop.f32.mrb[0].mxu0
    %v4777 = vadd.f32 0.0, %v4776
    %v4778 = vpop.f32.mrb[0].mxu0
    %v4779 = vpop.f32.mrb[0].mxu0
    %4780 = vdwg.mxu0
    %v4781 = vadd.f32 %v4609, %v4652
    %v4782 = vadd.f32 %v4610, %v4654
    %v4783 = vadd.f32 %v4611, %v4693
    %v4784 = vadd.f32 %v4612, %v4695
    %v4785 = vadd.f32 %v4613, %v4734
    %v4786 = vadd.f32 %v4614, %v4736
    %v4787 = vadd.f32 %v4615, %v4775
    %v4788 = vadd.f32 %v4616, %v4777
    %v4789 = vxor.u32 %v4781, 2147483648
    %v4790 = vxor.u32 %v4782, 2147483648
    %v4791 = vmul.f32 %v4789, 1.442695
    %v4792 = vpow.pop %v4791
    %v4793 = vmul.f32 %v4790, 1.442695
    %v4794 = vpow.pop %v4793
    %v4795 = vadd.f32 %v4792, 1.0
    %v4796 = vadd.f32 %v4794, 1.0
    %v4797 = vrcp.pop %v4795
    %v4798 = vmul.f32 1.0, %v4797
    %v4799 = vrcp.pop %v4796
    %v4800 = vmul.f32 1.0, %v4799
    %v4801 = vxor.u32 %v4783, 2147483648
    %v4802 = vxor.u32 %v4784, 2147483648
    %v4803 = vmul.f32 %v4801, 1.442695
    %v4804 = vpow.pop %v4803
    %v4805 = vmul.f32 %v4802, 1.442695
    %v4806 = vpow.pop %v4805
    %v4807 = vadd.f32 %v4804, 1.0
    %v4808 = vadd.f32 %v4806, 1.0
    %v4809 = vrcp.pop %v4807
    %v4810 = vmul.f32 1.0, %v4809
    %v4811 = vrcp.pop %v4808
    %v4812 = vmul.f32 1.0, %v4811
    %v4813 = vtanh.pop %v4785
    %v4814 = vtanh.pop %v4786
    %v4815 = vxor.u32 %v4787, 2147483648
    %v4816 = vxor.u32 %v4788, 2147483648
    %v4817 = vmul.f32 %v4815, 1.442695
    %v4818 = vpow.pop %v4817
    %v4819 = vmul.f32 %v4816, 1.442695
    %v4820 = vpow.pop %v4819
    %v4821 = vadd.f32 %v4818, 1.0
    %v4822 = vadd.f32 %v4820, 1.0
    %v4823 = vrcp.pop %v4821
    %v4824 = vmul.f32 1.0, %v4823
    %v4825 = vrcp.pop %v4822
    %v4826 = vmul.f32 1.0, %v4825
    %v4827 = vmul.f32 %v4810, 0.0
    %v4828 = vmul.f32 %v4812, 0.0
    %v4829 = vmul.f32 %v4798, %v4813
    %v4830 = vmul.f32 %v4800, %v4814
    %v4831 = vadd.f32 %v4827, %v4829
    %v4832 = vadd.f32 %v4828, %v4830
    %v4833 = vtanh.pop %v4831
    %v4834 = vtanh.pop %v4832
    %v4835 = vmul.f32 %v4824, %v4833
    %v4836 = vmul.f32 %v4826, %v4834
    %v4837 = vsel %vm2226, %v4835, 0.0
    %v4838 = vsel %vm2226, %v4836, 0.0
    %v4839 = vsel %vm2226, %v4831, 0.0
    %v4840 = vsel %vm2226, %v4832, 0.0
    %v4841 = vld [vmem:[#allocation5 + $0x40] sm:$0xff]
    %v4842 = vld [vmem:[#allocation5 + $0x48] sm:$0xff]
    %v4843 = vld [vmem:[#allocation5 + $0x50] sm:$0xff]
    %v4844 = vld [vmem:[#allocation5 + $0x58] sm:$0xff]
    %v4845 = vld [vmem:[#allocation5 + $0x60] sm:$0xff]
    %v4846 = vld [vmem:[#allocation5 + $0x68] sm:$0xff]
    %v4847 = vld [vmem:[#allocation5 + $0x70] sm:$0xff]
    %v4848 = vld [vmem:[#allocation5 + $0x78] sm:$0xff]
    %v4849 = vpack.c.bf16 %v4837, %v4837
    %v4850 = vpack.c.bf16 %v4838, %v4838
    %4851 = vmatprep.subr.bf16.mxu0 %v4482
    %4852 = vmatpush1.bf16.msra.mxu0 %v4481
    %4853 = vmatprep.subr.bf16.mxu0 %v4490
    %4854 = vmatpush1.bf16.msra.mxu0 %v4489
    %4855 = vmatprep.subr.bf16.mxu0 %v4498
    %4856 = vmatpush1.bf16.msra.mxu0 %v4497
    %4857 = vmatprep.subr.bf16.mxu0 %v4506
    %4858 = vmatpush1.bf16.msra.mxu0 %v4505
    %4859 = vmatprep.subr.bf16.mxu0 %v4514
    %4860 = vmatpush1.bf16.msra.mxu0 %v4513
    %4861 = vmatprep.subr.bf16.mxu0 %v4522
    %4862 = vmatpush1.bf16.msra.mxu0 %v4521
    %4863 = vmatprep.subr.bf16.mxu0 %v4530
    %4864 = vmatpush1.bf16.msra.mxu0 %v4529
    %4865 = vmatprep.subr.bf16.mxu0 %v4538
    %4866 = vmatpush1.bf16.msra.mxu0 %v4537
    %4867 = vmatprep.subr.bf16.mxu0 %v4546
    %4868 = vmatpush1.bf16.msra.mxu0 %v4545
    %4869 = vmatprep.subr.bf16.mxu0 %v4554
    %4870 = vmatpush1.bf16.msra.mxu0 %v4553
    %4871 = vmatprep.subr.bf16.mxu0 %v4562
    %4872 = vmatpush1.bf16.msra.mxu0 %v4561
    %4873 = vmatprep.subr.bf16.mxu0 %v4570
    %4874 = vmatpush1.bf16.msra.mxu0 %v4569
    %4875 = vmatprep.subr.bf16.mxu0 %v4578
    %4876 = vmatpush1.bf16.msra.mxu0 %v4577
    %4877 = vmatprep.subr.bf16.mxu0 %v4586
    %4878 = vmatpush1.bf16.msra.mxu0 %v4585
    %4879 = vmatprep.subr.bf16.mxu0 %v4594
    %4880 = vmatpush1.bf16.msra.mxu0 %v4593
    %4881 = vmatprep.subr.bf16.mxu0 %v4602
    %4882 = vmatpush1.bf16.msra.mxu0 %v4601
    %4883 = vmatprep.mubr.bf16.mxu0 %v4850
    %4884 = vmatmul.mubr.bf16.gmra.mrb[0].mxu0 %v4849
    %v4885 = vpop.f32.mrb[0].mxu0
    %v4886 = vadd.f32 0.0, %v4885
    %v4887 = vpop.f32.mrb[0].mxu0
    %v4888 = vadd.f32 0.0, %v4887
    %v4889 = vpop.f32.mrb[0].mxu0
    %v4890 = vpop.f32.mrb[0].mxu0
    %4891 = vdwg.mxu0
    %4892 = vmatprep.subr.bf16.mxu0 %v4484
    %4893 = vmatpush1.bf16.msra.mxu0 %v4483
    %4894 = vmatprep.subr.bf16.mxu0 %v4492
    %4895 = vmatpush1.bf16.msra.mxu0 %v4491
    %4896 = vmatprep.subr.bf16.mxu0 %v4500
    %4897 = vmatpush1.bf16.msra.mxu0 %v4499
    %4898 = vmatprep.subr.bf16.mxu0 %v4508
    %4899 = vmatpush1.bf16.msra.mxu0 %v4507
    %4900 = vmatprep.subr.bf16.mxu0 %v4516
    %4901 = vmatpush1.bf16.msra.mxu0 %v4515
    %4902 = vmatprep.subr.bf16.mxu0 %v4524
    %4903 = vmatpush1.bf16.msra.mxu0 %v4523
    %4904 = vmatprep.subr.bf16.mxu0 %v4532
    %4905 = vmatpush1.bf16.msra.mxu0 %v4531
    %4906 = vmatprep.subr.bf16.mxu0 %v4540
    %4907 = vmatpush1.bf16.msra.mxu0 %v4539
    %4908 = vmatprep.subr.bf16.mxu0 %v4548
    %4909 = vmatpush1.bf16.msra.mxu0 %v4547
    %4910 = vmatprep.subr.bf16.mxu0 %v4556
    %4911 = vmatpush1.bf16.msra.mxu0 %v4555
    %4912 = vmatprep.subr.bf16.mxu0 %v4564
    %4913 = vmatpush1.bf16.msra.mxu0 %v4563
    %4914 = vmatprep.subr.bf16.mxu0 %v4572
    %4915 = vmatpush1.bf16.msra.mxu0 %v4571
    %4916 = vmatprep.subr.bf16.mxu0 %v4580
    %4917 = vmatpush1.bf16.msra.mxu0 %v4579
    %4918 = vmatprep.subr.bf16.mxu0 %v4588
    %4919 = vmatpush1.bf16.msra.mxu0 %v4587
    %4920 = vmatprep.subr.bf16.mxu0 %v4596
    %4921 = vmatpush1.bf16.msra.mxu0 %v4595
    %4922 = vmatprep.subr.bf16.mxu0 %v4604
    %4923 = vmatpush1.bf16.msra.mxu0 %v4603
    %4924 = vmatprep.mubr.bf16.mxu0 %v4850
    %4925 = vmatmul.mubr.bf16.gmra.mrb[0].mxu0 %v4849
    %v4926 = vpop.f32.mrb[0].mxu0
    %v4927 = vadd.f32 0.0, %v4926
    %v4928 = vpop.f32.mrb[0].mxu0
    %v4929 = vadd.f32 0.0, %v4928
    %v4930 = vpop.f32.mrb[0].mxu0
    %v4931 = vpop.f32.mrb[0].mxu0
    %4932 = vdwg.mxu0
    %4933 = vmatprep.subr.bf16.mxu0 %v4486
    %4934 = vmatpush1.bf16.msra.mxu0 %v4485
    %4935 = vmatprep.subr.bf16.mxu0 %v4494
    %4936 = vmatpush1.bf16.msra.mxu0 %v4493
    %4937 = vmatprep.subr.bf16.mxu0 %v4502
    %4938 = vmatpush1.bf16.msra.mxu0 %v4501
    %4939 = vmatprep.subr.bf16.mxu0 %v4510
    %4940 = vmatpush1.bf16.msra.mxu0 %v4509
    %4941 = vmatprep.subr.bf16.mxu0 %v4518
    %4942 = vmatpush1.bf16.msra.mxu0 %v4517
    %4943 = vmatprep.subr.bf16.mxu0 %v4526
    %4944 = vmatpush1.bf16.msra.mxu0 %v4525
    %4945 = vmatprep.subr.bf16.mxu0 %v4534
    %4946 = vmatpush1.bf16.msra.mxu0 %v4533
    %4947 = vmatprep.subr.bf16.mxu0 %v4542
    %4948 = vmatpush1.bf16.msra.mxu0 %v4541
    %4949 = vmatprep.subr.bf16.mxu0 %v4550
    %4950 = vmatpush1.bf16.msra.mxu0 %v4549
    %4951 = vmatprep.subr.bf16.mxu0 %v4558
    %4952 = vmatpush1.bf16.msra.mxu0 %v4557
    %4953 = vmatprep.subr.bf16.mxu0 %v4566
    %4954 = vmatpush1.bf16.msra.mxu0 %v4565
    %4955 = vmatprep.subr.bf16.mxu0 %v4574
    %4956 = vmatpush1.bf16.msra.mxu0 %v4573
    %4957 = vmatprep.subr.bf16.mxu0 %v4582
    %4958 = vmatpush1.bf16.msra.mxu0 %v4581
    %4959 = vmatprep.subr.bf16.mxu0 %v4590
    %4960 = vmatpush1.bf16.msra.mxu0 %v4589
    %4961 = vmatprep.subr.bf16.mxu0 %v4598
    %4962 = vmatpush1.bf16.msra.mxu0 %v4597
    %4963 = vmatprep.subr.bf16.mxu0 %v4606
    %4964 = vmatpush1.bf16.msra.mxu0 %v4605
    %4965 = vmatprep.mubr.bf16.mxu0 %v4850
    %4966 = vmatmul.mubr.bf16.gmra.mrb[0].mxu0 %v4849
    %v4967 = vpop.f32.mrb[0].mxu0
    %v4968 = vadd.f32 0.0, %v4967
    %v4969 = vpop.f32.mrb[0].mxu0
    %v4970 = vadd.f32 0.0, %v4969
    %v4971 = vpop.f32.mrb[0].mxu0
    %v4972 = vpop.f32.mrb[0].mxu0
    %4973 = vdwg.mxu0
    %4974 = vmatprep.subr.bf16.mxu0 %v4488
    %4975 = vmatpush1.bf16.msra.mxu0 %v4487
    %4976 = vmatprep.subr.bf16.mxu0 %v4496
    %4977 = vmatpush1.bf16.msra.mxu0 %v4495
    %4978 = vmatprep.subr.bf16.mxu0 %v4504
    %4979 = vmatpush1.bf16.msra.mxu0 %v4503
    %4980 = vmatprep.subr.bf16.mxu0 %v4512
    %4981 = vmatpush1.bf16.msra.mxu0 %v4511
    %4982 = vmatprep.subr.bf16.mxu0 %v4520
    %4983 = vmatpush1.bf16.msra.mxu0 %v4519
    %4984 = vmatprep.subr.bf16.mxu0 %v4528
    %4985 = vmatpush1.bf16.msra.mxu0 %v4527
    %4986 = vmatprep.subr.bf16.mxu0 %v4536
    %4987 = vmatpush1.bf16.msra.mxu0 %v4535
    %4988 = vmatprep.subr.bf16.mxu0 %v4544
    %4989 = vmatpush1.bf16.msra.mxu0 %v4543
    %4990 = vmatprep.subr.bf16.mxu0 %v4552
    %4991 = vmatpush1.bf16.msra.mxu0 %v4551
    %4992 = vmatprep.subr.bf16.mxu0 %v4560
    %4993 = vmatpush1.bf16.msra.mxu0 %v4559
    %4994 = vmatprep.subr.bf16.mxu0 %v4568
    %4995 = vmatpush1.bf16.msra.mxu0 %v4567
    %4996 = vmatprep.subr.bf16.mxu0 %v4576
    %4997 = vmatpush1.bf16.msra.mxu0 %v4575
    %4998 = vmatprep.subr.bf16.mxu0 %v4584
    %4999 = vmatpush1.bf16.msra.mxu0 %v4583
    %5000 = vmatprep.subr.bf16.mxu0 %v4592
    %5001 = vmatpush1.bf16.msra.mxu0 %v4591
    %5002 = vmatprep.subr.bf16.mxu0 %v4600
    %5003 = vmatpush1.bf16.msra.mxu0 %v4599
    %5004 = vmatprep.subr.bf16.mxu0 %v4608
    %5005 = vmatpush1.bf16.msra.mxu0 %v4607
    %5006 = vmatprep.mubr.bf16.mxu0 %v4850
    %5007 = vmatmul.mubr.bf16.gmra.mrb[0].mxu0 %v4849
    %v5008 = vpop.f32.mrb[0].mxu0
    %v5009 = vadd.f32 0.0, %v5008
    %v5010 = vpop.f32.mrb[0].mxu0
    %v5011 = vadd.f32 0.0, %v5010
    %v5012 = vpop.f32.mrb[0].mxu0
    %v5013 = vpop.f32.mrb[0].mxu0
    %5014 = vdwg.mxu0
    %v5015 = vadd.f32 %v4841, %v4886
    %v5016 = vadd.f32 %v4842, %v4888
    %v5017 = vadd.f32 %v4843, %v4927
    %v5018 = vadd.f32 %v4844, %v4929
    %v5019 = vadd.f32 %v4845, %v4968
    %v5020 = vadd.f32 %v4846, %v4970
    %v5021 = vadd.f32 %v4847, %v5009
    %v5022 = vadd.f32 %v4848, %v5011
    %v5023 = vxor.u32 %v5015, 2147483648
    %v5024 = vxor.u32 %v5016, 2147483648
    %v5025 = vmul.f32 %v5023, 1.442695
    %v5026 = vpow.pop %v5025
    %v5027 = vmul.f32 %v5024, 1.442695
    %v5028 = vpow.pop %v5027
    %v5029 = vadd.f32 %v5026, 1.0
    %v5030 = vadd.f32 %v5028, 1.0
    %v5031 = vrcp.pop %v5029
    %v5032 = vmul.f32 1.0, %v5031
    %v5033 = vrcp.pop %v5030
    %v5034 = vmul.f32 1.0, %v5033
    %v5035 = vxor.u32 %v5017, 2147483648
    %v5036 = vxor.u32 %v5018, 2147483648
    %v5037 = vmul.f32 %v5035, 1.442695
    %v5038 = vpow.pop %v5037
    %v5039 = vmul.f32 %v5036, 1.442695
    %v5040 = vpow.pop %v5039
    %v5041 = vadd.f32 %v5038, 1.0
    %v5042 = vadd.f32 %v5040, 1.0
    %v5043 = vrcp.pop %v5041
    %v5044 = vmul.f32 1.0, %v5043
    %v5045 = vrcp.pop %v5042
    %v5046 = vmul.f32 1.0, %v5045
    %v5047 = vtanh.pop %v5019
    %v5048 = vtanh.pop %v5020
    %v5049 = vxor.u32 %v5021, 2147483648
    %v5050 = vxor.u32 %v5022, 2147483648
    %v5051 = vmul.f32 %v5049, 1.442695
    %v5052 = vpow.pop %v5051
    %v5053 = vmul.f32 %v5050, 1.442695
    %v5054 = vpow.pop %v5053
    %v5055 = vadd.f32 %v5052, 1.0
    %v5056 = vadd.f32 %v5054, 1.0
    %v5057 = vrcp.pop %v5055
    %v5058 = vmul.f32 1.0, %v5057
    %v5059 = vrcp.pop %v5056
    %v5060 = vmul.f32 1.0, %v5059
    %v5061 = vmul.f32 %v5044, %v4839
    %v5062 = vmul.f32 %v5046, %v4840
    %v5063 = vmul.f32 %v5032, %v5047
    %v5064 = vmul.f32 %v5034, %v5048
    %v5065 = vadd.f32 %v5061, %v5063
    %v5066 = vadd.f32 %v5062, %v5064
    %v5067 = vtanh.pop %v5065
    %v5068 = vtanh.pop %v5066
    %v5069 = vmul.f32 %v5058, %v5067
    %v5070 = vmul.f32 %v5060, %v5068
    %v5071 = vsel %vm2468, %v5069, %v4837
    %v5072 = vsel %vm2468, %v5070, %v4838
    %v5073 = vsel %vm2468, %v5065, %v4839
    %v5074 = vsel %vm2468, %v5066, %v4840
    %v5075 = vld [vmem:[#allocation5 + $0x80] sm:$0xff]
    %v5076 = vld [vmem:[#allocation5 + $0x88] sm:$0xff]
    %v5077 = vld [vmem:[#allocation5 + $0x90] sm:$0xff]
    %v5078 = vld [vmem:[#allocation5 + $0x98] sm:$0xff]
    %v5079 = vld [vmem:[#allocation5 + $0xa0] sm:$0xff]
    %v5080 = vld [vmem:[#allocation5 + $0xa8] sm:$0xff]
    %v5081 = vld [vmem:[#allocation5 + $0xb0] sm:$0xff]
    %v5082 = vld [vmem:[#allocation5 + $0xb8] sm:$0xff]
    %v5083 = vpack.c.bf16 %v5071, %v5071
    %v5084 = vpack.c.bf16 %v5072, %v5072
    %5085 = vmatprep.subr.bf16.mxu0 %v4482
    %5086 = vmatpush1.bf16.msra.mxu0 %v4481
    %5087 = vmatprep.subr.bf16.mxu0 %v4490
    %5088 = vmatpush1.bf16.msra.mxu0 %v4489
    %5089 = vmatprep.subr.bf16.mxu0 %v4498
    %5090 = vmatpush1.bf16.msra.mxu0 %v4497
    %5091 = vmatprep.subr.bf16.mxu0 %v4506
    %5092 = vmatpush1.bf16.msra.mxu0 %v4505
    %5093 = vmatprep.subr.bf16.mxu0 %v4514
    %5094 = vmatpush1.bf16.msra.mxu0 %v4513
    %5095 = vmatprep.subr.bf16.mxu0 %v4522
    %5096 = vmatpush1.bf16.msra.mxu0 %v4521
    %5097 = vmatprep.subr.bf16.mxu0 %v4530
    %5098 = vmatpush1.bf16.msra.mxu0 %v4529
    %5099 = vmatprep.subr.bf16.mxu0 %v4538
    %5100 = vmatpush1.bf16.msra.mxu0 %v4537
    %5101 = vmatprep.subr.bf16.mxu0 %v4546
    %5102 = vmatpush1.bf16.msra.mxu0 %v4545
    %5103 = vmatprep.subr.bf16.mxu0 %v4554
    %5104 = vmatpush1.bf16.msra.mxu0 %v4553
    %5105 = vmatprep.subr.bf16.mxu0 %v4562
    %5106 = vmatpush1.bf16.msra.mxu0 %v4561
    %5107 = vmatprep.subr.bf16.mxu0 %v4570
    %5108 = vmatpush1.bf16.msra.mxu0 %v4569
    %5109 = vmatprep.subr.bf16.mxu0 %v4578
    %5110 = vmatpush1.bf16.msra.mxu0 %v4577
    %5111 = vmatprep.subr.bf16.mxu0 %v4586
    %5112 = vmatpush1.bf16.msra.mxu0 %v4585
    %5113 = vmatprep.subr.bf16.mxu0 %v4594
    %5114 = vmatpush1.bf16.msra.mxu0 %v4593
    %5115 = vmatprep.subr.bf16.mxu0 %v4602
    %5116 = vmatpush1.bf16.msra.mxu0 %v4601
    %5117 = vmatprep.mubr.bf16.mxu0 %v5084
    %5118 = vmatmul.mubr.bf16.gmra.mrb[0].mxu0 %v5083
    %v5119 = vpop.f32.mrb[0].mxu0
    %v5120 = vadd.f32 0.0, %v5119
    %v5121 = vpop.f32.mrb[0].mxu0
    %v5122 = vadd.f32 0.0, %v5121
    %v5123 = vpop.f32.mrb[0].mxu0
    %v5124 = vpop.f32.mrb[0].mxu0
    %5125 = vdwg.mxu0
    %5126 = vmatprep.subr.bf16.mxu0 %v4484
    %5127 = vmatpush1.bf16.msra.mxu0 %v4483
    %5128 = vmatprep.subr.bf16.mxu0 %v4492
    %5129 = vmatpush1.bf16.msra.mxu0 %v4491
    %5130 = vmatprep.subr.bf16.mxu0 %v4500
    %5131 = vmatpush1.bf16.msra.mxu0 %v4499
    %5132 = vmatprep.subr.bf16.mxu0 %v4508
    %5133 = vmatpush1.bf16.msra.mxu0 %v4507
    %5134 = vmatprep.subr.bf16.mxu0 %v4516
    %5135 = vmatpush1.bf16.msra.mxu0 %v4515
    %5136 = vmatprep.subr.bf16.mxu0 %v4524
    %5137 = vmatpush1.bf16.msra.mxu0 %v4523
    %5138 = vmatprep.subr.bf16.mxu0 %v4532
    %5139 = vmatpush1.bf16.msra.mxu0 %v4531
    %5140 = vmatprep.subr.bf16.mxu0 %v4540
    %5141 = vmatpush1.bf16.msra.mxu0 %v4539
    %5142 = vmatprep.subr.bf16.mxu0 %v4548
    %5143 = vmatpush1.bf16.msra.mxu0 %v4547
    %5144 = vmatprep.subr.bf16.mxu0 %v4556
    %5145 = vmatpush1.bf16.msra.mxu0 %v4555
    %5146 = vmatprep.subr.bf16.mxu0 %v4564
    %5147 = vmatpush1.bf16.msra.mxu0 %v4563
    %5148 = vmatprep.subr.bf16.mxu0 %v4572
    %5149 = vmatpush1.bf16.msra.mxu0 %v4571
    %5150 = vmatprep.subr.bf16.mxu0 %v4580
    %5151 = vmatpush1.bf16.msra.mxu0 %v4579
    %5152 = vmatprep.subr.bf16.mxu0 %v4588
    %5153 = vmatpush1.bf16.msra.mxu0 %v4587
    %5154 = vmatprep.subr.bf16.mxu0 %v4596
    %5155 = vmatpush1.bf16.msra.mxu0 %v4595
    %5156 = vmatprep.subr.bf16.mxu0 %v4604
    %5157 = vmatpush1.bf16.msra.mxu0 %v4603
    %5158 = vmatprep.mubr.bf16.mxu0 %v5084
    %5159 = vmatmul.mubr.bf16.gmra.mrb[0].mxu0 %v5083
    %v5160 = vpop.f32.mrb[0].mxu0
    %v5161 = vadd.f32 0.0, %v5160
    %v5162 = vpop.f32.mrb[0].mxu0
    %v5163 = vadd.f32 0.0, %v5162
    %v5164 = vpop.f32.mrb[0].mxu0
    %v5165 = vpop.f32.mrb[0].mxu0
    %5166 = vdwg.mxu0
    %5167 = vmatprep.subr.bf16.mxu0 %v4486
    %5168 = vmatpush1.bf16.msra.mxu0 %v4485
    %5169 = vmatprep.subr.bf16.mxu0 %v4494
    %5170 = vmatpush1.bf16.msra.mxu0 %v4493
    %5171 = vmatprep.subr.bf16.mxu0 %v4502
    %5172 = vmatpush1.bf16.msra.mxu0 %v4501
    %5173 = vmatprep.subr.bf16.mxu0 %v4510
    %5174 = vmatpush1.bf16.msra.mxu0 %v4509
    %5175 = vmatprep.subr.bf16.mxu0 %v4518
    %5176 = vmatpush1.bf16.msra.mxu0 %v4517
    %5177 = vmatprep.subr.bf16.mxu0 %v4526
    %5178 = vmatpush1.bf16.msra.mxu0 %v4525
    %5179 = vmatprep.subr.bf16.mxu0 %v4534
    %5180 = vmatpush1.bf16.msra.mxu0 %v4533
    %5181 = vmatprep.subr.bf16.mxu0 %v4542
    %5182 = vmatpush1.bf16.msra.mxu0 %v4541
    %5183 = vmatprep.subr.bf16.mxu0 %v4550
    %5184 = vmatpush1.bf16.msra.mxu0 %v4549
    %5185 = vmatprep.subr.bf16.mxu0 %v4558
    %5186 = vmatpush1.bf16.msra.mxu0 %v4557
    %5187 = vmatprep.subr.bf16.mxu0 %v4566
    %5188 = vmatpush1.bf16.msra.mxu0 %v4565
    %5189 = vmatprep.subr.bf16.mxu0 %v4574
    %5190 = vmatpush1.bf16.msra.mxu0 %v4573
    %5191 = vmatprep.subr.bf16.mxu0 %v4582
    %5192 = vmatpush1.bf16.msra.mxu0 %v4581
    %5193 = vmatprep.subr.bf16.mxu0 %v4590
    %5194 = vmatpush1.bf16.msra.mxu0 %v4589
    %5195 = vmatprep.subr.bf16.mxu0 %v4598
    %5196 = vmatpush1.bf16.msra.mxu0 %v4597
    %5197 = vmatprep.subr.bf16.mxu0 %v4606
    %5198 = vmatpush1.bf16.msra.mxu0 %v4605
    %5199 = vmatprep.mubr.bf16.mxu0 %v5084
    %5200 = vmatmul.mubr.bf16.gmra.mrb[0].mxu0 %v5083
    %v5201 = vpop.f32.mrb[0].mxu0
    %v5202 = vadd.f32 0.0, %v5201
    %v5203 = vpop.f32.mrb[0].mxu0
    %v5204 = vadd.f32 0.0, %v5203
    %v5205 = vpop.f32.mrb[0].mxu0
    %v5206 = vpop.f32.mrb[0].mxu0
    %5207 = vdwg.mxu0
    %5208 = vmatprep.subr.bf16.mxu0 %v4488
    %5209 = vmatpush1.bf16.msra.mxu0 %v4487
    %5210 = vmatprep.subr.bf16.mxu0 %v4496
    %5211 = vmatpush1.bf16.msra.mxu0 %v4495
    %5212 = vmatprep.subr.bf16.mxu0 %v4504
    %5213 = vmatpush1.bf16.msra.mxu0 %v4503
    %5214 = vmatprep.subr.bf16.mxu0 %v4512
    %5215 = vmatpush1.bf16.msra.mxu0 %v4511
    %5216 = vmatprep.subr.bf16.mxu0 %v4520
    %5217 = vmatpush1.bf16.msra.mxu0 %v4519
    %5218 = vmatprep.subr.bf16.mxu0 %v4528
    %5219 = vmatpush1.bf16.msra.mxu0 %v4527
    %5220 = vmatprep.subr.bf16.mxu0 %v4536
    %5221 = vmatpush1.bf16.msra.mxu0 %v4535
    %5222 = vmatprep.subr.bf16.mxu0 %v4544
    %5223 = vmatpush1.bf16.msra.mxu0 %v4543
    %5224 = vmatprep.subr.bf16.mxu0 %v4552
    %5225 = vmatpush1.bf16.msra.mxu0 %v4551
    %5226 = vmatprep.subr.bf16.mxu0 %v4560
    %5227 = vmatpush1.bf16.msra.mxu0 %v4559
    %5228 = vmatprep.subr.bf16.mxu0 %v4568
    %5229 = vmatpush1.bf16.msra.mxu0 %v4567
    %5230 = vmatprep.subr.bf16.mxu0 %v4576
    %5231 = vmatpush1.bf16.msra.mxu0 %v4575
    %5232 = vmatprep.subr.bf16.mxu0 %v4584
    %5233 = vmatpush1.bf16.msra.mxu0 %v4583
    %5234 = vmatprep.subr.bf16.mxu0 %v4592
    %5235 = vmatpush1.bf16.msra.mxu0 %v4591
    %5236 = vmatprep.subr.bf16.mxu0 %v4600
    %5237 = vmatpush1.bf16.msra.mxu0 %v4599
    %5238 = vmatprep.subr.bf16.mxu0 %v4608
    %5239 = vmatpush1.bf16.msra.mxu0 %v4607
    %5240 = vmatprep.mubr.bf16.mxu0 %v5084
    %5241 = vmatmul.mubr.bf16.gmra.mrb[0].mxu0 %v5083
    %v5242 = vpop.f32.mrb[0].mxu0
    %v5243 = vadd.f32 0.0, %v5242
    %v5244 = vpop.f32.mrb[0].mxu0
    %v5245 = vadd.f32 0.0, %v5244
    %v5246 = vpop.f32.mrb[0].mxu0
    %v5247 = vpop.f32.mrb[0].mxu0
    %5248 = vdwg.mxu0
    %v5249 = vadd.f32 %v5075, %v5120
    %v5250 = vadd.f32 %v5076, %v5122
    %v5251 = vadd.f32 %v5077, %v5161
    %v5252 = vadd.f32 %v5078, %v5163
    %v5253 = vadd.f32 %v5079, %v5202
    %v5254 = vadd.f32 %v5080, %v5204
    %v5255 = vadd.f32 %v5081, %v5243
    %v5256 = vadd.f32 %v5082, %v5245
    %v5257 = vxor.u32 %v5249, 2147483648
    %v5258 = vxor.u32 %v5250, 2147483648
    %v5259 = vmul.f32 %v5257, 1.442695
    %v5260 = vpow.pop %v5259
    %v5261 = vmul.f32 %v5258, 1.442695
    %v5262 = vpow.pop %v5261
    %v5263 = vadd.f32 %v5260, 1.0
    %v5264 = vadd.f32 %v5262, 1.0
    %v5265 = vrcp.pop %v5263
    %v5266 = vmul.f32 1.0, %v5265
    %v5267 = vrcp.pop %v5264
    %v5268 = vmul.f32 1.0, %v5267
    %v5269 = vxor.u32 %v5251, 2147483648
    %v5270 = vxor.u32 %v5252, 2147483648
    %v5271 = vmul.f32 %v5269, 1.442695
    %v5272 = vpow.pop %v5271
    %v5273 = vmul.f32 %v5270, 1.442695
    %v5274 = vpow.pop %v5273
    %v5275 = vadd.f32 %v5272, 1.0
    %v5276 = vadd.f32 %v5274, 1.0
    %v5277 = vrcp.pop %v5275
    %v5278 = vmul.f32 1.0, %v5277
    %v5279 = vrcp.pop %v5276
    %v5280 = vmul.f32 1.0, %v5279
    %v5281 = vtanh.pop %v5253
    %v5282 = vtanh.pop %v5254
    %v5283 = vxor.u32 %v5255, 2147483648
    %v5284 = vxor.u32 %v5256, 2147483648
    %v5285 = vmul.f32 %v5283, 1.442695
    %v5286 = vpow.pop %v5285
    %v5287 = vmul.f32 %v5284, 1.442695
    %v5288 = vpow.pop %v5287
    %v5289 = vadd.f32 %v5286, 1.0
    %v5290 = vadd.f32 %v5288, 1.0
    %v5291 = vrcp.pop %v5289
    %v5292 = vmul.f32 1.0, %v5291
    %v5293 = vrcp.pop %v5290
    %v5294 = vmul.f32 1.0, %v5293
    %v5295 = vmul.f32 %v5278, %v5073
    %v5296 = vmul.f32 %v5280, %v5074
    %v5297 = vmul.f32 %v5266, %v5281
    %v5298 = vmul.f32 %v5268, %v5282
    %v5299 = vadd.f32 %v5295, %v5297
    %v5300 = vadd.f32 %v5296, %v5298
    %v5301 = vtanh.pop %v5299
    %v5302 = vtanh.pop %v5300
    %v5303 = vmul.f32 %v5292, %v5301
    %v5304 = vmul.f32 %v5294, %v5302
    %v5305 = vsel %vm2710, %v5303, %v5071
    %v5306 = vsel %vm2710, %v5304, %v5072
    %v5307 = vsel %vm2710, %v5299, %v5073
    %v5308 = vsel %vm2710, %v5300, %v5074
    %v5309 = vld [vmem:[#allocation5 + $0xc0] sm:$0xff]
    %v5310 = vld [vmem:[#allocation5 + $0xc8] sm:$0xff]
    %v5311 = vld [vmem:[#allocation5 + $0xd0] sm:$0xff]
    %v5312 = vld [vmem:[#allocation5 + $0xd8] sm:$0xff]
    %v5313 = vld [vmem:[#allocation5 + $0xe0] sm:$0xff]
    %v5314 = vld [vmem:[#allocation5 + $0xe8] sm:$0xff]
    %v5315 = vld [vmem:[#allocation5 + $0xf0] sm:$0xff]
    %v5316 = vld [vmem:[#allocation5 + $0xf8] sm:$0xff]
    %v5317 = vpack.c.bf16 %v5305, %v5305
    %v5318 = vpack.c.bf16 %v5306, %v5306
    %5319 = vmatprep.subr.bf16.mxu0 %v4482
    %5320 = vmatpush1.bf16.msra.mxu0 %v4481
    %5321 = vmatprep.subr.bf16.mxu0 %v4490
    %5322 = vmatpush1.bf16.msra.mxu0 %v4489
    %5323 = vmatprep.subr.bf16.mxu0 %v4498
    %5324 = vmatpush1.bf16.msra.mxu0 %v4497
    %5325 = vmatprep.subr.bf16.mxu0 %v4506
    %5326 = vmatpush1.bf16.msra.mxu0 %v4505
    %5327 = vmatprep.subr.bf16.mxu0 %v4514
    %5328 = vmatpush1.bf16.msra.mxu0 %v4513
    %5329 = vmatprep.subr.bf16.mxu0 %v4522
    %5330 = vmatpush1.bf16.msra.mxu0 %v4521
    %5331 = vmatprep.subr.bf16.mxu0 %v4530
    %5332 = vmatpush1.bf16.msra.mxu0 %v4529
    %5333 = vmatprep.subr.bf16.mxu0 %v4538
    %5334 = vmatpush1.bf16.msra.mxu0 %v4537
    %5335 = vmatprep.subr.bf16.mxu0 %v4546
    %5336 = vmatpush1.bf16.msra.mxu0 %v4545
    %5337 = vmatprep.subr.bf16.mxu0 %v4554
    %5338 = vmatpush1.bf16.msra.mxu0 %v4553
    %5339 = vmatprep.subr.bf16.mxu0 %v4562
    %5340 = vmatpush1.bf16.msra.mxu0 %v4561
    %5341 = vmatprep.subr.bf16.mxu0 %v4570
    %5342 = vmatpush1.bf16.msra.mxu0 %v4569
    %5343 = vmatprep.subr.bf16.mxu0 %v4578
    %5344 = vmatpush1.bf16.msra.mxu0 %v4577
    %5345 = vmatprep.subr.bf16.mxu0 %v4586
    %5346 = vmatpush1.bf16.msra.mxu0 %v4585
    %5347 = vmatprep.subr.bf16.mxu0 %v4594
    %5348 = vmatpush1.bf16.msra.mxu0 %v4593
    %5349 = vmatprep.subr.bf16.mxu0 %v4602
    %5350 = vmatpush1.bf16.msra.mxu0 %v4601
    %5351 = vmatprep.mubr.bf16.mxu0 %v5318
    %5352 = vmatmul.mubr.bf16.gmra.mrb[0].mxu0 %v5317
    %v5353 = vpop.f32.mrb[0].mxu0
    %v5354 = vadd.f32 0.0, %v5353
    %v5355 = vpop.f32.mrb[0].mxu0
    %v5356 = vadd.f32 0.0, %v5355
    %v5357 = vpop.f32.mrb[0].mxu0
    %v5358 = vpop.f32.mrb[0].mxu0
    %5359 = vdwg.mxu0
    %5360 = vmatprep.subr.bf16.mxu0 %v4484
    %5361 = vmatpush1.bf16.msra.mxu0 %v4483
    %5362 = vmatprep.subr.bf16.mxu0 %v4492
    %5363 = vmatpush1.bf16.msra.mxu0 %v4491
    %5364 = vmatprep.subr.bf16.mxu0 %v4500
    %5365 = vmatpush1.bf16.msra.mxu0 %v4499
    %5366 = vmatprep.subr.bf16.mxu0 %v4508
    %5367 = vmatpush1.bf16.msra.mxu0 %v4507
    %5368 = vmatprep.subr.bf16.mxu0 %v4516
    %5369 = vmatpush1.bf16.msra.mxu0 %v4515
    %5370 = vmatprep.subr.bf16.mxu0 %v4524
    %5371 = vmatpush1.bf16.msra.mxu0 %v4523
    %5372 = vmatprep.subr.bf16.mxu0 %v4532
    %5373 = vmatpush1.bf16.msra.mxu0 %v4531
    %5374 = vmatprep.subr.bf16.mxu0 %v4540
    %5375 = vmatpush1.bf16.msra.mxu0 %v4539
    %5376 = vmatprep.subr.bf16.mxu0 %v4548
    %5377 = vmatpush1.bf16.msra.mxu0 %v4547
    %5378 = vmatprep.subr.bf16.mxu0 %v4556
    %5379 = vmatpush1.bf16.msra.mxu0 %v4555
    %5380 = vmatprep.subr.bf16.mxu0 %v4564
    %5381 = vmatpush1.bf16.msra.mxu0 %v4563
    %5382 = vmatprep.subr.bf16.mxu0 %v4572
    %5383 = vmatpush1.bf16.msra.mxu0 %v4571
    %5384 = vmatprep.subr.bf16.mxu0 %v4580
    %5385 = vmatpush1.bf16.msra.mxu0 %v4579
    %5386 = vmatprep.subr.bf16.mxu0 %v4588
    %5387 = vmatpush1.bf16.msra.mxu0 %v4587
    %5388 = vmatprep.subr.bf16.mxu0 %v4596
    %5389 = vmatpush1.bf16.msra.mxu0 %v4595
    %5390 = vmatprep.subr.bf16.mxu0 %v4604
    %5391 = vmatpush1.bf16.msra.mxu0 %v4603
    %5392 = vmatprep.mubr.bf16.mxu0 %v5318
    %5393 = vmatmul.mubr.bf16.gmra.mrb[0].mxu0 %v5317
    %v5394 = vpop.f32.mrb[0].mxu0
    %v5395 = vadd.f32 0.0, %v5394
    %v5396 = vpop.f32.mrb[0].mxu0
    %v5397 = vadd.f32 0.0, %v5396
    %v5398 = vpop.f32.mrb[0].mxu0
    %v5399 = vpop.f32.mrb[0].mxu0
    %5400 = vdwg.mxu0
    %5401 = vmatprep.subr.bf16.mxu0 %v4486
    %5402 = vmatpush1.bf16.msra.mxu0 %v4485
    %5403 = vmatprep.subr.bf16.mxu0 %v4494
    %5404 = vmatpush1.bf16.msra.mxu0 %v4493
    %5405 = vmatprep.subr.bf16.mxu0 %v4502
    %5406 = vmatpush1.bf16.msra.mxu0 %v4501
    %5407 = vmatprep.subr.bf16.mxu0 %v4510
    %5408 = vmatpush1.bf16.msra.mxu0 %v4509
    %5409 = vmatprep.subr.bf16.mxu0 %v4518
    %5410 = vmatpush1.bf16.msra.mxu0 %v4517
    %5411 = vmatprep.subr.bf16.mxu0 %v4526
    %5412 = vmatpush1.bf16.msra.mxu0 %v4525
    %5413 = vmatprep.subr.bf16.mxu0 %v4534
    %5414 = vmatpush1.bf16.msra.mxu0 %v4533
    %5415 = vmatprep.subr.bf16.mxu0 %v4542
    %5416 = vmatpush1.bf16.msra.mxu0 %v4541
    %5417 = vmatprep.subr.bf16.mxu0 %v4550
    %5418 = vmatpush1.bf16.msra.mxu0 %v4549
    %5419 = vmatprep.subr.bf16.mxu0 %v4558
    %5420 = vmatpush1.bf16.msra.mxu0 %v4557
    %5421 = vmatprep.subr.bf16.mxu0 %v4566
    %5422 = vmatpush1.bf16.msra.mxu0 %v4565
    %5423 = vmatprep.subr.bf16.mxu0 %v4574
    %5424 = vmatpush1.bf16.msra.mxu0 %v4573
    %5425 = vmatprep.subr.bf16.mxu0 %v4582
    %5426 = vmatpush1.bf16.msra.mxu0 %v4581
    %5427 = vmatprep.subr.bf16.mxu0 %v4590
    %5428 = vmatpush1.bf16.msra.mxu0 %v4589
    %5429 = vmatprep.subr.bf16.mxu0 %v4598
    %5430 = vmatpush1.bf16.msra.mxu0 %v4597
    %5431 = vmatprep.subr.bf16.mxu0 %v4606
    %5432 = vmatpush1.bf16.msra.mxu0 %v4605
    %5433 = vmatprep.mubr.bf16.mxu0 %v5318
    %5434 = vmatmul.mubr.bf16.gmra.mrb[0].mxu0 %v5317
    %v5435 = vpop.f32.mrb[0].mxu0
    %v5436 = vadd.f32 0.0, %v5435
    %v5437 = vpop.f32.mrb[0].mxu0
    %v5438 = vadd.f32 0.0, %v5437
    %v5439 = vpop.f32.mrb[0].mxu0
    %v5440 = vpop.f32.mrb[0].mxu0
    %5441 = vdwg.mxu0
    %5442 = vmatprep.subr.bf16.mxu0 %v4488
    %5443 = vmatpush1.bf16.msra.mxu0 %v4487
    %5444 = vmatprep.subr.bf16.mxu0 %v4496
    %5445 = vmatpush1.bf16.msra.mxu0 %v4495
    %5446 = vmatprep.subr.bf16.mxu0 %v4504
    %5447 = vmatpush1.bf16.msra.mxu0 %v4503
    %5448 = vmatprep.subr.bf16.mxu0 %v4512
    %5449 = vmatpush1.bf16.msra.mxu0 %v4511
    %5450 = vmatprep.subr.bf16.mxu0 %v4520
    %5451 = vmatpush1.bf16.msra.mxu0 %v4519
    %5452 = vmatprep.subr.bf16.mxu0 %v4528
    %5453 = vmatpush1.bf16.msra.mxu0 %v4527
    %5454 = vmatprep.subr.bf16.mxu0 %v4536
    %5455 = vmatpush1.bf16.msra.mxu0 %v4535
    %5456 = vmatprep.subr.bf16.mxu0 %v4544
    %5457 = vmatpush1.bf16.msra.mxu0 %v4543
    %5458 = vmatprep.subr.bf16.mxu0 %v4552
    %5459 = vmatpush1.bf16.msra.mxu0 %v4551
    %5460 = vmatprep.subr.bf16.mxu0 %v4560
    %5461 = vmatpush1.bf16.msra.mxu0 %v4559
    %5462 = vmatprep.subr.bf16.mxu0 %v4568
    %5463 = vmatpush1.bf16.msra.mxu0 %v4567
    %5464 = vmatprep.subr.bf16.mxu0 %v4576
    %5465 = vmatpush1.bf16.msra.mxu0 %v4575
    %5466 = vmatprep.subr.bf16.mxu0 %v4584
    %5467 = vmatpush1.bf16.msra.mxu0 %v4583
    %5468 = vmatprep.subr.bf16.mxu0 %v4592
    %5469 = vmatpush1.bf16.msra.mxu0 %v4591
    %5470 = vmatprep.subr.bf16.mxu0 %v4600
    %5471 = vmatpush1.bf16.msra.mxu0 %v4599
    %5472 = vmatprep.subr.bf16.mxu0 %v4608
    %5473 = vmatpush1.bf16.msra.mxu0 %v4607
    %5474 = vmatprep.mubr.bf16.mxu0 %v5318
    %5475 = vmatmul.mubr.bf16.gmra.mrb[0].mxu0 %v5317
    %v5476 = vpop.f32.mrb[0].mxu0
    %v5477 = vadd.f32 0.0, %v5476
    %v5478 = vpop.f32.mrb[0].mxu0
    %v5479 = vadd.f32 0.0, %v5478
    %v5480 = vpop.f32.mrb[0].mxu0
    %v5481 = vpop.f32.mrb[0].mxu0
    %5482 = vdwg.mxu0
    %v5483 = vadd.f32 %v5309, %v5354
    %v5484 = vadd.f32 %v5310, %v5356
    %v5485 = vadd.f32 %v5311, %v5395
    %v5486 = vadd.f32 %v5312, %v5397
    %v5487 = vadd.f32 %v5313, %v5436
    %v5488 = vadd.f32 %v5314, %v5438
    %v5489 = vadd.f32 %v5315, %v5477
    %v5490 = vadd.f32 %v5316, %v5479
    %v5491 = vxor.u32 %v5483, 2147483648
    %v5492 = vxor.u32 %v5484, 2147483648
    %v5493 = vmul.f32 %v5491, 1.442695
    %v5494 = vpow.pop %v5493
    %v5495 = vmul.f32 %v5492, 1.442695
    %v5496 = vpow.pop %v5495
    %v5497 = vadd.f32 %v5494, 1.0
    %v5498 = vadd.f32 %v5496, 1.0
    %v5499 = vrcp.pop %v5497
    %v5500 = vmul.f32 1.0, %v5499
    %v5501 = vrcp.pop %v5498
    %v5502 = vmul.f32 1.0, %v5501
    %v5503 = vxor.u32 %v5485, 2147483648
    %v5504 = vxor.u32 %v5486, 2147483648
    %v5505 = vmul.f32 %v5503, 1.442695
    %v5506 = vpow.pop %v5505
    %v5507 = vmul.f32 %v5504, 1.442695
    %v5508 = vpow.pop %v5507
    %v5509 = vadd.f32 %v5506, 1.0
    %v5510 = vadd.f32 %v5508, 1.0
    %v5511 = vrcp.pop %v5509
    %v5512 = vmul.f32 1.0, %v5511
    %v5513 = vrcp.pop %v5510
    %v5514 = vmul.f32 1.0, %v5513
    %v5515 = vtanh.pop %v5487
    %v5516 = vtanh.pop %v5488
    %v5517 = vxor.u32 %v5489, 2147483648
    %v5518 = vxor.u32 %v5490, 2147483648
    %v5519 = vmul.f32 %v5517, 1.442695
    %v5520 = vpow.pop %v5519
    %v5521 = vmul.f32 %v5518, 1.442695
    %v5522 = vpow.pop %v5521
    %v5523 = vadd.f32 %v5520, 1.0
    %v5524 = vadd.f32 %v5522, 1.0
    %v5525 = vrcp.pop %v5523
    %v5526 = vmul.f32 1.0, %v5525
    %v5527 = vrcp.pop %v5524
    %v5528 = vmul.f32 1.0, %v5527
    %v5529 = vmul.f32 %v5512, %v5307
    %v5530 = vmul.f32 %v5514, %v5308
    %v5531 = vmul.f32 %v5500, %v5515
    %v5532 = vmul.f32 %v5502, %v5516
    %v5533 = vadd.f32 %v5529, %v5531
    %v5534 = vadd.f32 %v5530, %v5532
    %v5535 = vtanh.pop %v5533
    %v5536 = vtanh.pop %v5534
    %v5537 = vmul.f32 %v5526, %v5535
    %v5538 = vmul.f32 %v5528, %v5536
    %v5539 = vsel %vm2952, %v5537, %v5305
    %v5540 = vsel %vm2952, %v5538, %v5306
    %v5541 = vsel %vm2952, %v5533, %v5307
    %v5542 = vsel %vm2952, %v5534, %v5308
    %v5543 = vld [vmem:[#allocation5 + $0x100] sm:$0xff]
    %v5544 = vld [vmem:[#allocation5 + $0x108] sm:$0xff]
    %v5545 = vld [vmem:[#allocation5 + $0x110] sm:$0xff]
    %v5546 = vld [vmem:[#allocation5 + $0x118] sm:$0xff]
    %v5547 = vld [vmem:[#allocation5 + $0x120] sm:$0xff]
    %v5548 = vld [vmem:[#allocation5 + $0x128] sm:$0xff]
    %v5549 = vld [vmem:[#allocation5 + $0x130] sm:$0xff]
    %v5550 = vld [vmem:[#allocation5 + $0x138] sm:$0xff]
    %v5551 = vpack.c.bf16 %v5539, %v5539
    %v5552 = vpack.c.bf16 %v5540, %v5540
    %5553 = vmatprep.subr.bf16.mxu0 %v4482
    %5554 = vmatpush1.bf16.msra.mxu0 %v4481
    %5555 = vmatprep.subr.bf16.mxu0 %v4490
    %5556 = vmatpush1.bf16.msra.mxu0 %v4489
    %5557 = vmatprep.subr.bf16.mxu0 %v4498
    %5558 = vmatpush1.bf16.msra.mxu0 %v4497
    %5559 = vmatprep.subr.bf16.mxu0 %v4506
    %5560 = vmatpush1.bf16.msra.mxu0 %v4505
    %5561 = vmatprep.subr.bf16.mxu0 %v4514
    %5562 = vmatpush1.bf16.msra.mxu0 %v4513
    %5563 = vmatprep.subr.bf16.mxu0 %v4522
    %5564 = vmatpush1.bf16.msra.mxu0 %v4521
    %5565 = vmatprep.subr.bf16.mxu0 %v4530
    %5566 = vmatpush1.bf16.msra.mxu0 %v4529
    %5567 = vmatprep.subr.bf16.mxu0 %v4538
    %5568 = vmatpush1.bf16.msra.mxu0 %v4537
    %5569 = vmatprep.subr.bf16.mxu0 %v4546
    %5570 = vmatpush1.bf16.msra.mxu0 %v4545
    %5571 = vmatprep.subr.bf16.mxu0 %v4554
    %5572 = vmatpush1.bf16.msra.mxu0 %v4553
    %5573 = vmatprep.subr.bf16.mxu0 %v4562
    %5574 = vmatpush1.bf16.msra.mxu0 %v4561
    %5575 = vmatprep.subr.bf16.mxu0 %v4570
    %5576 = vmatpush1.bf16.msra.mxu0 %v4569
    %5577 = vmatprep.subr.bf16.mxu0 %v4578
    %5578 = vmatpush1.bf16.msra.mxu0 %v4577
    %5579 = vmatprep.subr.bf16.mxu0 %v4586
    %5580 = vmatpush1.bf16.msra.mxu0 %v4585
    %5581 = vmatprep.subr.bf16.mxu0 %v4594
    %5582 = vmatpush1.bf16.msra.mxu0 %v4593
    %5583 = vmatprep.subr.bf16.mxu0 %v4602
    %5584 = vmatpush1.bf16.msra.mxu0 %v4601
    %5585 = vmatprep.mubr.bf16.mxu0 %v5552
    %5586 = vmatmul.mubr.bf16.gmra.mrb[0].mxu0 %v5551
    %v5587 = vpop.f32.mrb[0].mxu0
    %v5588 = vadd.f32 0.0, %v5587
    %v5589 = vpop.f32.mrb[0].mxu0
    %v5590 = vadd.f32 0.0, %v5589
    %v5591 = vpop.f32.mrb[0].mxu0
    %v5592 = vpop.f32.mrb[0].mxu0
    %5593 = vdwg.mxu0
    %5594 = vmatprep.subr.bf16.mxu0 %v4484
    %5595 = vmatpush1.bf16.msra.mxu0 %v4483
    %5596 = vmatprep.subr.bf16.mxu0 %v4492
    %5597 = vmatpush1.bf16.msra.mxu0 %v4491
    %5598 = vmatprep.subr.bf16.mxu0 %v4500
    %5599 = vmatpush1.bf16.msra.mxu0 %v4499
    %5600 = vmatprep.subr.bf16.mxu0 %v4508
    %5601 = vmatpush1.bf16.msra.mxu0 %v4507
    %5602 = vmatprep.subr.bf16.mxu0 %v4516
    %5603 = vmatpush1.bf16.msra.mxu0 %v4515
    %5604 = vmatprep.subr.bf16.mxu0 %v4524
    %5605 = vmatpush1.bf16.msra.mxu0 %v4523
    %5606 = vmatprep.subr.bf16.mxu0 %v4532
    %5607 = vmatpush1.bf16.msra.mxu0 %v4531
    %5608 = vmatprep.subr.bf16.mxu0 %v4540
    %5609 = vmatpush1.bf16.msra.mxu0 %v4539
    %5610 = vmatprep.subr.bf16.mxu0 %v4548
    %5611 = vmatpush1.bf16.msra.mxu0 %v4547
    %5612 = vmatprep.subr.bf16.mxu0 %v4556
    %5613 = vmatpush1.bf16.msra.mxu0 %v4555
    %5614 = vmatprep.subr.bf16.mxu0 %v4564
    %5615 = vmatpush1.bf16.msra.mxu0 %v4563
    %5616 = vmatprep.subr.bf16.mxu0 %v4572
    %5617 = vmatpush1.bf16.msra.mxu0 %v4571
    %5618 = vmatprep.subr.bf16.mxu0 %v4580
    %5619 = vmatpush1.bf16.msra.mxu0 %v4579
    %5620 = vmatprep.subr.bf16.mxu0 %v4588
    %5621 = vmatpush1.bf16.msra.mxu0 %v4587
    %5622 = vmatprep.subr.bf16.mxu0 %v4596
    %5623 = vmatpush1.bf16.msra.mxu0 %v4595
    %5624 = vmatprep.subr.bf16.mxu0 %v4604
    %5625 = vmatpush1.bf16.msra.mxu0 %v4603
    %5626 = vmatprep.mubr.bf16.mxu0 %v5552
    %5627 = vmatmul.mubr.bf16.gmra.mrb[0].mxu0 %v5551
    %v5628 = vpop.f32.mrb[0].mxu0
    %v5629 = vadd.f32 0.0, %v5628
    %v5630 = vpop.f32.mrb[0].mxu0
    %v5631 = vadd.f32 0.0, %v5630
    %v5632 = vpop.f32.mrb[0].mxu0
    %v5633 = vpop.f32.mrb[0].mxu0
    %5634 = vdwg.mxu0
    %5635 = vmatprep.subr.bf16.mxu0 %v4486
    %5636 = vmatpush1.bf16.msra.mxu0 %v4485
    %5637 = vmatprep.subr.bf16.mxu0 %v4494
    %5638 = vmatpush1.bf16.msra.mxu0 %v4493
    %5639 = vmatprep.subr.bf16.mxu0 %v4502
    %5640 = vmatpush1.bf16.msra.mxu0 %v4501
    %5641 = vmatprep.subr.bf16.mxu0 %v4510
    %5642 = vmatpush1.bf16.msra.mxu0 %v4509
    %5643 = vmatprep.subr.bf16.mxu0 %v4518
    %5644 = vmatpush1.bf16.msra.mxu0 %v4517
    %5645 = vmatprep.subr.bf16.mxu0 %v4526
    %5646 = vmatpush1.bf16.msra.mxu0 %v4525
    %5647 = vmatprep.subr.bf16.mxu0 %v4534
    %5648 = vmatpush1.bf16.msra.mxu0 %v4533
    %5649 = vmatprep.subr.bf16.mxu0 %v4542
    %5650 = vmatpush1.bf16.msra.mxu0 %v4541
    %5651 = vmatprep.subr.bf16.mxu0 %v4550
    %5652 = vmatpush1.bf16.msra.mxu0 %v4549
    %5653 = vmatprep.subr.bf16.mxu0 %v4558
    %5654 = vmatpush1.bf16.msra.mxu0 %v4557
    %5655 = vmatprep.subr.bf16.mxu0 %v4566
    %5656 = vmatpush1.bf16.msra.mxu0 %v4565
    %5657 = vmatprep.subr.bf16.mxu0 %v4574
    %5658 = vmatpush1.bf16.msra.mxu0 %v4573
    %5659 = vmatprep.subr.bf16.mxu0 %v4582
    %5660 = vmatpush1.bf16.msra.mxu0 %v4581
    %5661 = vmatprep.subr.bf16.mxu0 %v4590
    %5662 = vmatpush1.bf16.msra.mxu0 %v4589
    %5663 = vmatprep.subr.bf16.mxu0 %v4598
    %5664 = vmatpush1.bf16.msra.mxu0 %v4597
    %5665 = vmatprep.subr.bf16.mxu0 %v4606
    %5666 = vmatpush1.bf16.msra.mxu0 %v4605
    %5667 = vmatprep.mubr.bf16.mxu0 %v5552
    %5668 = vmatmul.mubr.bf16.gmra.mrb[0].mxu0 %v5551
    %v5669 = vpop.f32.mrb[0].mxu0
    %v5670 = vadd.f32 0.0, %v5669
    %v5671 = vpop.f32.mrb[0].mxu0
    %v5672 = vadd.f32 0.0, %v5671
    %v5673 = vpop.f32.mrb[0].mxu0
    %v5674 = vpop.f32.mrb[0].mxu0
    %5675 = vdwg.mxu0
    %5676 = vmatprep.subr.bf16.mxu0 %v4488
    %5677 = vmatpush1.bf16.msra.mxu0 %v4487
    %5678 = vmatprep.subr.bf16.mxu0 %v4496
    %5679 = vmatpush1.bf16.msra.mxu0 %v4495
    %5680 = vmatprep.subr.bf16.mxu0 %v4504
    %5681 = vmatpush1.bf16.msra.mxu0 %v4503
    %5682 = vmatprep.subr.bf16.mxu0 %v4512
    %5683 = vmatpush1.bf16.msra.mxu0 %v4511
    %5684 = vmatprep.subr.bf16.mxu0 %v4520
    %5685 = vmatpush1.bf16.msra.mxu0 %v4519
    %5686 = vmatprep.subr.bf16.mxu0 %v4528
    %5687 = vmatpush1.bf16.msra.mxu0 %v4527
    %5688 = vmatprep.subr.bf16.mxu0 %v4536
    %5689 = vmatpush1.bf16.msra.mxu0 %v4535
    %5690 = vmatprep.subr.bf16.mxu0 %v4544
    %5691 = vmatpush1.bf16.msra.mxu0 %v4543
    %5692 = vmatprep.subr.bf16.mxu0 %v4552
    %5693 = vmatpush1.bf16.msra.mxu0 %v4551
    %5694 = vmatprep.subr.bf16.mxu0 %v4560
    %5695 = vmatpush1.bf16.msra.mxu0 %v4559
    %5696 = vmatprep.subr.bf16.mxu0 %v4568
    %5697 = vmatpush1.bf16.msra.mxu0 %v4567
    %5698 = vmatprep.subr.bf16.mxu0 %v4576
    %5699 = vmatpush1.bf16.msra.mxu0 %v4575
    %5700 = vmatprep.subr.bf16.mxu0 %v4584
    %5701 = vmatpush1.bf16.msra.mxu0 %v4583
    %5702 = vmatprep.subr.bf16.mxu0 %v4592
    %5703 = vmatpush1.bf16.msra.mxu0 %v4591
    %5704 = vmatprep.subr.bf16.mxu0 %v4600
    %5705 = vmatpush1.bf16.msra.mxu0 %v4599
    %5706 = vmatprep.subr.bf16.mxu0 %v4608
    %5707 = vmatpush1.bf16.msra.mxu0 %v4607
    %5708 = vmatprep.mubr.bf16.mxu0 %v5552
    %5709 = vmatmul.mubr.bf16.gmra.mrb[0].mxu0 %v5551
    %v5710 = vpop.f32.mrb[0].mxu0
    %v5711 = vadd.f32 0.0, %v5710
    %v5712 = vpop.f32.mrb[0].mxu0
    %v5713 = vadd.f32 0.0, %v5712
    %v5714 = vpop.f32.mrb[0].mxu0
    %v5715 = vpop.f32.mrb[0].mxu0
    %5716 = vdwg.mxu0
    %v5717 = vadd.f32 %v5543, %v5588
    %v5718 = vadd.f32 %v5544, %v5590
    %v5719 = vadd.f32 %v5545, %v5629
    %v5720 = vadd.f32 %v5546, %v5631
    %v5721 = vadd.f32 %v5547, %v5670
    %v5722 = vadd.f32 %v5548, %v5672
    %v5723 = vadd.f32 %v5549, %v5711
    %v5724 = vadd.f32 %v5550, %v5713
    %v5725 = vxor.u32 %v5717, 2147483648
    %v5726 = vxor.u32 %v5718, 2147483648
    %v5727 = vmul.f32 %v5725, 1.442695
    %v5728 = vpow.pop %v5727
    %v5729 = vmul.f32 %v5726, 1.442695
    %v5730 = vpow.pop %v5729
    %v5731 = vadd.f32 %v5728, 1.0
    %v5732 = vadd.f32 %v5730, 1.0
    %v5733 = vrcp.pop %v5731
    %v5734 = vmul.f32 1.0, %v5733
    %v5735 = vrcp.pop %v5732
    %v5736 = vmul.f32 1.0, %v5735
    %v5737 = vxor.u32 %v5719, 2147483648
    %v5738 = vxor.u32 %v5720, 2147483648
    %v5739 = vmul.f32 %v5737, 1.442695
    %v5740 = vpow.pop %v5739
    %v5741 = vmul.f32 %v5738, 1.442695
    %v5742 = vpow.pop %v5741
    %v5743 = vadd.f32 %v5740, 1.0
    %v5744 = vadd.f32 %v5742, 1.0
    %v5745 = vrcp.pop %v5743
    %v5746 = vmul.f32 1.0, %v5745
    %v5747 = vrcp.pop %v5744
    %v5748 = vmul.f32 1.0, %v5747
    %v5749 = vtanh.pop %v5721
    %v5750 = vtanh.pop %v5722
    %v5751 = vxor.u32 %v5723, 2147483648
    %v5752 = vxor.u32 %v5724, 2147483648
    %v5753 = vmul.f32 %v5751, 1.442695
    %v5754 = vpow.pop %v5753
    %v5755 = vmul.f32 %v5752, 1.442695
    %v5756 = vpow.pop %v5755
    %v5757 = vadd.f32 %v5754, 1.0
    %v5758 = vadd.f32 %v5756, 1.0
    %v5759 = vrcp.pop %v5757
    %v5760 = vmul.f32 1.0, %v5759
    %v5761 = vrcp.pop %v5758
    %v5762 = vmul.f32 1.0, %v5761
    %v5763 = vmul.f32 %v5746, %v5541
    %v5764 = vmul.f32 %v5748, %v5542
    %v5765 = vmul.f32 %v5734, %v5749
    %v5766 = vmul.f32 %v5736, %v5750
    %v5767 = vadd.f32 %v5763, %v5765
    %v5768 = vadd.f32 %v5764, %v5766
    %v5769 = vtanh.pop %v5767
    %v5770 = vtanh.pop %v5768
    %v5771 = vmul.f32 %v5760, %v5769
    %v5772 = vmul.f32 %v5762, %v5770
    %v5773 = vsel %vm3194, %v5771, %v5539
    %v5774 = vsel %vm3194, %v5772, %v5540
    %v5775 = vsel %vm3194, %v5767, %v5541
    %v5776 = vsel %vm3194, %v5768, %v5542
    %v5777 = vld [vmem:[#allocation5 + $0x140] sm:$0xff]
    %v5778 = vld [vmem:[#allocation5 + $0x148] sm:$0xff]
    %v5779 = vld [vmem:[#allocation5 + $0x150] sm:$0xff]
    %v5780 = vld [vmem:[#allocation5 + $0x158] sm:$0xff]
    %v5781 = vld [vmem:[#allocation5 + $0x160] sm:$0xff]
    %v5782 = vld [vmem:[#allocation5 + $0x168] sm:$0xff]
    %v5783 = vld [vmem:[#allocation5 + $0x170] sm:$0xff]
    %v5784 = vld [vmem:[#allocation5 + $0x178] sm:$0xff]
    %v5785 = vpack.c.bf16 %v5773, %v5773
    %v5786 = vpack.c.bf16 %v5774, %v5774
    %5787 = vmatprep.subr.bf16.mxu0 %v4482
    %5788 = vmatpush1.bf16.msra.mxu0 %v4481
    %5789 = vmatprep.subr.bf16.mxu0 %v4490
    %5790 = vmatpush1.bf16.msra.mxu0 %v4489
    %5791 = vmatprep.subr.bf16.mxu0 %v4498
    %5792 = vmatpush1.bf16.msra.mxu0 %v4497
    %5793 = vmatprep.subr.bf16.mxu0 %v4506
    %5794 = vmatpush1.bf16.msra.mxu0 %v4505
    %5795 = vmatprep.subr.bf16.mxu0 %v4514
    %5796 = vmatpush1.bf16.msra.mxu0 %v4513
    %5797 = vmatprep.subr.bf16.mxu0 %v4522
    %5798 = vmatpush1.bf16.msra.mxu0 %v4521
    %5799 = vmatprep.subr.bf16.mxu0 %v4530
    %5800 = vmatpush1.bf16.msra.mxu0 %v4529
    %5801 = vmatprep.subr.bf16.mxu0 %v4538
    %5802 = vmatpush1.bf16.msra.mxu0 %v4537
    %5803 = vmatprep.subr.bf16.mxu0 %v4546
    %5804 = vmatpush1.bf16.msra.mxu0 %v4545
    %5805 = vmatprep.subr.bf16.mxu0 %v4554
    %5806 = vmatpush1.bf16.msra.mxu0 %v4553
    %5807 = vmatprep.subr.bf16.mxu0 %v4562
    %5808 = vmatpush1.bf16.msra.mxu0 %v4561
    %5809 = vmatprep.subr.bf16.mxu0 %v4570
    %5810 = vmatpush1.bf16.msra.mxu0 %v4569
    %5811 = vmatprep.subr.bf16.mxu0 %v4578
    %5812 = vmatpush1.bf16.msra.mxu0 %v4577
    %5813 = vmatprep.subr.bf16.mxu0 %v4586
    %5814 = vmatpush1.bf16.msra.mxu0 %v4585
    %5815 = vmatprep.subr.bf16.mxu0 %v4594
    %5816 = vmatpush1.bf16.msra.mxu0 %v4593
    %5817 = vmatprep.subr.bf16.mxu0 %v4602
    %5818 = vmatpush1.bf16.msra.mxu0 %v4601
    %5819 = vmatprep.mubr.bf16.mxu0 %v5786
    %5820 = vmatmul.mubr.bf16.gmra.mrb[0].mxu0 %v5785
    %v5821 = vpop.f32.mrb[0].mxu0
    %v5822 = vadd.f32 0.0, %v5821
    %v5823 = vpop.f32.mrb[0].mxu0
    %v5824 = vadd.f32 0.0, %v5823
    %v5825 = vpop.f32.mrb[0].mxu0
    %v5826 = vpop.f32.mrb[0].mxu0
    %5827 = vdwg.mxu0
    %5828 = vmatprep.subr.bf16.mxu0 %v4484
    %5829 = vmatpush1.bf16.msra.mxu0 %v4483
    %5830 = vmatprep.subr.bf16.mxu0 %v4492
    %5831 = vmatpush1.bf16.msra.mxu0 %v4491
    %5832 = vmatprep.subr.bf16.mxu0 %v4500
    %5833 = vmatpush1.bf16.msra.mxu0 %v4499
    %5834 = vmatprep.subr.bf16.mxu0 %v4508
    %5835 = vmatpush1.bf16.msra.mxu0 %v4507
    %5836 = vmatprep.subr.bf16.mxu0 %v4516
    %5837 = vmatpush1.bf16.msra.mxu0 %v4515
    %5838 = vmatprep.subr.bf16.mxu0 %v4524
    %5839 = vmatpush1.bf16.msra.mxu0 %v4523
    %5840 = vmatprep.subr.bf16.mxu0 %v4532
    %5841 = vmatpush1.bf16.msra.mxu0 %v4531
    %5842 = vmatprep.subr.bf16.mxu0 %v4540
    %5843 = vmatpush1.bf16.msra.mxu0 %v4539
    %5844 = vmatprep.subr.bf16.mxu0 %v4548
    %5845 = vmatpush1.bf16.msra.mxu0 %v4547
    %5846 = vmatprep.subr.bf16.mxu0 %v4556
    %5847 = vmatpush1.bf16.msra.mxu0 %v4555
    %5848 = vmatprep.subr.bf16.mxu0 %v4564
    %5849 = vmatpush1.bf16.msra.mxu0 %v4563
    %5850 = vmatprep.subr.bf16.mxu0 %v4572
    %5851 = vmatpush1.bf16.msra.mxu0 %v4571
    %5852 = vmatprep.subr.bf16.mxu0 %v4580
    %5853 = vmatpush1.bf16.msra.mxu0 %v4579
    %5854 = vmatprep.subr.bf16.mxu0 %v4588
    %5855 = vmatpush1.bf16.msra.mxu0 %v4587
    %5856 = vmatprep.subr.bf16.mxu0 %v4596
    %5857 = vmatpush1.bf16.msra.mxu0 %v4595
    %5858 = vmatprep.subr.bf16.mxu0 %v4604
    %5859 = vmatpush1.bf16.msra.mxu0 %v4603
    %5860 = vmatprep.mubr.bf16.mxu0 %v5786
    %5861 = vmatmul.mubr.bf16.gmra.mrb[0].mxu0 %v5785
    %v5862 = vpop.f32.mrb[0].mxu0
    %v5863 = vadd.f32 0.0, %v5862
    %v5864 = vpop.f32.mrb[0].mxu0
    %v5865 = vadd.f32 0.0, %v5864
    %v5866 = vpop.f32.mrb[0].mxu0
    %v5867 = vpop.f32.mrb[0].mxu0
    %5868 = vdwg.mxu0
    %5869 = vmatprep.subr.bf16.mxu0 %v4486
    %5870 = vmatpush1.bf16.msra.mxu0 %v4485
    %5871 = vmatprep.subr.bf16.mxu0 %v4494
    %5872 = vmatpush1.bf16.msra.mxu0 %v4493
    %5873 = vmatprep.subr.bf16.mxu0 %v4502
    %5874 = vmatpush1.bf16.msra.mxu0 %v4501
    %5875 = vmatprep.subr.bf16.mxu0 %v4510
    %5876 = vmatpush1.bf16.msra.mxu0 %v4509
    %5877 = vmatprep.subr.bf16.mxu0 %v4518
    %5878 = vmatpush1.bf16.msra.mxu0 %v4517
    %5879 = vmatprep.subr.bf16.mxu0 %v4526
    %5880 = vmatpush1.bf16.msra.mxu0 %v4525
    %5881 = vmatprep.subr.bf16.mxu0 %v4534
    %5882 = vmatpush1.bf16.msra.mxu0 %v4533
    %5883 = vmatprep.subr.bf16.mxu0 %v4542
    %5884 = vmatpush1.bf16.msra.mxu0 %v4541
    %5885 = vmatprep.subr.bf16.mxu0 %v4550
    %5886 = vmatpush1.bf16.msra.mxu0 %v4549
    %5887 = vmatprep.subr.bf16.mxu0 %v4558
    %5888 = vmatpush1.bf16.msra.mxu0 %v4557
    %5889 = vmatprep.subr.bf16.mxu0 %v4566
    %5890 = vmatpush1.bf16.msra.mxu0 %v4565
    %5891 = vmatprep.subr.bf16.mxu0 %v4574
    %5892 = vmatpush1.bf16.msra.mxu0 %v4573
    %5893 = vmatprep.subr.bf16.mxu0 %v4582
    %5894 = vmatpush1.bf16.msra.mxu0 %v4581
    %5895 = vmatprep.subr.bf16.mxu0 %v4590
    %5896 = vmatpush1.bf16.msra.mxu0 %v4589
    %5897 = vmatprep.subr.bf16.mxu0 %v4598
    %5898 = vmatpush1.bf16.msra.mxu0 %v4597
    %5899 = vmatprep.subr.bf16.mxu0 %v4606
    %5900 = vmatpush1.bf16.msra.mxu0 %v4605
    %5901 = vmatprep.mubr.bf16.mxu0 %v5786
    %5902 = vmatmul.mubr.bf16.gmra.mrb[0].mxu0 %v5785
    %v5903 = vpop.f32.mrb[0].mxu0
    %v5904 = vadd.f32 0.0, %v5903
    %v5905 = vpop.f32.mrb[0].mxu0
    %v5906 = vadd.f32 0.0, %v5905
    %v5907 = vpop.f32.mrb[0].mxu0
    %v5908 = vpop.f32.mrb[0].mxu0
    %5909 = vdwg.mxu0
    %5910 = vmatprep.subr.bf16.mxu0 %v4488
    %5911 = vmatpush1.bf16.msra.mxu0 %v4487
    %5912 = vmatprep.subr.bf16.mxu0 %v4496
    %5913 = vmatpush1.bf16.msra.mxu0 %v4495
    %5914 = vmatprep.subr.bf16.mxu0 %v4504
    %5915 = vmatpush1.bf16.msra.mxu0 %v4503
    %5916 = vmatprep.subr.bf16.mxu0 %v4512
    %5917 = vmatpush1.bf16.msra.mxu0 %v4511
    %5918 = vmatprep.subr.bf16.mxu0 %v4520
    %5919 = vmatpush1.bf16.msra.mxu0 %v4519
    %5920 = vmatprep.subr.bf16.mxu0 %v4528
    %5921 = vmatpush1.bf16.msra.mxu0 %v4527
    %5922 = vmatprep.subr.bf16.mxu0 %v4536
    %5923 = vmatpush1.bf16.msra.mxu0 %v4535
    %5924 = vmatprep.subr.bf16.mxu0 %v4544
    %5925 = vmatpush1.bf16.msra.mxu0 %v4543
    %5926 = vmatprep.subr.bf16.mxu0 %v4552
    %5927 = vmatpush1.bf16.msra.mxu0 %v4551
    %5928 = vmatprep.subr.bf16.mxu0 %v4560
    %5929 = vmatpush1.bf16.msra.mxu0 %v4559
    %5930 = vmatprep.subr.bf16.mxu0 %v4568
    %5931 = vmatpush1.bf16.msra.mxu0 %v4567
    %5932 = vmatprep.subr.bf16.mxu0 %v4576
    %5933 = vmatpush1.bf16.msra.mxu0 %v4575
    %5934 = vmatprep.subr.bf16.mxu0 %v4584
    %5935 = vmatpush1.bf16.msra.mxu0 %v4583
    %5936 = vmatprep.subr.bf16.mxu0 %v4592
    %5937 = vmatpush1.bf16.msra.mxu0 %v4591
    %5938 = vmatprep.subr.bf16.mxu0 %v4600
    %5939 = vmatpush1.bf16.msra.mxu0 %v4599
    %5940 = vmatprep.subr.bf16.mxu0 %v4608
    %5941 = vmatpush1.bf16.msra.mxu0 %v4607
    %5942 = vmatprep.mubr.bf16.mxu0 %v5786
    %5943 = vmatmul.mubr.bf16.gmra.mrb[0].mxu0 %v5785
    %v5944 = vpop.f32.mrb[0].mxu0
    %v5945 = vadd.f32 0.0, %v5944
    %v5946 = vpop.f32.mrb[0].mxu0
    %v5947 = vadd.f32 0.0, %v5946
    %v5948 = vpop.f32.mrb[0].mxu0
    %v5949 = vpop.f32.mrb[0].mxu0
    %5950 = vdwg.mxu0
    %v5951 = vadd.f32 %v5777, %v5822
    %v5952 = vadd.f32 %v5778, %v5824
    %v5953 = vadd.f32 %v5779, %v5863
    %v5954 = vadd.f32 %v5780, %v5865
    %v5955 = vadd.f32 %v5781, %v5904
    %v5956 = vadd.f32 %v5782, %v5906
    %v5957 = vadd.f32 %v5783, %v5945
    %v5958 = vadd.f32 %v5784, %v5947
    %v5959 = vxor.u32 %v5951, 2147483648
    %v5960 = vxor.u32 %v5952, 2147483648
    %v5961 = vmul.f32 %v5959, 1.442695
    %v5962 = vpow.pop %v5961
    %v5963 = vmul.f32 %v5960, 1.442695
    %v5964 = vpow.pop %v5963
    %v5965 = vadd.f32 %v5962, 1.0
    %v5966 = vadd.f32 %v5964, 1.0
    %v5967 = vrcp.pop %v5965
    %v5968 = vmul.f32 1.0, %v5967
    %v5969 = vrcp.pop %v5966
    %v5970 = vmul.f32 1.0, %v5969
    %v5971 = vxor.u32 %v5953, 2147483648
    %v5972 = vxor.u32 %v5954, 2147483648
    %v5973 = vmul.f32 %v5971, 1.442695
    %v5974 = vpow.pop %v5973
    %v5975 = vmul.f32 %v5972, 1.442695
    %v5976 = vpow.pop %v5975
    %v5977 = vadd.f32 %v5974, 1.0
    %v5978 = vadd.f32 %v5976, 1.0
    %v5979 = vrcp.pop %v5977
    %v5980 = vmul.f32 1.0, %v5979
    %v5981 = vrcp.pop %v5978
    %v5982 = vmul.f32 1.0, %v5981
    %v5983 = vtanh.pop %v5955
    %v5984 = vtanh.pop %v5956
    %v5985 = vxor.u32 %v5957, 2147483648
    %v5986 = vxor.u32 %v5958, 2147483648
    %v5987 = vmul.f32 %v5985, 1.442695
    %v5988 = vpow.pop %v5987
    %v5989 = vmul.f32 %v5986, 1.442695
    %v5990 = vpow.pop %v5989
    %v5991 = vadd.f32 %v5988, 1.0
    %v5992 = vadd.f32 %v5990, 1.0
    %v5993 = vrcp.pop %v5991
    %v5994 = vmul.f32 1.0, %v5993
    %v5995 = vrcp.pop %v5992
    %v5996 = vmul.f32 1.0, %v5995
    %v5997 = vmul.f32 %v5980, %v5775
    %v5998 = vmul.f32 %v5982, %v5776
    %v5999 = vmul.f32 %v5968, %v5983
    %v6000 = vmul.f32 %v5970, %v5984
    %v6001 = vadd.f32 %v5997, %v5999
    %v6002 = vadd.f32 %v5998, %v6000
    %v6003 = vtanh.pop %v6001
    %v6004 = vtanh.pop %v6002
    %v6005 = vmul.f32 %v5994, %v6003
    %v6006 = vmul.f32 %v5996, %v6004
    %v6007 = vsel %vm3436, %v6005, %v5773
    %v6008 = vsel %vm3436, %v6006, %v5774
    %v6009 = vsel %vm3436, %v6001, %v5775
    %v6010 = vsel %vm3436, %v6002, %v5776
    %v6011 = vld [vmem:[#allocation5 + $0x180] sm:$0xff]
    %v6012 = vld [vmem:[#allocation5 + $0x188] sm:$0xff]
    %v6013 = vld [vmem:[#allocation5 + $0x190] sm:$0xff]
    %v6014 = vld [vmem:[#allocation5 + $0x198] sm:$0xff]
    %v6015 = vld [vmem:[#allocation5 + $0x1a0] sm:$0xff]
    %v6016 = vld [vmem:[#allocation5 + $0x1a8] sm:$0xff]
    %v6017 = vld [vmem:[#allocation5 + $0x1b0] sm:$0xff]
    %v6018 = vld [vmem:[#allocation5 + $0x1b8] sm:$0xff]
    %v6019 = vpack.c.bf16 %v6007, %v6007
    %v6020 = vpack.c.bf16 %v6008, %v6008
    %6021 = vmatprep.subr.bf16.mxu0 %v4482
    %6022 = vmatpush1.bf16.msra.mxu0 %v4481
    %6023 = vmatprep.subr.bf16.mxu0 %v4490
    %6024 = vmatpush1.bf16.msra.mxu0 %v4489
    %6025 = vmatprep.subr.bf16.mxu0 %v4498
    %6026 = vmatpush1.bf16.msra.mxu0 %v4497
    %6027 = vmatprep.subr.bf16.mxu0 %v4506
    %6028 = vmatpush1.bf16.msra.mxu0 %v4505
    %6029 = vmatprep.subr.bf16.mxu0 %v4514
    %6030 = vmatpush1.bf16.msra.mxu0 %v4513
    %6031 = vmatprep.subr.bf16.mxu0 %v4522
    %6032 = vmatpush1.bf16.msra.mxu0 %v4521
    %6033 = vmatprep.subr.bf16.mxu0 %v4530
    %6034 = vmatpush1.bf16.msra.mxu0 %v4529
    %6035 = vmatprep.subr.bf16.mxu0 %v4538
    %6036 = vmatpush1.bf16.msra.mxu0 %v4537
    %6037 = vmatprep.subr.bf16.mxu0 %v4546
    %6038 = vmatpush1.bf16.msra.mxu0 %v4545
    %6039 = vmatprep.subr.bf16.mxu0 %v4554
    %6040 = vmatpush1.bf16.msra.mxu0 %v4553
    %6041 = vmatprep.subr.bf16.mxu0 %v4562
    %6042 = vmatpush1.bf16.msra.mxu0 %v4561
    %6043 = vmatprep.subr.bf16.mxu0 %v4570
    %6044 = vmatpush1.bf16.msra.mxu0 %v4569
    %6045 = vmatprep.subr.bf16.mxu0 %v4578
    %6046 = vmatpush1.bf16.msra.mxu0 %v4577
    %6047 = vmatprep.subr.bf16.mxu0 %v4586
    %6048 = vmatpush1.bf16.msra.mxu0 %v4585
    %6049 = vmatprep.subr.bf16.mxu0 %v4594
    %6050 = vmatpush1.bf16.msra.mxu0 %v4593
    %6051 = vmatprep.subr.bf16.mxu0 %v4602
    %6052 = vmatpush1.bf16.msra.mxu0 %v4601
    %6053 = vmatprep.mubr.bf16.mxu0 %v6020
    %6054 = vmatmul.mubr.bf16.gmra.mrb[0].mxu0 %v6019
    %v6055 = vpop.f32.mrb[0].mxu0
    %v6056 = vadd.f32 0.0, %v6055
    %v6057 = vpop.f32.mrb[0].mxu0
    %v6058 = vadd.f32 0.0, %v6057
    %v6059 = vpop.f32.mrb[0].mxu0
    %v6060 = vpop.f32.mrb[0].mxu0
    %6061 = vdwg.mxu0
    %6062 = vmatprep.subr.bf16.mxu0 %v4484
    %6063 = vmatpush1.bf16.msra.mxu0 %v4483
    %6064 = vmatprep.subr.bf16.mxu0 %v4492
    %6065 = vmatpush1.bf16.msra.mxu0 %v4491
    %6066 = vmatprep.subr.bf16.mxu0 %v4500
    %6067 = vmatpush1.bf16.msra.mxu0 %v4499
    %6068 = vmatprep.subr.bf16.mxu0 %v4508
    %6069 = vmatpush1.bf16.msra.mxu0 %v4507
    %6070 = vmatprep.subr.bf16.mxu0 %v4516
    %6071 = vmatpush1.bf16.msra.mxu0 %v4515
    %6072 = vmatprep.subr.bf16.mxu0 %v4524
    %6073 = vmatpush1.bf16.msra.mxu0 %v4523
    %6074 = vmatprep.subr.bf16.mxu0 %v4532
    %6075 = vmatpush1.bf16.msra.mxu0 %v4531
    %6076 = vmatprep.subr.bf16.mxu0 %v4540
    %6077 = vmatpush1.bf16.msra.mxu0 %v4539
    %6078 = vmatprep.subr.bf16.mxu0 %v4548
    %6079 = vmatpush1.bf16.msra.mxu0 %v4547
    %6080 = vmatprep.subr.bf16.mxu0 %v4556
    %6081 = vmatpush1.bf16.msra.mxu0 %v4555
    %6082 = vmatprep.subr.bf16.mxu0 %v4564
    %6083 = vmatpush1.bf16.msra.mxu0 %v4563
    %6084 = vmatprep.subr.bf16.mxu0 %v4572
    %6085 = vmatpush1.bf16.msra.mxu0 %v4571
    %6086 = vmatprep.subr.bf16.mxu0 %v4580
    %6087 = vmatpush1.bf16.msra.mxu0 %v4579
    %6088 = vmatprep.subr.bf16.mxu0 %v4588
    %6089 = vmatpush1.bf16.msra.mxu0 %v4587
    %6090 = vmatprep.subr.bf16.mxu0 %v4596
    %6091 = vmatpush1.bf16.msra.mxu0 %v4595
    %6092 = vmatprep.subr.bf16.mxu0 %v4604
    %6093 = vmatpush1.bf16.msra.mxu0 %v4603
    %6094 = vmatprep.mubr.bf16.mxu0 %v6020
    %6095 = vmatmul.mubr.bf16.gmra.mrb[0].mxu0 %v6019
    %v6096 = vpop.f32.mrb[0].mxu0
    %v6097 = vadd.f32 0.0, %v6096
    %v6098 = vpop.f32.mrb[0].mxu0
    %v6099 = vadd.f32 0.0, %v6098
    %v6100 = vpop.f32.mrb[0].mxu0
    %v6101 = vpop.f32.mrb[0].mxu0
    %6102 = vdwg.mxu0
    %6103 = vmatprep.subr.bf16.mxu0 %v4486
    %6104 = vmatpush1.bf16.msra.mxu0 %v4485
    %6105 = vmatprep.subr.bf16.mxu0 %v4494
    %6106 = vmatpush1.bf16.msra.mxu0 %v4493
    %6107 = vmatprep.subr.bf16.mxu0 %v4502
    %6108 = vmatpush1.bf16.msra.mxu0 %v4501
    %6109 = vmatprep.subr.bf16.mxu0 %v4510
    %6110 = vmatpush1.bf16.msra.mxu0 %v4509
    %6111 = vmatprep.subr.bf16.mxu0 %v4518
    %6112 = vmatpush1.bf16.msra.mxu0 %v4517
    %6113 = vmatprep.subr.bf16.mxu0 %v4526
    %6114 = vmatpush1.bf16.msra.mxu0 %v4525
    %6115 = vmatprep.subr.bf16.mxu0 %v4534
    %6116 = vmatpush1.bf16.msra.mxu0 %v4533
    %6117 = vmatprep.subr.bf16.mxu0 %v4542
    %6118 = vmatpush1.bf16.msra.mxu0 %v4541
    %6119 = vmatprep.subr.bf16.mxu0 %v4550
    %6120 = vmatpush1.bf16.msra.mxu0 %v4549
    %6121 = vmatprep.subr.bf16.mxu0 %v4558
    %6122 = vmatpush1.bf16.msra.mxu0 %v4557
    %6123 = vmatprep.subr.bf16.mxu0 %v4566
    %6124 = vmatpush1.bf16.msra.mxu0 %v4565
    %6125 = vmatprep.subr.bf16.mxu0 %v4574
    %6126 = vmatpush1.bf16.msra.mxu0 %v4573
    %6127 = vmatprep.subr.bf16.mxu0 %v4582
    %6128 = vmatpush1.bf16.msra.mxu0 %v4581
    %6129 = vmatprep.subr.bf16.mxu0 %v4590
    %6130 = vmatpush1.bf16.msra.mxu0 %v4589
    %6131 = vmatprep.subr.bf16.mxu0 %v4598
    %6132 = vmatpush1.bf16.msra.mxu0 %v4597
    %6133 = vmatprep.subr.bf16.mxu0 %v4606
    %6134 = vmatpush1.bf16.msra.mxu0 %v4605
    %6135 = vmatprep.mubr.bf16.mxu0 %v6020
    %6136 = vmatmul.mubr.bf16.gmra.mrb[0].mxu0 %v6019
    %v6137 = vpop.f32.mrb[0].mxu0
    %v6138 = vadd.f32 0.0, %v6137
    %v6139 = vpop.f32.mrb[0].mxu0
    %v6140 = vadd.f32 0.0, %v6139
    %v6141 = vpop.f32.mrb[0].mxu0
    %v6142 = vpop.f32.mrb[0].mxu0
    %6143 = vdwg.mxu0
    %6144 = vmatprep.subr.bf16.mxu0 %v4488
    %6145 = vmatpush1.bf16.msra.mxu0 %v4487
    %6146 = vmatprep.subr.bf16.mxu0 %v4496
    %6147 = vmatpush1.bf16.msra.mxu0 %v4495
    %6148 = vmatprep.subr.bf16.mxu0 %v4504
    %6149 = vmatpush1.bf16.msra.mxu0 %v4503
    %6150 = vmatprep.subr.bf16.mxu0 %v4512
    %6151 = vmatpush1.bf16.msra.mxu0 %v4511
    %6152 = vmatprep.subr.bf16.mxu0 %v4520
    %6153 = vmatpush1.bf16.msra.mxu0 %v4519
    %6154 = vmatprep.subr.bf16.mxu0 %v4528
    %6155 = vmatpush1.bf16.msra.mxu0 %v4527
    %6156 = vmatprep.subr.bf16.mxu0 %v4536
    %6157 = vmatpush1.bf16.msra.mxu0 %v4535
    %6158 = vmatprep.subr.bf16.mxu0 %v4544
    %6159 = vmatpush1.bf16.msra.mxu0 %v4543
    %6160 = vmatprep.subr.bf16.mxu0 %v4552
    %6161 = vmatpush1.bf16.msra.mxu0 %v4551
    %6162 = vmatprep.subr.bf16.mxu0 %v4560
    %6163 = vmatpush1.bf16.msra.mxu0 %v4559
    %6164 = vmatprep.subr.bf16.mxu0 %v4568
    %6165 = vmatpush1.bf16.msra.mxu0 %v4567
    %6166 = vmatprep.subr.bf16.mxu0 %v4576
    %6167 = vmatpush1.bf16.msra.mxu0 %v4575
    %6168 = vmatprep.subr.bf16.mxu0 %v4584
    %6169 = vmatpush1.bf16.msra.mxu0 %v4583
    %6170 = vmatprep.subr.bf16.mxu0 %v4592
    %6171 = vmatpush1.bf16.msra.mxu0 %v4591
    %6172 = vmatprep.subr.bf16.mxu0 %v4600
    %6173 = vmatpush1.bf16.msra.mxu0 %v4599
    %6174 = vmatprep.subr.bf16.mxu0 %v4608
    %6175 = vmatpush1.bf16.msra.mxu0 %v4607
    %6176 = vmatprep.mubr.bf16.mxu0 %v6020
    %6177 = vmatmul.mubr.bf16.gmra.mrb[0].mxu0 %v6019
    %v6178 = vpop.f32.mrb[0].mxu0
    %v6179 = vadd.f32 0.0, %v6178
    %v6180 = vpop.f32.mrb[0].mxu0
    %v6181 = vadd.f32 0.0, %v6180
    %v6182 = vpop.f32.mrb[0].mxu0
    %v6183 = vpop.f32.mrb[0].mxu0
    %6184 = vdwg.mxu0
    %v6185 = vadd.f32 %v6011, %v6056
    %v6186 = vadd.f32 %v6012, %v6058
    %v6187 = vadd.f32 %v6013, %v6097
    %v6188 = vadd.f32 %v6014, %v6099
    %v6189 = vadd.f32 %v6015, %v6138
    %v6190 = vadd.f32 %v6016, %v6140
    %v6191 = vadd.f32 %v6017, %v6179
    %v6192 = vadd.f32 %v6018, %v6181
    %v6193 = vxor.u32 %v6185, 2147483648
    %v6194 = vxor.u32 %v6186, 2147483648
    %v6195 = vmul.f32 %v6193, 1.442695
    %v6196 = vpow.pop %v6195
    %v6197 = vmul.f32 %v6194, 1.442695
    %v6198 = vpow.pop %v6197
    %v6199 = vadd.f32 %v6196, 1.0
    %v6200 = vadd.f32 %v6198, 1.0
    %v6201 = vrcp.pop %v6199
    %v6202 = vmul.f32 1.0, %v6201
    %v6203 = vrcp.pop %v6200
    %v6204 = vmul.f32 1.0, %v6203
    %v6205 = vxor.u32 %v6187, 2147483648
    %v6206 = vxor.u32 %v6188, 2147483648
    %v6207 = vmul.f32 %v6205, 1.442695
    %v6208 = vpow.pop %v6207
    %v6209 = vmul.f32 %v6206, 1.442695
    %v6210 = vpow.pop %v6209
    %v6211 = vadd.f32 %v6208, 1.0
    %v6212 = vadd.f32 %v6210, 1.0
    %v6213 = vrcp.pop %v6211
    %v6214 = vmul.f32 1.0, %v6213
    %v6215 = vrcp.pop %v6212
    %v6216 = vmul.f32 1.0, %v6215
    %v6217 = vtanh.pop %v6189
    %v6218 = vtanh.pop %v6190
    %v6219 = vxor.u32 %v6191, 2147483648
    %v6220 = vxor.u32 %v6192, 2147483648
    %v6221 = vmul.f32 %v6219, 1.442695
    %v6222 = vpow.pop %v6221
    %v6223 = vmul.f32 %v6220, 1.442695
    %v6224 = vpow.pop %v6223
    %v6225 = vadd.f32 %v6222, 1.0
    %v6226 = vadd.f32 %v6224, 1.0
    %v6227 = vrcp.pop %v6225
    %v6228 = vmul.f32 1.0, %v6227
    %v6229 = vrcp.pop %v6226
    %v6230 = vmul.f32 1.0, %v6229
    %v6231 = vmul.f32 %v6214, %v6009
    %v6232 = vmul.f32 %v6216, %v6010
    %v6233 = vmul.f32 %v6202, %v6217
    %v6234 = vmul.f32 %v6204, %v6218
    %v6235 = vadd.f32 %v6231, %v6233
    %v6236 = vadd.f32 %v6232, %v6234
    %v6237 = vtanh.pop %v6235
    %v6238 = vtanh.pop %v6236
    %v6239 = vmul.f32 %v6228, %v6237
    %v6240 = vmul.f32 %v6230, %v6238
    %v6241 = vsel %vm3678, %v6239, %v6007
    %v6242 = vsel %vm3678, %v6240, %v6008
    %v6243 = vsel %vm3678, %v6235, %v6009
    %v6244 = vsel %vm3678, %v6236, %v6010
    %v6245 = vld [vmem:[#allocation5 + $0x1c0] sm:$0xff]
    %v6246 = vld [vmem:[#allocation5 + $0x1c8] sm:$0xff]
    %v6247 = vld [vmem:[#allocation5 + $0x1d0] sm:$0xff]
    %v6248 = vld [vmem:[#allocation5 + $0x1d8] sm:$0xff]
    %v6249 = vld [vmem:[#allocation5 + $0x1e0] sm:$0xff]
    %v6250 = vld [vmem:[#allocation5 + $0x1e8] sm:$0xff]
    %v6251 = vld [vmem:[#allocation5 + $0x1f0] sm:$0xff]
    %v6252 = vld [vmem:[#allocation5 + $0x1f8] sm:$0xff]
    %v6253 = vpack.c.bf16 %v6241, %v6241
    %v6254 = vpack.c.bf16 %v6242, %v6242
    %6255 = vmatprep.subr.bf16.mxu0 %v4482
    %6256 = vmatpush1.bf16.msra.mxu0 %v4481
    %6257 = vmatprep.subr.bf16.mxu0 %v4490
    %6258 = vmatpush1.bf16.msra.mxu0 %v4489
    %6259 = vmatprep.subr.bf16.mxu0 %v4498
    %6260 = vmatpush1.bf16.msra.mxu0 %v4497
    %6261 = vmatprep.subr.bf16.mxu0 %v4506
    %6262 = vmatpush1.bf16.msra.mxu0 %v4505
    %6263 = vmatprep.subr.bf16.mxu0 %v4514
    %6264 = vmatpush1.bf16.msra.mxu0 %v4513
    %6265 = vmatprep.subr.bf16.mxu0 %v4522
    %6266 = vmatpush1.bf16.msra.mxu0 %v4521
    %6267 = vmatprep.subr.bf16.mxu0 %v4530
    %6268 = vmatpush1.bf16.msra.mxu0 %v4529
    %6269 = vmatprep.subr.bf16.mxu0 %v4538
    %6270 = vmatpush1.bf16.msra.mxu0 %v4537
    %6271 = vmatprep.subr.bf16.mxu0 %v4546
    %6272 = vmatpush1.bf16.msra.mxu0 %v4545
    %6273 = vmatprep.subr.bf16.mxu0 %v4554
    %6274 = vmatpush1.bf16.msra.mxu0 %v4553
    %6275 = vmatprep.subr.bf16.mxu0 %v4562
    %6276 = vmatpush1.bf16.msra.mxu0 %v4561
    %6277 = vmatprep.subr.bf16.mxu0 %v4570
    %6278 = vmatpush1.bf16.msra.mxu0 %v4569
    %6279 = vmatprep.subr.bf16.mxu0 %v4578
    %6280 = vmatpush1.bf16.msra.mxu0 %v4577
    %6281 = vmatprep.subr.bf16.mxu0 %v4586
    %6282 = vmatpush1.bf16.msra.mxu0 %v4585
    %6283 = vmatprep.subr.bf16.mxu0 %v4594
    %6284 = vmatpush1.bf16.msra.mxu0 %v4593
    %6285 = vmatprep.subr.bf16.mxu0 %v4602
    %6286 = vmatpush1.bf16.msra.mxu0 %v4601
    %6287 = vmatprep.mubr.bf16.mxu0 %v6254
    %6288 = vmatmul.mubr.bf16.gmra.mrb[0].mxu0 %v6253
    %v6289 = vpop.f32.mrb[0].mxu0
    %v6290 = vadd.f32 0.0, %v6289
    %v6291 = vpop.f32.mrb[0].mxu0
    %v6292 = vadd.f32 0.0, %v6291
    %v6293 = vpop.f32.mrb[0].mxu0
    %v6294 = vpop.f32.mrb[0].mxu0
    %6295 = vdwg.mxu0
    %6296 = vmatprep.subr.bf16.mxu0 %v4484
    %6297 = vmatpush1.bf16.msra.mxu0 %v4483
    %6298 = vmatprep.subr.bf16.mxu0 %v4492
    %6299 = vmatpush1.bf16.msra.mxu0 %v4491
    %6300 = vmatprep.subr.bf16.mxu0 %v4500
    %6301 = vmatpush1.bf16.msra.mxu0 %v4499
    %6302 = vmatprep.subr.bf16.mxu0 %v4508
    %6303 = vmatpush1.bf16.msra.mxu0 %v4507
    %6304 = vmatprep.subr.bf16.mxu0 %v4516
    %6305 = vmatpush1.bf16.msra.mxu0 %v4515
    %6306 = vmatprep.subr.bf16.mxu0 %v4524
    %6307 = vmatpush1.bf16.msra.mxu0 %v4523
    %6308 = vmatprep.subr.bf16.mxu0 %v4532
    %6309 = vmatpush1.bf16.msra.mxu0 %v4531
    %6310 = vmatprep.subr.bf16.mxu0 %v4540
    %6311 = vmatpush1.bf16.msra.mxu0 %v4539
    %6312 = vmatprep.subr.bf16.mxu0 %v4548
    %6313 = vmatpush1.bf16.msra.mxu0 %v4547
    %6314 = vmatprep.subr.bf16.mxu0 %v4556
    %6315 = vmatpush1.bf16.msra.mxu0 %v4555
    %6316 = vmatprep.subr.bf16.mxu0 %v4564
    %6317 = vmatpush1.bf16.msra.mxu0 %v4563
    %6318 = vmatprep.subr.bf16.mxu0 %v4572
    %6319 = vmatpush1.bf16.msra.mxu0 %v4571
    %6320 = vmatprep.subr.bf16.mxu0 %v4580
    %6321 = vmatpush1.bf16.msra.mxu0 %v4579
    %6322 = vmatprep.subr.bf16.mxu0 %v4588
    %6323 = vmatpush1.bf16.msra.mxu0 %v4587
    %6324 = vmatprep.subr.bf16.mxu0 %v4596
    %6325 = vmatpush1.bf16.msra.mxu0 %v4595
    %6326 = vmatprep.subr.bf16.mxu0 %v4604
    %6327 = vmatpush1.bf16.msra.mxu0 %v4603
    %6328 = vmatprep.mubr.bf16.mxu0 %v6254
    %6329 = vmatmul.mubr.bf16.gmra.mrb[0].mxu0 %v6253
    %v6330 = vpop.f32.mrb[0].mxu0
    %v6331 = vadd.f32 0.0, %v6330
    %v6332 = vpop.f32.mrb[0].mxu0
    %v6333 = vadd.f32 0.0, %v6332
    %v6334 = vpop.f32.mrb[0].mxu0
    %v6335 = vpop.f32.mrb[0].mxu0
    %6336 = vdwg.mxu0
    %6337 = vmatprep.subr.bf16.mxu0 %v4486
    %6338 = vmatpush1.bf16.msra.mxu0 %v4485
    %6339 = vmatprep.subr.bf16.mxu0 %v4494
    %6340 = vmatpush1.bf16.msra.mxu0 %v4493
    %6341 = vmatprep.subr.bf16.mxu0 %v4502
    %6342 = vmatpush1.bf16.msra.mxu0 %v4501
    %6343 = vmatprep.subr.bf16.mxu0 %v4510
    %6344 = vmatpush1.bf16.msra.mxu0 %v4509
    %6345 = vmatprep.subr.bf16.mxu0 %v4518
    %6346 = vmatpush1.bf16.msra.mxu0 %v4517
    %6347 = vmatprep.subr.bf16.mxu0 %v4526
    %6348 = vmatpush1.bf16.msra.mxu0 %v4525
    %6349 = vmatprep.subr.bf16.mxu0 %v4534
    %6350 = vmatpush1.bf16.msra.mxu0 %v4533
    %6351 = vmatprep.subr.bf16.mxu0 %v4542
    %6352 = vmatpush1.bf16.msra.mxu0 %v4541
    %6353 = vmatprep.subr.bf16.mxu0 %v4550
    %6354 = vmatpush1.bf16.msra.mxu0 %v4549
    %6355 = vmatprep.subr.bf16.mxu0 %v4558
    %6356 = vmatpush1.bf16.msra.mxu0 %v4557
    %6357 = vmatprep.subr.bf16.mxu0 %v4566
    %6358 = vmatpush1.bf16.msra.mxu0 %v4565
    %6359 = vmatprep.subr.bf16.mxu0 %v4574
    %6360 = vmatpush1.bf16.msra.mxu0 %v4573
    %6361 = vmatprep.subr.bf16.mxu0 %v4582
    %6362 = vmatpush1.bf16.msra.mxu0 %v4581
    %6363 = vmatprep.subr.bf16.mxu0 %v4590
    %6364 = vmatpush1.bf16.msra.mxu0 %v4589
    %6365 = vmatprep.subr.bf16.mxu0 %v4598
    %6366 = vmatpush1.bf16.msra.mxu0 %v4597
    %6367 = vmatprep.subr.bf16.mxu0 %v4606
    %6368 = vmatpush1.bf16.msra.mxu0 %v4605
    %6369 = vmatprep.mubr.bf16.mxu0 %v6254
    %6370 = vmatmul.mubr.bf16.gmra.mrb[0].mxu0 %v6253
    %v6371 = vpop.f32.mrb[0].mxu0
    %v6372 = vadd.f32 0.0, %v6371
    %v6373 = vpop.f32.mrb[0].mxu0
    %v6374 = vadd.f32 0.0, %v6373
    %v6375 = vpop.f32.mrb[0].mxu0
    %v6376 = vpop.f32.mrb[0].mxu0
    %6377 = vdwg.mxu0
    %6378 = vmatprep.subr.bf16.mxu0 %v4488
    %6379 = vmatpush1.bf16.msra.mxu0 %v4487
    %6380 = vmatprep.subr.bf16.mxu0 %v4496
    %6381 = vmatpush1.bf16.msra.mxu0 %v4495
    %6382 = vmatprep.subr.bf16.mxu0 %v4504
    %6383 = vmatpush1.bf16.msra.mxu0 %v4503
    %6384 = vmatprep.subr.bf16.mxu0 %v4512
    %6385 = vmatpush1.bf16.msra.mxu0 %v4511
    %6386 = vmatprep.subr.bf16.mxu0 %v4520
    %6387 = vmatpush1.bf16.msra.mxu0 %v4519
    %6388 = vmatprep.subr.bf16.mxu0 %v4528
    %6389 = vmatpush1.bf16.msra.mxu0 %v4527
    %6390 = vmatprep.subr.bf16.mxu0 %v4536
    %6391 = vmatpush1.bf16.msra.mxu0 %v4535
    %6392 = vmatprep.subr.bf16.mxu0 %v4544
    %6393 = vmatpush1.bf16.msra.mxu0 %v4543
    %6394 = vmatprep.subr.bf16.mxu0 %v4552
    %6395 = vmatpush1.bf16.msra.mxu0 %v4551
    %6396 = vmatprep.subr.bf16.mxu0 %v4560
    %6397 = vmatpush1.bf16.msra.mxu0 %v4559
    %6398 = vmatprep.subr.bf16.mxu0 %v4568
    %6399 = vmatpush1.bf16.msra.mxu0 %v4567
    %6400 = vmatprep.subr.bf16.mxu0 %v4576
    %6401 = vmatpush1.bf16.msra.mxu0 %v4575
    %6402 = vmatprep.subr.bf16.mxu0 %v4584
    %6403 = vmatpush1.bf16.msra.mxu0 %v4583
    %6404 = vmatprep.subr.bf16.mxu0 %v4592
    %6405 = vmatpush1.bf16.msra.mxu0 %v4591
    %6406 = vmatprep.subr.bf16.mxu0 %v4600
    %6407 = vmatpush1.bf16.msra.mxu0 %v4599
    %6408 = vmatprep.subr.bf16.mxu0 %v4608
    %6409 = vmatpush1.bf16.msra.mxu0 %v4607
    %6410 = vmatprep.mubr.bf16.mxu0 %v6254
    %6411 = vmatmul.mubr.bf16.gmra.mrb[0].mxu0 %v6253
    %v6412 = vpop.f32.mrb[0].mxu0
    %v6413 = vadd.f32 0.0, %v6412
    %v6414 = vpop.f32.mrb[0].mxu0
    %v6415 = vadd.f32 0.0, %v6414
    %v6416 = vpop.f32.mrb[0].mxu0
    %v6417 = vpop.f32.mrb[0].mxu0
    %6418 = vdwg.mxu0
    %v6419 = vadd.f32 %v6245, %v6290
    %v6420 = vadd.f32 %v6246, %v6292
    %v6421 = vadd.f32 %v6247, %v6331
    %v6422 = vadd.f32 %v6248, %v6333
    %v6423 = vadd.f32 %v6249, %v6372
    %v6424 = vadd.f32 %v6250, %v6374
    %v6425 = vadd.f32 %v6251, %v6413
    %v6426 = vadd.f32 %v6252, %v6415
    %v6427 = vxor.u32 %v6419, 2147483648
    %v6428 = vxor.u32 %v6420, 2147483648
    %v6429 = vmul.f32 %v6427, 1.442695
    %v6430 = vpow.pop %v6429
    %v6431 = vmul.f32 %v6428, 1.442695
    %v6432 = vpow.pop %v6431
    %v6433 = vadd.f32 %v6430, 1.0
    %v6434 = vadd.f32 %v6432, 1.0
    %v6435 = vrcp.pop %v6433
    %v6436 = vmul.f32 1.0, %v6435
    %v6437 = vrcp.pop %v6434
    %v6438 = vmul.f32 1.0, %v6437
    %v6439 = vxor.u32 %v6421, 2147483648
    %v6440 = vxor.u32 %v6422, 2147483648
    %v6441 = vmul.f32 %v6439, 1.442695
    %v6442 = vpow.pop %v6441
    %v6443 = vmul.f32 %v6440, 1.442695
    %v6444 = vpow.pop %v6443
    %v6445 = vadd.f32 %v6442, 1.0
    %v6446 = vadd.f32 %v6444, 1.0
    %v6447 = vrcp.pop %v6445
    %v6448 = vmul.f32 1.0, %v6447
    %v6449 = vrcp.pop %v6446
    %v6450 = vmul.f32 1.0, %v6449
    %v6451 = vtanh.pop %v6423
    %v6452 = vtanh.pop %v6424
    %v6453 = vxor.u32 %v6425, 2147483648
    %v6454 = vxor.u32 %v6426, 2147483648
    %v6455 = vmul.f32 %v6453, 1.442695
    %v6456 = vpow.pop %v6455
    %v6457 = vmul.f32 %v6454, 1.442695
    %v6458 = vpow.pop %v6457
    %v6459 = vadd.f32 %v6456, 1.0
    %v6460 = vadd.f32 %v6458, 1.0
    %v6461 = vrcp.pop %v6459
    %v6462 = vmul.f32 1.0, %v6461
    %v6463 = vrcp.pop %v6460
    %v6464 = vmul.f32 1.0, %v6463
    %v6465 = vmul.f32 %v6448, %v6243
    %v6466 = vmul.f32 %v6450, %v6244
    %v6467 = vmul.f32 %v6436, %v6451
    %v6468 = vmul.f32 %v6438, %v6452
    %v6469 = vadd.f32 %v6465, %v6467
    %v6470 = vadd.f32 %v6466, %v6468
    %v6471 = vtanh.pop %v6469
    %v6472 = vtanh.pop %v6470
    %v6473 = vmul.f32 %v6462, %v6471
    %v6474 = vmul.f32 %v6464, %v6472
    %v6475 = vsel %vm3920, %v6473, %v6241
    %v6476 = vsel %vm3920, %v6474, %v6242
    %v6477 = vld [vmem:[%s8] sm:$0xff]
    %v6478 = vld [vmem:[%s9] sm:$0xff]
    %v6479 = vld [vmem:[%s9 + $0x8] sm:$0xff]
    %v6480 = vld [vmem:[%s9 + $0x10] sm:$0xff]
    %v6481 = vld [vmem:[%s9 + $0x18] sm:$0xff]
    %v6482 = vld [vmem:[%s9 + $0x20] sm:$0xff]
    %v6483 = vld [vmem:[%s9 + $0x28] sm:$0xff]
    %v6484 = vld [vmem:[%s9 + $0x30] sm:$0xff]
    %v6485 = vld [vmem:[%s9 + $0x38] sm:$0xff]
    %v6486 = vld [vmem:[%s10] sm:$0x1]
    %v6488 = vlaneseq
    %v6489 = vshrl.u32 %v6488, 7
    %v6490 = vsub.s32 0, %v6489
    %v6491 = vrot.slane %v6486, %v6490
    %vm6493 = vcmask 523264
    %v6495 = vsel %vm6493, %v6477, 0
    %6497 = vmatprep.subr.mxu0 0.0
    %6498 = vmatpush1.msra.mxu0 %v6478
    %6499 = vmatprep.subr.mxu0 0.0
    %6500 = vmatpush1.msra.mxu0 %v6479
    %6501 = vmatprep.subr.mxu0 0.0
    %6502 = vmatpush1.msra.mxu0 %v6480
    %6503 = vmatprep.subr.mxu0 0.0
    %6504 = vmatpush1.msra.mxu0 %v6481
    %6505 = vmatprep.subr.mxu0 0.0
    %6506 = vmatpush1.msra.mxu0 %v6482
    %6507 = vmatprep.subr.mxu0 0.0
    %6508 = vmatpush1.msra.mxu0 %v6483
    %6509 = vmatprep.subr.mxu0 0.0
    %6510 = vmatpush1.msra.mxu0 %v6484
    %6511 = vmatprep.subr.mxu0 0.0
    %6512 = vmatpush1.msra.mxu0 %v6485
    %6513 = vmatprep.subr.mxu0 0.0
    %6514 = vmatpush1.msra.mxu0 0.0
    %6515 = vmatprep.subr.mxu0 0.0
    %6516 = vmatpush1.msra.mxu0 0.0
    %6517 = vmatprep.subr.mxu0 0.0
    %6518 = vmatpush1.msra.mxu0 0.0
    %6519 = vmatprep.subr.mxu0 0.0
    %6520 = vmatpush1.msra.mxu0 0.0
    %6521 = vmatprep.subr.mxu0 0.0
    %6522 = vmatpush1.msra.mxu0 0.0
    %6523 = vmatprep.subr.mxu0 0.0
    %6524 = vmatpush1.msra.mxu0 0.0
    %6525 = vmatprep.subr.mxu0 0.0
    %6526 = vmatpush1.msra.mxu0 0.0
    %6527 = vmatprep.subr.mxu0 0.0
    %6528 = vmatpush1.msra.mxu0 0.0
    %6529 = vmatprep.subr.mxu0 0.0
    %6530 = vmatpush1.msra.mxu0 0.0
    %6531 = vmatprep.subr.mxu0 0.0
    %6532 = vmatpush1.msra.mxu0 0.0
    %6533 = vmatprep.subr.mxu0 0.0
    %6534 = vmatpush1.msra.mxu0 0.0
    %6535 = vmatprep.subr.mxu0 0.0
    %6536 = vmatpush1.msra.mxu0 0.0
    %6537 = vmatprep.subr.mxu0 0.0
    %6538 = vmatpush1.msra.mxu0 0.0
    %6539 = vmatprep.subr.mxu0 0.0
    %6540 = vmatpush1.msra.mxu0 0.0
    %6541 = vmatprep.subr.mxu0 0.0
    %6542 = vmatpush1.msra.mxu0 0.0
    %6543 = vmatprep.subr.mxu0 0.0
    %6544 = vmatpush1.msra.mxu0 0.0
    %6545 = vmatprep.subr.mxu0 0.0
    %6546 = vmatpush1.msra.mxu0 0.0
    %6547 = vmatprep.subr.mxu0 0.0
    %6548 = vmatpush1.msra.mxu0 0.0
    %6549 = vmatprep.subr.mxu0 0.0
    %6550 = vmatpush1.msra.mxu0 0.0
    %6551 = vmatprep.subr.mxu0 0.0
    %6552 = vmatpush1.msra.mxu0 0.0
    %6553 = vmatprep.subr.mxu0 0.0
    %6554 = vmatpush1.msra.mxu0 0.0
    %6555 = vmatprep.subr.mxu0 0.0
    %6556 = vmatpush1.msra.mxu0 0.0
    %6557 = vmatprep.subr.mxu0 0.0
    %6558 = vmatpush1.msra.mxu0 0.0
    %6559 = vmatprep.subr.mxu0 0.0
    %6560 = vmatpush1.msra.mxu0 0.0
    %6561 = vmatprep.mubr.f32.mxu0 0.0
    %6562 = vmatmul.mubr.f32.gmra.mrb[0].mxu0 %v6495
    %v6563 = vpop.f32.mrb[0].mxu0
    %v6564 = vadd.f32 %v6491, %v6563
    %v6565 = vpop.f32.mrb[0].mxu0
    %6566 = vdwg.mxu0
    %v6567 = vmax.f32 %v6564, 0.0
    %v6568 = vmin.f32 %v6564, 0.0
    %v6569 = vmul.f32 %v6568, 1.442695
    %v6570 = vpow.pop %v6569
    %v6571 = vsub.f32 %v6570, 1.0
    %v6572 = vmul.f32 %v6571, 1.6732632
    %v6573 = vadd.f32 %v6567, %v6572
    %v6574 = vmul.f32 %v6573, 1.050701
    %v6575 = vld [vmem:[%s11] sm:$0xff]
    %v6576 = vld [vmem:[%s11 + $0x8] sm:$0xff]
    %v6577 = vld [vmem:[%s12] sm:$0x1]
    %v6579 = vlaneseq
    %v6580 = vshrl.u32 %v6579, 7
    %v6581 = vsub.s32 0, %v6580
    %v6582 = vrot.slane %v6577, %v6581
    %vm6584 = vcmask 130048
    %v6586 = vsel %vm6584, %v6574, 0
    %6588 = vmatprep.subr.mxu0 0.0
    %6589 = vmatpush1.msra.mxu0 %v6575
    %6590 = vmatprep.subr.mxu0 0.0
    %6591 = vmatpush1.msra.mxu0 %v6576
    %6592 = vmatprep.subr.mxu0 0.0
    %6593 = vmatpush1.msra.mxu0 0.0
    %6594 = vmatprep.subr.mxu0 0.0
    %6595 = vmatpush1.msra.mxu0 0.0
    %6596 = vmatprep.subr.mxu0 0.0
    %6597 = vmatpush1.msra.mxu0 0.0
    %6598 = vmatprep.subr.mxu0 0.0
    %6599 = vmatpush1.msra.mxu0 0.0
    %6600 = vmatprep.subr.mxu0 0.0
    %6601 = vmatpush1.msra.mxu0 0.0
    %6602 = vmatprep.subr.mxu0 0.0
    %6603 = vmatpush1.msra.mxu0 0.0
    %6604 = vmatprep.subr.mxu0 0.0
    %6605 = vmatpush1.msra.mxu0 0.0
    %6606 = vmatprep.subr.mxu0 0.0
    %6607 = vmatpush1.msra.mxu0 0.0
    %6608 = vmatprep.subr.mxu0 0.0
    %6609 = vmatpush1.msra.mxu0 0.0
    %6610 = vmatprep.subr.mxu0 0.0
    %6611 = vmatpush1.msra.mxu0 0.0
    %6612 = vmatprep.subr.mxu0 0.0
    %6613 = vmatpush1.msra.mxu0 0.0
    %6614 = vmatprep.subr.mxu0 0.0
    %6615 = vmatpush1.msra.mxu0 0.0
    %6616 = vmatprep.subr.mxu0 0.0
    %6617 = vmatpush1.msra.mxu0 0.0
    %6618 = vmatprep.subr.mxu0 0.0
    %6619 = vmatpush1.msra.mxu0 0.0
    %6620 = vmatprep.subr.mxu0 0.0
    %6621 = vmatpush1.msra.mxu0 0.0
    %6622 = vmatprep.subr.mxu0 0.0
    %6623 = vmatpush1.msra.mxu0 0.0
    %6624 = vmatprep.subr.mxu0 0.0
    %6625 = vmatpush1.msra.mxu0 0.0
    %6626 = vmatprep.subr.mxu0 0.0
    %6627 = vmatpush1.msra.mxu0 0.0
    %6628 = vmatprep.subr.mxu0 0.0
    %6629 = vmatpush1.msra.mxu0 0.0
    %6630 = vmatprep.subr.mxu0 0.0
    %6631 = vmatpush1.msra.mxu0 0.0
    %6632 = vmatprep.subr.mxu0 0.0
    %6633 = vmatpush1.msra.mxu0 0.0
    %6634 = vmatprep.subr.mxu0 0.0
    %6635 = vmatpush1.msra.mxu0 0.0
    %6636 = vmatprep.subr.mxu0 0.0
    %6637 = vmatpush1.msra.mxu0 0.0
    %6638 = vmatprep.subr.mxu0 0.0
    %6639 = vmatpush1.msra.mxu0 0.0
    %6640 = vmatprep.subr.mxu0 0.0
    %6641 = vmatpush1.msra.mxu0 0.0
    %6642 = vmatprep.subr.mxu0 0.0
    %6643 = vmatpush1.msra.mxu0 0.0
    %6644 = vmatprep.subr.mxu0 0.0
    %6645 = vmatpush1.msra.mxu0 0.0
    %6646 = vmatprep.subr.mxu0 0.0
    %6647 = vmatpush1.msra.mxu0 0.0
    %6648 = vmatprep.subr.mxu0 0.0
    %6649 = vmatpush1.msra.mxu0 0.0
    %6650 = vmatprep.subr.mxu0 0.0
    %6651 = vmatpush1.msra.mxu0 0.0
    %6652 = vmatprep.mubr.f32.mxu0 0.0
    %6653 = vmatmul.mubr.f32.gmra.mrb[0].mxu0 %v6586
    %v6654 = vpop.f32.mrb[0].mxu0
    %v6655 = vadd.f32 %v6582, %v6654
    %v6656 = vpop.f32.mrb[0].mxu0
    %6657 = vdwg.mxu0
    %v6658 = vmax.f32 %v6655, 0.0
    %v6659 = vmin.f32 %v6655, 0.0
    %v6660 = vmul.f32 %v6659, 1.442695
    %v6661 = vpow.pop %v6660
    %v6662 = vsub.f32 %v6661, 1.0
    %v6663 = vmul.f32 %v6662, 1.6732632
    %v6664 = vadd.f32 %v6658, %v6663
    %v6665 = vmul.f32 %v6664, 1.050701
    %v6666 = vld [vmem:[%s13] sm:$0xff]
    %v6667 = vld [vmem:[%s14] sm:$0x1]
    %v6669 = vlaneseq
    %v6670 = vshrl.u32 %v6669, 7
    %v6671 = vsub.s32 0, %v6670
    %v6672 = vrot.slane %v6667, %v6671
    %vm6674 = vcmask 64512
    %v6676 = vsel %vm6674, %v6665, 0
    %6678 = vmatprep.subr.mxu0 0.0
    %6679 = vmatpush1.msra.mxu0 %v6666
    %6680 = vmatprep.subr.mxu0 0.0
    %6681 = vmatpush1.msra.mxu0 0.0
    %6682 = vmatprep.subr.mxu0 0.0
    %6683 = vmatpush1.msra.mxu0 0.0
    %6684 = vmatprep.subr.mxu0 0.0
    %6685 = vmatpush1.msra.mxu0 0.0
    %6686 = vmatprep.subr.mxu0 0.0
    %6687 = vmatpush1.msra.mxu0 0.0
    %6688 = vmatprep.subr.mxu0 0.0
    %6689 = vmatpush1.msra.mxu0 0.0
    %6690 = vmatprep.subr.mxu0 0.0
    %6691 = vmatpush1.msra.mxu0 0.0
    %6692 = vmatprep.subr.mxu0 0.0
    %6693 = vmatpush1.msra.mxu0 0.0
    %6694 = vmatprep.subr.mxu0 0.0
    %6695 = vmatpush1.msra.mxu0 0.0
    %6696 = vmatprep.subr.mxu0 0.0
    %6697 = vmatpush1.msra.mxu0 0.0
    %6698 = vmatprep.subr.mxu0 0.0
    %6699 = vmatpush1.msra.mxu0 0.0
    %6700 = vmatprep.subr.mxu0 0.0
    %6701 = vmatpush1.msra.mxu0 0.0
    %6702 = vmatprep.subr.mxu0 0.0
    %6703 = vmatpush1.msra.mxu0 0.0
    %6704 = vmatprep.subr.mxu0 0.0
    %6705 = vmatpush1.msra.mxu0 0.0
    %6706 = vmatprep.subr.mxu0 0.0
    %6707 = vmatpush1.msra.mxu0 0.0
    %6708 = vmatprep.subr.mxu0 0.0
    %6709 = vmatpush1.msra.mxu0 0.0
    %6710 = vmatprep.subr.mxu0 0.0
    %6711 = vmatpush1.msra.mxu0 0.0
    %6712 = vmatprep.subr.mxu0 0.0
    %6713 = vmatpush1.msra.mxu0 0.0
    %6714 = vmatprep.subr.mxu0 0.0
    %6715 = vmatpush1.msra.mxu0 0.0
    %6716 = vmatprep.subr.mxu0 0.0
    %6717 = vmatpush1.msra.mxu0 0.0
    %6718 = vmatprep.subr.mxu0 0.0
    %6719 = vmatpush1.msra.mxu0 0.0
    %6720 = vmatprep.subr.mxu0 0.0
    %6721 = vmatpush1.msra.mxu0 0.0
    %6722 = vmatprep.subr.mxu0 0.0
    %6723 = vmatpush1.msra.mxu0 0.0
    %6724 = vmatprep.subr.mxu0 0.0
    %6725 = vmatpush1.msra.mxu0 0.0
    %6726 = vmatprep.subr.mxu0 0.0
    %6727 = vmatpush1.msra.mxu0 0.0
    %6728 = vmatprep.subr.mxu0 0.0
    %6729 = vmatpush1.msra.mxu0 0.0
    %6730 = vmatprep.subr.mxu0 0.0
    %6731 = vmatpush1.msra.mxu0 0.0
    %6732 = vmatprep.subr.mxu0 0.0
    %6733 = vmatpush1.msra.mxu0 0.0
    %6734 = vmatprep.subr.mxu0 0.0
    %6735 = vmatpush1.msra.mxu0 0.0
    %6736 = vmatprep.subr.mxu0 0.0
    %6737 = vmatpush1.msra.mxu0 0.0
    %6738 = vmatprep.subr.mxu0 0.0
    %6739 = vmatpush1.msra.mxu0 0.0
    %6740 = vmatprep.subr.mxu0 0.0
    %6741 = vmatpush1.msra.mxu0 0.0
    %6742 = vmatprep.mubr.f32.mxu0 0.0
    %6743 = vmatmul.mubr.f32.gmra.mrb[0].mxu0 %v6676
    %v6744 = vpop.f32.mrb[0].mxu0
    %v6745 = vadd.f32 %v6672, %v6744
    %v6746 = vpop.f32.mrb[0].mxu0
    %6747 = vdwg.mxu0
    %v6748 = vmax.f32 %v6745, 0.0
    %v6749 = vmin.f32 %v6745, 0.0
    %v6750 = vmul.f32 %v6749, 1.442695
    %v6751 = vpow.pop %v6750
    %v6752 = vsub.f32 %v6751, 1.0
    %v6753 = vmul.f32 %v6752, 1.6732632
    %v6754 = vadd.f32 %v6748, %v6753
    %v6755 = vmul.f32 %v6754, 1.050701
    %s6756 = smul.u32 %s3925, 2
    %s6757 = sshll.u32 %s6756, 4
    %6758 = dma.done %s159, %s6757
    %v6759 = vpack.c.bf16 %v6475, %v6475
    %v6760 = vpack.c.bf16 %v6476, %v6476
    %v6761 = vld [vmem:[#allocation4] sm:$0xff]
    %v6762 = vld [vmem:[#allocation4 + $0x8] sm:$0xff]
    %v6763 = vld [vmem:[#allocation4 + $0x10] sm:$0xff]
    %v6764 = vld [vmem:[#allocation4 + $0x18] sm:$0xff]
    %v6765 = vld [vmem:[#allocation4 + $0x20] sm:$0xff]
    %v6766 = vld [vmem:[#allocation4 + $0x28] sm:$0xff]
    %v6767 = vld [vmem:[#allocation4 + $0x30] sm:$0xff]
    %v6768 = vld [vmem:[#allocation4 + $0x38] sm:$0xff]
    %v6769 = vld [vmem:[#allocation4 + $0x40] sm:$0xff]
    %v6770 = vld [vmem:[#allocation4 + $0x48] sm:$0xff]
    %v6771 = vld [vmem:[#allocation4 + $0x50] sm:$0xff]
    %v6772 = vld [vmem:[#allocation4 + $0x58] sm:$0xff]
    %v6773 = vld [vmem:[#allocation4 + $0x60] sm:$0xff]
    %v6774 = vld [vmem:[#allocation4 + $0x68] sm:$0xff]
    %v6775 = vld [vmem:[#allocation4 + $0x70] sm:$0xff]
    %v6776 = vld [vmem:[#allocation4 + $0x78] sm:$0xff]
    %v6777 = vld [vmem:[#allocation4 + $0x80] sm:$0xff]
    %v6778 = vld [vmem:[#allocation4 + $0x88] sm:$0xff]
    %v6779 = vld [vmem:[#allocation4 + $0x90] sm:$0xff]
    %v6780 = vld [vmem:[#allocation4 + $0x98] sm:$0xff]
    %v6781 = vld [vmem:[#allocation4 + $0xa0] sm:$0xff]
    %v6782 = vld [vmem:[#allocation4 + $0xa8] sm:$0xff]
    %v6783 = vld [vmem:[#allocation4 + $0xb0] sm:$0xff]
    %v6784 = vld [vmem:[#allocation4 + $0xb8] sm:$0xff]
    %v6785 = vld [vmem:[#allocation4 + $0xc0] sm:$0xff]
    %v6786 = vld [vmem:[#allocation4 + $0xc8] sm:$0xff]
    %v6787 = vld [vmem:[#allocation4 + $0xd0] sm:$0xff]
    %v6788 = vld [vmem:[#allocation4 + $0xd8] sm:$0xff]
    %v6789 = vld [vmem:[#allocation4 + $0xe0] sm:$0xff]
    %v6790 = vld [vmem:[#allocation4 + $0xe8] sm:$0xff]
    %v6791 = vld [vmem:[#allocation4 + $0xf0] sm:$0xff]
    %v6792 = vld [vmem:[#allocation4 + $0xf8] sm:$0xff]
    %v6793 = vld [vmem:[%s16] sm:$0xff]
    %v6795 = vcombine.high %v6793, %v6793
    %vm6796 = vcmask 31744
    %v6798 = vsel %vm6796, %v6755, 0
    %vm6800 = vcmask 1043456
    %v6801 = vsel %vm6800, %v6793, 0
    %v6803 = vsel %vm6800, %v6795, 0
    %6805 = vmatprep.subr.mxu0 %v6803
    %6806 = vmatpush1.msra.mxu0 %v6801
    %6807 = vmatprep.subr.mxu0 0.0
    %6808 = vmatpush1.msra.mxu0 0.0
    %6809 = vmatprep.subr.mxu0 0.0
    %6810 = vmatpush1.msra.mxu0 0.0
    %6811 = vmatprep.subr.mxu0 0.0
    %6812 = vmatpush1.msra.mxu0 0.0
    %6813 = vmatprep.subr.mxu0 0.0
    %6814 = vmatpush1.msra.mxu0 0.0
    %6815 = vmatprep.subr.mxu0 0.0
    %6816 = vmatpush1.msra.mxu0 0.0
    %6817 = vmatprep.subr.mxu0 0.0
    %6818 = vmatpush1.msra.mxu0 0.0
    %6819 = vmatprep.subr.mxu0 0.0
    %6820 = vmatpush1.msra.mxu0 0.0
    %6821 = vmatprep.subr.mxu0 0.0
    %6822 = vmatpush1.msra.mxu0 0.0
    %6823 = vmatprep.subr.mxu0 0.0
    %6824 = vmatpush1.msra.mxu0 0.0
    %6825 = vmatprep.subr.mxu0 0.0
    %6826 = vmatpush1.msra.mxu0 0.0
    %6827 = vmatprep.subr.mxu0 0.0
    %6828 = vmatpush1.msra.mxu0 0.0
    %6829 = vmatprep.subr.mxu0 0.0
    %6830 = vmatpush1.msra.mxu0 0.0
    %6831 = vmatprep.subr.mxu0 0.0
    %6832 = vmatpush1.msra.mxu0 0.0
    %6833 = vmatprep.subr.mxu0 0.0
    %6834 = vmatpush1.msra.mxu0 0.0
    %6835 = vmatprep.subr.mxu0 0.0
    %6836 = vmatpush1.msra.mxu0 0.0
    %6837 = vmatprep.subr.mxu0 0.0
    %6838 = vmatpush1.msra.mxu0 0.0
    %6839 = vmatprep.subr.mxu0 0.0
    %6840 = vmatpush1.msra.mxu0 0.0
    %6841 = vmatprep.subr.mxu0 0.0
    %6842 = vmatpush1.msra.mxu0 0.0
    %6843 = vmatprep.subr.mxu0 0.0
    %6844 = vmatpush1.msra.mxu0 0.0
    %6845 = vmatprep.subr.mxu0 0.0
    %6846 = vmatpush1.msra.mxu0 0.0
    %6847 = vmatprep.subr.mxu0 0.0
    %6848 = vmatpush1.msra.mxu0 0.0
    %6849 = vmatprep.subr.mxu0 0.0
    %6850 = vmatpush1.msra.mxu0 0.0
    %6851 = vmatprep.subr.mxu0 0.0
    %6852 = vmatpush1.msra.mxu0 0.0
    %6853 = vmatprep.subr.mxu0 0.0
    %6854 = vmatpush1.msra.mxu0 0.0
    %6855 = vmatprep.subr.mxu0 0.0
    %6856 = vmatpush1.msra.mxu0 0.0
    %6857 = vmatprep.subr.mxu0 0.0
    %6858 = vmatpush1.msra.mxu0 0.0
    %6859 = vmatprep.subr.mxu0 0.0
    %6860 = vmatpush1.msra.mxu0 0.0
    %6861 = vmatprep.subr.mxu0 0.0
    %6862 = vmatpush1.msra.mxu0 0.0
    %6863 = vmatprep.subr.mxu0 0.0
    %6864 = vmatpush1.msra.mxu0 0.0
    %6865 = vmatprep.subr.mxu0 0.0
    %6866 = vmatpush1.msra.mxu0 0.0
    %6867 = vmatprep.subr.mxu0 0.0
    %6868 = vmatpush1.msra.mxu0 0.0
    %6869 = vmatprep.mubr.f32.mxu0 0.0
    %6870 = vmatmul.mubr.f32.gmra.mrb[0].mxu0 %v6798
    %v6871 = vpop.f32.mrb[0].mxu0
    %v6872 = vadd.f32 0.0, %v6871
    %v6873 = vpop.f32.mrb[0].mxu0
    %v6874 = vadd.f32 0.0, %v6873
    %6875 = vdwg.mxu0
    %6876 = vmatprep.subr.bf16.mxu0 %v6762
    %6877 = vmatpush1.bf16.msra.mxu0 %v6761
    %6878 = vmatprep.subr.bf16.mxu0 %v6764
    %6879 = vmatpush1.bf16.msra.mxu0 %v6763
    %6880 = vmatprep.subr.bf16.mxu0 %v6766
    %6881 = vmatpush1.bf16.msra.mxu0 %v6765
    %6882 = vmatprep.subr.bf16.mxu0 %v6768
    %6883 = vmatpush1.bf16.msra.mxu0 %v6767
    %6884 = vmatprep.subr.bf16.mxu0 %v6770
    %6885 = vmatpush1.bf16.msra.mxu0 %v6769
    %6886 = vmatprep.subr.bf16.mxu0 %v6772
    %6887 = vmatpush1.bf16.msra.mxu0 %v6771
    %6888 = vmatprep.subr.bf16.mxu0 %v6774
    %6889 = vmatpush1.bf16.msra.mxu0 %v6773
    %6890 = vmatprep.subr.bf16.mxu0 %v6776
    %6891 = vmatpush1.bf16.msra.mxu0 %v6775
    %6892 = vmatprep.subr.bf16.mxu0 %v6778
    %6893 = vmatpush1.bf16.msra.mxu0 %v6777
    %6894 = vmatprep.subr.bf16.mxu0 %v6780
    %6895 = vmatpush1.bf16.msra.mxu0 %v6779
    %6896 = vmatprep.subr.bf16.mxu0 %v6782
    %6897 = vmatpush1.bf16.msra.mxu0 %v6781
    %6898 = vmatprep.subr.bf16.mxu0 %v6784
    %6899 = vmatpush1.bf16.msra.mxu0 %v6783
    %6900 = vmatprep.subr.bf16.mxu0 %v6786
    %6901 = vmatpush1.bf16.msra.mxu0 %v6785
    %6902 = vmatprep.subr.bf16.mxu0 %v6788
    %6903 = vmatpush1.bf16.msra.mxu0 %v6787
    %6904 = vmatprep.subr.bf16.mxu0 %v6790
    %6905 = vmatpush1.bf16.msra.mxu0 %v6789
    %6906 = vmatprep.subr.bf16.mxu0 %v6792
    %6907 = vmatpush1.bf16.msra.mxu0 %v6791
    %6908 = vmatprep.mubr.bf16.mxu0 %v6760
    %6909 = vmatmul.mubr.bf16.gmra.mrb[0].mxu0 %v6759
    %v6910 = vpop.f32.mrb[0].mxu0
    %v6911 = vadd.f32 %v6872, %v6910
    %v6912 = vpop.f32.mrb[0].mxu0
    %v6913 = vadd.f32 %v6874, %v6912
    %v6914 = vpop.f32.mrb[0].mxu0
    %v6915 = vpop.f32.mrb[0].mxu0
    %6916 = vdwg.mxu0
    %v6917 = vld [vmem:[%s17] sm:$0x3]
    %v6919 = vlaneseq
    %v6920 = vshrl.u32 %v6919, 7
    %v6921 = vsub.s32 0, %v6920
    %v6922 = vrot.slane %v6917, %v6921
    %v6923 = vlaneseq
    %v6924 = vshrl.u32 %v6923, 7
    %v6925 = vsub.s32 1, %v6924
    %v6926 = vrot.slane %v6917, %v6925
    %v6929 = vadd.f32 %v6911, %v6922
    %v6930 = vadd.f32 %v6913, %v6926
    %v6931 = vmax.f32 %v6929, 0.0
    %v6932 = vmax.f32 %v6930, 0.0
    %v6933 = vmin.f32 %v6929, 0.0
    %v6934 = vmin.f32 %v6930, 0.0
    %v6935 = vmul.f32 %v6933, 1.442695
    %v6936 = vpow.pop %v6935
    %v6937 = vmul.f32 %v6934, 1.442695
    %v6938 = vpow.pop %v6937
    %v6939 = vsub.f32 %v6936, 1.0
    %v6940 = vsub.f32 %v6938, 1.0
    %v6941 = vmul.f32 %v6939, 1.6732632
    %v6942 = vmul.f32 %v6940, 1.6732632
    %v6943 = vadd.f32 %v6931, %v6941
    %v6944 = vadd.f32 %v6932, %v6942
    %v6945 = vmul.f32 %v6943, 1.050701
    %v6946 = vmul.f32 %v6944, 1.050701
    %v6947 = vld [vmem:[%s18] sm:$0xff]
    %v6948 = vld [vmem:[%s18 + $0x8] sm:$0xff]
    %v6949 = vld [vmem:[%s18 + $0x10] sm:$0xff]
    %v6950 = vld [vmem:[%s18 + $0x18] sm:$0xff]
    %v6951 = vld [vmem:[%s18 + $0x20] sm:$0xff]
    %v6952 = vld [vmem:[%s18 + $0x28] sm:$0xff]
    %v6953 = vld [vmem:[%s18 + $0x30] sm:$0xff]
    %v6954 = vld [vmem:[%s18 + $0x38] sm:$0xff]
    %v6955 = vld [vmem:[%s18 + $0x40] sm:$0xff]
    %v6956 = vld [vmem:[%s18 + $0x48] sm:$0xff]
    %v6957 = vld [vmem:[%s18 + $0x50] sm:$0xff]
    %v6958 = vld [vmem:[%s18 + $0x58] sm:$0xff]
    %v6959 = vld [vmem:[%s18 + $0x60] sm:$0xff]
    %v6960 = vld [vmem:[%s18 + $0x68] sm:$0xff]
    %v6961 = vld [vmem:[%s18 + $0x70] sm:$0xff]
    %v6962 = vld [vmem:[%s18 + $0x78] sm:$0xff]
    %v6963 = vld [vmem:[%s18 + $0x80] sm:$0xff]
    %v6964 = vld [vmem:[%s18 + $0x88] sm:$0xff]
    %v6965 = vld [vmem:[%s18 + $0x90] sm:$0xff]
    %v6966 = vld [vmem:[%s18 + $0x98] sm:$0xff]
    %v6967 = vld [vmem:[%s18 + $0xa0] sm:$0xff]
    %v6968 = vld [vmem:[%s18 + $0xa8] sm:$0xff]
    %v6969 = vld [vmem:[%s18 + $0xb0] sm:$0xff]
    %v6970 = vld [vmem:[%s18 + $0xb8] sm:$0xff]
    %v6971 = vld [vmem:[%s18 + $0xc0] sm:$0xff]
    %v6972 = vld [vmem:[%s18 + $0xc8] sm:$0xff]
    %v6973 = vld [vmem:[%s18 + $0xd0] sm:$0xff]
    %v6974 = vld [vmem:[%s18 + $0xd8] sm:$0xff]
    %v6975 = vld [vmem:[%s18 + $0xe0] sm:$0xff]
    %v6976 = vld [vmem:[%s18 + $0xe8] sm:$0xff]
    %v6977 = vld [vmem:[%s18 + $0xf0] sm:$0xff]
    %v6978 = vld [vmem:[%s18 + $0xf8] sm:$0xff]
    %v6979 = vld [vmem:[%s19] sm:$0x1]
    %v6981 = vlaneseq
    %v6982 = vshrl.u32 %v6981, 7
    %v6983 = vsub.s32 0, %v6982
    %v6984 = vrot.slane %v6979, %v6983
    %6986 = vmatprep.subr.mxu0 0.0
    %6987 = vmatpush1.msra.mxu0 %v6947
    %6988 = vmatprep.subr.mxu0 0.0
    %6989 = vmatpush1.msra.mxu0 %v6948
    %6990 = vmatprep.subr.mxu0 0.0
    %6991 = vmatpush1.msra.mxu0 %v6949
    %6992 = vmatprep.subr.mxu0 0.0
    %6993 = vmatpush1.msra.mxu0 %v6950
    %6994 = vmatprep.subr.mxu0 0.0
    %6995 = vmatpush1.msra.mxu0 %v6951
    %6996 = vmatprep.subr.mxu0 0.0
    %6997 = vmatpush1.msra.mxu0 %v6952
    %6998 = vmatprep.subr.mxu0 0.0
    %6999 = vmatpush1.msra.mxu0 %v6953
    %7000 = vmatprep.subr.mxu0 0.0
    %7001 = vmatpush1.msra.mxu0 %v6954
    %7002 = vmatprep.subr.mxu0 0.0
    %7003 = vmatpush1.msra.mxu0 %v6955
    %7004 = vmatprep.subr.mxu0 0.0
    %7005 = vmatpush1.msra.mxu0 %v6956
    %7006 = vmatprep.subr.mxu0 0.0
    %7007 = vmatpush1.msra.mxu0 %v6957
    %7008 = vmatprep.subr.mxu0 0.0
    %7009 = vmatpush1.msra.mxu0 %v6958
    %7010 = vmatprep.subr.mxu0 0.0
    %7011 = vmatpush1.msra.mxu0 %v6959
    %7012 = vmatprep.subr.mxu0 0.0
    %7013 = vmatpush1.msra.mxu0 %v6960
    %7014 = vmatprep.subr.mxu0 0.0
    %7015 = vmatpush1.msra.mxu0 %v6961
    %7016 = vmatprep.subr.mxu0 0.0
    %7017 = vmatpush1.msra.mxu0 %v6962
    %7018 = vmatprep.subr.mxu0 0.0
    %7019 = vmatpush1.msra.mxu0 %v6963
    %7020 = vmatprep.subr.mxu0 0.0
    %7021 = vmatpush1.msra.mxu0 %v6964
    %7022 = vmatprep.subr.mxu0 0.0
    %7023 = vmatpush1.msra.mxu0 %v6965
    %7024 = vmatprep.subr.mxu0 0.0
    %7025 = vmatpush1.msra.mxu0 %v6966
    %7026 = vmatprep.subr.mxu0 0.0
    %7027 = vmatpush1.msra.mxu0 %v6967
    %7028 = vmatprep.subr.mxu0 0.0
    %7029 = vmatpush1.msra.mxu0 %v6968
    %7030 = vmatprep.subr.mxu0 0.0
    %7031 = vmatpush1.msra.mxu0 %v6969
    %7032 = vmatprep.subr.mxu0 0.0
    %7033 = vmatpush1.msra.mxu0 %v6970
    %7034 = vmatprep.subr.mxu0 0.0
    %7035 = vmatpush1.msra.mxu0 %v6971
    %7036 = vmatprep.subr.mxu0 0.0
    %7037 = vmatpush1.msra.mxu0 %v6972
    %7038 = vmatprep.subr.mxu0 0.0
    %7039 = vmatpush1.msra.mxu0 %v6973
    %7040 = vmatprep.subr.mxu0 0.0
    %7041 = vmatpush1.msra.mxu0 %v6974
    %7042 = vmatprep.subr.mxu0 0.0
    %7043 = vmatpush1.msra.mxu0 %v6975
    %7044 = vmatprep.subr.mxu0 0.0
    %7045 = vmatpush1.msra.mxu0 %v6976
    %7046 = vmatprep.subr.mxu0 0.0
    %7047 = vmatpush1.msra.mxu0 %v6977
    %7048 = vmatprep.subr.mxu0 0.0
    %7049 = vmatpush1.msra.mxu0 %v6978
    %7050 = vmatprep.mubr.f32.mxu0 %v6946
    %7051 = vmatmul.mubr.f32.gmra.mrb[0].mxu0 %v6945
    %v7052 = vpop.f32.mrb[0].mxu0
    %v7053 = vadd.f32 %v6984, %v7052
    %v7054 = vpop.f32.mrb[0].mxu0
    %7055 = vdwg.mxu0
    %vm7056 = vcmask 80896
    %v7057 = vsel %vm7056, %v7053, -inf
    %7058 = vmax.xlane.f32.xlu0 %v7057
    %v7059 = vpop.xlane.xlu0 %7058
    %v7060 = vsub.f32 %v7053, %v7059
    %v7061 = vmul.f32 %v7060, 1.442695
    %v7062 = vpow.pop %v7061
    %v7063 = vsel %vm7056, %v7062, 0.0
    %7064 = vadd.xlane.f32.xlu0 %v7063
    %v7065 = vpop.xlane.xlu0 %7064
    %v7066 = vlog2.pop %v7065
    %v7067 = vmul.f32 %v7066, 0.6931472
    %v7068 = vadd.f32 %v7059, %v7067
    %v7069 = vsub.f32 %v7053, %v7068
    %7070 = vst.msk [vmem:[#allocation13] sm:$0xff] %vm7056, %v7069
    // Predicated region
    $region115: #{tpu_custom_call.1} parent=1 // pred_check
      _
    $region116: #{tpu_custom_call.1} parent=1 // pred_check_branch
      %7072 = sbr.rel (0) target = $region118
    $region117: #{tpu_custom_call.1} parent=1 // pred_region
      %s7074 = ssub.s32 128, 128
      %7075 = vsyncadd [#allocation10], %s7074
      %s7077 = sshll.u32 [#allocation13], 4
      %s7078 = int_to_ptr.vmem [resolvable:$true] %s7077
      %7080 = dma.vmem_to_hbm [thread:$0]  %s7078, 128, %s20, [#allocation10]
    $region118: #{tpu_custom_call.1} parent=1 // pred_fallthru
      _
    // Predicated region
    $region119: #{tpu_custom_call.1} parent=1 // pred_check
      _
    $region120: #{tpu_custom_call.1} parent=1 // pred_check_branch
      %7082 = sbr.rel (0) target = $region122
    $region121: #{tpu_custom_call.1} parent=1 // pred_region
      %7083 = dma.done [#allocation10], 128
    $region122: #{tpu_custom_call.1} parent=1 // pred_fallthru
      _
    %7084 = vsyncpa [#allocation9], 1
    %7085 = vsyncpa [#allocation12], 1
    %7086 = vsyncpa [#allocation10], 1
  %7087 = vsyncmov [#allocation7]
  %s7088 = vpop.sfrf %7087
  %p7089 = scmp.eq.s32.totalorder %s7088, 0
  %p7090 = pneg %p7089
  %7092 = shalt.err (%p7090)
  %s7093 = scalar_lea.sflag [#allocation7], 1
  %7094 = vsyncmov %s7093
  %s7095 = vpop.sfrf %7094
  %p7096 = scmp.eq.s32.totalorder %s7095, 0
  %p7097 = pneg %p7096
  %7099 = shalt.err (%p7097)
  %s7100 = scalar_lea.sflag [#allocation7], 2
  %7101 = vsyncmov %s7100
  %s7102 = vpop.sfrf %7101
  %p7103 = scmp.eq.s32.totalorder %s7102, 0
  %p7104 = pneg %p7103
  %7106 = shalt.err (%p7104)

</llo_original>
